<compile_context>
chip_gen: v6e
topology: v6e:2x2x1
jax: 0.10.0
libtpu: 0.0.40
codegen_flags: <defaults>
</compile_context>

<pallas_src>
import math
import functools

import jax
import jax.numpy as jnp
from jax import lax
from jax.experimental import pallas as pl
from jax.experimental.pallas import tpu as pltpu


_SQRT_2_OVER_PI = math.sqrt(2.0 / math.pi)


def _gelu(x):
    # PreSumm gelu: 0.5*x*(1+tanh(sqrt(2/pi)*(x+0.044715*x^3)))
    return 0.5 * x * (1.0 + jnp.tanh(_SQRT_2_OVER_PI * (x + 0.044715 * x * x * x)))


def _decoder_layer_kernel(heads,
                          inp_ref, ent_ref,
                          wq_ref, wk_ref, wv_ref,
                          bq_ref, bk_ref, bv_ref,
                          wo_ref, bo_ref,
                          ln_g_ref, ln_b_ref,
                          w1_ref, b1_ref, w2_ref, b2_ref,
                          out_ref):
    x = inp_ref[...]          # (Bt, Lq, D) bf16  -- query / self-attn stream ("inputs")
    e = ent_ref[...]          # (Bt, Lk, D) bf16  -- memory stream ("ent_enc")
    Bt, Lq, D = x.shape
    H = heads
    dph = D // H

    wq = wq_ref[...]; wk = wk_ref[...]; wv = wv_ref[...]      # (D, D) bf16 (scale in wq)
    bq = bq_ref[...]; bk = bk_ref[...]; bv = bv_ref[...]      # (1, D) f32
    wo = wo_ref[...]; bo = bo_ref[...]                        # (D, D) bf16 / (1, D) f32
    g_ln = ln_g_ref[...]; b_ln = ln_b_ref[...]                # (1, D) f32

    def mha(kv, q):
        Lq_ = q.shape[1]
        Lkv = kv.shape[1]
        q2 = q.reshape(Bt * Lq_, D)
        kv2 = kv.reshape(Bt * Lkv, D)
        # Full-D projections: (M, D) @ (D, D) keeps the MXU contraction & output width at D.
        qh = (jnp.dot(q2, wq, preferred_element_type=jnp.float32) + bq).astype(jnp.bfloat16)
        kh = (jnp.dot(kv2, wk, preferred_element_type=jnp.float32) + bk).astype(jnp.bfloat16)
        vh = (jnp.dot(kv2, wv, preferred_element_type=jnp.float32) + bv).astype(jnp.bfloat16)
        qh = qh.reshape(Bt, Lq_, D)
        kh = kh.reshape(Bt, Lkv, D)
        vh = vh.reshape(Bt, Lkv, D)

        # Per-head attention (static unroll over H; K=dph on score/ctx is inherent to MHA).
        # Softmax statistics stay in f32; denominator uses the EUP approx reciprocal.
        # TODO(synk): mask support + lane-dense (multiple-of-128) KV tiling for long Lk.
        ctx_heads = []
        for h in range(H):
            lo = h * dph
            qh_h = qh[:, :, lo:lo + dph]
            kh_h = kh[:, :, lo:lo + dph]
            vh_h = vh[:, :, lo:lo + dph]
            s = jnp.einsum('bqe,bke->bqk', qh_h, kh_h,
                           preferred_element_type=jnp.float32)          # (Bt, Lq_, Lkv) f32
            s = s - jnp.max(s, axis=-1, keepdims=True)
            p = jnp.exp(s)
            attn = p * pl.reciprocal(jnp.sum(p, axis=-1, keepdims=True), approx=True)
            ctx_heads.append(
                jnp.einsum('bqk,bke->bqe', attn.astype(jnp.bfloat16), vh_h,
                           preferred_element_type=jnp.float32))         # (Bt, Lq_, dph) f32

        # Merge heads along lanes (standard head-major column order), then one full-D
        # output projection instead of H small-K matmuls + a head-sum.
        ctx = jnp.concatenate(ctx_heads, axis=-1)                        # (Bt, Lq_, D) f32
        ctx2 = ctx.astype(jnp.bfloat16).reshape(Bt * Lq_, D)
        o = jnp.dot(ctx2, wo, preferred_element_type=jnp.float32) + bo   # (Bt*Lq_, D) f32
        return o.reshape(Bt, Lq_, D)

    # 1) self-attention: self_attn(inputs, inputs, inputs)
    context = mha(x, x)
    # 2) context attention with the SAME module/weights: self_attn(ent_enc, ent_enc, context)
    dec = mha(e, context.astype(jnp.bfloat16))

    # PositionwiseFeedForward: x + W2(gelu(W1(LayerNorm(x)))), eps=1e-6, dropout=identity
    mu = jnp.mean(dec, axis=-1, keepdims=True)
    var = jnp.mean((dec - mu) ** 2, axis=-1, keepdims=True)
    normed = (dec - mu) * lax.rsqrt(var + 1e-6) * g_ln + b_ln            # f32 LN stats
    n2 = normed.astype(jnp.bfloat16).reshape(Bt * Lq, D)
    inter = _gelu(jnp.dot(n2, w1_ref[...], preferred_element_type=jnp.float32) + b1_ref[...])
    ffn = jnp.dot(inter.astype(jnp.bfloat16), w2_ref[...],
                  preferred_element_type=jnp.float32) + b2_ref[...]
    out_ref[...] = (ffn.reshape(Bt, Lq, D) + dec).astype(out_ref.dtype)


def _prepare_params(params, heads):
    """Cast matrices to bf16; fold 1/sqrt(dph) into the q projection (free at prep time)."""
    D = params["wq"].shape[0]
    dph = D // heads
    scale = 1.0 / math.sqrt(dph)
    return [
        (params["wq"] * scale).astype(jnp.bfloat16),   # scale folded into wq
        params["wk"].astype(jnp.bfloat16),
        params["wv"].astype(jnp.bfloat16),
        (params["bq"] * scale).astype(jnp.float32),    # ... and into bq
        params["bk"].astype(jnp.float32),
        params["bv"].astype(jnp.float32),
        params["wo"].astype(jnp.bfloat16),
        params["bo"].astype(jnp.float32),
        params["ln_g"].astype(jnp.float32),
        params["ln_b"].astype(jnp.float32),
        params["w1"].astype(jnp.bfloat16),
        params["b1"].astype(jnp.float32),
        params["w2"].astype(jnp.bfloat16),
        params["b2"].astype(jnp.float32),
    ]


def _pick_block_b(B, Lq):
    """Keep >=2 grid steps (v7x has 2 TensorCores) while growing per-step M toward 128."""
    if B <= 1:
        return 1
    best = 1
    for cand in range(1, B // 2 + 1):
        if B % cand == 0:
            best = cand
            if cand * Lq >= 128:
                break
    return best


def _vmem_limit_bytes():
    """Per-generation VMEM cap: ~100 MiB on 128 MiB chips, ~56 MiB on v7x (64 MiB)."""
    try:
        cap = int(pltpu.get_tpu_info().vmem_capacity_bytes)
    except Exception:
        cap = 64 * 1024 * 1024          # conservative fallback (safe on every generation)
    headroom = 8 * 1024 * 1024
    return int(max(32 * 1024 * 1024, min(cap - headroom, 100 * 1024 * 1024)))


def transformer_decoder_layer(inputs, ent_enc, params, heads, *, block_b=None,
                              out_dtype=jnp.bfloat16):
    B, Lq, D = inputs.shape
    _, Lk, _ = ent_enc.shape
    d_ff = params["w1"].shape[1]
    assert D % heads == 0
    if block_b is None:
        block_b = _pick_block_b(B, Lq)
    assert B % block_b == 0

    weight_args = _prepare_params(params, heads)
    x_bf = inputs.astype(jnp.bfloat16)
    e_bf = ent_enc.astype(jnp.bfloat16)

    # Advisory cost estimate so XLA schedules surrounding ops sensibly.
    flops = int(2 * B * ((6 * Lq + 2 * Lk) * D * D          # projections, both MHAs
                         + 2 * Lq * Lq * D + 2 * Lq * Lk * D  # scores + context
                         + 2 * Lq * D * d_ff))                # FFN
    transcendentals = int(B * (heads * Lq * (Lq + Lk) + Lq * d_ff))
    bytes_accessed = int(2 * B * (Lq + Lk) * D               # bf16 activations in
                         + 2 * (4 * D * D + 2 * D * d_ff)    # bf16 weights
                         + 2 * B * Lq * D)                    # bf16 output

    kernel = functools.partial(_decoder_layer_kernel, heads)

    def build(single_buffer_weights):
        def w_spec(a):
            n = a.ndim
            idx = lambda i, n=n: (0,) * n                     # grid-invariant block
            if single_buffer_weights:
                # Constant-index-map weights never need double buffering; halve footprint.
                return pl.BlockSpec(a.shape, idx, pipeline_mode=pl.Buffered(1))
            return pl.BlockSpec(a.shape, idx)

        in_specs = [
            pl.BlockSpec((block_b, Lq, D), lambda i: (i, 0, 0)),   # inputs
            pl.BlockSpec((block_b, Lk, D), lambda i: (i, 0, 0)),   # ent_enc
        ] + [w_spec(a) for a in weight_args]
        out_spec = pl.BlockSpec((block_b, Lq, D), lambda i: (i, 0, 0))

        return pl.pallas_call(
            kernel,
            out_shape=jax.ShapeDtypeStruct((B, Lq, D), out_dtype),
            grid_spec=pltpu.PrefetchScalarGridSpec(
                num_scalar_prefetch=0,
                grid=(B // block_b,),
                in_specs=in_specs,
                out_specs=out_spec,
            ),
            compiler_params=pltpu.CompilerParams(
                dimension_semantics=("parallel",),
                vmem_limit_bytes=_vmem_limit_bytes(),
            ),
            cost_estimate=pl.CostEstimate(flops=flops,
                                          transcendentals=transcendentals,
                                          bytes_accessed=bytes_accessed),
        )

    last_err = None
    for single_buffer_weights in (True, False):
        try:
            return build(single_buffer_weights)(x_bf, e_bf, *weight_args)
        except Exception as err:   # fall back if pipeline_mode/Buffered(1) is unsupported
            last_err = err
    raise last_err


def _reference(inputs, ent_enc, params, heads):
    """Pure-JAX f32 reference of the same math (for a sanity check)."""
    D = inputs.shape[-1]
    dph = D // heads
    scale = 1.0 / math.sqrt(dph)

    def mha(key, value, query):
        q = query @ params["wq"] + params["bq"]
        k = key   @ params["wk"] + params["bk"]
        v = value @ params["wv"] + params["bv"]
        def split(t):  # (B, L, D) -> (B, H, L, dph)
            B, L, _ = t.shape
            return t.reshape(B, L, heads, dph).transpose(0, 2, 1, 3)
        qh, kh, vh = split(q) * scale, split(k), split(v)
        scores = jnp.einsum("bhqd,bhkd->bhqk", qh, kh)
        attn = jax.nn.softmax(scores, axis=-1)
        ctx = jnp.einsum("bhqk,bhkd->bhqd", attn, vh)
        B, H, Lq, _ = ctx.shape
        ctx = ctx.transpose(0, 2, 1, 3).reshape(B, Lq, D)
        return ctx @ params["wo"] + params["bo"]

    context = mha(inputs, inputs, inputs)
    dec = mha(ent_enc, ent_enc, context)
    mu = jnp.mean(dec, axis=-1, keepdims=True)
    var = jnp.mean((dec - mu) ** 2, axis=-1, keepdims=True)
    normed = (dec - mu) / jnp.sqrt(var + 1e-6) * params["ln_g"] + params["ln_b"]
    inter = _gelu(normed @ params["w1"] + params["b1"])
    return inter @ params["w2"] + params["b2"] + dec


def _make_params(key, d_model, d_ff):
    ks = jax.random.split(key, 16)
    def w(k, din, dout, s=0.05):
        return jax.random.normal(k, (din, dout), jnp.float32) * s
    def b(k, dout, s=0.02):
        return jax.random.normal(k, (1, dout), jnp.float32) * s
    return {
        "wq": w(ks[0], d_model, d_model), "bq": b(ks[1], d_model),
        "wk": w(ks[2], d_model, d_model), "bk": b(ks[3], d_model),
        "wv": w(ks[4], d_model, d_model), "bv": b(ks[5], d_model),
        "wo": w(ks[6], d_model, d_model), "bo": b(ks[7], d_model),
        "ln_g": jnp.ones((1, d_model), jnp.float32),
        "ln_b": jnp.zeros((1, d_model), jnp.float32),
        "w1": w(ks[8], d_model, d_ff),  "b1": b(ks[9], d_ff),
        "w2": w(ks[10], d_ff, d_model), "b2": b(ks[11], d_model),
    }


if __name__ == "__main__":
    # lane-dense demo shapes: d_model = 128 (full 128-lane output slab), heads=4 -> dph=32
    d_model, heads, d_ff = 128, 4, 256
    B, Lq, Lk = 2, 8, 16

    root = jax.random.PRNGKey(0)
    k_in, k_ent, k_par = jax.random.split(root, 3)
    inputs = jax.random.normal(k_in, (B, Lq, d_model), jnp.float32)
    ent_enc = jax.random.normal(k_ent, (B, Lk, d_model), jnp.float32)
    params = _make_params(k_par, d_model, d_ff)

    out = transformer_decoder_layer(inputs, ent_enc, params, heads)
    out = jax.block_until_ready(out)

    # f32 reference on the bf16-rounded operands (kernel uses bf16 matmuls, f32 accumulation)
    def rnd(a):
        return a.astype(jnp.bfloat16).astype(jnp.float32)
    params_r = dict(params)
    for name in ("wq", "wk", "wv", "wo", "w1", "w2"):
        params_r[name] = rnd(params[name])
    ref = _reference(rnd(inputs), rnd(ent_enc), params_r, heads)

    assert out.shape == (B, Lq, d_model)
    assert bool(jnp.allclose(out.astype(jnp.float32), ref, atol=3e-2, rtol=3e-2)), \
        "kernel mismatch vs reference"

    print("KERNEL_OK")
</pallas_src>

<mosaic_0001>
module attributes {stable_mosaic.version = 11 : i64} {
  func.func @_decoder_layer_kernel(%arg0: i32, %arg1: memref<1x8x128xbf16, #tpu.memory_space<vmem>>, %arg2: memref<1x16x128xbf16, #tpu.memory_space<vmem>>, %arg3: memref<128x128xbf16, #tpu.memory_space<vmem>>, %arg4: memref<128x128xbf16, #tpu.memory_space<vmem>>, %arg5: memref<128x128xbf16, #tpu.memory_space<vmem>>, %arg6: memref<1x128xf32, #tpu.memory_space<vmem>>, %arg7: memref<1x128xf32, #tpu.memory_space<vmem>>, %arg8: memref<1x128xf32, #tpu.memory_space<vmem>>, %arg9: memref<128x128xbf16, #tpu.memory_space<vmem>>, %arg10: memref<1x128xf32, #tpu.memory_space<vmem>>, %arg11: memref<1x128xf32, #tpu.memory_space<vmem>>, %arg12: memref<1x128xf32, #tpu.memory_space<vmem>>, %arg13: memref<128x256xbf16, #tpu.memory_space<vmem>>, %arg14: memref<1x256xf32, #tpu.memory_space<vmem>>, %arg15: memref<256x128xbf16, #tpu.memory_space<vmem>>, %arg16: memref<1x128xf32, #tpu.memory_space<vmem>>, %arg17: memref<1x8x128xbf16, #tpu.memory_space<vmem>>) attributes {dimension_semantics = [#tpu.dimension_semantics<parallel>], iteration_bounds = array<i64: 2>, scalar_prefetch = 0 : i64, scratch_operands = 0 : i64, tpu.core_type = #tpu.core_type<tc>, window_params = [{transform_indices = @transform_0, window_bounds = array<i64: 1, 8, 128>}, {transform_indices = @transform_1, window_bounds = array<i64: 1, 16, 128>}, {pipeline_mode = #tpu.pipeline_mode<synchronous>, transform_indices = @transform_2, window_bounds = array<i64: 128, 128>}, {pipeline_mode = #tpu.pipeline_mode<synchronous>, transform_indices = @transform_3, window_bounds = array<i64: 128, 128>}, {pipeline_mode = #tpu.pipeline_mode<synchronous>, transform_indices = @transform_4, window_bounds = array<i64: 128, 128>}, {pipeline_mode = #tpu.pipeline_mode<synchronous>, transform_indices = @transform_5, window_bounds = array<i64: 1, 128>}, {pipeline_mode = #tpu.pipeline_mode<synchronous>, transform_indices = @transform_6, window_bounds = array<i64: 1, 128>}, {pipeline_mode = #tpu.pipeline_mode<synchronous>, transform_indices = @transform_7, window_bounds = array<i64: 1, 128>}, {pipeline_mode = #tpu.pipeline_mode<synchronous>, transform_indices = @transform_8, window_bounds = array<i64: 128, 128>}, {pipeline_mode = #tpu.pipeline_mode<synchronous>, transform_indices = @transform_9, window_bounds = array<i64: 1, 128>}, {pipeline_mode = #tpu.pipeline_mode<synchronous>, transform_indices = @transform_10, window_bounds = array<i64: 1, 128>}, {pipeline_mode = #tpu.pipeline_mode<synchronous>, transform_indices = @transform_11, window_bounds = array<i64: 1, 128>}, {pipeline_mode = #tpu.pipeline_mode<synchronous>, transform_indices = @transform_12, window_bounds = array<i64: 128, 256>}, {pipeline_mode = #tpu.pipeline_mode<synchronous>, transform_indices = @transform_13, window_bounds = array<i64: 1, 256>}, {pipeline_mode = #tpu.pipeline_mode<synchronous>, transform_indices = @transform_14, window_bounds = array<i64: 256, 128>}, {pipeline_mode = #tpu.pipeline_mode<synchronous>, transform_indices = @transform_15, window_bounds = array<i64: 1, 128>}, {transform_indices = @transform_16, window_bounds = array<i64: 1, 8, 128>}]} {
    %c0 = arith.constant 0 : index
    %c0_0 = arith.constant 0 : index
    %c0_1 = arith.constant 0 : index
    %0 = vector.load %arg1[%c0, %c0_0, %c0_1] : memref<1x8x128xbf16, #tpu.memory_space<vmem>>, vector<1x8x128xbf16>
    %c0_2 = arith.constant 0 : index
    %c0_3 = arith.constant 0 : index
    %c0_4 = arith.constant 0 : index
    %1 = vector.load %arg2[%c0_2, %c0_3, %c0_4] : memref<1x16x128xbf16, #tpu.memory_space<vmem>>, vector<1x16x128xbf16>
    %c0_5 = arith.constant 0 : index
    %c0_6 = arith.constant 0 : index
    %2 = vector.load %arg3[%c0_5, %c0_6] : memref<128x128xbf16, #tpu.memory_space<vmem>>, vector<128x128xbf16>
    %c0_7 = arith.constant 0 : index
    %c0_8 = arith.constant 0 : index
    %3 = vector.load %arg4[%c0_7, %c0_8] : memref<128x128xbf16, #tpu.memory_space<vmem>>, vector<128x128xbf16>
    %c0_9 = arith.constant 0 : index
    %c0_10 = arith.constant 0 : index
    %4 = vector.load %arg5[%c0_9, %c0_10] : memref<128x128xbf16, #tpu.memory_space<vmem>>, vector<128x128xbf16>
    %c0_11 = arith.constant 0 : index
    %c0_12 = arith.constant 0 : index
    %5 = vector.load %arg6[%c0_11, %c0_12] : memref<1x128xf32, #tpu.memory_space<vmem>>, vector<1x128xf32>
    %c0_13 = arith.constant 0 : index
    %c0_14 = arith.constant 0 : index
    %6 = vector.load %arg7[%c0_13, %c0_14] : memref<1x128xf32, #tpu.memory_space<vmem>>, vector<1x128xf32>
    %c0_15 = arith.constant 0 : index
    %c0_16 = arith.constant 0 : index
    %7 = vector.load %arg8[%c0_15, %c0_16] : memref<1x128xf32, #tpu.memory_space<vmem>>, vector<1x128xf32>
    %c0_17 = arith.constant 0 : index
    %c0_18 = arith.constant 0 : index
    %8 = vector.load %arg9[%c0_17, %c0_18] : memref<128x128xbf16, #tpu.memory_space<vmem>>, vector<128x128xbf16>
    %c0_19 = arith.constant 0 : index
    %c0_20 = arith.constant 0 : index
    %9 = vector.load %arg10[%c0_19, %c0_20] : memref<1x128xf32, #tpu.memory_space<vmem>>, vector<1x128xf32>
    %c0_21 = arith.constant 0 : index
    %c0_22 = arith.constant 0 : index
    %10 = vector.load %arg11[%c0_21, %c0_22] : memref<1x128xf32, #tpu.memory_space<vmem>>, vector<1x128xf32>
    %c0_23 = arith.constant 0 : index
    %c0_24 = arith.constant 0 : index
    %11 = vector.load %arg12[%c0_23, %c0_24] : memref<1x128xf32, #tpu.memory_space<vmem>>, vector<1x128xf32>
    %12 = vector.shape_cast %0 : vector<1x8x128xbf16> to vector<8x128xbf16>
    %13 = vector.shape_cast %0 : vector<1x8x128xbf16> to vector<8x128xbf16>
    %cst = arith.constant dense<0.000000e+00> : vector<8x128xf32>
    %14 = tpu.matmul %12, %2, %cst {dimension_numbers = #tpu.dot_dimension_numbers<[1], [0], [0], [1], [0, 0, 1, 1], [], []>} : vector<8x128xbf16>, vector<128x128xbf16>, vector<8x128xf32> -> vector<8x128xf32>
    %15 = vector.broadcast %5 : vector<1x128xf32> to vector<8x128xf32>
    %16 = arith.addf %14, %15 : vector<8x128xf32>
    %17 = arith.truncf %16 : vector<8x128xf32> to vector<8x128xbf16>
    %cst_25 = arith.constant dense<0.000000e+00> : vector<8x128xf32>
    %18 = tpu.matmul %13, %3, %cst_25 {dimension_numbers = #tpu.dot_dimension_numbers<[1], [0], [0], [1], [0, 0, 1, 1], [], []>} : vector<8x128xbf16>, vector<128x128xbf16>, vector<8x128xf32> -> vector<8x128xf32>
    %19 = vector.broadcast %6 : vector<1x128xf32> to vector<8x128xf32>
    %20 = arith.addf %18, %19 : vector<8x128xf32>
    %21 = arith.truncf %20 : vector<8x128xf32> to vector<8x128xbf16>
    %cst_26 = arith.constant dense<0.000000e+00> : vector<8x128xf32>
    %22 = tpu.matmul %13, %4, %cst_26 {dimension_numbers = #tpu.dot_dimension_numbers<[1], [0], [0], [1], [0, 0, 1, 1], [], []>} : vector<8x128xbf16>, vector<128x128xbf16>, vector<8x128xf32> -> vector<8x128xf32>
    %23 = vector.broadcast %7 : vector<1x128xf32> to vector<8x128xf32>
    %24 = arith.addf %22, %23 : vector<8x128xf32>
    %25 = arith.truncf %24 : vector<8x128xf32> to vector<8x128xbf16>
    %26 = vector.shape_cast %17 : vector<8x128xbf16> to vector<1x8x128xbf16>
    %27 = vector.shape_cast %21 : vector<8x128xbf16> to vector<1x8x128xbf16>
    %28 = vector.shape_cast %25 : vector<8x128xbf16> to vector<1x8x128xbf16>
    %29 = vector.extract_strided_slice %26 {offsets = [0, 0, 0], sizes = [1, 8, 32], strides = [1, 1, 1]} : vector<1x8x128xbf16> to vector<1x8x32xbf16>
    %30 = vector.extract_strided_slice %27 {offsets = [0, 0, 0], sizes = [1, 8, 32], strides = [1, 1, 1]} : vector<1x8x128xbf16> to vector<1x8x32xbf16>
    %31 = vector.extract_strided_slice %28 {offsets = [0, 0, 0], sizes = [1, 8, 32], strides = [1, 1, 1]} : vector<1x8x128xbf16> to vector<1x8x32xbf16>
    "tpu.trace_start"() <{level = 10 : i32, message = "bqe,bke->bqk"}> : () -> ()
    %cst_27 = arith.constant dense<0.000000e+00> : vector<1x8x8xf32>
    %32 = tpu.matmul %29, %30, %cst_27 {dimension_numbers = #tpu.dot_dimension_numbers<[2], [2], [1], [1], [0, 0, 0, 1, 1, 1], [0], [0]>} : vector<1x8x32xbf16>, vector<1x8x32xbf16>, vector<1x8x8xf32> -> vector<1x8x8xf32>
    "tpu.trace_stop"() : () -> ()
    %cst_28 = arith.constant dense<0xFF800000> : vector<1x8xf32>
    %33 = vector.multi_reduction <maximumf>, %32, %cst_28 [2] : vector<1x8x8xf32> to vector<1x8xf32>
    %34 = vector.shape_cast %33 : vector<1x8xf32> to vector<1x8x1xf32>
    %35 = vector.broadcast %34 : vector<1x8x1xf32> to vector<1x8x8xf32>
    %36 = arith.subf %32, %35 : vector<1x8x8xf32>
    %37 = math.exp %36 : vector<1x8x8xf32>
    %cst_29 = arith.constant dense<0.000000e+00> : vector<1x8xf32>
    %38 = vector.multi_reduction <add>, %37, %cst_29 [2] : vector<1x8x8xf32> to vector<1x8xf32>
    %39 = vector.shape_cast %38 : vector<1x8xf32> to vector<1x8x1xf32>
    %40 = tpu.reciprocal %39 {approx = true} : vector<1x8x1xf32> -> vector<1x8x1xf32>
    %41 = vector.broadcast %40 : vector<1x8x1xf32> to vector<1x8x8xf32>
    %42 = arith.mulf %37, %41 : vector<1x8x8xf32>
    %43 = arith.truncf %42 : vector<1x8x8xf32> to vector<1x8x8xbf16>
    "tpu.trace_start"() <{level = 10 : i32, message = "bqk,bke->bqe"}> : () -> ()
    %cst_30 = arith.constant dense<0.000000e+00> : vector<1x8x32xf32>
    %44 = tpu.matmul %43, %31, %cst_30 {dimension_numbers = #tpu.dot_dimension_numbers<[2], [1], [1], [2], [0, 0, 0, 1, 1, 2], [0], [0]>} : vector<1x8x8xbf16>, vector<1x8x32xbf16>, vector<1x8x32xf32> -> vector<1x8x32xf32>
    "tpu.trace_stop"() : () -> ()
    %45 = vector.extract_strided_slice %26 {offsets = [0, 0, 32], sizes = [1, 8, 32], strides = [1, 1, 1]} : vector<1x8x128xbf16> to vector<1x8x32xbf16>
    %46 = vector.extract_strided_slice %27 {offsets = [0, 0, 32], sizes = [1, 8, 32], strides = [1, 1, 1]} : vector<1x8x128xbf16> to vector<1x8x32xbf16>
    %47 = vector.extract_strided_slice %28 {offsets = [0, 0, 32], sizes = [1, 8, 32], strides = [1, 1, 1]} : vector<1x8x128xbf16> to vector<1x8x32xbf16>
    "tpu.trace_start"() <{level = 10 : i32, message = "bqe,bke->bqk"}> : () -> ()
    %cst_31 = arith.constant dense<0.000000e+00> : vector<1x8x8xf32>
    %48 = tpu.matmul %45, %46, %cst_31 {dimension_numbers = #tpu.dot_dimension_numbers<[2], [2], [1], [1], [0, 0, 0, 1, 1, 1], [0], [0]>} : vector<1x8x32xbf16>, vector<1x8x32xbf16>, vector<1x8x8xf32> -> vector<1x8x8xf32>
    "tpu.trace_stop"() : () -> ()
    %cst_32 = arith.constant dense<0xFF800000> : vector<1x8xf32>
    %49 = vector.multi_reduction <maximumf>, %48, %cst_32 [2] : vector<1x8x8xf32> to vector<1x8xf32>
    %50 = vector.shape_cast %49 : vector<1x8xf32> to vector<1x8x1xf32>
    %51 = vector.broadcast %50 : vector<1x8x1xf32> to vector<1x8x8xf32>
    %52 = arith.subf %48, %51 : vector<1x8x8xf32>
    %53 = math.exp %52 : vector<1x8x8xf32>
    %cst_33 = arith.constant dense<0.000000e+00> : vector<1x8xf32>
    %54 = vector.multi_reduction <add>, %53, %cst_33 [2] : vector<1x8x8xf32> to vector<1x8xf32>
    %55 = vector.shape_cast %54 : vector<1x8xf32> to vector<1x8x1xf32>
    %56 = tpu.reciprocal %55 {approx = true} : vector<1x8x1xf32> -> vector<1x8x1xf32>
    %57 = vector.broadcast %56 : vector<1x8x1xf32> to vector<1x8x8xf32>
    %58 = arith.mulf %53, %57 : vector<1x8x8xf32>
    %59 = arith.truncf %58 : vector<1x8x8xf32> to vector<1x8x8xbf16>
    "tpu.trace_start"() <{level = 10 : i32, message = "bqk,bke->bqe"}> : () -> ()
    %cst_34 = arith.constant dense<0.000000e+00> : vector<1x8x32xf32>
    %60 = tpu.matmul %59, %47, %cst_34 {dimension_numbers = #tpu.dot_dimension_numbers<[2], [1], [1], [2], [0, 0, 0, 1, 1, 2], [0], [0]>} : vector<1x8x8xbf16>, vector<1x8x32xbf16>, vector<1x8x32xf32> -> vector<1x8x32xf32>
    "tpu.trace_stop"() : () -> ()
    %61 = vector.extract_strided_slice %26 {offsets = [0, 0, 64], sizes = [1, 8, 32], strides = [1, 1, 1]} : vector<1x8x128xbf16> to vector<1x8x32xbf16>
    %62 = vector.extract_strided_slice %27 {offsets = [0, 0, 64], sizes = [1, 8, 32], strides = [1, 1, 1]} : vector<1x8x128xbf16> to vector<1x8x32xbf16>
    %63 = vector.extract_strided_slice %28 {offsets = [0, 0, 64], sizes = [1, 8, 32], strides = [1, 1, 1]} : vector<1x8x128xbf16> to vector<1x8x32xbf16>
    "tpu.trace_start"() <{level = 10 : i32, message = "bqe,bke->bqk"}> : () -> ()
    %cst_35 = arith.constant dense<0.000000e+00> : vector<1x8x8xf32>
    %64 = tpu.matmul %61, %62, %cst_35 {dimension_numbers = #tpu.dot_dimension_numbers<[2], [2], [1], [1], [0, 0, 0, 1, 1, 1], [0], [0]>} : vector<1x8x32xbf16>, vector<1x8x32xbf16>, vector<1x8x8xf32> -> vector<1x8x8xf32>
    "tpu.trace_stop"() : () -> ()
    %cst_36 = arith.constant dense<0xFF800000> : vector<1x8xf32>
    %65 = vector.multi_reduction <maximumf>, %64, %cst_36 [2] : vector<1x8x8xf32> to vector<1x8xf32>
    %66 = vector.shape_cast %65 : vector<1x8xf32> to vector<1x8x1xf32>
    %67 = vector.broadcast %66 : vector<1x8x1xf32> to vector<1x8x8xf32>
    %68 = arith.subf %64, %67 : vector<1x8x8xf32>
    %69 = math.exp %68 : vector<1x8x8xf32>
    %cst_37 = arith.constant dense<0.000000e+00> : vector<1x8xf32>
    %70 = vector.multi_reduction <add>, %69, %cst_37 [2] : vector<1x8x8xf32> to vector<1x8xf32>
    %71 = vector.shape_cast %70 : vector<1x8xf32> to vector<1x8x1xf32>
    %72 = tpu.reciprocal %71 {approx = true} : vector<1x8x1xf32> -> vector<1x8x1xf32>
    %73 = vector.broadcast %72 : vector<1x8x1xf32> to vector<1x8x8xf32>
    %74 = arith.mulf %69, %73 : vector<1x8x8xf32>
    %75 = arith.truncf %74 : vector<1x8x8xf32> to vector<1x8x8xbf16>
    "tpu.trace_start"() <{level = 10 : i32, message = "bqk,bke->bqe"}> : () -> ()
    %cst_38 = arith.constant dense<0.000000e+00> : vector<1x8x32xf32>
    %76 = tpu.matmul %75, %63, %cst_38 {dimension_numbers = #tpu.dot_dimension_numbers<[2], [1], [1], [2], [0, 0, 0, 1, 1, 2], [0], [0]>} : vector<1x8x8xbf16>, vector<1x8x32xbf16>, vector<1x8x32xf32> -> vector<1x8x32xf32>
    "tpu.trace_stop"() : () -> ()
    %77 = vector.extract_strided_slice %26 {offsets = [0, 0, 96], sizes = [1, 8, 32], strides = [1, 1, 1]} : vector<1x8x128xbf16> to vector<1x8x32xbf16>
    %78 = vector.extract_strided_slice %27 {offsets = [0, 0, 96], sizes = [1, 8, 32], strides = [1, 1, 1]} : vector<1x8x128xbf16> to vector<1x8x32xbf16>
    %79 = vector.extract_strided_slice %28 {offsets = [0, 0, 96], sizes = [1, 8, 32], strides = [1, 1, 1]} : vector<1x8x128xbf16> to vector<1x8x32xbf16>
    "tpu.trace_start"() <{level = 10 : i32, message = "bqe,bke->bqk"}> : () -> ()
    %cst_39 = arith.constant dense<0.000000e+00> : vector<1x8x8xf32>
    %80 = tpu.matmul %77, %78, %cst_39 {dimension_numbers = #tpu.dot_dimension_numbers<[2], [2], [1], [1], [0, 0, 0, 1, 1, 1], [0], [0]>} : vector<1x8x32xbf16>, vector<1x8x32xbf16>, vector<1x8x8xf32> -> vector<1x8x8xf32>
    "tpu.trace_stop"() : () -> ()
    %cst_40 = arith.constant dense<0xFF800000> : vector<1x8xf32>
    %81 = vector.multi_reduction <maximumf>, %80, %cst_40 [2] : vector<1x8x8xf32> to vector<1x8xf32>
    %82 = vector.shape_cast %81 : vector<1x8xf32> to vector<1x8x1xf32>
    %83 = vector.broadcast %82 : vector<1x8x1xf32> to vector<1x8x8xf32>
    %84 = arith.subf %80, %83 : vector<1x8x8xf32>
    %85 = math.exp %84 : vector<1x8x8xf32>
    %cst_41 = arith.constant dense<0.000000e+00> : vector<1x8xf32>
    %86 = vector.multi_reduction <add>, %85, %cst_41 [2] : vector<1x8x8xf32> to vector<1x8xf32>
    %87 = vector.shape_cast %86 : vector<1x8xf32> to vector<1x8x1xf32>
    %88 = tpu.reciprocal %87 {approx = true} : vector<1x8x1xf32> -> vector<1x8x1xf32>
    %89 = vector.broadcast %88 : vector<1x8x1xf32> to vector<1x8x8xf32>
    %90 = arith.mulf %85, %89 : vector<1x8x8xf32>
    %91 = arith.truncf %90 : vector<1x8x8xf32> to vector<1x8x8xbf16>
    "tpu.trace_start"() <{level = 10 : i32, message = "bqk,bke->bqe"}> : () -> ()
    %cst_42 = arith.constant dense<0.000000e+00> : vector<1x8x32xf32>
    %92 = tpu.matmul %91, %79, %cst_42 {dimension_numbers = #tpu.dot_dimension_numbers<[2], [1], [1], [2], [0, 0, 0, 1, 1, 2], [0], [0]>} : vector<1x8x8xbf16>, vector<1x8x32xbf16>, vector<1x8x32xf32> -> vector<1x8x32xf32>
    "tpu.trace_stop"() : () -> ()
    %93 = tpu.concatenate %44, %60, %76, %92 in 2 : vector<1x8x32xf32>, vector<1x8x32xf32>, vector<1x8x32xf32>, vector<1x8x32xf32> -> vector<1x8x128xf32>
    %94 = arith.truncf %93 : vector<1x8x128xf32> to vector<1x8x128xbf16>
    %95 = vector.shape_cast %94 : vector<1x8x128xbf16> to vector<8x128xbf16>
    %cst_43 = arith.constant dense<0.000000e+00> : vector<8x128xf32>
    %96 = tpu.matmul %95, %8, %cst_43 {dimension_numbers = #tpu.dot_dimension_numbers<[1], [0], [0], [1], [0, 0, 1, 1], [], []>} : vector<8x128xbf16>, vector<128x128xbf16>, vector<8x128xf32> -> vector<8x128xf32>
    %97 = vector.broadcast %9 : vector<1x128xf32> to vector<8x128xf32>
    %98 = arith.addf %96, %97 : vector<8x128xf32>
    %99 = vector.shape_cast %98 : vector<8x128xf32> to vector<1x8x128xf32>
    %100 = arith.truncf %99 : vector<1x8x128xf32> to vector<1x8x128xbf16>
    %101 = vector.shape_cast %100 : vector<1x8x128xbf16> to vector<8x128xbf16>
    %102 = vector.shape_cast %1 : vector<1x16x128xbf16> to vector<16x128xbf16>
    %cst_44 = arith.constant dense<0.000000e+00> : vector<8x128xf32>
    %103 = tpu.matmul %101, %2, %cst_44 {dimension_numbers = #tpu.dot_dimension_numbers<[1], [0], [0], [1], [0, 0, 1, 1], [], []>} : vector<8x128xbf16>, vector<128x128xbf16>, vector<8x128xf32> -> vector<8x128xf32>
    %104 = vector.broadcast %5 : vector<1x128xf32> to vector<8x128xf32>
    %105 = arith.addf %103, %104 : vector<8x128xf32>
    %106 = arith.truncf %105 : vector<8x128xf32> to vector<8x128xbf16>
    %cst_45 = arith.constant dense<0.000000e+00> : vector<16x128xf32>
    %107 = tpu.matmul %102, %3, %cst_45 {dimension_numbers = #tpu.dot_dimension_numbers<[1], [0], [0], [1], [0, 0, 1, 1], [], []>} : vector<16x128xbf16>, vector<128x128xbf16>, vector<16x128xf32> -> vector<16x128xf32>
    %108 = vector.broadcast %6 : vector<1x128xf32> to vector<16x128xf32>
    %109 = arith.addf %107, %108 : vector<16x128xf32>
    %110 = arith.truncf %109 : vector<16x128xf32> to vector<16x128xbf16>
    %cst_46 = arith.constant dense<0.000000e+00> : vector<16x128xf32>
    %111 = tpu.matmul %102, %4, %cst_46 {dimension_numbers = #tpu.dot_dimension_numbers<[1], [0], [0], [1], [0, 0, 1, 1], [], []>} : vector<16x128xbf16>, vector<128x128xbf16>, vector<16x128xf32> -> vector<16x128xf32>
    %112 = vector.broadcast %7 : vector<1x128xf32> to vector<16x128xf32>
    %113 = arith.addf %111, %112 : vector<16x128xf32>
    %114 = arith.truncf %113 : vector<16x128xf32> to vector<16x128xbf16>
    %115 = vector.shape_cast %106 : vector<8x128xbf16> to vector<1x8x128xbf16>
    %116 = vector.shape_cast %110 : vector<16x128xbf16> to vector<1x16x128xbf16>
    %117 = vector.shape_cast %114 : vector<16x128xbf16> to vector<1x16x128xbf16>
    %118 = vector.extract_strided_slice %115 {offsets = [0, 0, 0], sizes = [1, 8, 32], strides = [1, 1, 1]} : vector<1x8x128xbf16> to vector<1x8x32xbf16>
    %119 = vector.extract_strided_slice %116 {offsets = [0, 0, 0], sizes = [1, 16, 32], strides = [1, 1, 1]} : vector<1x16x128xbf16> to vector<1x16x32xbf16>
    %120 = vector.extract_strided_slice %117 {offsets = [0, 0, 0], sizes = [1, 16, 32], strides = [1, 1, 1]} : vector<1x16x128xbf16> to vector<1x16x32xbf16>
    "tpu.trace_start"() <{level = 10 : i32, message = "bqe,bke->bqk"}> : () -> ()
    %cst_47 = arith.constant dense<0.000000e+00> : vector<1x8x16xf32>
    %121 = tpu.matmul %118, %119, %cst_47 {dimension_numbers = #tpu.dot_dimension_numbers<[2], [2], [1], [1], [0, 0, 0, 1, 1, 1], [0], [0]>} : vector<1x8x32xbf16>, vector<1x16x32xbf16>, vector<1x8x16xf32> -> vector<1x8x16xf32>
    "tpu.trace_stop"() : () -> ()
    %cst_48 = arith.constant dense<0xFF800000> : vector<1x8xf32>
    %122 = vector.multi_reduction <maximumf>, %121, %cst_48 [2] : vector<1x8x16xf32> to vector<1x8xf32>
    %123 = vector.shape_cast %122 : vector<1x8xf32> to vector<1x8x1xf32>
    %124 = vector.broadcast %123 : vector<1x8x1xf32> to vector<1x8x16xf32>
    %125 = arith.subf %121, %124 : vector<1x8x16xf32>
    %126 = math.exp %125 : vector<1x8x16xf32>
    %cst_49 = arith.constant dense<0.000000e+00> : vector<1x8xf32>
    %127 = vector.multi_reduction <add>, %126, %cst_49 [2] : vector<1x8x16xf32> to vector<1x8xf32>
    %128 = vector.shape_cast %127 : vector<1x8xf32> to vector<1x8x1xf32>
    %129 = tpu.reciprocal %128 {approx = true} : vector<1x8x1xf32> -> vector<1x8x1xf32>
    %130 = vector.broadcast %129 : vector<1x8x1xf32> to vector<1x8x16xf32>
    %131 = arith.mulf %126, %130 : vector<1x8x16xf32>
    %132 = arith.truncf %131 : vector<1x8x16xf32> to vector<1x8x16xbf16>
    "tpu.trace_start"() <{level = 10 : i32, message = "bqk,bke->bqe"}> : () -> ()
    %cst_50 = arith.constant dense<0.000000e+00> : vector<1x8x32xf32>
    %133 = tpu.matmul %132, %120, %cst_50 {dimension_numbers = #tpu.dot_dimension_numbers<[2], [1], [1], [2], [0, 0, 0, 1, 1, 2], [0], [0]>} : vector<1x8x16xbf16>, vector<1x16x32xbf16>, vector<1x8x32xf32> -> vector<1x8x32xf32>
    "tpu.trace_stop"() : () -> ()
    %134 = vector.extract_strided_slice %115 {offsets = [0, 0, 32], sizes = [1, 8, 32], strides = [1, 1, 1]} : vector<1x8x128xbf16> to vector<1x8x32xbf16>
    %135 = vector.extract_strided_slice %116 {offsets = [0, 0, 32], sizes = [1, 16, 32], strides = [1, 1, 1]} : vector<1x16x128xbf16> to vector<1x16x32xbf16>
    %136 = vector.extract_strided_slice %117 {offsets = [0, 0, 32], sizes = [1, 16, 32], strides = [1, 1, 1]} : vector<1x16x128xbf16> to vector<1x16x32xbf16>
    "tpu.trace_start"() <{level = 10 : i32, message = "bqe,bke->bqk"}> : () -> ()
    %cst_51 = arith.constant dense<0.000000e+00> : vector<1x8x16xf32>
    %137 = tpu.matmul %134, %135, %cst_51 {dimension_numbers = #tpu.dot_dimension_numbers<[2], [2], [1], [1], [0, 0, 0, 1, 1, 1], [0], [0]>} : vector<1x8x32xbf16>, vector<1x16x32xbf16>, vector<1x8x16xf32> -> vector<1x8x16xf32>
    "tpu.trace_stop"() : () -> ()
    %cst_52 = arith.constant dense<0xFF800000> : vector<1x8xf32>
    %138 = vector.multi_reduction <maximumf>, %137, %cst_52 [2] : vector<1x8x16xf32> to vector<1x8xf32>
    %139 = vector.shape_cast %138 : vector<1x8xf32> to vector<1x8x1xf32>
    %140 = vector.broadcast %139 : vector<1x8x1xf32> to vector<1x8x16xf32>
    %141 = arith.subf %137, %140 : vector<1x8x16xf32>
    %142 = math.exp %141 : vector<1x8x16xf32>
    %cst_53 = arith.constant dense<0.000000e+00> : vector<1x8xf32>
    %143 = vector.multi_reduction <add>, %142, %cst_53 [2] : vector<1x8x16xf32> to vector<1x8xf32>
    %144 = vector.shape_cast %143 : vector<1x8xf32> to vector<1x8x1xf32>
    %145 = tpu.reciprocal %144 {approx = true} : vector<1x8x1xf32> -> vector<1x8x1xf32>
    %146 = vector.broadcast %145 : vector<1x8x1xf32> to vector<1x8x16xf32>
    %147 = arith.mulf %142, %146 : vector<1x8x16xf32>
    %148 = arith.truncf %147 : vector<1x8x16xf32> to vector<1x8x16xbf16>
    "tpu.trace_start"() <{level = 10 : i32, message = "bqk,bke->bqe"}> : () -> ()
    %cst_54 = arith.constant dense<0.000000e+00> : vector<1x8x32xf32>
    %149 = tpu.matmul %148, %136, %cst_54 {dimension_numbers = #tpu.dot_dimension_numbers<[2], [1], [1], [2], [0, 0, 0, 1, 1, 2], [0], [0]>} : vector<1x8x16xbf16>, vector<1x16x32xbf16>, vector<1x8x32xf32> -> vector<1x8x32xf32>
    "tpu.trace_stop"() : () -> ()
    %150 = vector.extract_strided_slice %115 {offsets = [0, 0, 64], sizes = [1, 8, 32], strides = [1, 1, 1]} : vector<1x8x128xbf16> to vector<1x8x32xbf16>
    %151 = vector.extract_strided_slice %116 {offsets = [0, 0, 64], sizes = [1, 16, 32], strides = [1, 1, 1]} : vector<1x16x128xbf16> to vector<1x16x32xbf16>
    %152 = vector.extract_strided_slice %117 {offsets = [0, 0, 64], sizes = [1, 16, 32], strides = [1, 1, 1]} : vector<1x16x128xbf16> to vector<1x16x32xbf16>
    "tpu.trace_start"() <{level = 10 : i32, message = "bqe,bke->bqk"}> : () -> ()
    %cst_55 = arith.constant dense<0.000000e+00> : vector<1x8x16xf32>
    %153 = tpu.matmul %150, %151, %cst_55 {dimension_numbers = #tpu.dot_dimension_numbers<[2], [2], [1], [1], [0, 0, 0, 1, 1, 1], [0], [0]>} : vector<1x8x32xbf16>, vector<1x16x32xbf16>, vector<1x8x16xf32> -> vector<1x8x16xf32>
    "tpu.trace_stop"() : () -> ()
    %cst_56 = arith.constant dense<0xFF800000> : vector<1x8xf32>
    %154 = vector.multi_reduction <maximumf>, %153, %cst_56 [2] : vector<1x8x16xf32> to vector<1x8xf32>
    %155 = vector.shape_cast %154 : vector<1x8xf32> to vector<1x8x1xf32>
    %156 = vector.broadcast %155 : vector<1x8x1xf32> to vector<1x8x16xf32>
    %157 = arith.subf %153, %156 : vector<1x8x16xf32>
    %158 = math.exp %157 : vector<1x8x16xf32>
    %cst_57 = arith.constant dense<0.000000e+00> : vector<1x8xf32>
    %159 = vector.multi_reduction <add>, %158, %cst_57 [2] : vector<1x8x16xf32> to vector<1x8xf32>
    %160 = vector.shape_cast %159 : vector<1x8xf32> to vector<1x8x1xf32>
    %161 = tpu.reciprocal %160 {approx = true} : vector<1x8x1xf32> -> vector<1x8x1xf32>
    %162 = vector.broadcast %161 : vector<1x8x1xf32> to vector<1x8x16xf32>
    %163 = arith.mulf %158, %162 : vector<1x8x16xf32>
    %164 = arith.truncf %163 : vector<1x8x16xf32> to vector<1x8x16xbf16>
    "tpu.trace_start"() <{level = 10 : i32, message = "bqk,bke->bqe"}> : () -> ()
    %cst_58 = arith.constant dense<0.000000e+00> : vector<1x8x32xf32>
    %165 = tpu.matmul %164, %152, %cst_58 {dimension_numbers = #tpu.dot_dimension_numbers<[2], [1], [1], [2], [0, 0, 0, 1, 1, 2], [0], [0]>} : vector<1x8x16xbf16>, vector<1x16x32xbf16>, vector<1x8x32xf32> -> vector<1x8x32xf32>
    "tpu.trace_stop"() : () -> ()
    %166 = vector.extract_strided_slice %115 {offsets = [0, 0, 96], sizes = [1, 8, 32], strides = [1, 1, 1]} : vector<1x8x128xbf16> to vector<1x8x32xbf16>
    %167 = vector.extract_strided_slice %116 {offsets = [0, 0, 96], sizes = [1, 16, 32], strides = [1, 1, 1]} : vector<1x16x128xbf16> to vector<1x16x32xbf16>
    %168 = vector.extract_strided_slice %117 {offsets = [0, 0, 96], sizes = [1, 16, 32], strides = [1, 1, 1]} : vector<1x16x128xbf16> to vector<1x16x32xbf16>
    "tpu.trace_start"() <{level = 10 : i32, message = "bqe,bke->bqk"}> : () -> ()
    %cst_59 = arith.constant dense<0.000000e+00> : vector<1x8x16xf32>
    %169 = tpu.matmul %166, %167, %cst_59 {dimension_numbers = #tpu.dot_dimension_numbers<[2], [2], [1], [1], [0, 0, 0, 1, 1, 1], [0], [0]>} : vector<1x8x32xbf16>, vector<1x16x32xbf16>, vector<1x8x16xf32> -> vector<1x8x16xf32>
    "tpu.trace_stop"() : () -> ()
    %cst_60 = arith.constant dense<0xFF800000> : vector<1x8xf32>
    %170 = vector.multi_reduction <maximumf>, %169, %cst_60 [2] : vector<1x8x16xf32> to vector<1x8xf32>
    %171 = vector.shape_cast %170 : vector<1x8xf32> to vector<1x8x1xf32>
    %172 = vector.broadcast %171 : vector<1x8x1xf32> to vector<1x8x16xf32>
    %173 = arith.subf %169, %172 : vector<1x8x16xf32>
    %174 = math.exp %173 : vector<1x8x16xf32>
    %cst_61 = arith.constant dense<0.000000e+00> : vector<1x8xf32>
    %175 = vector.multi_reduction <add>, %174, %cst_61 [2] : vector<1x8x16xf32> to vector<1x8xf32>
    %176 = vector.shape_cast %175 : vector<1x8xf32> to vector<1x8x1xf32>
    %177 = tpu.reciprocal %176 {approx = true} : vector<1x8x1xf32> -> vector<1x8x1xf32>
    %178 = vector.broadcast %177 : vector<1x8x1xf32> to vector<1x8x16xf32>
    %179 = arith.mulf %174, %178 : vector<1x8x16xf32>
    %180 = arith.truncf %179 : vector<1x8x16xf32> to vector<1x8x16xbf16>
    "tpu.trace_start"() <{level = 10 : i32, message = "bqk,bke->bqe"}> : () -> ()
    %cst_62 = arith.constant dense<0.000000e+00> : vector<1x8x32xf32>
    %181 = tpu.matmul %180, %168, %cst_62 {dimension_numbers = #tpu.dot_dimension_numbers<[2], [1], [1], [2], [0, 0, 0, 1, 1, 2], [0], [0]>} : vector<1x8x16xbf16>, vector<1x16x32xbf16>, vector<1x8x32xf32> -> vector<1x8x32xf32>
    "tpu.trace_stop"() : () -> ()
    %182 = tpu.concatenate %133, %149, %165, %181 in 2 : vector<1x8x32xf32>, vector<1x8x32xf32>, vector<1x8x32xf32>, vector<1x8x32xf32> -> vector<1x8x128xf32>
    %183 = arith.truncf %182 : vector<1x8x128xf32> to vector<1x8x128xbf16>
    %184 = vector.shape_cast %183 : vector<1x8x128xbf16> to vector<8x128xbf16>
    %cst_63 = arith.constant dense<0.000000e+00> : vector<8x128xf32>
    %185 = tpu.matmul %184, %8, %cst_63 {dimension_numbers = #tpu.dot_dimension_numbers<[1], [0], [0], [1], [0, 0, 1, 1], [], []>} : vector<8x128xbf16>, vector<128x128xbf16>, vector<8x128xf32> -> vector<8x128xf32>
    %186 = vector.broadcast %9 : vector<1x128xf32> to vector<8x128xf32>
    %187 = arith.addf %185, %186 : vector<8x128xf32>
    %188 = vector.shape_cast %187 : vector<8x128xf32> to vector<1x8x128xf32>
    %cst_64 = arith.constant dense<0.000000e+00> : vector<1x8xf32>
    %189 = vector.multi_reduction <add>, %188, %cst_64 [2] : vector<1x8x128xf32> to vector<1x8xf32>
    %190 = vector.shape_cast %189 : vector<1x8xf32> to vector<1x8x1xf32>
    %cst_65 = arith.constant 1.280000e+02 : f32
    %191 = vector.broadcast %cst_65 : f32 to vector<1x8x1xf32>
    %192 = arith.divf %190, %191 : vector<1x8x1xf32>
    %193 = vector.broadcast %192 : vector<1x8x1xf32> to vector<1x8x128xf32>
    %194 = arith.subf %188, %193 : vector<1x8x128xf32>
    %195 = arith.mulf %194, %194 : vector<1x8x128xf32>
    %cst_66 = arith.constant dense<0.000000e+00> : vector<1x8xf32>
    %196 = vector.multi_reduction <add>, %195, %cst_66 [2] : vector<1x8x128xf32> to vector<1x8xf32>
    %197 = vector.shape_cast %196 : vector<1x8xf32> to vector<1x8x1xf32>
    %cst_67 = arith.constant 1.280000e+02 : f32
    %198 = vector.broadcast %cst_67 : f32 to vector<1x8x1xf32>
    %199 = arith.divf %197, %198 : vector<1x8x1xf32>
    %200 = vector.broadcast %192 : vector<1x8x1xf32> to vector<1x8x128xf32>
    %201 = arith.subf %188, %200 : vector<1x8x128xf32>
    %cst_68 = arith.constant 9.99999997E-7 : f32
    %202 = vector.broadcast %cst_68 : f32 to vector<1x8x1xf32>
    %203 = arith.addf %199, %202 : vector<1x8x1xf32>
    %204 = math.rsqrt %203 : vector<1x8x1xf32>
    %205 = vector.broadcast %204 : vector<1x8x1xf32> to vector<1x8x128xf32>
    %206 = arith.mulf %201, %205 : vector<1x8x128xf32>
    %207 = vector.shape_cast %10 : vector<1x128xf32> to vector<1x1x128xf32>
    %208 = vector.broadcast %207 : vector<1x1x128xf32> to vector<1x8x128xf32>
    %209 = arith.mulf %206, %208 : vector<1x8x128xf32>
    %210 = vector.shape_cast %11 : vector<1x128xf32> to vector<1x1x128xf32>
    %211 = vector.broadcast %210 : vector<1x1x128xf32> to vector<1x8x128xf32>
    %212 = arith.addf %209, %211 : vector<1x8x128xf32>
    %213 = arith.truncf %212 : vector<1x8x128xf32> to vector<1x8x128xbf16>
    %214 = vector.shape_cast %213 : vector<1x8x128xbf16> to vector<8x128xbf16>
    %c0_69 = arith.constant 0 : index
    %c0_70 = arith.constant 0 : index
    %215 = vector.load %arg13[%c0_69, %c0_70] : memref<128x256xbf16, #tpu.memory_space<vmem>>, vector<128x256xbf16>
    %cst_71 = arith.constant dense<0.000000e+00> : vector<8x256xf32>
    %216 = tpu.matmul %214, %215, %cst_71 {dimension_numbers = #tpu.dot_dimension_numbers<[1], [0], [0], [1], [0, 0, 1, 1], [], []>} : vector<8x128xbf16>, vector<128x256xbf16>, vector<8x256xf32> -> vector<8x256xf32>
    %c0_72 = arith.constant 0 : index
    %c0_73 = arith.constant 0 : index
    %217 = vector.load %arg14[%c0_72, %c0_73] : memref<1x256xf32, #tpu.memory_space<vmem>>, vector<1x256xf32>
    %218 = vector.broadcast %217 : vector<1x256xf32> to vector<8x256xf32>
    %219 = arith.addf %216, %218 : vector<8x256xf32>
    %cst_74 = arith.constant 5.000000e-01 : f32
    %220 = vector.broadcast %cst_74 : f32 to vector<8x256xf32>
    %221 = arith.mulf %220, %219 : vector<8x256xf32>
    %cst_75 = arith.constant 4.471500e-02 : f32
    %222 = vector.broadcast %cst_75 : f32 to vector<8x256xf32>
    %223 = arith.mulf %222, %219 : vector<8x256xf32>
    %224 = arith.mulf %223, %219 : vector<8x256xf32>
    %225 = arith.mulf %224, %219 : vector<8x256xf32>
    %226 = arith.addf %219, %225 : vector<8x256xf32>
    %cst_76 = arith.constant 0.797884583 : f32
    %227 = vector.broadcast %cst_76 : f32 to vector<8x256xf32>
    %228 = arith.mulf %227, %226 : vector<8x256xf32>
    %229 = math.tanh %228 : vector<8x256xf32>
    %cst_77 = arith.constant 1.000000e+00 : f32
    %230 = vector.broadcast %cst_77 : f32 to vector<8x256xf32>
    %231 = arith.addf %230, %229 : vector<8x256xf32>
    %232 = arith.mulf %221, %231 : vector<8x256xf32>
    %233 = arith.truncf %232 : vector<8x256xf32> to vector<8x256xbf16>
    %c0_78 = arith.constant 0 : index
    %c0_79 = arith.constant 0 : index
    %234 = vector.load %arg15[%c0_78, %c0_79] : memref<256x128xbf16, #tpu.memory_space<vmem>>, vector<256x128xbf16>
    %cst_80 = arith.constant dense<0.000000e+00> : vector<8x128xf32>
    %235 = tpu.matmul %233, %234, %cst_80 {dimension_numbers = #tpu.dot_dimension_numbers<[1], [0], [0], [1], [0, 0, 1, 1], [], []>} : vector<8x256xbf16>, vector<256x128xbf16>, vector<8x128xf32> -> vector<8x128xf32>
    %c0_81 = arith.constant 0 : index
    %c0_82 = arith.constant 0 : index
    %236 = vector.load %arg16[%c0_81, %c0_82] : memref<1x128xf32, #tpu.memory_space<vmem>>, vector<1x128xf32>
    %237 = vector.broadcast %236 : vector<1x128xf32> to vector<8x128xf32>
    %238 = arith.addf %235, %237 : vector<8x128xf32>
    %239 = vector.shape_cast %238 : vector<8x128xf32> to vector<1x8x128xf32>
    %240 = arith.addf %239, %188 : vector<1x8x128xf32>
    %241 = arith.truncf %240 : vector<1x8x128xf32> to vector<1x8x128xbf16>
    %c0_83 = arith.constant 0 : index
    %c0_84 = arith.constant 0 : index
    %c0_85 = arith.constant 0 : index
    %242 = vector.load %arg17[%c0_83, %c0_84, %c0_85] : memref<1x8x128xbf16, #tpu.memory_space<vmem>>, vector<1x8x128xbf16>
    tpu.vector_store %arg17[%c0_83, %c0_84, %c0_85], %241 {strides = array<i32>} : memref<1x8x128xbf16, #tpu.memory_space<vmem>>, vector<1x8x128xbf16>,
    return
  }
  func.func @transform_0(%arg0: i32) -> (i32, i32, i32) {
    %c0_i32 = arith.constant 0 : i32
    %c0_i32_0 = arith.constant 0 : i32
    %c0_i32_1 = arith.constant 0 : i32
    return %arg0, %c0_i32, %c0_i32_0 : i32, i32, i32
  }
  func.func @transform_1(%arg0: i32) -> (i32, i32, i32) {
    %c0_i32 = arith.constant 0 : i32
    %c0_i32_0 = arith.constant 0 : i32
    %c0_i32_1 = arith.constant 0 : i32
    return %arg0, %c0_i32, %c0_i32_0 : i32, i32, i32
  }
  func.func @transform_2(%arg0: i32) -> (i32, i32) {
    %c0_i32 = arith.constant 0 : i32
    %c0_i32_0 = arith.constant 0 : i32
    %c0_i32_1 = arith.constant 0 : i32
    return %c0_i32, %c0_i32_0 : i32, i32
  }
  func.func @transform_3(%arg0: i32) -> (i32, i32) {
    %c0_i32 = arith.constant 0 : i32
    %c0_i32_0 = arith.constant 0 : i32
    %c0_i32_1 = arith.constant 0 : i32
    return %c0_i32, %c0_i32_0 : i32, i32
  }
  func.func @transform_4(%arg0: i32) -> (i32, i32) {
    %c0_i32 = arith.constant 0 : i32
    %c0_i32_0 = arith.constant 0 : i32
    %c0_i32_1 = arith.constant 0 : i32
    return %c0_i32, %c0_i32_0 : i32, i32
  }
  func.func @transform_5(%arg0: i32) -> (i32, i32) {
    %c0_i32 = arith.constant 0 : i32
    %c0_i32_0 = arith.constant 0 : i32
    %c0_i32_1 = arith.constant 0 : i32
    return %c0_i32, %c0_i32_0 : i32, i32
  }
  func.func @transform_6(%arg0: i32) -> (i32, i32) {
    %c0_i32 = arith.constant 0 : i32
    %c0_i32_0 = arith.constant 0 : i32
    %c0_i32_1 = arith.constant 0 : i32
    return %c0_i32, %c0_i32_0 : i32, i32
  }
  func.func @transform_7(%arg0: i32) -> (i32, i32) {
    %c0_i32 = arith.constant 0 : i32
    %c0_i32_0 = arith.constant 0 : i32
    %c0_i32_1 = arith.constant 0 : i32
    return %c0_i32, %c0_i32_0 : i32, i32
  }
  func.func @transform_8(%arg0: i32) -> (i32, i32) {
    %c0_i32 = arith.constant 0 : i32
    %c0_i32_0 = arith.constant 0 : i32
    %c0_i32_1 = arith.constant 0 : i32
    return %c0_i32, %c0_i32_0 : i32, i32
  }
  func.func @transform_9(%arg0: i32) -> (i32, i32) {
    %c0_i32 = arith.constant 0 : i32
    %c0_i32_0 = arith.constant 0 : i32
    %c0_i32_1 = arith.constant 0 : i32
    return %c0_i32, %c0_i32_0 : i32, i32
  }
  func.func @transform_10(%arg0: i32) -> (i32, i32) {
    %c0_i32 = arith.constant 0 : i32
    %c0_i32_0 = arith.constant 0 : i32
    %c0_i32_1 = arith.constant 0 : i32
    return %c0_i32, %c0_i32_0 : i32, i32
  }
  func.func @transform_11(%arg0: i32) -> (i32, i32) {
    %c0_i32 = arith.constant 0 : i32
    %c0_i32_0 = arith.constant 0 : i32
    %c0_i32_1 = arith.constant 0 : i32
    return %c0_i32, %c0_i32_0 : i32, i32
  }
  func.func @transform_12(%arg0: i32) -> (i32, i32) {
    %c0_i32 = arith.constant 0 : i32
    %c0_i32_0 = arith.constant 0 : i32
    %c0_i32_1 = arith.constant 0 : i32
    return %c0_i32, %c0_i32_0 : i32, i32
  }
  func.func @transform_13(%arg0: i32) -> (i32, i32) {
    %c0_i32 = arith.constant 0 : i32
    %c0_i32_0 = arith.constant 0 : i32
    %c0_i32_1 = arith.constant 0 : i32
    return %c0_i32, %c0_i32_0 : i32, i32
  }
  func.func @transform_14(%arg0: i32) -> (i32, i32) {
    %c0_i32 = arith.constant 0 : i32
    %c0_i32_0 = arith.constant 0 : i32
    %c0_i32_1 = arith.constant 0 : i32
    return %c0_i32, %c0_i32_0 : i32, i32
  }
  func.func @transform_15(%arg0: i32) -> (i32, i32) {
    %c0_i32 = arith.constant 0 : i32
    %c0_i32_0 = arith.constant 0 : i32
    %c0_i32_1 = arith.constant 0 : i32
    return %c0_i32, %c0_i32_0 : i32, i32
  }
  func.func @transform_16(%arg0: i32) -> (i32, i32, i32) {
    %c0_i32 = arith.constant 0 : i32
    %c0_i32_0 = arith.constant 0 : i32
    %c0_i32_1 = arith.constant 0 : i32
    return %arg0, %c0_i32, %c0_i32_0 : i32, i32, i32
  }
}

module attributes {stable_mosaic.version = 11 : i64} {
  func.func @_decoder_layer_kernel(%arg0: i32, %arg1: memref<1x8x128xbf16, #tpu.memory_space<vmem>>, %arg2: memref<1x16x128xbf16, #tpu.memory_space<vmem>>, %arg3: memref<128x128xbf16, #tpu.memory_space<vmem>>, %arg4: memref<128x128xbf16, #tpu.memory_space<vmem>>, %arg5: memref<128x128xbf16, #tpu.memory_space<vmem>>, %arg6: memref<1x128xf32, #tpu.memory_space<vmem>>, %arg7: memref<1x128xf32, #tpu.memory_space<vmem>>, %arg8: memref<1x128xf32, #tpu.memory_space<vmem>>, %arg9: memref<128x128xbf16, #tpu.memory_space<vmem>>, %arg10: memref<1x128xf32, #tpu.memory_space<vmem>>, %arg11: memref<1x128xf32, #tpu.memory_space<vmem>>, %arg12: memref<1x128xf32, #tpu.memory_space<vmem>>, %arg13: memref<128x256xbf16, #tpu.memory_space<vmem>>, %arg14: memref<1x256xf32, #tpu.memory_space<vmem>>, %arg15: memref<256x128xbf16, #tpu.memory_space<vmem>>, %arg16: memref<1x128xf32, #tpu.memory_space<vmem>>, %arg17: memref<1x8x128xbf16, #tpu.memory_space<vmem>>) attributes {dimension_semantics = [#tpu.dimension_semantics<parallel>], iteration_bounds = array<i64: 2>, scalar_prefetch = 0 : i64, scratch_operands = 0 : i64, tpu.core_type = #tpu.core_type<tc>, window_params = [{transform_indices = @transform_0, window_bounds = array<i64: 1, 8, 128>}, {transform_indices = @transform_1, window_bounds = array<i64: 1, 16, 128>}, {pipeline_mode = #tpu.pipeline_mode<synchronous>, transform_indices = @transform_2, window_bounds = array<i64: 128, 128>}, {pipeline_mode = #tpu.pipeline_mode<synchronous>, transform_indices = @transform_3, window_bounds = array<i64: 128, 128>}, {pipeline_mode = #tpu.pipeline_mode<synchronous>, transform_indices = @transform_4, window_bounds = array<i64: 128, 128>}, {pipeline_mode = #tpu.pipeline_mode<synchronous>, transform_indices = @transform_5, window_bounds = array<i64: 1, 128>}, {pipeline_mode = #tpu.pipeline_mode<synchronous>, transform_indices = @transform_6, window_bounds = array<i64: 1, 128>}, {pipeline_mode = #tpu.pipeline_mode<synchronous>, transform_indices = @transform_7, window_bounds = array<i64: 1, 128>}, {pipeline_mode = #tpu.pipeline_mode<synchronous>, transform_indices = @transform_8, window_bounds = array<i64: 128, 128>}, {pipeline_mode = #tpu.pipeline_mode<synchronous>, transform_indices = @transform_9, window_bounds = array<i64: 1, 128>}, {pipeline_mode = #tpu.pipeline_mode<synchronous>, transform_indices = @transform_10, window_bounds = array<i64: 1, 128>}, {pipeline_mode = #tpu.pipeline_mode<synchronous>, transform_indices = @transform_11, window_bounds = array<i64: 1, 128>}, {pipeline_mode = #tpu.pipeline_mode<synchronous>, transform_indices = @transform_12, window_bounds = array<i64: 128, 256>}, {pipeline_mode = #tpu.pipeline_mode<synchronous>, transform_indices = @transform_13, window_bounds = array<i64: 1, 256>}, {pipeline_mode = #tpu.pipeline_mode<synchronous>, transform_indices = @transform_14, window_bounds = array<i64: 256, 128>}, {pipeline_mode = #tpu.pipeline_mode<synchronous>, transform_indices = @transform_15, window_bounds = array<i64: 1, 128>}, {transform_indices = @transform_16, window_bounds = array<i64: 1, 8, 128>}]} {
    %c0 = arith.constant 0 : index
    %c0_0 = arith.constant 0 : index
    %c0_1 = arith.constant 0 : index
    %0 = vector.load %arg1[%c0, %c0_0, %c0_1] : memref<1x8x128xbf16, #tpu.memory_space<vmem>>, vector<1x8x128xbf16>
    %c0_2 = arith.constant 0 : index
    %c0_3 = arith.constant 0 : index
    %c0_4 = arith.constant 0 : index
    %1 = vector.load %arg2[%c0_2, %c0_3, %c0_4] : memref<1x16x128xbf16, #tpu.memory_space<vmem>>, vector<1x16x128xbf16>
    %c0_5 = arith.constant 0 : index
    %c0_6 = arith.constant 0 : index
    %2 = vector.load %arg3[%c0_5, %c0_6] : memref<128x128xbf16, #tpu.memory_space<vmem>>, vector<128x128xbf16>
    %c0_7 = arith.constant 0 : index
    %c0_8 = arith.constant 0 : index
    %3 = vector.load %arg4[%c0_7, %c0_8] : memref<128x128xbf16, #tpu.memory_space<vmem>>, vector<128x128xbf16>
    %c0_9 = arith.constant 0 : index
    %c0_10 = arith.constant 0 : index
    %4 = vector.load %arg5[%c0_9, %c0_10] : memref<128x128xbf16, #tpu.memory_space<vmem>>, vector<128x128xbf16>
    %c0_11 = arith.constant 0 : index
    %c0_12 = arith.constant 0 : index
    %5 = vector.load %arg6[%c0_11, %c0_12] : memref<1x128xf32, #tpu.memory_space<vmem>>, vector<1x128xf32>
    %c0_13 = arith.constant 0 : index
    %c0_14 = arith.constant 0 : index
    %6 = vector.load %arg7[%c0_13, %c0_14] : memref<1x128xf32, #tpu.memory_space<vmem>>, vector<1x128xf32>
    %c0_15 = arith.constant 0 : index
    %c0_16 = arith.constant 0 : index
    %7 = vector.load %arg8[%c0_15, %c0_16] : memref<1x128xf32, #tpu.memory_space<vmem>>, vector<1x128xf32>
    %c0_17 = arith.constant 0 : index
    %c0_18 = arith.constant 0 : index
    %8 = vector.load %arg9[%c0_17, %c0_18] : memref<128x128xbf16, #tpu.memory_space<vmem>>, vector<128x128xbf16>
    %c0_19 = arith.constant 0 : index
    %c0_20 = arith.constant 0 : index
    %9 = vector.load %arg10[%c0_19, %c0_20] : memref<1x128xf32, #tpu.memory_space<vmem>>, vector<1x128xf32>
    %c0_21 = arith.constant 0 : index
    %c0_22 = arith.constant 0 : index
    %10 = vector.load %arg11[%c0_21, %c0_22] : memref<1x128xf32, #tpu.memory_space<vmem>>, vector<1x128xf32>
    %c0_23 = arith.constant 0 : index
    %c0_24 = arith.constant 0 : index
    %11 = vector.load %arg12[%c0_23, %c0_24] : memref<1x128xf32, #tpu.memory_space<vmem>>, vector<1x128xf32>
    %12 = vector.shape_cast %0 : vector<1x8x128xbf16> to vector<8x128xbf16>
    %13 = vector.shape_cast %0 : vector<1x8x128xbf16> to vector<8x128xbf16>
    %cst = arith.constant dense<0.000000e+00> : vector<8x128xf32>
    %14 = tpu.matmul %12, %2, %cst {dimension_numbers = #tpu.dot_dimension_numbers<[1], [0], [0], [1], [0, 0, 1, 1], [], []>} : vector<8x128xbf16>, vector<128x128xbf16>, vector<8x128xf32> -> vector<8x128xf32>
    %15 = vector.broadcast %5 : vector<1x128xf32> to vector<8x128xf32>
    %16 = arith.addf %14, %15 : vector<8x128xf32>
    %17 = arith.truncf %16 : vector<8x128xf32> to vector<8x128xbf16>
    %cst_25 = arith.constant dense<0.000000e+00> : vector<8x128xf32>
    %18 = tpu.matmul %13, %3, %cst_25 {dimension_numbers = #tpu.dot_dimension_numbers<[1], [0], [0], [1], [0, 0, 1, 1], [], []>} : vector<8x128xbf16>, vector<128x128xbf16>, vector<8x128xf32> -> vector<8x128xf32>
    %19 = vector.broadcast %6 : vector<1x128xf32> to vector<8x128xf32>
    %20 = arith.addf %18, %19 : vector<8x128xf32>
    %21 = arith.truncf %20 : vector<8x128xf32> to vector<8x128xbf16>
    %cst_26 = arith.constant dense<0.000000e+00> : vector<8x128xf32>
    %22 = tpu.matmul %13, %4, %cst_26 {dimension_numbers = #tpu.dot_dimension_numbers<[1], [0], [0], [1], [0, 0, 1, 1], [], []>} : vector<8x128xbf16>, vector<128x128xbf16>, vector<8x128xf32> -> vector<8x128xf32>
    %23 = vector.broadcast %7 : vector<1x128xf32> to vector<8x128xf32>
    %24 = arith.addf %22, %23 : vector<8x128xf32>
    %25 = arith.truncf %24 : vector<8x128xf32> to vector<8x128xbf16>
    %26 = vector.shape_cast %17 : vector<8x128xbf16> to vector<1x8x128xbf16>
    %27 = vector.shape_cast %21 : vector<8x128xbf16> to vector<1x8x128xbf16>
    %28 = vector.shape_cast %25 : vector<8x128xbf16> to vector<1x8x128xbf16>
    %29 = vector.extract_strided_slice %26 {offsets = [0, 0, 0], sizes = [1, 8, 32], strides = [1, 1, 1]} : vector<1x8x128xbf16> to vector<1x8x32xbf16>
    %30 = vector.extract_strided_slice %27 {offsets = [0, 0, 0], sizes = [1, 8, 32], strides = [1, 1, 1]} : vector<1x8x128xbf16> to vector<1x8x32xbf16>
    %31 = vector.extract_strided_slice %28 {offsets = [0, 0, 0], sizes = [1, 8, 32], strides = [1, 1, 1]} : vector<1x8x128xbf16> to vector<1x8x32xbf16>
    "tpu.trace_start"() <{level = 10 : i32, message = "bqe,bke->bqk"}> : () -> ()
    %cst_27 = arith.constant dense<0.000000e+00> : vector<1x8x8xf32>
    %32 = tpu.matmul %29, %30, %cst_27 {dimension_numbers = #tpu.dot_dimension_numbers<[2], [2], [1], [1], [0, 0, 0, 1, 1, 1], [0], [0]>} : vector<1x8x32xbf16>, vector<1x8x32xbf16>, vector<1x8x8xf32> -> vector<1x8x8xf32>
    "tpu.trace_stop"() : () -> ()
    %cst_28 = arith.constant dense<0xFF800000> : vector<1x8xf32>
    %33 = vector.multi_reduction <maximumf>, %32, %cst_28 [2] : vector<1x8x8xf32> to vector<1x8xf32>
    %34 = vector.shape_cast %33 : vector<1x8xf32> to vector<1x8x1xf32>
    %35 = vector.broadcast %34 : vector<1x8x1xf32> to vector<1x8x8xf32>
    %36 = arith.subf %32, %35 : vector<1x8x8xf32>
    %37 = math.exp %36 : vector<1x8x8xf32>
    %cst_29 = arith.constant dense<0.000000e+00> : vector<1x8xf32>
    %38 = vector.multi_reduction <add>, %37, %cst_29 [2] : vector<1x8x8xf32> to vector<1x8xf32>
    %39 = vector.shape_cast %38 : vector<1x8xf32> to vector<1x8x1xf32>
    %40 = tpu.reciprocal %39 {approx = true} : vector<1x8x1xf32> -> vector<1x8x1xf32>
    %41 = vector.broadcast %40 : vector<1x8x1xf32> to vector<1x8x8xf32>
    %42 = arith.mulf %37, %41 : vector<1x8x8xf32>
    %43 = arith.truncf %42 : vector<1x8x8xf32> to vector<1x8x8xbf16>
    "tpu.trace_start"() <{level = 10 : i32, message = "bqk,bke->bqe"}> : () -> ()
    %cst_30 = arith.constant dense<0.000000e+00> : vector<1x8x32xf32>
    %44 = tpu.matmul %43, %31, %cst_30 {dimension_numbers = #tpu.dot_dimension_numbers<[2], [1], [1], [2], [0, 0, 0, 1, 1, 2], [0], [0]>} : vector<1x8x8xbf16>, vector<1x8x32xbf16>, vector<1x8x32xf32> -> vector<1x8x32xf32>
    "tpu.trace_stop"() : () -> ()
    %45 = vector.extract_strided_slice %26 {offsets = [0, 0, 32], sizes = [1, 8, 32], strides = [1, 1, 1]} : vector<1x8x128xbf16> to vector<1x8x32xbf16>
    %46 = vector.extract_strided_slice %27 {offsets = [0, 0, 32], sizes = [1, 8, 32], strides = [1, 1, 1]} : vector<1x8x128xbf16> to vector<1x8x32xbf16>
    %47 = vector.extract_strided_slice %28 {offsets = [0, 0, 32], sizes = [1, 8, 32], strides = [1, 1, 1]} : vector<1x8x128xbf16> to vector<1x8x32xbf16>
    "tpu.trace_start"() <{level = 10 : i32, message = "bqe,bke->bqk"}> : () -> ()
    %cst_31 = arith.constant dense<0.000000e+00> : vector<1x8x8xf32>
    %48 = tpu.matmul %45, %46, %cst_31 {dimension_numbers = #tpu.dot_dimension_numbers<[2], [2], [1], [1], [0, 0, 0, 1, 1, 1], [0], [0]>} : vector<1x8x32xbf16>, vector<1x8x32xbf16>, vector<1x8x8xf32> -> vector<1x8x8xf32>
    "tpu.trace_stop"() : () -> ()
    %cst_32 = arith.constant dense<0xFF800000> : vector<1x8xf32>
    %49 = vector.multi_reduction <maximumf>, %48, %cst_32 [2] : vector<1x8x8xf32> to vector<1x8xf32>
    %50 = vector.shape_cast %49 : vector<1x8xf32> to vector<1x8x1xf32>
    %51 = vector.broadcast %50 : vector<1x8x1xf32> to vector<1x8x8xf32>
    %52 = arith.subf %48, %51 : vector<1x8x8xf32>
    %53 = math.exp %52 : vector<1x8x8xf32>
    %cst_33 = arith.constant dense<0.000000e+00> : vector<1x8xf32>
    %54 = vector.multi_reduction <add>, %53, %cst_33 [2] : vector<1x8x8xf32> to vector<1x8xf32>
    %55 = vector.shape_cast %54 : vector<1x8xf32> to vector<1x8x1xf32>
    %56 = tpu.reciprocal %55 {approx = true} : vector<1x8x1xf32> -> vector<1x8x1xf32>
    %57 = vector.broadcast %56 : vector<1x8x1xf32> to vector<1x8x8xf32>
    %58 = arith.mulf %53, %57 : vector<1x8x8xf32>
    %59 = arith.truncf %58 : vector<1x8x8xf32> to vector<1x8x8xbf16>
    "tpu.trace_start"() <{level = 10 : i32, message = "bqk,bke->bqe"}> : () -> ()
    %cst_34 = arith.constant dense<0.000000e+00> : vector<1x8x32xf32>
    %60 = tpu.matmul %59, %47, %cst_34 {dimension_numbers = #tpu.dot_dimension_numbers<[2], [1], [1], [2], [0, 0, 0, 1, 1, 2], [0], [0]>} : vector<1x8x8xbf16>, vector<1x8x32xbf16>, vector<1x8x32xf32> -> vector<1x8x32xf32>
    "tpu.trace_stop"() : () -> ()
    %61 = vector.extract_strided_slice %26 {offsets = [0, 0, 64], sizes = [1, 8, 32], strides = [1, 1, 1]} : vector<1x8x128xbf16> to vector<1x8x32xbf16>
    %62 = vector.extract_strided_slice %27 {offsets = [0, 0, 64], sizes = [1, 8, 32], strides = [1, 1, 1]} : vector<1x8x128xbf16> to vector<1x8x32xbf16>
    %63 = vector.extract_strided_slice %28 {offsets = [0, 0, 64], sizes = [1, 8, 32], strides = [1, 1, 1]} : vector<1x8x128xbf16> to vector<1x8x32xbf16>
    "tpu.trace_start"() <{level = 10 : i32, message = "bqe,bke->bqk"}> : () -> ()
    %cst_35 = arith.constant dense<0.000000e+00> : vector<1x8x8xf32>
    %64 = tpu.matmul %61, %62, %cst_35 {dimension_numbers = #tpu.dot_dimension_numbers<[2], [2], [1], [1], [0, 0, 0, 1, 1, 1], [0], [0]>} : vector<1x8x32xbf16>, vector<1x8x32xbf16>, vector<1x8x8xf32> -> vector<1x8x8xf32>
    "tpu.trace_stop"() : () -> ()
    %cst_36 = arith.constant dense<0xFF800000> : vector<1x8xf32>
    %65 = vector.multi_reduction <maximumf>, %64, %cst_36 [2] : vector<1x8x8xf32> to vector<1x8xf32>
    %66 = vector.shape_cast %65 : vector<1x8xf32> to vector<1x8x1xf32>
    %67 = vector.broadcast %66 : vector<1x8x1xf32> to vector<1x8x8xf32>
    %68 = arith.subf %64, %67 : vector<1x8x8xf32>
    %69 = math.exp %68 : vector<1x8x8xf32>
    %cst_37 = arith.constant dense<0.000000e+00> : vector<1x8xf32>
    %70 = vector.multi_reduction <add>, %69, %cst_37 [2] : vector<1x8x8xf32> to vector<1x8xf32>
    %71 = vector.shape_cast %70 : vector<1x8xf32> to vector<1x8x1xf32>
    %72 = tpu.reciprocal %71 {approx = true} : vector<1x8x1xf32> -> vector<1x8x1xf32>
    %73 = vector.broadcast %72 : vector<1x8x1xf32> to vector<1x8x8xf32>
    %74 = arith.mulf %69, %73 : vector<1x8x8xf32>
    %75 = arith.truncf %74 : vector<1x8x8xf32> to vector<1x8x8xbf16>
    "tpu.trace_start"() <{level = 10 : i32, message = "bqk,bke->bqe"}> : () -> ()
    %cst_38 = arith.constant dense<0.000000e+00> : vector<1x8x32xf32>
    %76 = tpu.matmul %75, %63, %cst_38 {dimension_numbers = #tpu.dot_dimension_numbers<[2], [1], [1], [2], [0, 0, 0, 1, 1, 2], [0], [0]>} : vector<1x8x8xbf16>, vector<1x8x32xbf16>, vector<1x8x32xf32> -> vector<1x8x32xf32>
    "tpu.trace_stop"() : () -> ()
    %77 = vector.extract_strided_slice %26 {offsets = [0, 0, 96], sizes = [1, 8, 32], strides = [1, 1, 1]} : vector<1x8x128xbf16> to vector<1x8x32xbf16>
    %78 = vector.extract_strided_slice %27 {offsets = [0, 0, 96], sizes = [1, 8, 32], strides = [1, 1, 1]} : vector<1x8x128xbf16> to vector<1x8x32xbf16>
    %79 = vector.extract_strided_slice %28 {offsets = [0, 0, 96], sizes = [1, 8, 32], strides = [1, 1, 1]} : vector<1x8x128xbf16> to vector<1x8x32xbf16>
    "tpu.trace_start"() <{level = 10 : i32, message = "bqe,bke->bqk"}> : () -> ()
    %cst_39 = arith.constant dense<0.000000e+00> : vector<1x8x8xf32>
    %80 = tpu.matmul %77, %78, %cst_39 {dimension_numbers = #tpu.dot_dimension_numbers<[2], [2], [1], [1], [0, 0, 0, 1, 1, 1], [0], [0]>} : vector<1x8x32xbf16>, vector<1x8x32xbf16>, vector<1x8x8xf32> -> vector<1x8x8xf32>
    "tpu.trace_stop"() : () -> ()
    %cst_40 = arith.constant dense<0xFF800000> : vector<1x8xf32>
    %81 = vector.multi_reduction <maximumf>, %80, %cst_40 [2] : vector<1x8x8xf32> to vector<1x8xf32>
    %82 = vector.shape_cast %81 : vector<1x8xf32> to vector<1x8x1xf32>
    %83 = vector.broadcast %82 : vector<1x8x1xf32> to vector<1x8x8xf32>
    %84 = arith.subf %80, %83 : vector<1x8x8xf32>
    %85 = math.exp %84 : vector<1x8x8xf32>
    %cst_41 = arith.constant dense<0.000000e+00> : vector<1x8xf32>
    %86 = vector.multi_reduction <add>, %85, %cst_41 [2] : vector<1x8x8xf32> to vector<1x8xf32>
    %87 = vector.shape_cast %86 : vector<1x8xf32> to vector<1x8x1xf32>
    %88 = tpu.reciprocal %87 {approx = true} : vector<1x8x1xf32> -> vector<1x8x1xf32>
    %89 = vector.broadcast %88 : vector<1x8x1xf32> to vector<1x8x8xf32>
    %90 = arith.mulf %85, %89 : vector<1x8x8xf32>
    %91 = arith.truncf %90 : vector<1x8x8xf32> to vector<1x8x8xbf16>
    "tpu.trace_start"() <{level = 10 : i32, message = "bqk,bke->bqe"}> : () -> ()
    %cst_42 = arith.constant dense<0.000000e+00> : vector<1x8x32xf32>
    %92 = tpu.matmul %91, %79, %cst_42 {dimension_numbers = #tpu.dot_dimension_numbers<[2], [1], [1], [2], [0, 0, 0, 1, 1, 2], [0], [0]>} : vector<1x8x8xbf16>, vector<1x8x32xbf16>, vector<1x8x32xf32> -> vector<1x8x32xf32>
    "tpu.trace_stop"() : () -> ()
    %93 = tpu.concatenate %44, %60, %76, %92 in 2 : vector<1x8x32xf32>, vector<1x8x32xf32>, vector<1x8x32xf32>, vector<1x8x32xf32> -> vector<1x8x128xf32>
    %94 = arith.truncf %93 : vector<1x8x128xf32> to vector<1x8x128xbf16>
    %95 = vector.shape_cast %94 : vector<1x8x128xbf16> to vector<8x128xbf16>
    %cst_43 = arith.constant dense<0.000000e+00> : vector<8x128xf32>
    %96 = tpu.matmul %95, %8, %cst_43 {dimension_numbers = #tpu.dot_dimension_numbers<[1], [0], [0], [1], [0, 0, 1, 1], [], []>} : vector<8x128xbf16>, vector<128x128xbf16>, vector<8x128xf32> -> vector<8x128xf32>
    %97 = vector.broadcast %9 : vector<1x128xf32> to vector<8x128xf32>
    %98 = arith.addf %96, %97 : vector<8x128xf32>
    %99 = vector.shape_cast %98 : vector<8x128xf32> to vector<1x8x128xf32>
    %100 = arith.truncf %99 : vector<1x8x128xf32> to vector<1x8x128xbf16>
    %101 = vector.shape_cast %100 : vector<1x8x128xbf16> to vector<8x128xbf16>
    %102 = vector.shape_cast %1 : vector<1x16x128xbf16> to vector<16x128xbf16>
    %cst_44 = arith.constant dense<0.000000e+00> : vector<8x128xf32>
    %103 = tpu.matmul %101, %2, %cst_44 {dimension_numbers = #tpu.dot_dimension_numbers<[1], [0], [0], [1], [0, 0, 1, 1], [], []>} : vector<8x128xbf16>, vector<128x128xbf16>, vector<8x128xf32> -> vector<8x128xf32>
    %104 = vector.broadcast %5 : vector<1x128xf32> to vector<8x128xf32>
    %105 = arith.addf %103, %104 : vector<8x128xf32>
    %106 = arith.truncf %105 : vector<8x128xf32> to vector<8x128xbf16>
    %cst_45 = arith.constant dense<0.000000e+00> : vector<16x128xf32>
    %107 = tpu.matmul %102, %3, %cst_45 {dimension_numbers = #tpu.dot_dimension_numbers<[1], [0], [0], [1], [0, 0, 1, 1], [], []>} : vector<16x128xbf16>, vector<128x128xbf16>, vector<16x128xf32> -> vector<16x128xf32>
    %108 = vector.broadcast %6 : vector<1x128xf32> to vector<16x128xf32>
    %109 = arith.addf %107, %108 : vector<16x128xf32>
    %110 = arith.truncf %109 : vector<16x128xf32> to vector<16x128xbf16>
    %cst_46 = arith.constant dense<0.000000e+00> : vector<16x128xf32>
    %111 = tpu.matmul %102, %4, %cst_46 {dimension_numbers = #tpu.dot_dimension_numbers<[1], [0], [0], [1], [0, 0, 1, 1], [], []>} : vector<16x128xbf16>, vector<128x128xbf16>, vector<16x128xf32> -> vector<16x128xf32>
    %112 = vector.broadcast %7 : vector<1x128xf32> to vector<16x128xf32>
    %113 = arith.addf %111, %112 : vector<16x128xf32>
    %114 = arith.truncf %113 : vector<16x128xf32> to vector<16x128xbf16>
    %115 = vector.shape_cast %106 : vector<8x128xbf16> to vector<1x8x128xbf16>
    %116 = vector.shape_cast %110 : vector<16x128xbf16> to vector<1x16x128xbf16>
    %117 = vector.shape_cast %114 : vector<16x128xbf16> to vector<1x16x128xbf16>
    %118 = vector.extract_strided_slice %115 {offsets = [0, 0, 0], sizes = [1, 8, 32], strides = [1, 1, 1]} : vector<1x8x128xbf16> to vector<1x8x32xbf16>
    %119 = vector.extract_strided_slice %116 {offsets = [0, 0, 0], sizes = [1, 16, 32], strides = [1, 1, 1]} : vector<1x16x128xbf16> to vector<1x16x32xbf16>
    %120 = vector.extract_strided_slice %117 {offsets = [0, 0, 0], sizes = [1, 16, 32], strides = [1, 1, 1]} : vector<1x16x128xbf16> to vector<1x16x32xbf16>
    "tpu.trace_start"() <{level = 10 : i32, message = "bqe,bke->bqk"}> : () -> ()
    %cst_47 = arith.constant dense<0.000000e+00> : vector<1x8x16xf32>
    %121 = tpu.matmul %118, %119, %cst_47 {dimension_numbers = #tpu.dot_dimension_numbers<[2], [2], [1], [1], [0, 0, 0, 1, 1, 1], [0], [0]>} : vector<1x8x32xbf16>, vector<1x16x32xbf16>, vector<1x8x16xf32> -> vector<1x8x16xf32>
    "tpu.trace_stop"() : () -> ()
    %cst_48 = arith.constant dense<0xFF800000> : vector<1x8xf32>
    %122 = vector.multi_reduction <maximumf>, %121, %cst_48 [2] : vector<1x8x16xf32> to vector<1x8xf32>
    %123 = vector.shape_cast %122 : vector<1x8xf32> to vector<1x8x1xf32>
    %124 = vector.broadcast %123 : vector<1x8x1xf32> to vector<1x8x16xf32>
    %125 = arith.subf %121, %124 : vector<1x8x16xf32>
    %126 = math.exp %125 : vector<1x8x16xf32>
    %cst_49 = arith.constant dense<0.000000e+00> : vector<1x8xf32>
    %127 = vector.multi_reduction <add>, %126, %cst_49 [2] : vector<1x8x16xf32> to vector<1x8xf32>
    %128 = vector.shape_cast %127 : vector<1x8xf32> to vector<1x8x1xf32>
    %129 = tpu.reciprocal %128 {approx = true} : vector<1x8x1xf32> -> vector<1x8x1xf32>
    %130 = vector.broadcast %129 : vector<1x8x1xf32> to vector<1x8x16xf32>
    %131 = arith.mulf %126, %130 : vector<1x8x16xf32>
    %132 = arith.truncf %131 : vector<1x8x16xf32> to vector<1x8x16xbf16>
    "tpu.trace_start"() <{level = 10 : i32, message = "bqk,bke->bqe"}> : () -> ()
    %cst_50 = arith.constant dense<0.000000e+00> : vector<1x8x32xf32>
    %133 = tpu.matmul %132, %120, %cst_50 {dimension_numbers = #tpu.dot_dimension_numbers<[2], [1], [1], [2], [0, 0, 0, 1, 1, 2], [0], [0]>} : vector<1x8x16xbf16>, vector<1x16x32xbf16>, vector<1x8x32xf32> -> vector<1x8x32xf32>
    "tpu.trace_stop"() : () -> ()
    %134 = vector.extract_strided_slice %115 {offsets = [0, 0, 32], sizes = [1, 8, 32], strides = [1, 1, 1]} : vector<1x8x128xbf16> to vector<1x8x32xbf16>
    %135 = vector.extract_strided_slice %116 {offsets = [0, 0, 32], sizes = [1, 16, 32], strides = [1, 1, 1]} : vector<1x16x128xbf16> to vector<1x16x32xbf16>
    %136 = vector.extract_strided_slice %117 {offsets = [0, 0, 32], sizes = [1, 16, 32], strides = [1, 1, 1]} : vector<1x16x128xbf16> to vector<1x16x32xbf16>
    "tpu.trace_start"() <{level = 10 : i32, message = "bqe,bke->bqk"}> : () -> ()
    %cst_51 = arith.constant dense<0.000000e+00> : vector<1x8x16xf32>
    %137 = tpu.matmul %134, %135, %cst_51 {dimension_numbers = #tpu.dot_dimension_numbers<[2], [2], [1], [1], [0, 0, 0, 1, 1, 1], [0], [0]>} : vector<1x8x32xbf16>, vector<1x16x32xbf16>, vector<1x8x16xf32> -> vector<1x8x16xf32>
    "tpu.trace_stop"() : () -> ()
    %cst_52 = arith.constant dense<0xFF800000> : vector<1x8xf32>
    %138 = vector.multi_reduction <maximumf>, %137, %cst_52 [2] : vector<1x8x16xf32> to vector<1x8xf32>
    %139 = vector.shape_cast %138 : vector<1x8xf32> to vector<1x8x1xf32>
    %140 = vector.broadcast %139 : vector<1x8x1xf32> to vector<1x8x16xf32>
    %141 = arith.subf %137, %140 : vector<1x8x16xf32>
    %142 = math.exp %141 : vector<1x8x16xf32>
    %cst_53 = arith.constant dense<0.000000e+00> : vector<1x8xf32>
    %143 = vector.multi_reduction <add>, %142, %cst_53 [2] : vector<1x8x16xf32> to vector<1x8xf32>
    %144 = vector.shape_cast %143 : vector<1x8xf32> to vector<1x8x1xf32>
    %145 = tpu.reciprocal %144 {approx = true} : vector<1x8x1xf32> -> vector<1x8x1xf32>
    %146 = vector.broadcast %145 : vector<1x8x1xf32> to vector<1x8x16xf32>
    %147 = arith.mulf %142, %146 : vector<1x8x16xf32>
    %148 = arith.truncf %147 : vector<1x8x16xf32> to vector<1x8x16xbf16>
    "tpu.trace_start"() <{level = 10 : i32, message = "bqk,bke->bqe"}> : () -> ()
    %cst_54 = arith.constant dense<0.000000e+00> : vector<1x8x32xf32>
    %149 = tpu.matmul %148, %136, %cst_54 {dimension_numbers = #tpu.dot_dimension_numbers<[2], [1], [1], [2], [0, 0, 0, 1, 1, 2], [0], [0]>} : vector<1x8x16xbf16>, vector<1x16x32xbf16>, vector<1x8x32xf32> -> vector<1x8x32xf32>
    "tpu.trace_stop"() : () -> ()
    %150 = vector.extract_strided_slice %115 {offsets = [0, 0, 64], sizes = [1, 8, 32], strides = [1, 1, 1]} : vector<1x8x128xbf16> to vector<1x8x32xbf16>
    %151 = vector.extract_strided_slice %116 {offsets = [0, 0, 64], sizes = [1, 16, 32], strides = [1, 1, 1]} : vector<1x16x128xbf16> to vector<1x16x32xbf16>
    %152 = vector.extract_strided_slice %117 {offsets = [0, 0, 64], sizes = [1, 16, 32], strides = [1, 1, 1]} : vector<1x16x128xbf16> to vector<1x16x32xbf16>
    "tpu.trace_start"() <{level = 10 : i32, message = "bqe,bke->bqk"}> : () -> ()
    %cst_55 = arith.constant dense<0.000000e+00> : vector<1x8x16xf32>
    %153 = tpu.matmul %150, %151, %cst_55 {dimension_numbers = #tpu.dot_dimension_numbers<[2], [2], [1], [1], [0, 0, 0, 1, 1, 1], [0], [0]>} : vector<1x8x32xbf16>, vector<1x16x32xbf16>, vector<1x8x16xf32> -> vector<1x8x16xf32>
    "tpu.trace_stop"() : () -> ()
    %cst_56 = arith.constant dense<0xFF800000> : vector<1x8xf32>
    %154 = vector.multi_reduction <maximumf>, %153, %cst_56 [2] : vector<1x8x16xf32> to vector<1x8xf32>
    %155 = vector.shape_cast %154 : vector<1x8xf32> to vector<1x8x1xf32>
    %156 = vector.broadcast %155 : vector<1x8x1xf32> to vector<1x8x16xf32>
    %157 = arith.subf %153, %156 : vector<1x8x16xf32>
    %158 = math.exp %157 : vector<1x8x16xf32>
    %cst_57 = arith.constant dense<0.000000e+00> : vector<1x8xf32>
    %159 = vector.multi_reduction <add>, %158, %cst_57 [2] : vector<1x8x16xf32> to vector<1x8xf32>
    %160 = vector.shape_cast %159 : vector<1x8xf32> to vector<1x8x1xf32>
    %161 = tpu.reciprocal %160 {approx = true} : vector<1x8x1xf32> -> vector<1x8x1xf32>
    %162 = vector.broadcast %161 : vector<1x8x1xf32> to vector<1x8x16xf32>
    %163 = arith.mulf %158, %162 : vector<1x8x16xf32>
    %164 = arith.truncf %163 : vector<1x8x16xf32> to vector<1x8x16xbf16>
    "tpu.trace_start"() <{level = 10 : i32, message = "bqk,bke->bqe"}> : () -> ()
    %cst_58 = arith.constant dense<0.000000e+00> : vector<1x8x32xf32>
    %165 = tpu.matmul %164, %152, %cst_58 {dimension_numbers = #tpu.dot_dimension_numbers<[2], [1], [1], [2], [0, 0, 0, 1, 1, 2], [0], [0]>} : vector<1x8x16xbf16>, vector<1x16x32xbf16>, vector<1x8x32xf32> -> vector<1x8x32xf32>
    "tpu.trace_stop"() : () -> ()
    %166 = vector.extract_strided_slice %115 {offsets = [0, 0, 96], sizes = [1, 8, 32], strides = [1, 1, 1]} : vector<1x8x128xbf16> to vector<1x8x32xbf16>
    %167 = vector.extract_strided_slice %116 {offsets = [0, 0, 96], sizes = [1, 16, 32], strides = [1, 1, 1]} : vector<1x16x128xbf16> to vector<1x16x32xbf16>
    %168 = vector.extract_strided_slice %117 {offsets = [0, 0, 96], sizes = [1, 16, 32], strides = [1, 1, 1]} : vector<1x16x128xbf16> to vector<1x16x32xbf16>
    "tpu.trace_start"() <{level = 10 : i32, message = "bqe,bke->bqk"}> : () -> ()
    %cst_59 = arith.constant dense<0.000000e+00> : vector<1x8x16xf32>
    %169 = tpu.matmul %166, %167, %cst_59 {dimension_numbers = #tpu.dot_dimension_numbers<[2], [2], [1], [1], [0, 0, 0, 1, 1, 1], [0], [0]>} : vector<1x8x32xbf16>, vector<1x16x32xbf16>, vector<1x8x16xf32> -> vector<1x8x16xf32>
    "tpu.trace_stop"() : () -> ()
    %cst_60 = arith.constant dense<0xFF800000> : vector<1x8xf32>
    %170 = vector.multi_reduction <maximumf>, %169, %cst_60 [2] : vector<1x8x16xf32> to vector<1x8xf32>
    %171 = vector.shape_cast %170 : vector<1x8xf32> to vector<1x8x1xf32>
    %172 = vector.broadcast %171 : vector<1x8x1xf32> to vector<1x8x16xf32>
    %173 = arith.subf %169, %172 : vector<1x8x16xf32>
    %174 = math.exp %173 : vector<1x8x16xf32>
    %cst_61 = arith.constant dense<0.000000e+00> : vector<1x8xf32>
    %175 = vector.multi_reduction <add>, %174, %cst_61 [2] : vector<1x8x16xf32> to vector<1x8xf32>
    %176 = vector.shape_cast %175 : vector<1x8xf32> to vector<1x8x1xf32>
    %177 = tpu.reciprocal %176 {approx = true} : vector<1x8x1xf32> -> vector<1x8x1xf32>
    %178 = vector.broadcast %177 : vector<1x8x1xf32> to vector<1x8x16xf32>
    %179 = arith.mulf %174, %178 : vector<1x8x16xf32>
    %180 = arith.truncf %179 : vector<1x8x16xf32> to vector<1x8x16xbf16>
    "tpu.trace_start"() <{level = 10 : i32, message = "bqk,bke->bqe"}> : () -> ()
    %cst_62 = arith.constant dense<0.000000e+00> : vector<1x8x32xf32>
    %181 = tpu.matmul %180, %168, %cst_62 {dimension_numbers = #tpu.dot_dimension_numbers<[2], [1], [1], [2], [0, 0, 0, 1, 1, 2], [0], [0]>} : vector<1x8x16xbf16>, vector<1x16x32xbf16>, vector<1x8x32xf32> -> vector<1x8x32xf32>
    "tpu.trace_stop"() : () -> ()
    %182 = tpu.concatenate %133, %149, %165, %181 in 2 : vector<1x8x32xf32>, vector<1x8x32xf32>, vector<1x8x32xf32>, vector<1x8x32xf32> -> vector<1x8x128xf32>
    %183 = arith.truncf %182 : vector<1x8x128xf32> to vector<1x8x128xbf16>
    %184 = vector.shape_cast %183 : vector<1x8x128xbf16> to vector<8x128xbf16>
    %cst_63 = arith.constant dense<0.000000e+00> : vector<8x128xf32>
    %185 = tpu.matmul %184, %8, %cst_63 {dimension_numbers = #tpu.dot_dimension_numbers<[1], [0], [0], [1], [0, 0, 1, 1], [], []>} : vector<8x128xbf16>, vector<128x128xbf16>, vector<8x128xf32> -> vector<8x128xf32>
    %186 = vector.broadcast %9 : vector<1x128xf32> to vector<8x128xf32>
    %187 = arith.addf %185, %186 : vector<8x128xf32>
    %188 = vector.shape_cast %187 : vector<8x128xf32> to vector<1x8x128xf32>
    %cst_64 = arith.constant dense<0.000000e+00> : vector<1x8xf32>
    %189 = vector.multi_reduction <add>, %188, %cst_64 [2] : vector<1x8x128xf32> to vector<1x8xf32>
    %190 = vector.shape_cast %189 : vector<1x8xf32> to vector<1x8x1xf32>
    %cst_65 = arith.constant 1.280000e+02 : f32
    %191 = vector.broadcast %cst_65 : f32 to vector<1x8x1xf32>
    %192 = arith.divf %190, %191 : vector<1x8x1xf32>
    %193 = vector.broadcast %192 : vector<1x8x1xf32> to vector<1x8x128xf32>
    %194 = arith.subf %188, %193 : vector<1x8x128xf32>
    %195 = arith.mulf %194, %194 : vector<1x8x128xf32>
    %cst_66 = arith.constant dense<0.000000e+00> : vector<1x8xf32>
    %196 = vector.multi_reduction <add>, %195, %cst_66 [2] : vector<1x8x128xf32> to vector<1x8xf32>
    %197 = vector.shape_cast %196 : vector<1x8xf32> to vector<1x8x1xf32>
    %cst_67 = arith.constant 1.280000e+02 : f32
    %198 = vector.broadcast %cst_67 : f32 to vector<1x8x1xf32>
    %199 = arith.divf %197, %198 : vector<1x8x1xf32>
    %200 = vector.broadcast %192 : vector<1x8x1xf32> to vector<1x8x128xf32>
    %201 = arith.subf %188, %200 : vector<1x8x128xf32>
    %cst_68 = arith.constant 9.99999997E-7 : f32
    %202 = vector.broadcast %cst_68 : f32 to vector<1x8x1xf32>
    %203 = arith.addf %199, %202 : vector<1x8x1xf32>
    %204 = math.rsqrt %203 : vector<1x8x1xf32>
    %205 = vector.broadcast %204 : vector<1x8x1xf32> to vector<1x8x128xf32>
    %206 = arith.mulf %201, %205 : vector<1x8x128xf32>
    %207 = vector.shape_cast %10 : vector<1x128xf32> to vector<1x1x128xf32>
    %208 = vector.broadcast %207 : vector<1x1x128xf32> to vector<1x8x128xf32>
    %209 = arith.mulf %206, %208 : vector<1x8x128xf32>
    %210 = vector.shape_cast %11 : vector<1x128xf32> to vector<1x1x128xf32>
    %211 = vector.broadcast %210 : vector<1x1x128xf32> to vector<1x8x128xf32>
    %212 = arith.addf %209, %211 : vector<1x8x128xf32>
    %213 = arith.truncf %212 : vector<1x8x128xf32> to vector<1x8x128xbf16>
    %214 = vector.shape_cast %213 : vector<1x8x128xbf16> to vector<8x128xbf16>
    %c0_69 = arith.constant 0 : index
    %c0_70 = arith.constant 0 : index
    %215 = vector.load %arg13[%c0_69, %c0_70] : memref<128x256xbf16, #tpu.memory_space<vmem>>, vector<128x256xbf16>
    %cst_71 = arith.constant dense<0.000000e+00> : vector<8x256xf32>
    %216 = tpu.matmul %214, %215, %cst_71 {dimension_numbers = #tpu.dot_dimension_numbers<[1], [0], [0], [1], [0, 0, 1, 1], [], []>} : vector<8x128xbf16>, vector<128x256xbf16>, vector<8x256xf32> -> vector<8x256xf32>
    %c0_72 = arith.constant 0 : index
    %c0_73 = arith.constant 0 : index
    %217 = vector.load %arg14[%c0_72, %c0_73] : memref<1x256xf32, #tpu.memory_space<vmem>>, vector<1x256xf32>
    %218 = vector.broadcast %217 : vector<1x256xf32> to vector<8x256xf32>
    %219 = arith.addf %216, %218 : vector<8x256xf32>
    %cst_74 = arith.constant 5.000000e-01 : f32
    %220 = vector.broadcast %cst_74 : f32 to vector<8x256xf32>
    %221 = arith.mulf %220, %219 : vector<8x256xf32>
    %cst_75 = arith.constant 4.471500e-02 : f32
    %222 = vector.broadcast %cst_75 : f32 to vector<8x256xf32>
    %223 = arith.mulf %222, %219 : vector<8x256xf32>
    %224 = arith.mulf %223, %219 : vector<8x256xf32>
    %225 = arith.mulf %224, %219 : vector<8x256xf32>
    %226 = arith.addf %219, %225 : vector<8x256xf32>
    %cst_76 = arith.constant 0.797884583 : f32
    %227 = vector.broadcast %cst_76 : f32 to vector<8x256xf32>
    %228 = arith.mulf %227, %226 : vector<8x256xf32>
    %229 = math.tanh %228 : vector<8x256xf32>
    %cst_77 = arith.constant 1.000000e+00 : f32
    %230 = vector.broadcast %cst_77 : f32 to vector<8x256xf32>
    %231 = arith.addf %230, %229 : vector<8x256xf32>
    %232 = arith.mulf %221, %231 : vector<8x256xf32>
    %233 = arith.truncf %232 : vector<8x256xf32> to vector<8x256xbf16>
    %c0_78 = arith.constant 0 : index
    %c0_79 = arith.constant 0 : index
    %234 = vector.load %arg15[%c0_78, %c0_79] : memref<256x128xbf16, #tpu.memory_space<vmem>>, vector<256x128xbf16>
    %cst_80 = arith.constant dense<0.000000e+00> : vector<8x128xf32>
    %235 = tpu.matmul %233, %234, %cst_80 {dimension_numbers = #tpu.dot_dimension_numbers<[1], [0], [0], [1], [0, 0, 1, 1], [], []>} : vector<8x256xbf16>, vector<256x128xbf16>, vector<8x128xf32> -> vector<8x128xf32>
    %c0_81 = arith.constant 0 : index
    %c0_82 = arith.constant 0 : index
    %236 = vector.load %arg16[%c0_81, %c0_82] : memref<1x128xf32, #tpu.memory_space<vmem>>, vector<1x128xf32>
    %237 = vector.broadcast %236 : vector<1x128xf32> to vector<8x128xf32>
    %238 = arith.addf %235, %237 : vector<8x128xf32>
    %239 = vector.shape_cast %238 : vector<8x128xf32> to vector<1x8x128xf32>
    %240 = arith.addf %239, %188 : vector<1x8x128xf32>
    %241 = arith.truncf %240 : vector<1x8x128xf32> to vector<1x8x128xbf16>
    %c0_83 = arith.constant 0 : index
    %c0_84 = arith.constant 0 : index
    %c0_85 = arith.constant 0 : index
    %242 = vector.load %arg17[%c0_83, %c0_84, %c0_85] : memref<1x8x128xbf16, #tpu.memory_space<vmem>>, vector<1x8x128xbf16>
    tpu.vector_store %arg17[%c0_83, %c0_84, %c0_85], %241 {strides = array<i32>} : memref<1x8x128xbf16, #tpu.memory_space<vmem>>, vector<1x8x128xbf16>,
    return
  }
  func.func @transform_0(%arg0: i32) -> (i32, i32, i32) {
    %c0_i32 = arith.constant 0 : i32
    %c0_i32_0 = arith.constant 0 : i32
    %c0_i32_1 = arith.constant 0 : i32
    return %arg0, %c0_i32, %c0_i32_0 : i32, i32, i32
  }
  func.func @transform_1(%arg0: i32) -> (i32, i32, i32) {
    %c0_i32 = arith.constant 0 : i32
    %c0_i32_0 = arith.constant 0 : i32
    %c0_i32_1 = arith.constant 0 : i32
    return %arg0, %c0_i32, %c0_i32_0 : i32, i32, i32
  }
  func.func @transform_2(%arg0: i32) -> (i32, i32) {
    %c0_i32 = arith.constant 0 : i32
    %c0_i32_0 = arith.constant 0 : i32
    %c0_i32_1 = arith.constant 0 : i32
    return %c0_i32, %c0_i32_0 : i32, i32
  }
  func.func @transform_3(%arg0: i32) -> (i32, i32) {
    %c0_i32 = arith.constant 0 : i32
    %c0_i32_0 = arith.constant 0 : i32
    %c0_i32_1 = arith.constant 0 : i32
    return %c0_i32, %c0_i32_0 : i32, i32
  }
  func.func @transform_4(%arg0: i32) -> (i32, i32) {
    %c0_i32 = arith.constant 0 : i32
    %c0_i32_0 = arith.constant 0 : i32
    %c0_i32_1 = arith.constant 0 : i32
    return %c0_i32, %c0_i32_0 : i32, i32
  }
  func.func @transform_5(%arg0: i32) -> (i32, i32) {
    %c0_i32 = arith.constant 0 : i32
    %c0_i32_0 = arith.constant 0 : i32
    %c0_i32_1 = arith.constant 0 : i32
    return %c0_i32, %c0_i32_0 : i32, i32
  }
  func.func @transform_6(%arg0: i32) -> (i32, i32) {
    %c0_i32 = arith.constant 0 : i32
    %c0_i32_0 = arith.constant 0 : i32
    %c0_i32_1 = arith.constant 0 : i32
    return %c0_i32, %c0_i32_0 : i32, i32
  }
  func.func @transform_7(%arg0: i32) -> (i32, i32) {
    %c0_i32 = arith.constant 0 : i32
    %c0_i32_0 = arith.constant 0 : i32
    %c0_i32_1 = arith.constant 0 : i32
    return %c0_i32, %c0_i32_0 : i32, i32
  }
  func.func @transform_8(%arg0: i32) -> (i32, i32) {
    %c0_i32 = arith.constant 0 : i32
    %c0_i32_0 = arith.constant 0 : i32
    %c0_i32_1 = arith.constant 0 : i32
    return %c0_i32, %c0_i32_0 : i32, i32
  }
  func.func @transform_9(%arg0: i32) -> (i32, i32) {
    %c0_i32 = arith.constant 0 : i32
    %c0_i32_0 = arith.constant 0 : i32
    %c0_i32_1 = arith.constant 0 : i32
    return %c0_i32, %c0_i32_0 : i32, i32
  }
  func.func @transform_10(%arg0: i32) -> (i32, i32) {
    %c0_i32 = arith.constant 0 : i32
    %c0_i32_0 = arith.constant 0 : i32
    %c0_i32_1 = arith.constant 0 : i32
    return %c0_i32, %c0_i32_0 : i32, i32
  }
  func.func @transform_11(%arg0: i32) -> (i32, i32) {
    %c0_i32 = arith.constant 0 : i32
    %c0_i32_0 = arith.constant 0 : i32
    %c0_i32_1 = arith.constant 0 : i32
    return %c0_i32, %c0_i32_0 : i32, i32
  }
  func.func @transform_12(%arg0: i32) -> (i32, i32) {
    %c0_i32 = arith.constant 0 : i32
    %c0_i32_0 = arith.constant 0 : i32
    %c0_i32_1 = arith.constant 0 : i32
    return %c0_i32, %c0_i32_0 : i32, i32
  }
  func.func @transform_13(%arg0: i32) -> (i32, i32) {
    %c0_i32 = arith.constant 0 : i32
    %c0_i32_0 = arith.constant 0 : i32
    %c0_i32_1 = arith.constant 0 : i32
    return %c0_i32, %c0_i32_0 : i32, i32
  }
  func.func @transform_14(%arg0: i32) -> (i32, i32) {
    %c0_i32 = arith.constant 0 : i32
    %c0_i32_0 = arith.constant 0 : i32
    %c0_i32_1 = arith.constant 0 : i32
    return %c0_i32, %c0_i32_0 : i32, i32
  }
  func.func @transform_15(%arg0: i32) -> (i32, i32) {
    %c0_i32 = arith.constant 0 : i32
    %c0_i32_0 = arith.constant 0 : i32
    %c0_i32_1 = arith.constant 0 : i32
    return %c0_i32, %c0_i32_0 : i32, i32
  }
  func.func @transform_16(%arg0: i32) -> (i32, i32, i32) {
    %c0_i32 = arith.constant 0 : i32
    %c0_i32_0 = arith.constant 0 : i32
    %c0_i32_1 = arith.constant 0 : i32
    return %arg0, %c0_i32, %c0_i32_0 : i32, i32, i32
  }
}

</mosaic_0001>

<llo_original>
// kernel: tpu_custom_call.1
$region0: #{tpu_custom_call.1}
  #allocation0 [shape = 'u32[]', space=smem, size = 0x4, offset = 0x4, fixed_abs, tag = 'smem constant byte address 0x4 - core index']
  #allocation1 [shape = 'u32[144,128]{1,0:T(1,128)}', space=vmem, size = 0x12000, scoped, tag = 'internal scratch']
  %s0 = inlined_call_operand.hbm [shape: bf16[2,8,128], index: 0, kind: input, shape index: {}]
  %s1 = inlined_call_operand.hbm [shape: bf16[2,16,128], index: 1, kind: input, shape index: {}]
  %s2 = inlined_call_operand.hbm [shape: bf16[128,128], index: 2, kind: input, shape index: {}]
  %s3 = inlined_call_operand.hbm [shape: bf16[128,128], index: 3, kind: input, shape index: {}]
  %s4 = inlined_call_operand.hbm [shape: bf16[128,128], index: 4, kind: input, shape index: {}]
  %s5 = inlined_call_operand.vmem [shape: f32[1,128], index: 5, kind: input, shape index: {}]
  %s6 = inlined_call_operand.vmem [shape: f32[1,128], index: 6, kind: input, shape index: {}]
  %s7 = inlined_call_operand.vmem [shape: f32[1,128], index: 7, kind: input, shape index: {}]
  %s8 = inlined_call_operand.hbm [shape: bf16[128,128], index: 8, kind: input, shape index: {}]
  %s9 = inlined_call_operand.vmem [shape: f32[1,128], index: 9, kind: input, shape index: {}]
  %s10 = inlined_call_operand.vmem [shape: f32[1,128], index: 10, kind: input, shape index: {}]
  %s11 = inlined_call_operand.vmem [shape: f32[1,128], index: 11, kind: input, shape index: {}]
  %s12 = inlined_call_operand.hbm [shape: bf16[128,256], index: 12, kind: input, shape index: {}]
  %s13 = inlined_call_operand.vmem [shape: f32[1,256], index: 13, kind: input, shape index: {}]
  %s14 = inlined_call_operand.hbm [shape: bf16[256,128], index: 14, kind: input, shape index: {}]
  %s15 = inlined_call_operand.vmem [shape: f32[1,128], index: 15, kind: input, shape index: {}]
  %s16 = inlined_call_operand.hbm [shape: bf16[2,8,128], index: 16, kind: output, shape index: {}]
  %s17 = sld [smem:[#allocation0]]
  $region129: #{tpu_custom_call.1} parent=0
    _
  %s19 = ssub.s32 1, %s17
  %s20 = scalar_select 0, %s19, %s17
  $region1: #{tpu_custom_call.1} parent=0
    #allocation2 [shape = 'u8[4096]{0}', space=vmem, size = 0x1000, scoped, tag = 'input window, operand 0']
    #allocation3 [shape = 's32[2]{0}', space=sflag, size = 0x8, scoped, tag = 'scoped memory for tpu_custom_call.1']
    #allocation4 [shape = 's32[2]{0}', space=sflag, size = 0x8, scoped, tag = 'scoped memory for tpu_custom_call.1']
    #allocation5 [shape = 'u8[8192]{0}', space=vmem, size = 0x2000, scoped, tag = 'input window, operand 1']
    #allocation6 [shape = 's32[2]{0}', space=sflag, size = 0x8, scoped, tag = 'scoped memory for tpu_custom_call.1']
    #allocation7 [shape = 'u8[32768]{0}', space=vmem, size = 0x8000, scoped, tag = 'input window, operand 2, single buffered']
    #allocation8 [shape = 'u8[32768]{0}', space=vmem, size = 0x8000, scoped, tag = 'input window, operand 3, single buffered']
    #allocation9 [shape = 's32[1]{0}', space=sflag, size = 0x4, scoped, tag = 'scoped memory for tpu_custom_call.1']
    #allocation10 [shape = 'u8[32768]{0}', space=vmem, size = 0x8000, scoped, tag = 'input window, operand 4, single buffered']
    #allocation11 [shape = 'u8[32768]{0}', space=vmem, size = 0x8000, scoped, tag = 'input window, operand 8, single buffered']
    #allocation12 [shape = 's32[1]{0}', space=sflag, size = 0x4, scoped, tag = 'scoped memory for tpu_custom_call.1']
    #allocation13 [shape = 'u8[65536]{0}', space=vmem, size = 0x10000, scoped, tag = 'input window, operand 12, single buffered']
    #allocation14 [shape = 'u8[65536]{0}', space=vmem, size = 0x10000, scoped, tag = 'input window, operand 14, single buffered']
    #allocation15 [shape = 's32[1]{0}', space=sflag, size = 0x4, scoped, tag = 'scoped memory for tpu_custom_call.1']
    #allocation16 [shape = 'u8[4096]{0}', space=vmem, size = 0x1000, scoped, tag = 'output window, operand 0']
    %21 = vsyncpa [#allocation3], 0
    %s22 = scalar_lea.sflag [#allocation3], 1
    %23 = vsyncpa %s22, 0
    %24 = vsyncpa [#allocation6], 0
    %s25 = scalar_lea.sflag [#allocation6], 1
    %26 = vsyncpa %s25, 0
    %27 = vsyncpa [#allocation9], 0
    %28 = vsyncpa [#allocation12], 0
    %29 = vsyncpa [#allocation15], 0
    %30 = vsyncpa [#allocation4], 0
    %s31 = scalar_lea.sflag [#allocation4], 1
    %32 = vsyncpa %s31, 0
    loop: start=0, step=1, limit=4
    $region2: #{tpu_custom_call.1} parent=1 // loop_pre_header
      _
    $region3: #{tpu_custom_call.1} parent=1 // loop_header
      %s34 = sphi 0, %s38
      %p35 = scmp.ge.s32.totalorder %s34, 4
      %s44 = sphi 0, %s46
      %s47 = sphi 0, %s44
      %s48 = sphi 0, %s47
      %s64 = sphi 0, %s48
      %s70 = sphi 0, %s72
      %s73 = sphi 0, %s70
      %s74 = sphi 0, %s73
      %s90 = sphi 0, %s74
      %s94 = sphi 0, %s94
      %s96 = sphi 0, %s94
      %s97 = sphi 0, %s96
      %s111 = sphi 0, %s97
      %s115 = sphi 0, %s115
      %s117 = sphi 0, %s115
      %s118 = sphi 0, %s117
      %s132 = sphi 0, %s118
      %s136 = sphi 0, %s136
      %s138 = sphi 0, %s136
      %s139 = sphi 0, %s138
      %s153 = sphi 0, %s139
      %s157 = sphi 0, %s157
      %s159 = sphi 0, %s157
      %s160 = sphi 0, %s159
      %s174 = sphi 0, %s160
      %s178 = sphi 0, %s178
      %s180 = sphi 0, %s178
      %s181 = sphi 0, %s180
      %s195 = sphi 0, %s181
      %s199 = sphi 0, %s199
      %s201 = sphi 0, %s199
      %s202 = sphi 0, %s201
      %s216 = sphi 0, %s202
      %s220 = sphi 0, %s220
      %s222 = sphi 0, %s220
      %s223 = sphi 0, %s222
      %s237 = sphi 0, %s223
      %s241 = sphi 0, %s241
      %s243 = sphi 0, %s241
      %s244 = sphi 0, %s243
      %s258 = sphi 0, %s244
      %s262 = sphi 0, %s262
      %s264 = sphi 0, %s262
      %s265 = sphi 0, %s264
      %s279 = sphi 0, %s265
      %s283 = sphi 0, %s283
      %s285 = sphi 0, %s283
      %s286 = sphi 0, %s285
      %s300 = sphi 0, %s286
      %s304 = sphi 0, %s304
      %s306 = sphi 0, %s304
      %s307 = sphi 0, %s306
      %s321 = sphi 0, %s307
      %s325 = sphi 0, %s325
      %s327 = sphi 0, %s325
      %s328 = sphi 0, %s327
      %s342 = sphi 0, %s328
      %s346 = sphi 0, %s346
      %s348 = sphi 0, %s346
      %s349 = sphi 0, %s348
      %s363 = sphi 0, %s349
      %s367 = sphi 0, %s367
      %s369 = sphi 0, %s367
      %s370 = sphi 0, %s369
      %s384 = sphi 0, %s370
      %s390 = sphi 0, %s392
      %s393 = sphi 0, %s390
      %s394 = sphi 0, %s393
      %s410 = sphi 0, %s394
    $region4: #{tpu_custom_call.1} parent=1 // loop_header_branch
      %37 = sbr.rel (%p35) target = $region8
    $region5: #{tpu_custom_call.1} parent=1 // loop_body
      %s39 = ssub.s32 %s34, 1
      %s40 = ssub.s32 %s34, 2
      %s41 = sadd.s32 %s34, 1
      %s42 = ssub.s32 %s34, %s41
      %p43 = scmp.eq.s32.totalorder %s42, 0
      %s45 = sadd.s32 %s44, 1
      %s46 = scalar_select %p43, %s44, %s45
      %p49 = pneg %p43
      %p50 = scmp.eq.s32.totalorder %s34, 1
      %p51 = por %p49, %p50
      %p52 = scmp.ne.s32.totalorder %s44, %s47
      %p53 = scmp.eq.s32.totalorder %s34, 0
      %p54 = por %p52, %p53
      %p55 = scmp.ne.s32.totalorder %s44, %s47
      %p56 = scmp.eq.s32.totalorder %s39, 1
      %p57 = por %p55, %p56
      %p58 = scmp.ne.s32.totalorder %s47, %s48
      %p59 = scmp.eq.s32.totalorder %s39, 0
      %p60 = por %p58, %p59
      %p61 = scmp.ne.s32.totalorder %s47, %s48
      %p62 = scmp.eq.s32.totalorder %s40, 1
      %p63 = por %p61, %p62
      %p65 = scmp.ne.s32.totalorder %s48, %s64
      %p66 = scmp.eq.s32.totalorder %s40, 0
      %p67 = por %p65, %p66
      %s68 = ssub.s32 %s34, %s41
      %p69 = scmp.eq.s32.totalorder %s68, 0
      %s71 = sadd.s32 %s70, 1
      %s72 = scalar_select %p69, %s70, %s71
      %p75 = pneg %p69
      %p76 = scmp.eq.s32.totalorder %s34, 1
      %p77 = por %p75, %p76
      %p78 = scmp.ne.s32.totalorder %s70, %s73
      %p79 = scmp.eq.s32.totalorder %s34, 0
      %p80 = por %p78, %p79
      %p81 = scmp.ne.s32.totalorder %s70, %s73
      %p82 = scmp.eq.s32.totalorder %s39, 1
      %p83 = por %p81, %p82
      %p84 = scmp.ne.s32.totalorder %s73, %s74
      %p85 = scmp.eq.s32.totalorder %s39, 0
      %p86 = por %p84, %p85
      %p87 = scmp.ne.s32.totalorder %s73, %s74
      %p88 = scmp.eq.s32.totalorder %s40, 1
      %p89 = por %p87, %p88
      %p91 = scmp.ne.s32.totalorder %s74, %s90
      %p92 = scmp.eq.s32.totalorder %s40, 0
      %p93 = por %p91, %p92
      %s95 = sadd.s32 %s94, 1
      %p98 = scmp.eq.s32.totalorder %s34, 1
      %p99 = scmp.ne.s32.totalorder %s94, %s96
      %p100 = scmp.eq.s32.totalorder %s34, 0
      %p101 = por %p99, %p100
      %p102 = scmp.ne.s32.totalorder %s94, %s96
      %p103 = scmp.eq.s32.totalorder %s39, 1
      %p104 = por %p102, %p103
      %p105 = scmp.ne.s32.totalorder %s96, %s97
      %p106 = scmp.eq.s32.totalorder %s39, 0
      %p107 = por %p105, %p106
      %p108 = scmp.ne.s32.totalorder %s96, %s97
      %p109 = scmp.eq.s32.totalorder %s40, 1
      %p110 = por %p108, %p109
      %p112 = scmp.ne.s32.totalorder %s97, %s111
      %p113 = scmp.eq.s32.totalorder %s40, 0
      %p114 = por %p112, %p113
      %s116 = sadd.s32 %s115, 1
      %p119 = scmp.eq.s32.totalorder %s34, 1
      %p120 = scmp.ne.s32.totalorder %s115, %s117
      %p121 = scmp.eq.s32.totalorder %s34, 0
      %p122 = por %p120, %p121
      %p123 = scmp.ne.s32.totalorder %s115, %s117
      %p124 = scmp.eq.s32.totalorder %s39, 1
      %p125 = por %p123, %p124
      %p126 = scmp.ne.s32.totalorder %s117, %s118
      %p127 = scmp.eq.s32.totalorder %s39, 0
      %p128 = por %p126, %p127
      %p129 = scmp.ne.s32.totalorder %s117, %s118
      %p130 = scmp.eq.s32.totalorder %s40, 1
      %p131 = por %p129, %p130
      %p133 = scmp.ne.s32.totalorder %s118, %s132
      %p134 = scmp.eq.s32.totalorder %s40, 0
      %p135 = por %p133, %p134
      %s137 = sadd.s32 %s136, 1
      %p140 = scmp.eq.s32.totalorder %s34, 1
      %p141 = scmp.ne.s32.totalorder %s136, %s138
      %p142 = scmp.eq.s32.totalorder %s34, 0
      %p143 = por %p141, %p142
      %p144 = scmp.ne.s32.totalorder %s136, %s138
      %p145 = scmp.eq.s32.totalorder %s39, 1
      %p146 = por %p144, %p145
      %p147 = scmp.ne.s32.totalorder %s138, %s139
      %p148 = scmp.eq.s32.totalorder %s39, 0
      %p149 = por %p147, %p148
      %p150 = scmp.ne.s32.totalorder %s138, %s139
      %p151 = scmp.eq.s32.totalorder %s40, 1
      %p152 = por %p150, %p151
      %p154 = scmp.ne.s32.totalorder %s139, %s153
      %p155 = scmp.eq.s32.totalorder %s40, 0
      %p156 = por %p154, %p155
      %s158 = sadd.s32 %s157, 1
      %p161 = scmp.eq.s32.totalorder %s34, 1
      %p162 = scmp.ne.s32.totalorder %s157, %s159
      %p163 = scmp.eq.s32.totalorder %s34, 0
      %p164 = por %p162, %p163
      %p165 = scmp.ne.s32.totalorder %s157, %s159
      %p166 = scmp.eq.s32.totalorder %s39, 1
      %p167 = por %p165, %p166
      %p168 = scmp.ne.s32.totalorder %s159, %s160
      %p169 = scmp.eq.s32.totalorder %s39, 0
      %p170 = por %p168, %p169
      %p171 = scmp.ne.s32.totalorder %s159, %s160
      %p172 = scmp.eq.s32.totalorder %s40, 1
      %p173 = por %p171, %p172
      %p175 = scmp.ne.s32.totalorder %s160, %s174
      %p176 = scmp.eq.s32.totalorder %s40, 0
      %p177 = por %p175, %p176
      %s179 = sadd.s32 %s178, 1
      %p182 = scmp.eq.s32.totalorder %s34, 1
      %p183 = scmp.ne.s32.totalorder %s178, %s180
      %p184 = scmp.eq.s32.totalorder %s34, 0
      %p185 = por %p183, %p184
      %p186 = scmp.ne.s32.totalorder %s178, %s180
      %p187 = scmp.eq.s32.totalorder %s39, 1
      %p188 = por %p186, %p187
      %p189 = scmp.ne.s32.totalorder %s180, %s181
      %p190 = scmp.eq.s32.totalorder %s39, 0
      %p191 = por %p189, %p190
      %p192 = scmp.ne.s32.totalorder %s180, %s181
      %p193 = scmp.eq.s32.totalorder %s40, 1
      %p194 = por %p192, %p193
      %p196 = scmp.ne.s32.totalorder %s181, %s195
      %p197 = scmp.eq.s32.totalorder %s40, 0
      %p198 = por %p196, %p197
      %s200 = sadd.s32 %s199, 1
      %p203 = scmp.eq.s32.totalorder %s34, 1
      %p204 = scmp.ne.s32.totalorder %s199, %s201
      %p205 = scmp.eq.s32.totalorder %s34, 0
      %p206 = por %p204, %p205
      %p207 = scmp.ne.s32.totalorder %s199, %s201
      %p208 = scmp.eq.s32.totalorder %s39, 1
      %p209 = por %p207, %p208
      %p210 = scmp.ne.s32.totalorder %s201, %s202
      %p211 = scmp.eq.s32.totalorder %s39, 0
      %p212 = por %p210, %p211
      %p213 = scmp.ne.s32.totalorder %s201, %s202
      %p214 = scmp.eq.s32.totalorder %s40, 1
      %p215 = por %p213, %p214
      %p217 = scmp.ne.s32.totalorder %s202, %s216
      %p218 = scmp.eq.s32.totalorder %s40, 0
      %p219 = por %p217, %p218
      %s221 = sadd.s32 %s220, 1
      %p224 = scmp.eq.s32.totalorder %s34, 1
      %p225 = scmp.ne.s32.totalorder %s220, %s222
      %p226 = scmp.eq.s32.totalorder %s34, 0
      %p227 = por %p225, %p226
      %p228 = scmp.ne.s32.totalorder %s220, %s222
      %p229 = scmp.eq.s32.totalorder %s39, 1
      %p230 = por %p228, %p229
      %p231 = scmp.ne.s32.totalorder %s222, %s223
      %p232 = scmp.eq.s32.totalorder %s39, 0
      %p233 = por %p231, %p232
      %p234 = scmp.ne.s32.totalorder %s222, %s223
      %p235 = scmp.eq.s32.totalorder %s40, 1
      %p236 = por %p234, %p235
      %p238 = scmp.ne.s32.totalorder %s223, %s237
      %p239 = scmp.eq.s32.totalorder %s40, 0
      %p240 = por %p238, %p239
      %s242 = sadd.s32 %s241, 1
      %p245 = scmp.eq.s32.totalorder %s34, 1
      %p246 = scmp.ne.s32.totalorder %s241, %s243
      %p247 = scmp.eq.s32.totalorder %s34, 0
      %p248 = por %p246, %p247
      %p249 = scmp.ne.s32.totalorder %s241, %s243
      %p250 = scmp.eq.s32.totalorder %s39, 1
      %p251 = por %p249, %p250
      %p252 = scmp.ne.s32.totalorder %s243, %s244
      %p253 = scmp.eq.s32.totalorder %s39, 0
      %p254 = por %p252, %p253
      %p255 = scmp.ne.s32.totalorder %s243, %s244
      %p256 = scmp.eq.s32.totalorder %s40, 1
      %p257 = por %p255, %p256
      %p259 = scmp.ne.s32.totalorder %s244, %s258
      %p260 = scmp.eq.s32.totalorder %s40, 0
      %p261 = por %p259, %p260
      %s263 = sadd.s32 %s262, 1
      %p266 = scmp.eq.s32.totalorder %s34, 1
      %p267 = scmp.ne.s32.totalorder %s262, %s264
      %p268 = scmp.eq.s32.totalorder %s34, 0
      %p269 = por %p267, %p268
      %p270 = scmp.ne.s32.totalorder %s262, %s264
      %p271 = scmp.eq.s32.totalorder %s39, 1
      %p272 = por %p270, %p271
      %p273 = scmp.ne.s32.totalorder %s264, %s265
      %p274 = scmp.eq.s32.totalorder %s39, 0
      %p275 = por %p273, %p274
      %p276 = scmp.ne.s32.totalorder %s264, %s265
      %p277 = scmp.eq.s32.totalorder %s40, 1
      %p278 = por %p276, %p277
      %p280 = scmp.ne.s32.totalorder %s265, %s279
      %p281 = scmp.eq.s32.totalorder %s40, 0
      %p282 = por %p280, %p281
      %s284 = sadd.s32 %s283, 1
      %p287 = scmp.eq.s32.totalorder %s34, 1
      %p288 = scmp.ne.s32.totalorder %s283, %s285
      %p289 = scmp.eq.s32.totalorder %s34, 0
      %p290 = por %p288, %p289
      %p291 = scmp.ne.s32.totalorder %s283, %s285
      %p292 = scmp.eq.s32.totalorder %s39, 1
      %p293 = por %p291, %p292
      %p294 = scmp.ne.s32.totalorder %s285, %s286
      %p295 = scmp.eq.s32.totalorder %s39, 0
      %p296 = por %p294, %p295
      %p297 = scmp.ne.s32.totalorder %s285, %s286
      %p298 = scmp.eq.s32.totalorder %s40, 1
      %p299 = por %p297, %p298
      %p301 = scmp.ne.s32.totalorder %s286, %s300
      %p302 = scmp.eq.s32.totalorder %s40, 0
      %p303 = por %p301, %p302
      %s305 = sadd.s32 %s304, 1
      %p308 = scmp.eq.s32.totalorder %s34, 1
      %p309 = scmp.ne.s32.totalorder %s304, %s306
      %p310 = scmp.eq.s32.totalorder %s34, 0
      %p311 = por %p309, %p310
      %p312 = scmp.ne.s32.totalorder %s304, %s306
      %p313 = scmp.eq.s32.totalorder %s39, 1
      %p314 = por %p312, %p313
      %p315 = scmp.ne.s32.totalorder %s306, %s307
      %p316 = scmp.eq.s32.totalorder %s39, 0
      %p317 = por %p315, %p316
      %p318 = scmp.ne.s32.totalorder %s306, %s307
      %p319 = scmp.eq.s32.totalorder %s40, 1
      %p320 = por %p318, %p319
      %p322 = scmp.ne.s32.totalorder %s307, %s321
      %p323 = scmp.eq.s32.totalorder %s40, 0
      %p324 = por %p322, %p323
      %s326 = sadd.s32 %s325, 1
      %p329 = scmp.eq.s32.totalorder %s34, 1
      %p330 = scmp.ne.s32.totalorder %s325, %s327
      %p331 = scmp.eq.s32.totalorder %s34, 0
      %p332 = por %p330, %p331
      %p333 = scmp.ne.s32.totalorder %s325, %s327
      %p334 = scmp.eq.s32.totalorder %s39, 1
      %p335 = por %p333, %p334
      %p336 = scmp.ne.s32.totalorder %s327, %s328
      %p337 = scmp.eq.s32.totalorder %s39, 0
      %p338 = por %p336, %p337
      %p339 = scmp.ne.s32.totalorder %s327, %s328
      %p340 = scmp.eq.s32.totalorder %s40, 1
      %p341 = por %p339, %p340
      %p343 = scmp.ne.s32.totalorder %s328, %s342
      %p344 = scmp.eq.s32.totalorder %s40, 0
      %p345 = por %p343, %p344
      %s347 = sadd.s32 %s346, 1
      %p350 = scmp.eq.s32.totalorder %s34, 1
      %p351 = scmp.ne.s32.totalorder %s346, %s348
      %p352 = scmp.eq.s32.totalorder %s34, 0
      %p353 = por %p351, %p352
      %p354 = scmp.ne.s32.totalorder %s346, %s348
      %p355 = scmp.eq.s32.totalorder %s39, 1
      %p356 = por %p354, %p355
      %p357 = scmp.ne.s32.totalorder %s348, %s349
      %p358 = scmp.eq.s32.totalorder %s39, 0
      %p359 = por %p357, %p358
      %p360 = scmp.ne.s32.totalorder %s348, %s349
      %p361 = scmp.eq.s32.totalorder %s40, 1
      %p362 = por %p360, %p361
      %p364 = scmp.ne.s32.totalorder %s349, %s363
      %p365 = scmp.eq.s32.totalorder %s40, 0
      %p366 = por %p364, %p365
      %s368 = sadd.s32 %s367, 1
      %p371 = scmp.eq.s32.totalorder %s34, 1
      %p372 = scmp.ne.s32.totalorder %s367, %s369
      %p373 = scmp.eq.s32.totalorder %s34, 0
      %p374 = por %p372, %p373
      %p375 = scmp.ne.s32.totalorder %s367, %s369
      %p376 = scmp.eq.s32.totalorder %s39, 1
      %p377 = por %p375, %p376
      %p378 = scmp.ne.s32.totalorder %s369, %s370
      %p379 = scmp.eq.s32.totalorder %s39, 0
      %p380 = por %p378, %p379
      %p381 = scmp.ne.s32.totalorder %s369, %s370
      %p382 = scmp.eq.s32.totalorder %s40, 1
      %p383 = por %p381, %p382
      %p385 = scmp.ne.s32.totalorder %s370, %s384
      %p386 = scmp.eq.s32.totalorder %s40, 0
      %p387 = por %p385, %p386
      %s388 = ssub.s32 %s34, %s41
      %p389 = scmp.eq.s32.totalorder %s388, 0
      %s391 = sadd.s32 %s390, 1
      %s392 = scalar_select %p389, %s390, %s391
      %p395 = pneg %p389
      %p396 = scmp.eq.s32.totalorder %s34, 1
      %p397 = por %p395, %p396
      %p398 = scmp.ne.s32.totalorder %s390, %s393
      %p399 = scmp.eq.s32.totalorder %s34, 0
      %p400 = por %p398, %p399
      %p401 = scmp.ne.s32.totalorder %s390, %s393
      %p402 = scmp.eq.s32.totalorder %s39, 1
      %p403 = por %p401, %p402
      %p404 = scmp.ne.s32.totalorder %s393, %s394
      %p405 = scmp.eq.s32.totalorder %s39, 0
      %p406 = por %p404, %p405
      %p407 = scmp.ne.s32.totalorder %s393, %s394
      %p408 = scmp.eq.s32.totalorder %s40, 1
      %p409 = por %p407, %p408
      %p411 = scmp.ne.s32.totalorder %s394, %s410
      %p412 = scmp.eq.s32.totalorder %s40, 0
      %p413 = por %p411, %p412
      %p414 = scmp.le.s32.totalorder 1, %s34
      %p415 = scmp.lt.s32.totalorder %s34, 3
      %p416 = pnand %p414, %p415
      %p417 = pneg %p416
      // Predicated region
      $region9: #{tpu_custom_call.1} parent=5 // pred_check
        _
      $region10: #{tpu_custom_call.1} parent=5 // pred_check_branch
        %419 = sbr.rel (%p416) target = $region12
      $region11: #{tpu_custom_call.1} parent=5 // pred_region
        %s420 = ssub.s32 %s34, 1
        // Predicated region
        $region13: #{tpu_custom_call.1} parent=11 // pred_check
          %p421 = pneg %p107
        $region14: #{tpu_custom_call.1} parent=11 // pred_check_branch
          %423 = sbr.rel (%p421) target = $region16
        $region15: #{tpu_custom_call.1} parent=11 // pred_region
          %s425 = ssub.s32 1024, 1024
          %426 = vsyncadd [#allocation6], %s425
          %s427 = sshll.u32 [#allocation7], 4
          %s428 = int_to_ptr.vmem [resolvable:$true] %s427
          %433 = dma.hbm_to_vmem [thread:$0]  %s2, 1024, %s428, [#allocation6], 64, 64, 4
        $region16: #{tpu_custom_call.1} parent=11 // pred_fallthru
          _
        // Predicated region
        $region17: #{tpu_custom_call.1} parent=11 // pred_check
          %p434 = pneg %p128
        $region18: #{tpu_custom_call.1} parent=11 // pred_check_branch
          %436 = sbr.rel (%p434) target = $region20
        $region19: #{tpu_custom_call.1} parent=11 // pred_region
          %s438 = ssub.s32 1024, 1024
          %439 = vsyncadd [#allocation9], %s438
          %s440 = sshll.u32 [#allocation8], 4
          %s441 = int_to_ptr.vmem [resolvable:$true] %s440
          %446 = dma.hbm_to_vmem [thread:$0]  %s3, 1024, %s441, [#allocation9], 64, 64, 4
        $region20: #{tpu_custom_call.1} parent=11 // pred_fallthru
          _
        // Predicated region
        $region21: #{tpu_custom_call.1} parent=11 // pred_check
          %p447 = pneg %p149
        $region22: #{tpu_custom_call.1} parent=11 // pred_check_branch
          %449 = sbr.rel (%p447) target = $region24
        $region23: #{tpu_custom_call.1} parent=11 // pred_region
          %s451 = ssub.s32 1024, 1024
          %452 = vsyncadd [#allocation9], %s451
          %s453 = sshll.u32 [#allocation10], 4
          %s454 = int_to_ptr.vmem [resolvable:$true] %s453
          %459 = dma.hbm_to_vmem [thread:$0]  %s4, 1024, %s454, [#allocation9], 64, 64, 4
        $region24: #{tpu_custom_call.1} parent=11 // pred_fallthru
          _
        // Predicated region
        $region25: #{tpu_custom_call.1} parent=11 // pred_check
          %p460 = pneg %p170
        $region26: #{tpu_custom_call.1} parent=11 // pred_check_branch
          %462 = sbr.rel (%p460) target = $region28
        $region27: #{tpu_custom_call.1} parent=11 // pred_region
          _
        $region28: #{tpu_custom_call.1} parent=11 // pred_fallthru
          _
        // Predicated region
        $region29: #{tpu_custom_call.1} parent=11 // pred_check
          %p463 = pneg %p191
        $region30: #{tpu_custom_call.1} parent=11 // pred_check_branch
          %465 = sbr.rel (%p463) target = $region32
        $region31: #{tpu_custom_call.1} parent=11 // pred_region
          _
        $region32: #{tpu_custom_call.1} parent=11 // pred_fallthru
          _
        // Predicated region
        $region33: #{tpu_custom_call.1} parent=11 // pred_check
          %p466 = pneg %p212
        $region34: #{tpu_custom_call.1} parent=11 // pred_check_branch
          %468 = sbr.rel (%p466) target = $region36
        $region35: #{tpu_custom_call.1} parent=11 // pred_region
          _
        $region36: #{tpu_custom_call.1} parent=11 // pred_fallthru
          _
        // Predicated region
        $region37: #{tpu_custom_call.1} parent=11 // pred_check
          %p469 = pneg %p233
        $region38: #{tpu_custom_call.1} parent=11 // pred_check_branch
          %471 = sbr.rel (%p469) target = $region40
        $region39: #{tpu_custom_call.1} parent=11 // pred_region
          %s473 = ssub.s32 1024, 1024
          %474 = vsyncadd [#allocation12], %s473
          %s475 = sshll.u32 [#allocation11], 4
          %s476 = int_to_ptr.vmem [resolvable:$true] %s475
          %481 = dma.hbm_to_vmem [thread:$0]  %s8, 1024, %s476, [#allocation12], 64, 64, 4
        $region40: #{tpu_custom_call.1} parent=11 // pred_fallthru
          _
        // Predicated region
        $region41: #{tpu_custom_call.1} parent=11 // pred_check
          %p482 = pneg %p254
        $region42: #{tpu_custom_call.1} parent=11 // pred_check_branch
          %484 = sbr.rel (%p482) target = $region44
        $region43: #{tpu_custom_call.1} parent=11 // pred_region
          _
        $region44: #{tpu_custom_call.1} parent=11 // pred_fallthru
          _
        // Predicated region
        $region45: #{tpu_custom_call.1} parent=11 // pred_check
          %p485 = pneg %p275
        $region46: #{tpu_custom_call.1} parent=11 // pred_check_branch
          %487 = sbr.rel (%p485) target = $region48
        $region47: #{tpu_custom_call.1} parent=11 // pred_region
          _
        $region48: #{tpu_custom_call.1} parent=11 // pred_fallthru
          _
        // Predicated region
        $region49: #{tpu_custom_call.1} parent=11 // pred_check
          %p488 = pneg %p296
        $region50: #{tpu_custom_call.1} parent=11 // pred_check_branch
          %490 = sbr.rel (%p488) target = $region52
        $region51: #{tpu_custom_call.1} parent=11 // pred_region
          _
        $region52: #{tpu_custom_call.1} parent=11 // pred_fallthru
          _
        // Predicated region
        $region53: #{tpu_custom_call.1} parent=11 // pred_check
          %p491 = pneg %p317
        $region54: #{tpu_custom_call.1} parent=11 // pred_check_branch
          %493 = sbr.rel (%p491) target = $region56
        $region55: #{tpu_custom_call.1} parent=11 // pred_region
          %s495 = ssub.s32 2048, 2048
          %496 = vsyncadd [#allocation12], %s495
          %s497 = sshll.u32 [#allocation13], 4
          %s498 = int_to_ptr.vmem [resolvable:$true] %s497
          %503 = dma.hbm_to_vmem [thread:$0]  %s12, 2048, %s498, [#allocation12], 128, 128, 8
        $region56: #{tpu_custom_call.1} parent=11 // pred_fallthru
          _
        // Predicated region
        $region57: #{tpu_custom_call.1} parent=11 // pred_check
          %p504 = pneg %p338
        $region58: #{tpu_custom_call.1} parent=11 // pred_check_branch
          %506 = sbr.rel (%p504) target = $region60
        $region59: #{tpu_custom_call.1} parent=11 // pred_region
          _
        $region60: #{tpu_custom_call.1} parent=11 // pred_fallthru
          _
        // Predicated region
        $region61: #{tpu_custom_call.1} parent=11 // pred_check
          %p507 = pneg %p359
        $region62: #{tpu_custom_call.1} parent=11 // pred_check_branch
          %509 = sbr.rel (%p507) target = $region64
        $region63: #{tpu_custom_call.1} parent=11 // pred_region
          %s511 = ssub.s32 2048, 2048
          %512 = vsyncadd [#allocation15], %s511
          %s513 = sshll.u32 [#allocation14], 4
          %s514 = int_to_ptr.vmem [resolvable:$true] %s513
          %519 = dma.hbm_to_vmem [thread:$0]  %s14, 2048, %s514, [#allocation15], 64, 64, 4
        $region64: #{tpu_custom_call.1} parent=11 // pred_fallthru
          _
        // Predicated region
        $region65: #{tpu_custom_call.1} parent=11 // pred_check
          %p520 = pneg %p380
        $region66: #{tpu_custom_call.1} parent=11 // pred_check_branch
          %522 = sbr.rel (%p520) target = $region68
        $region67: #{tpu_custom_call.1} parent=11 // pred_region
          _
        $region68: #{tpu_custom_call.1} parent=11 // pred_fallthru
          _
      $region12: #{tpu_custom_call.1} parent=5 // pred_fallthru
        _
      %p523 = scmp.lt.s32.totalorder %s34, 2
      // Predicated region
      $region69: #{tpu_custom_call.1} parent=5 // pred_check
        %p524 = pneg %p523
      $region70: #{tpu_custom_call.1} parent=5 // pred_check_branch
        %526 = sbr.rel (%p524) target = $region72
      $region71: #{tpu_custom_call.1} parent=5 // pred_region
        // Predicated region
        $region73: #{tpu_custom_call.1} parent=71 // pred_check
          %p527 = pneg %p54
        $region74: #{tpu_custom_call.1} parent=71 // pred_check_branch
          %529 = sbr.rel (%p527) target = $region76
        $region75: #{tpu_custom_call.1} parent=71 // pred_region
          %s530 = sand.u32 %s44, 1
          %s531 = scalar_lea.sflag [#allocation3], %s530
          %s532 = sand.u32 %s44, 1
          %s533 = smul.addr %s532, 4
          %s534 = scalar_lea.vmem [#allocation2], %s533
          %s536 = ssub.s32 64, 64
          %537 = vsyncadd %s531, %s536
          %s538 = smul.addr %s34, 64
          %s539 = scalar_lea.hbm %s0, %s538
          %s541 = sshll.u32 %s534, 4
          %s542 = int_to_ptr.vmem [resolvable:$true] %s541
          %544 = dma.hbm_to_vmem [thread:$0]  %s539, 64, %s542, %s531
        $region76: #{tpu_custom_call.1} parent=71 // pred_fallthru
          _
        // Predicated region
        $region77: #{tpu_custom_call.1} parent=71 // pred_check
          %p545 = pneg %p80
        $region78: #{tpu_custom_call.1} parent=71 // pred_check_branch
          %547 = sbr.rel (%p545) target = $region80
        $region79: #{tpu_custom_call.1} parent=71 // pred_region
          %s548 = sand.u32 %s34, 1
          %s549 = scalar_lea.sflag [#allocation6], %s548
          %s550 = sand.u32 %s70, 1
          %s551 = smul.addr %s550, 8
          %s552 = scalar_lea.vmem [#allocation5], %s551
          %s554 = ssub.s32 128, 128
          %555 = vsyncadd %s549, %s554
          %s556 = smul.addr %s34, 2
          %s557 = smul.addr %s556, 64
          %s558 = scalar_lea.hbm %s1, %s557
          %s559 = sshll.u32 %s552, 4
          %s560 = int_to_ptr.vmem [resolvable:$true] %s559
          %565 = dma.hbm_to_vmem [thread:$0]  %s558, 128, %s560, %s549, 64, 64, 4
        $region80: #{tpu_custom_call.1} parent=71 // pred_fallthru
          _
      $region72: #{tpu_custom_call.1} parent=5 // pred_fallthru
        _
      %p566 = scmp.le.s32.totalorder 1, %s34
      %p567 = scmp.lt.s32.totalorder %s34, 3
      %p568 = pnand %p566, %p567
      %p569 = pneg %p568
      // Predicated region
      $region81: #{tpu_custom_call.1} parent=5 // pred_check
        _
      $region82: #{tpu_custom_call.1} parent=5 // pred_check_branch
        %571 = sbr.rel (%p568) target = $region84
      $region83: #{tpu_custom_call.1} parent=5 // pred_region
        %s572 = ssub.s32 %s34, 1
        %s573 = sand.u32 %s47, 1
        %s574 = scalar_lea.sflag [#allocation3], %s573
        %s575 = sand.u32 %s47, 1
        %s576 = smul.addr %s575, 4
        %s577 = scalar_lea.vmem [#allocation2], %s576
        // Predicated region
        $region85: #{tpu_custom_call.1} parent=83 // pred_check
          %p578 = pneg %p60
        $region86: #{tpu_custom_call.1} parent=83 // pred_check_branch
          %580 = sbr.rel (%p578) target = $region88
        $region87: #{tpu_custom_call.1} parent=83 // pred_region
          %581 = dma.done %s574, 64
        $region88: #{tpu_custom_call.1} parent=83 // pred_fallthru
          _
        %s582 = sand.u32 %s39, 1
        %s583 = scalar_lea.sflag [#allocation6], %s582
        %s584 = sand.u32 %s73, 1
        %s585 = smul.addr %s584, 8
        %s586 = scalar_lea.vmem [#allocation5], %s585
        // Predicated region
        $region89: #{tpu_custom_call.1} parent=83 // pred_check
          %p587 = pneg %p86
        $region90: #{tpu_custom_call.1} parent=83 // pred_check_branch
          %589 = sbr.rel (%p587) target = $region92
        $region91: #{tpu_custom_call.1} parent=83 // pred_region
          %590 = dma.done %s583, 128
        $region92: #{tpu_custom_call.1} parent=83 // pred_fallthru
          _
        // Predicated region
        $region93: #{tpu_custom_call.1} parent=83 // pred_check
          %p591 = pneg %p107
        $region94: #{tpu_custom_call.1} parent=83 // pred_check_branch
          %593 = sbr.rel (%p591) target = $region96
        $region95: #{tpu_custom_call.1} parent=83 // pred_region
          %594 = dma.done [#allocation6], 1024
        $region96: #{tpu_custom_call.1} parent=83 // pred_fallthru
          _
        // Predicated region
        $region97: #{tpu_custom_call.1} parent=83 // pred_check
          %p595 = pneg %p128
        $region98: #{tpu_custom_call.1} parent=83 // pred_check_branch
          %597 = sbr.rel (%p595) target = $region100
        $region99: #{tpu_custom_call.1} parent=83 // pred_region
          %598 = dma.done [#allocation9], 1024
        $region100: #{tpu_custom_call.1} parent=83 // pred_fallthru
          _
        // Predicated region
        $region101: #{tpu_custom_call.1} parent=83 // pred_check
          %p599 = pneg %p149
        $region102: #{tpu_custom_call.1} parent=83 // pred_check_branch
          %601 = sbr.rel (%p599) target = $region104
        $region103: #{tpu_custom_call.1} parent=83 // pred_region
          %602 = dma.done [#allocation9], 1024
        $region104: #{tpu_custom_call.1} parent=83 // pred_fallthru
          _
        // Predicated region
        $region105: #{tpu_custom_call.1} parent=83 // pred_check
          %p603 = pneg %p233
        $region106: #{tpu_custom_call.1} parent=83 // pred_check_branch
          %605 = sbr.rel (%p603) target = $region108
        $region107: #{tpu_custom_call.1} parent=83 // pred_region
          %606 = dma.done [#allocation12], 1024
        $region108: #{tpu_custom_call.1} parent=83 // pred_fallthru
          _
        // Predicated region
        $region109: #{tpu_custom_call.1} parent=83 // pred_check
          %p607 = pneg %p317
        $region110: #{tpu_custom_call.1} parent=83 // pred_check_branch
          %609 = sbr.rel (%p607) target = $region112
        $region111: #{tpu_custom_call.1} parent=83 // pred_region
          %610 = dma.done [#allocation12], 2048
        $region112: #{tpu_custom_call.1} parent=83 // pred_fallthru
          _
        // Predicated region
        $region113: #{tpu_custom_call.1} parent=83 // pred_check
          %p611 = pneg %p359
        $region114: #{tpu_custom_call.1} parent=83 // pred_check_branch
          %613 = sbr.rel (%p611) target = $region116
        $region115: #{tpu_custom_call.1} parent=83 // pred_region
          %614 = dma.done [#allocation15], 2048
        $region116: #{tpu_custom_call.1} parent=83 // pred_fallthru
          _
        %s615 = sand.u32 %s47, 1
        %s616 = scalar_lea.sflag [#allocation3], %s615
        %s617 = sand.u32 %s47, 1
        %s618 = smul.addr %s617, 4
        %s619 = scalar_lea.vmem [#allocation2], %s618
        %p620 = pneg %p60
        %p621 = pneg %p57
        %s622 = sand.u32 %s39, 1
        %s623 = scalar_lea.sflag [#allocation6], %s622
        %s624 = sand.u32 %s73, 1
        %s625 = smul.addr %s624, 8
        %s626 = scalar_lea.vmem [#allocation5], %s625
        %p627 = pneg %p86
        %p628 = pneg %p83
        %p629 = pneg %p107
        %p630 = pneg %p104
        %p631 = pneg %p128
        %p632 = pneg %p125
        %p633 = pneg %p149
        %p634 = pneg %p146
        %p635 = pneg %p170
        %p636 = pneg %p167
        %p637 = pneg %p191
        %p638 = pneg %p188
        %p639 = pneg %p212
        %p640 = pneg %p209
        %p641 = pneg %p233
        %p642 = pneg %p230
        %p643 = pneg %p254
        %p644 = pneg %p251
        %p645 = pneg %p275
        %p646 = pneg %p272
        %p647 = pneg %p296
        %p648 = pneg %p293
        %p649 = pneg %p317
        %p650 = pneg %p314
        %p651 = pneg %p338
        %p652 = pneg %p335
        %p653 = pneg %p359
        %p654 = pneg %p356
        %p655 = pneg %p380
        %p656 = pneg %p377
        %p657 = pneg %p406
        %p658 = pneg %p403
        %s659 = sand.u32 %s393, 1
        %s660 = scalar_lea.sflag [#allocation4], %s659
        %s661 = sand.u32 %s393, 1
        %s662 = smul.addr %s661, 4
        %s663 = scalar_lea.vmem [#allocation16], %s662
        %v665 = vld [vmem:[%s577] sm:$0xf]
        %v666 = vld [vmem:[%s586] sm:$0xf]
        %v667 = vld [vmem:[%s586 + $0x4] sm:$0xf]
        %v668 = vld [vmem:[#allocation7] sm:$0xf]
        %v669 = vld [vmem:[#allocation7 + $0x4] sm:$0xf]
        %v670 = vld [vmem:[#allocation7 + $0x8] sm:$0xf]
        %v671 = vld [vmem:[#allocation7 + $0xc] sm:$0xf]
        %v672 = vld [vmem:[#allocation7 + $0x10] sm:$0xf]
        %v673 = vld [vmem:[#allocation7 + $0x14] sm:$0xf]
        %v674 = vld [vmem:[#allocation7 + $0x18] sm:$0xf]
        %v675 = vld [vmem:[#allocation7 + $0x1c] sm:$0xf]
        %v676 = vld [vmem:[#allocation7 + $0x20] sm:$0xf]
        %v677 = vld [vmem:[#allocation7 + $0x24] sm:$0xf]
        %v678 = vld [vmem:[#allocation7 + $0x28] sm:$0xf]
        %v679 = vld [vmem:[#allocation7 + $0x2c] sm:$0xf]
        %v680 = vld [vmem:[#allocation7 + $0x30] sm:$0xf]
        %v681 = vld [vmem:[#allocation7 + $0x34] sm:$0xf]
        %v682 = vld [vmem:[#allocation7 + $0x38] sm:$0xf]
        %v683 = vld [vmem:[#allocation7 + $0x3c] sm:$0xf]
        %v684 = vld [vmem:[#allocation8] sm:$0xf]
        %v685 = vld [vmem:[#allocation8 + $0x4] sm:$0xf]
        %v686 = vld [vmem:[#allocation8 + $0x8] sm:$0xf]
        %v687 = vld [vmem:[#allocation8 + $0xc] sm:$0xf]
        %v688 = vld [vmem:[#allocation8 + $0x10] sm:$0xf]
        %v689 = vld [vmem:[#allocation8 + $0x14] sm:$0xf]
        %v690 = vld [vmem:[#allocation8 + $0x18] sm:$0xf]
        %v691 = vld [vmem:[#allocation8 + $0x1c] sm:$0xf]
        %v692 = vld [vmem:[#allocation8 + $0x20] sm:$0xf]
        %v693 = vld [vmem:[#allocation8 + $0x24] sm:$0xf]
        %v694 = vld [vmem:[#allocation8 + $0x28] sm:$0xf]
        %v695 = vld [vmem:[#allocation8 + $0x2c] sm:$0xf]
        %v696 = vld [vmem:[#allocation8 + $0x30] sm:$0xf]
        %v697 = vld [vmem:[#allocation8 + $0x34] sm:$0xf]
        %v698 = vld [vmem:[#allocation8 + $0x38] sm:$0xf]
        %v699 = vld [vmem:[#allocation8 + $0x3c] sm:$0xf]
        %v700 = vld [vmem:[#allocation10] sm:$0xf]
        %v701 = vld [vmem:[#allocation10 + $0x4] sm:$0xf]
        %v702 = vld [vmem:[#allocation10 + $0x8] sm:$0xf]
        %v703 = vld [vmem:[#allocation10 + $0xc] sm:$0xf]
        %v704 = vld [vmem:[#allocation10 + $0x10] sm:$0xf]
        %v705 = vld [vmem:[#allocation10 + $0x14] sm:$0xf]
        %v706 = vld [vmem:[#allocation10 + $0x18] sm:$0xf]
        %v707 = vld [vmem:[#allocation10 + $0x1c] sm:$0xf]
        %v708 = vld [vmem:[#allocation10 + $0x20] sm:$0xf]
        %v709 = vld [vmem:[#allocation10 + $0x24] sm:$0xf]
        %v710 = vld [vmem:[#allocation10 + $0x28] sm:$0xf]
        %v711 = vld [vmem:[#allocation10 + $0x2c] sm:$0xf]
        %v712 = vld [vmem:[#allocation10 + $0x30] sm:$0xf]
        %v713 = vld [vmem:[#allocation10 + $0x34] sm:$0xf]
        %v714 = vld [vmem:[#allocation10 + $0x38] sm:$0xf]
        %v715 = vld [vmem:[#allocation10 + $0x3c] sm:$0xf]
        %v716 = vld [vmem:[%s5] sm:$0x1]
        %v717 = vld [vmem:[%s6] sm:$0x1]
        %v718 = vld [vmem:[%s7] sm:$0x1]
        %v719 = vld [vmem:[#allocation11] sm:$0xf]
        %v720 = vld [vmem:[#allocation11 + $0x4] sm:$0xf]
        %v721 = vld [vmem:[#allocation11 + $0x8] sm:$0xf]
        %v722 = vld [vmem:[#allocation11 + $0xc] sm:$0xf]
        %v723 = vld [vmem:[#allocation11 + $0x10] sm:$0xf]
        %v724 = vld [vmem:[#allocation11 + $0x14] sm:$0xf]
        %v725 = vld [vmem:[#allocation11 + $0x18] sm:$0xf]
        %v726 = vld [vmem:[#allocation11 + $0x1c] sm:$0xf]
        %v727 = vld [vmem:[#allocation11 + $0x20] sm:$0xf]
        %v728 = vld [vmem:[#allocation11 + $0x24] sm:$0xf]
        %v729 = vld [vmem:[#allocation11 + $0x28] sm:$0xf]
        %v730 = vld [vmem:[#allocation11 + $0x2c] sm:$0xf]
        %v731 = vld [vmem:[#allocation11 + $0x30] sm:$0xf]
        %v732 = vld [vmem:[#allocation11 + $0x34] sm:$0xf]
        %v733 = vld [vmem:[#allocation11 + $0x38] sm:$0xf]
        %v734 = vld [vmem:[#allocation11 + $0x3c] sm:$0xf]
        %v735 = vld [vmem:[%s9] sm:$0x1]
        %v736 = vld [vmem:[%s10] sm:$0x1]
        %v737 = vld [vmem:[%s11] sm:$0x1]
        %v739 = vlaneseq
        %v740 = vshrl.u32 %v739, 7
        %v741 = vsub.s32 0, %v740
        %v742 = vrot.slane %v716, %v741
        %v760 = vunpack.c.l.b16 %v668
        %v761 = vunpack.c.l.b16 %v669
        %v762 = vunpack.c.l.b16 %v670
        %v763 = vunpack.c.l.b16 %v671
        %v764 = vunpack.c.l.b16 %v672
        %v765 = vunpack.c.l.b16 %v673
        %v766 = vunpack.c.l.b16 %v674
        %v767 = vunpack.c.l.b16 %v675
        %v768 = vunpack.c.l.b16 %v676
        %v769 = vunpack.c.l.b16 %v677
        %v770 = vunpack.c.l.b16 %v678
        %v771 = vunpack.c.l.b16 %v679
        %v772 = vunpack.c.l.b16 %v680
        %v773 = vunpack.c.l.b16 %v681
        %v774 = vunpack.c.l.b16 %v682
        %v775 = vunpack.c.l.b16 %v683
        %v776 = vpack.c.b16 %v761, %v760
        %v777 = vpack.c.b16 %v763, %v762
        %v778 = vpack.c.b16 %v765, %v764
        %v779 = vpack.c.b16 %v767, %v766
        %v780 = vpack.c.b16 %v769, %v768
        %v781 = vpack.c.b16 %v771, %v770
        %v782 = vpack.c.b16 %v773, %v772
        %v783 = vpack.c.b16 %v775, %v774
        %792 = vmatprep.subr.bf16.mxu0 0
        %793 = vmatpush1.bf16.msra.mxu0 %v783
        %794 = vmatprep.subr.bf16.mxu0 0
        %795 = vmatpush1.bf16.msra.mxu0 %v782
        %796 = vmatprep.subr.bf16.mxu0 0
        %797 = vmatpush1.bf16.msra.mxu0 %v781
        %798 = vmatprep.subr.bf16.mxu0 0
        %799 = vmatpush1.bf16.msra.mxu0 %v780
        %800 = vmatprep.subr.bf16.mxu0 0
        %801 = vmatpush1.bf16.msra.mxu0 %v779
        %802 = vmatprep.subr.bf16.mxu0 0
        %803 = vmatpush1.bf16.msra.mxu0 %v778
        %804 = vmatprep.subr.bf16.mxu0 0
        %805 = vmatpush1.bf16.msra.mxu0 %v777
        %806 = vmatprep.subr.bf16.mxu0 0
        %807 = vmatpush1.bf16.msra.mxu0 %v776
        %808 = vmatprep.subr.bf16.mxu0 0
        %809 = vmatpush2.bf16.msra.mxu0 0
        %810 = vmatprep.subr.bf16.mxu0 0
        %811 = vmatpush2.bf16.msra.mxu0 0
        %812 = vmatprep.subr.bf16.mxu0 0
        %813 = vmatpush2.bf16.msra.mxu0 0
        %814 = vmatprep.subr.bf16.mxu0 0
        %815 = vmatpush2.bf16.msra.mxu0 0
        %816 = vmatprep.subr.bf16.mxu0 0
        %817 = vmatpush2.bf16.msra.mxu0 0
        %818 = vmatprep.subr.bf16.mxu0 0
        %819 = vmatpush2.bf16.msra.mxu0 0
        %820 = vmatprep.subr.bf16.mxu0 0
        %821 = vmatpush2.bf16.msra.mxu0 0
        %822 = vmatprep.subr.bf16.mxu0 0
        %823 = vmatpush2.bf16.msra.mxu0 0
        %824 = vmatprep.mubr.bf16.mxu0 0
        %825 = vmatmul.mubr.bf16.gmra.mxu0 %v665
        %v826 = vpop.f32.mrf.mxu0
        %v827 = vadd.f32 %v742, %v826
        %v828 = vpop.f32.mrf.mxu0
        %v829 = vpop.f32.mrf.mxu0
        %v830 = vpop.f32.mrf.mxu0
        %831 = vdwg.mxu0
        %v832 = vpack.c.bf16 %v827, %v827
        %v834 = vlaneseq
        %v835 = vshrl.u32 %v834, 7
        %v836 = vsub.s32 0, %v835
        %v837 = vrot.slane %v717, %v836
        %v855 = vunpack.c.l.b16 %v684
        %v856 = vunpack.c.l.b16 %v685
        %v857 = vunpack.c.l.b16 %v686
        %v858 = vunpack.c.l.b16 %v687
        %v859 = vunpack.c.l.b16 %v688
        %v860 = vunpack.c.l.b16 %v689
        %v861 = vunpack.c.l.b16 %v690
        %v862 = vunpack.c.l.b16 %v691
        %v863 = vunpack.c.l.b16 %v692
        %v864 = vunpack.c.l.b16 %v693
        %v865 = vunpack.c.l.b16 %v694
        %v866 = vunpack.c.l.b16 %v695
        %v867 = vunpack.c.l.b16 %v696
        %v868 = vunpack.c.l.b16 %v697
        %v869 = vunpack.c.l.b16 %v698
        %v870 = vunpack.c.l.b16 %v699
        %v871 = vpack.c.b16 %v856, %v855
        %v872 = vpack.c.b16 %v858, %v857
        %v873 = vpack.c.b16 %v860, %v859
        %v874 = vpack.c.b16 %v862, %v861
        %v875 = vpack.c.b16 %v864, %v863
        %v876 = vpack.c.b16 %v866, %v865
        %v877 = vpack.c.b16 %v868, %v867
        %v878 = vpack.c.b16 %v870, %v869
        %887 = vmatprep.subr.bf16.mxu0 0
        %888 = vmatpush1.bf16.msra.mxu0 %v878
        %889 = vmatprep.subr.bf16.mxu0 0
        %890 = vmatpush1.bf16.msra.mxu0 %v877
        %891 = vmatprep.subr.bf16.mxu0 0
        %892 = vmatpush1.bf16.msra.mxu0 %v876
        %893 = vmatprep.subr.bf16.mxu0 0
        %894 = vmatpush1.bf16.msra.mxu0 %v875
        %895 = vmatprep.subr.bf16.mxu0 0
        %896 = vmatpush1.bf16.msra.mxu0 %v874
        %897 = vmatprep.subr.bf16.mxu0 0
        %898 = vmatpush1.bf16.msra.mxu0 %v873
        %899 = vmatprep.subr.bf16.mxu0 0
        %900 = vmatpush1.bf16.msra.mxu0 %v872
        %901 = vmatprep.subr.bf16.mxu0 0
        %902 = vmatpush1.bf16.msra.mxu0 %v871
        %903 = vmatprep.subr.bf16.mxu0 0
        %904 = vmatpush2.bf16.msra.mxu0 0
        %905 = vmatprep.subr.bf16.mxu0 0
        %906 = vmatpush2.bf16.msra.mxu0 0
        %907 = vmatprep.subr.bf16.mxu0 0
        %908 = vmatpush2.bf16.msra.mxu0 0
        %909 = vmatprep.subr.bf16.mxu0 0
        %910 = vmatpush2.bf16.msra.mxu0 0
        %911 = vmatprep.subr.bf16.mxu0 0
        %912 = vmatpush2.bf16.msra.mxu0 0
        %913 = vmatprep.subr.bf16.mxu0 0
        %914 = vmatpush2.bf16.msra.mxu0 0
        %915 = vmatprep.subr.bf16.mxu0 0
        %916 = vmatpush2.bf16.msra.mxu0 0
        %917 = vmatprep.subr.bf16.mxu0 0
        %918 = vmatpush2.bf16.msra.mxu0 0
        %919 = vmatprep.mubr.bf16.mxu0 0
        %920 = vmatmul.mubr.bf16.gmra.mxu0 %v665
        %v921 = vpop.f32.mrf.mxu0
        %v922 = vadd.f32 %v837, %v921
        %v923 = vpop.f32.mrf.mxu0
        %v924 = vpop.f32.mrf.mxu0
        %v925 = vpop.f32.mrf.mxu0
        %926 = vdwg.mxu0
        %v927 = vpack.c.bf16 %v922, %v922
        %v929 = vlaneseq
        %v930 = vshrl.u32 %v929, 7
        %v931 = vsub.s32 0, %v930
        %v932 = vrot.slane %v718, %v931
        %v950 = vunpack.c.l.b16 %v700
        %v951 = vunpack.c.l.b16 %v701
        %v952 = vunpack.c.l.b16 %v702
        %v953 = vunpack.c.l.b16 %v703
        %v954 = vunpack.c.l.b16 %v704
        %v955 = vunpack.c.l.b16 %v705
        %v956 = vunpack.c.l.b16 %v706
        %v957 = vunpack.c.l.b16 %v707
        %v958 = vunpack.c.l.b16 %v708
        %v959 = vunpack.c.l.b16 %v709
        %v960 = vunpack.c.l.b16 %v710
        %v961 = vunpack.c.l.b16 %v711
        %v962 = vunpack.c.l.b16 %v712
        %v963 = vunpack.c.l.b16 %v713
        %v964 = vunpack.c.l.b16 %v714
        %v965 = vunpack.c.l.b16 %v715
        %v966 = vpack.c.b16 %v951, %v950
        %v967 = vpack.c.b16 %v953, %v952
        %v968 = vpack.c.b16 %v955, %v954
        %v969 = vpack.c.b16 %v957, %v956
        %v970 = vpack.c.b16 %v959, %v958
        %v971 = vpack.c.b16 %v961, %v960
        %v972 = vpack.c.b16 %v963, %v962
        %v973 = vpack.c.b16 %v965, %v964
        %982 = vmatprep.subr.bf16.mxu0 0
        %983 = vmatpush1.bf16.msra.mxu0 %v973
        %984 = vmatprep.subr.bf16.mxu0 0
        %985 = vmatpush1.bf16.msra.mxu0 %v972
        %986 = vmatprep.subr.bf16.mxu0 0
        %987 = vmatpush1.bf16.msra.mxu0 %v971
        %988 = vmatprep.subr.bf16.mxu0 0
        %989 = vmatpush1.bf16.msra.mxu0 %v970
        %990 = vmatprep.subr.bf16.mxu0 0
        %991 = vmatpush1.bf16.msra.mxu0 %v969
        %992 = vmatprep.subr.bf16.mxu0 0
        %993 = vmatpush1.bf16.msra.mxu0 %v968
        %994 = vmatprep.subr.bf16.mxu0 0
        %995 = vmatpush1.bf16.msra.mxu0 %v967
        %996 = vmatprep.subr.bf16.mxu0 0
        %997 = vmatpush1.bf16.msra.mxu0 %v966
        %998 = vmatprep.subr.bf16.mxu0 0
        %999 = vmatpush2.bf16.msra.mxu0 0
        %1000 = vmatprep.subr.bf16.mxu0 0
        %1001 = vmatpush2.bf16.msra.mxu0 0
        %1002 = vmatprep.subr.bf16.mxu0 0
        %1003 = vmatpush2.bf16.msra.mxu0 0
        %1004 = vmatprep.subr.bf16.mxu0 0
        %1005 = vmatpush2.bf16.msra.mxu0 0
        %1006 = vmatprep.subr.bf16.mxu0 0
        %1007 = vmatpush2.bf16.msra.mxu0 0
        %1008 = vmatprep.subr.bf16.mxu0 0
        %1009 = vmatpush2.bf16.msra.mxu0 0
        %1010 = vmatprep.subr.bf16.mxu0 0
        %1011 = vmatpush2.bf16.msra.mxu0 0
        %1012 = vmatprep.subr.bf16.mxu0 0
        %1013 = vmatpush2.bf16.msra.mxu0 0
        %1014 = vmatprep.mubr.bf16.mxu0 0
        %1015 = vmatmul.mubr.bf16.gmra.mxu0 %v665
        %v1016 = vpop.f32.mrf.mxu0
        %v1017 = vadd.f32 %v932, %v1016
        %v1018 = vpop.f32.mrf.mxu0
        %v1019 = vpop.f32.mrf.mxu0
        %v1020 = vpop.f32.mrf.mxu0
        %1021 = vdwg.mxu0
        %v1022 = vpack.c.bf16 %v1017, %v1017
        %vm1023 = vcmask 261120
        %v1025 = vsel %vm1023, %v832, 0
        %v1028 = vsel %vm1023, %v927, 0
        %1030 = vmatprep.subr.bf16.mxu0 0
        %1031 = vmatpush1.bf16.xpose.msra.mxu0 0
        %1032 = vmatprep.subr.bf16.mxu0 0
        %1033 = vmatpush1.bf16.xpose.msra.mxu0 0
        %1034 = vmatprep.subr.bf16.mxu0 0
        %1035 = vmatpush1.bf16.xpose.msra.mxu0 0
        %1036 = vmatprep.subr.bf16.mxu0 0
        %1037 = vmatpush1.bf16.xpose.msra.mxu0 0
        %1038 = vmatprep.subr.bf16.mxu0 0
        %1039 = vmatpush1.bf16.xpose.msra.mxu0 0
        %1040 = vmatprep.subr.bf16.mxu0 0
        %1041 = vmatpush1.bf16.xpose.msra.mxu0 0
        %1042 = vmatprep.subr.bf16.mxu0 0
        %1043 = vmatpush1.bf16.xpose.msra.mxu0 0
        %1044 = vmatprep.subr.bf16.mxu0 0
        %1045 = vmatpush1.bf16.xpose.msra.mxu0 %v1028
        %1046 = vmatprep.subr.bf16.mxu0 0
        %1047 = vmatpush2.bf16.xpose.msra.mxu0 0
        %1048 = vmatprep.subr.bf16.mxu0 0
        %1049 = vmatpush2.bf16.xpose.msra.mxu0 0
        %1050 = vmatprep.subr.bf16.mxu0 0
        %1051 = vmatpush2.bf16.xpose.msra.mxu0 0
        %1052 = vmatprep.subr.bf16.mxu0 0
        %1053 = vmatpush2.bf16.xpose.msra.mxu0 0
        %1054 = vmatprep.subr.bf16.mxu0 0
        %1055 = vmatpush2.bf16.xpose.msra.mxu0 0
        %1056 = vmatprep.subr.bf16.mxu0 0
        %1057 = vmatpush2.bf16.xpose.msra.mxu0 0
        %1058 = vmatprep.subr.bf16.mxu0 0
        %1059 = vmatpush2.bf16.xpose.msra.mxu0 0
        %1060 = vmatprep.subr.bf16.mxu0 0
        %1061 = vmatpush2.bf16.xpose.msra.mxu0 0
        %1062 = vmatprep.mubr.bf16.mxu0 0
        %1063 = vmatmul.mubr.bf16.gmra.mxu0 %v1025
        %v1064 = vpop.f32.mrf.mxu0
        %v1065 = vadd.f32 0.0, %v1064
        %v1066 = vpop.f32.mrf.mxu0
        %v1067 = vpop.f32.mrf.mxu0
        %v1068 = vpop.f32.mrf.mxu0
        %1069 = vdwg.mxu0
        %vm1070 = vcmask 64512
        %v1071 = vsel %vm1070, %v1065, -inf
        %1072 = vmax.xlane.f32.xlu0 %v1071
        %v1073 = vpop.xlane.xlu0 %1072
        %v1074 = vsub.f32 %v1065, %v1073
        %v1075 = vmul.f32 %v1074, 1.442695
        %v1076 = vpow.pop %v1075
        %v1077 = vsel %vm1070, %v1076, 0.0
        %1078 = vadd.xlane.f32.xlu0 %v1077
        %v1079 = vpop.xlane.xlu0 %1078
        %v1080 = vrcp.pop %v1079
        %v1081 = vmul.f32 %v1076, %v1080
        %v1082 = vpack.c.bf16 %v1081, %v1081
        %v1084 = vsel %vm1070, %v1082, 0
        %vm1086 = vcmask 1043456
        %v1088 = vsel %vm1086, %v1022, 0
        %1090 = vmatprep.subr.bf16.mxu0 0
        %1091 = vmatpush1.bf16.msra.mxu0 0
        %1092 = vmatprep.subr.bf16.mxu0 0
        %1093 = vmatpush1.bf16.msra.mxu0 0
        %1094 = vmatprep.subr.bf16.mxu0 0
        %1095 = vmatpush1.bf16.msra.mxu0 0
        %1096 = vmatprep.subr.bf16.mxu0 0
        %1097 = vmatpush1.bf16.msra.mxu0 0
        %1098 = vmatprep.subr.bf16.mxu0 0
        %1099 = vmatpush1.bf16.msra.mxu0 0
        %1100 = vmatprep.subr.bf16.mxu0 0
        %1101 = vmatpush1.bf16.msra.mxu0 0
        %1102 = vmatprep.subr.bf16.mxu0 0
        %1103 = vmatpush1.bf16.msra.mxu0 0
        %1104 = vmatprep.subr.bf16.mxu0 0
        %1105 = vmatpush1.bf16.msra.mxu0 %v1088
        %1106 = vmatprep.subr.bf16.mxu0 0
        %1107 = vmatpush2.bf16.msra.mxu0 0
        %1108 = vmatprep.subr.bf16.mxu0 0
        %1109 = vmatpush2.bf16.msra.mxu0 0
        %1110 = vmatprep.subr.bf16.mxu0 0
        %1111 = vmatpush2.bf16.msra.mxu0 0
        %1112 = vmatprep.subr.bf16.mxu0 0
        %1113 = vmatpush2.bf16.msra.mxu0 0
        %1114 = vmatprep.subr.bf16.mxu0 0
        %1115 = vmatpush2.bf16.msra.mxu0 0
        %1116 = vmatprep.subr.bf16.mxu0 0
        %1117 = vmatpush2.bf16.msra.mxu0 0
        %1118 = vmatprep.subr.bf16.mxu0 0
        %1119 = vmatpush2.bf16.msra.mxu0 0
        %1120 = vmatprep.subr.bf16.mxu0 0
        %1121 = vmatpush2.bf16.msra.mxu0 0
        %1122 = vmatprep.mubr.bf16.mxu0 0
        %1123 = vmatmul.mubr.bf16.gmra.mxu0 %v1084
        %v1124 = vpop.f32.mrf.mxu0
        %v1125 = vadd.f32 0.0, %v1124
        %v1126 = vpop.f32.mrf.mxu0
        %v1127 = vpop.f32.mrf.mxu0
        %v1128 = vpop.f32.mrf.mxu0
        %1129 = vdwg.mxu0
        %1131 = vrot.lane.b32.xlu0 %v832, 96
        %v1132 = vpop.permute.xlu0 %1131
        %1134 = vrot.lane.b32.xlu0 %v927, 96
        %v1135 = vpop.permute.xlu0 %1134
        %v1137 = vsel %vm1023, %v1132, 0
        %v1140 = vsel %vm1023, %v1135, 0
        %1142 = vmatprep.subr.bf16.mxu0 0
        %1143 = vmatpush1.bf16.xpose.msra.mxu0 0
        %1144 = vmatprep.subr.bf16.mxu0 0
        %1145 = vmatpush1.bf16.xpose.msra.mxu0 0
        %1146 = vmatprep.subr.bf16.mxu0 0
        %1147 = vmatpush1.bf16.xpose.msra.mxu0 0
        %1148 = vmatprep.subr.bf16.mxu0 0
        %1149 = vmatpush1.bf16.xpose.msra.mxu0 0
        %1150 = vmatprep.subr.bf16.mxu0 0
        %1151 = vmatpush1.bf16.xpose.msra.mxu0 0
        %1152 = vmatprep.subr.bf16.mxu0 0
        %1153 = vmatpush1.bf16.xpose.msra.mxu0 0
        %1154 = vmatprep.subr.bf16.mxu0 0
        %1155 = vmatpush1.bf16.xpose.msra.mxu0 0
        %1156 = vmatprep.subr.bf16.mxu0 0
        %1157 = vmatpush1.bf16.xpose.msra.mxu0 %v1140
        %1158 = vmatprep.subr.bf16.mxu0 0
        %1159 = vmatpush2.bf16.xpose.msra.mxu0 0
        %1160 = vmatprep.subr.bf16.mxu0 0
        %1161 = vmatpush2.bf16.xpose.msra.mxu0 0
        %1162 = vmatprep.subr.bf16.mxu0 0
        %1163 = vmatpush2.bf16.xpose.msra.mxu0 0
        %1164 = vmatprep.subr.bf16.mxu0 0
        %1165 = vmatpush2.bf16.xpose.msra.mxu0 0
        %1166 = vmatprep.subr.bf16.mxu0 0
        %1167 = vmatpush2.bf16.xpose.msra.mxu0 0
        %1168 = vmatprep.subr.bf16.mxu0 0
        %1169 = vmatpush2.bf16.xpose.msra.mxu0 0
        %1170 = vmatprep.subr.bf16.mxu0 0
        %1171 = vmatpush2.bf16.xpose.msra.mxu0 0
        %1172 = vmatprep.subr.bf16.mxu0 0
        %1173 = vmatpush2.bf16.xpose.msra.mxu0 0
        %1174 = vmatprep.mubr.bf16.mxu0 0
        %1175 = vmatmul.mubr.bf16.gmra.mxu0 %v1137
        %v1176 = vpop.f32.mrf.mxu0
        %v1177 = vadd.f32 0.0, %v1176
        %v1178 = vpop.f32.mrf.mxu0
        %v1179 = vpop.f32.mrf.mxu0
        %v1180 = vpop.f32.mrf.mxu0
        %1181 = vdwg.mxu0
        %v1182 = vsel %vm1070, %v1177, -inf
        %1183 = vmax.xlane.f32.xlu0 %v1182
        %v1184 = vpop.xlane.xlu0 %1183
        %v1185 = vsub.f32 %v1177, %v1184
        %v1186 = vmul.f32 %v1185, 1.442695
        %v1187 = vpow.pop %v1186
        %v1188 = vsel %vm1070, %v1187, 0.0
        %1189 = vadd.xlane.f32.xlu0 %v1188
        %v1190 = vpop.xlane.xlu0 %1189
        %v1191 = vrcp.pop %v1190
        %v1192 = vmul.f32 %v1187, %v1191
        %v1193 = vpack.c.bf16 %v1192, %v1192
        %1195 = vrot.lane.b32.xlu0 %v1022, 96
        %v1196 = vpop.permute.xlu0 %1195
        %v1198 = vsel %vm1070, %v1193, 0
        %v1201 = vsel %vm1086, %v1196, 0
        %1203 = vmatprep.subr.bf16.mxu0 0
        %1204 = vmatpush1.bf16.msra.mxu0 0
        %1205 = vmatprep.subr.bf16.mxu0 0
        %1206 = vmatpush1.bf16.msra.mxu0 0
        %1207 = vmatprep.subr.bf16.mxu0 0
        %1208 = vmatpush1.bf16.msra.mxu0 0
        %1209 = vmatprep.subr.bf16.mxu0 0
        %1210 = vmatpush1.bf16.msra.mxu0 0
        %1211 = vmatprep.subr.bf16.mxu0 0
        %1212 = vmatpush1.bf16.msra.mxu0 0
        %1213 = vmatprep.subr.bf16.mxu0 0
        %1214 = vmatpush1.bf16.msra.mxu0 0
        %1215 = vmatprep.subr.bf16.mxu0 0
        %1216 = vmatpush1.bf16.msra.mxu0 0
        %1217 = vmatprep.subr.bf16.mxu0 0
        %1218 = vmatpush1.bf16.msra.mxu0 %v1201
        %1219 = vmatprep.subr.bf16.mxu0 0
        %1220 = vmatpush2.bf16.msra.mxu0 0
        %1221 = vmatprep.subr.bf16.mxu0 0
        %1222 = vmatpush2.bf16.msra.mxu0 0
        %1223 = vmatprep.subr.bf16.mxu0 0
        %1224 = vmatpush2.bf16.msra.mxu0 0
        %1225 = vmatprep.subr.bf16.mxu0 0
        %1226 = vmatpush2.bf16.msra.mxu0 0
        %1227 = vmatprep.subr.bf16.mxu0 0
        %1228 = vmatpush2.bf16.msra.mxu0 0
        %1229 = vmatprep.subr.bf16.mxu0 0
        %1230 = vmatpush2.bf16.msra.mxu0 0
        %1231 = vmatprep.subr.bf16.mxu0 0
        %1232 = vmatpush2.bf16.msra.mxu0 0
        %1233 = vmatprep.subr.bf16.mxu0 0
        %1234 = vmatpush2.bf16.msra.mxu0 0
        %1235 = vmatprep.mubr.bf16.mxu0 0
        %1236 = vmatmul.mubr.bf16.gmra.mxu0 %v1198
        %v1237 = vpop.f32.mrf.mxu0
        %v1238 = vadd.f32 0.0, %v1237
        %v1239 = vpop.f32.mrf.mxu0
        %v1240 = vpop.f32.mrf.mxu0
        %v1241 = vpop.f32.mrf.mxu0
        %1242 = vdwg.mxu0
        %1243 = vrot.lane.b32.xlu0 %v832, 64
        %v1244 = vpop.permute.xlu0 %1243
        %1245 = vrot.lane.b32.xlu0 %v927, 64
        %v1246 = vpop.permute.xlu0 %1245
        %v1248 = vsel %vm1023, %v1244, 0
        %v1251 = vsel %vm1023, %v1246, 0
        %1253 = vmatprep.subr.bf16.mxu0 0
        %1254 = vmatpush1.bf16.xpose.msra.mxu0 0
        %1255 = vmatprep.subr.bf16.mxu0 0
        %1256 = vmatpush1.bf16.xpose.msra.mxu0 0
        %1257 = vmatprep.subr.bf16.mxu0 0
        %1258 = vmatpush1.bf16.xpose.msra.mxu0 0
        %1259 = vmatprep.subr.bf16.mxu0 0
        %1260 = vmatpush1.bf16.xpose.msra.mxu0 0
        %1261 = vmatprep.subr.bf16.mxu0 0
        %1262 = vmatpush1.bf16.xpose.msra.mxu0 0
        %1263 = vmatprep.subr.bf16.mxu0 0
        %1264 = vmatpush1.bf16.xpose.msra.mxu0 0
        %1265 = vmatprep.subr.bf16.mxu0 0
        %1266 = vmatpush1.bf16.xpose.msra.mxu0 0
        %1267 = vmatprep.subr.bf16.mxu0 0
        %1268 = vmatpush1.bf16.xpose.msra.mxu0 %v1251
        %1269 = vmatprep.subr.bf16.mxu0 0
        %1270 = vmatpush2.bf16.xpose.msra.mxu0 0
        %1271 = vmatprep.subr.bf16.mxu0 0
        %1272 = vmatpush2.bf16.xpose.msra.mxu0 0
        %1273 = vmatprep.subr.bf16.mxu0 0
        %1274 = vmatpush2.bf16.xpose.msra.mxu0 0
        %1275 = vmatprep.subr.bf16.mxu0 0
        %1276 = vmatpush2.bf16.xpose.msra.mxu0 0
        %1277 = vmatprep.subr.bf16.mxu0 0
        %1278 = vmatpush2.bf16.xpose.msra.mxu0 0
        %1279 = vmatprep.subr.bf16.mxu0 0
        %1280 = vmatpush2.bf16.xpose.msra.mxu0 0
        %1281 = vmatprep.subr.bf16.mxu0 0
        %1282 = vmatpush2.bf16.xpose.msra.mxu0 0
        %1283 = vmatprep.subr.bf16.mxu0 0
        %1284 = vmatpush2.bf16.xpose.msra.mxu0 0
        %1285 = vmatprep.mubr.bf16.mxu0 0
        %1286 = vmatmul.mubr.bf16.gmra.mxu0 %v1248
        %v1287 = vpop.f32.mrf.mxu0
        %v1288 = vadd.f32 0.0, %v1287
        %v1289 = vpop.f32.mrf.mxu0
        %v1290 = vpop.f32.mrf.mxu0
        %v1291 = vpop.f32.mrf.mxu0
        %1292 = vdwg.mxu0
        %v1293 = vsel %vm1070, %v1288, -inf
        %1294 = vmax.xlane.f32.xlu0 %v1293
        %v1295 = vpop.xlane.xlu0 %1294
        %v1296 = vsub.f32 %v1288, %v1295
        %v1297 = vmul.f32 %v1296, 1.442695
        %v1298 = vpow.pop %v1297
        %v1299 = vsel %vm1070, %v1298, 0.0
        %1300 = vadd.xlane.f32.xlu0 %v1299
        %v1301 = vpop.xlane.xlu0 %1300
        %v1302 = vrcp.pop %v1301
        %v1303 = vmul.f32 %v1298, %v1302
        %v1304 = vpack.c.bf16 %v1303, %v1303
        %1305 = vrot.lane.b32.xlu0 %v1022, 64
        %v1306 = vpop.permute.xlu0 %1305
        %v1308 = vsel %vm1070, %v1304, 0
        %v1311 = vsel %vm1086, %v1306, 0
        %1313 = vmatprep.subr.bf16.mxu0 0
        %1314 = vmatpush1.bf16.msra.mxu0 0
        %1315 = vmatprep.subr.bf16.mxu0 0
        %1316 = vmatpush1.bf16.msra.mxu0 0
        %1317 = vmatprep.subr.bf16.mxu0 0
        %1318 = vmatpush1.bf16.msra.mxu0 0
        %1319 = vmatprep.subr.bf16.mxu0 0
        %1320 = vmatpush1.bf16.msra.mxu0 0
        %1321 = vmatprep.subr.bf16.mxu0 0
        %1322 = vmatpush1.bf16.msra.mxu0 0
        %1323 = vmatprep.subr.bf16.mxu0 0
        %1324 = vmatpush1.bf16.msra.mxu0 0
        %1325 = vmatprep.subr.bf16.mxu0 0
        %1326 = vmatpush1.bf16.msra.mxu0 0
        %1327 = vmatprep.subr.bf16.mxu0 0
        %1328 = vmatpush1.bf16.msra.mxu0 %v1311
        %1329 = vmatprep.subr.bf16.mxu0 0
        %1330 = vmatpush2.bf16.msra.mxu0 0
        %1331 = vmatprep.subr.bf16.mxu0 0
        %1332 = vmatpush2.bf16.msra.mxu0 0
        %1333 = vmatprep.subr.bf16.mxu0 0
        %1334 = vmatpush2.bf16.msra.mxu0 0
        %1335 = vmatprep.subr.bf16.mxu0 0
        %1336 = vmatpush2.bf16.msra.mxu0 0
        %1337 = vmatprep.subr.bf16.mxu0 0
        %1338 = vmatpush2.bf16.msra.mxu0 0
        %1339 = vmatprep.subr.bf16.mxu0 0
        %1340 = vmatpush2.bf16.msra.mxu0 0
        %1341 = vmatprep.subr.bf16.mxu0 0
        %1342 = vmatpush2.bf16.msra.mxu0 0
        %1343 = vmatprep.subr.bf16.mxu0 0
        %1344 = vmatpush2.bf16.msra.mxu0 0
        %1345 = vmatprep.mubr.bf16.mxu0 0
        %1346 = vmatmul.mubr.bf16.gmra.mxu0 %v1308
        %v1347 = vpop.f32.mrf.mxu0
        %v1348 = vadd.f32 0.0, %v1347
        %v1349 = vpop.f32.mrf.mxu0
        %v1350 = vpop.f32.mrf.mxu0
        %v1351 = vpop.f32.mrf.mxu0
        %1352 = vdwg.mxu0
        %1353 = vrot.lane.b32.xlu0 %v832, 32
        %v1354 = vpop.permute.xlu0 %1353
        %1355 = vrot.lane.b32.xlu0 %v927, 32
        %v1356 = vpop.permute.xlu0 %1355
        %v1358 = vsel %vm1023, %v1354, 0
        %v1361 = vsel %vm1023, %v1356, 0
        %1363 = vmatprep.subr.bf16.mxu0 0
        %1364 = vmatpush1.bf16.xpose.msra.mxu0 0
        %1365 = vmatprep.subr.bf16.mxu0 0
        %1366 = vmatpush1.bf16.xpose.msra.mxu0 0
        %1367 = vmatprep.subr.bf16.mxu0 0
        %1368 = vmatpush1.bf16.xpose.msra.mxu0 0
        %1369 = vmatprep.subr.bf16.mxu0 0
        %1370 = vmatpush1.bf16.xpose.msra.mxu0 0
        %1371 = vmatprep.subr.bf16.mxu0 0
        %1372 = vmatpush1.bf16.xpose.msra.mxu0 0
        %1373 = vmatprep.subr.bf16.mxu0 0
        %1374 = vmatpush1.bf16.xpose.msra.mxu0 0
        %1375 = vmatprep.subr.bf16.mxu0 0
        %1376 = vmatpush1.bf16.xpose.msra.mxu0 0
        %1377 = vmatprep.subr.bf16.mxu0 0
        %1378 = vmatpush1.bf16.xpose.msra.mxu0 %v1361
        %1379 = vmatprep.subr.bf16.mxu0 0
        %1380 = vmatpush2.bf16.xpose.msra.mxu0 0
        %1381 = vmatprep.subr.bf16.mxu0 0
        %1382 = vmatpush2.bf16.xpose.msra.mxu0 0
        %1383 = vmatprep.subr.bf16.mxu0 0
        %1384 = vmatpush2.bf16.xpose.msra.mxu0 0
        %1385 = vmatprep.subr.bf16.mxu0 0
        %1386 = vmatpush2.bf16.xpose.msra.mxu0 0
        %1387 = vmatprep.subr.bf16.mxu0 0
        %1388 = vmatpush2.bf16.xpose.msra.mxu0 0
        %1389 = vmatprep.subr.bf16.mxu0 0
        %1390 = vmatpush2.bf16.xpose.msra.mxu0 0
        %1391 = vmatprep.subr.bf16.mxu0 0
        %1392 = vmatpush2.bf16.xpose.msra.mxu0 0
        %1393 = vmatprep.subr.bf16.mxu0 0
        %1394 = vmatpush2.bf16.xpose.msra.mxu0 0
        %1395 = vmatprep.mubr.bf16.mxu0 0
        %1396 = vmatmul.mubr.bf16.gmra.mxu0 %v1358
        %v1397 = vpop.f32.mrf.mxu0
        %v1398 = vadd.f32 0.0, %v1397
        %v1399 = vpop.f32.mrf.mxu0
        %v1400 = vpop.f32.mrf.mxu0
        %v1401 = vpop.f32.mrf.mxu0
        %1402 = vdwg.mxu0
        %v1403 = vsel %vm1070, %v1398, -inf
        %1404 = vmax.xlane.f32.xlu0 %v1403
        %v1405 = vpop.xlane.xlu0 %1404
        %v1406 = vsub.f32 %v1398, %v1405
        %v1407 = vmul.f32 %v1406, 1.442695
        %v1408 = vpow.pop %v1407
        %v1409 = vsel %vm1070, %v1408, 0.0
        %1410 = vadd.xlane.f32.xlu0 %v1409
        %v1411 = vpop.xlane.xlu0 %1410
        %v1412 = vrcp.pop %v1411
        %v1413 = vmul.f32 %v1408, %v1412
        %v1414 = vpack.c.bf16 %v1413, %v1413
        %1415 = vrot.lane.b32.xlu0 %v1022, 32
        %v1416 = vpop.permute.xlu0 %1415
        %v1418 = vsel %vm1070, %v1414, 0
        %v1421 = vsel %vm1086, %v1416, 0
        %1423 = vmatprep.subr.bf16.mxu0 0
        %1424 = vmatpush1.bf16.msra.mxu0 0
        %1425 = vmatprep.subr.bf16.mxu0 0
        %1426 = vmatpush1.bf16.msra.mxu0 0
        %1427 = vmatprep.subr.bf16.mxu0 0
        %1428 = vmatpush1.bf16.msra.mxu0 0
        %1429 = vmatprep.subr.bf16.mxu0 0
        %1430 = vmatpush1.bf16.msra.mxu0 0
        %1431 = vmatprep.subr.bf16.mxu0 0
        %1432 = vmatpush1.bf16.msra.mxu0 0
        %1433 = vmatprep.subr.bf16.mxu0 0
        %1434 = vmatpush1.bf16.msra.mxu0 0
        %1435 = vmatprep.subr.bf16.mxu0 0
        %1436 = vmatpush1.bf16.msra.mxu0 0
        %1437 = vmatprep.subr.bf16.mxu0 0
        %1438 = vmatpush1.bf16.msra.mxu0 %v1421
        %1439 = vmatprep.subr.bf16.mxu0 0
        %1440 = vmatpush2.bf16.msra.mxu0 0
        %1441 = vmatprep.subr.bf16.mxu0 0
        %1442 = vmatpush2.bf16.msra.mxu0 0
        %1443 = vmatprep.subr.bf16.mxu0 0
        %1444 = vmatpush2.bf16.msra.mxu0 0
        %1445 = vmatprep.subr.bf16.mxu0 0
        %1446 = vmatpush2.bf16.msra.mxu0 0
        %1447 = vmatprep.subr.bf16.mxu0 0
        %1448 = vmatpush2.bf16.msra.mxu0 0
        %1449 = vmatprep.subr.bf16.mxu0 0
        %1450 = vmatpush2.bf16.msra.mxu0 0
        %1451 = vmatprep.subr.bf16.mxu0 0
        %1452 = vmatpush2.bf16.msra.mxu0 0
        %1453 = vmatprep.subr.bf16.mxu0 0
        %1454 = vmatpush2.bf16.msra.mxu0 0
        %1455 = vmatprep.mubr.bf16.mxu0 0
        %1456 = vmatmul.mubr.bf16.gmra.mxu0 %v1418
        %v1457 = vpop.f32.mrf.mxu0
        %v1458 = vadd.f32 0.0, %v1457
        %v1459 = vpop.f32.mrf.mxu0
        %v1460 = vpop.f32.mrf.mxu0
        %v1461 = vpop.f32.mrf.mxu0
        %1462 = vdwg.mxu0
        %1464 = vrot.lane.b32.xlu0 %v1238, 32
        %v1465 = vpop.permute.xlu0 %1464
        %1468 = vrot.lane.b32.xlu0 %v1348, 64
        %v1469 = vpop.permute.xlu0 %1468
        %1472 = vrot.lane.b32.xlu0 %v1458, 96
        %v1473 = vpop.permute.xlu0 %1472
        %v1475 = vsel %vm1023, %v1125, %v1465
        %vm1476 = vcmask 523264
        %v1477 = vsel %vm1476, %v1475, %v1469
        %vm1478 = vcmask 785408
        %v1479 = vsel %vm1478, %v1477, %v1473
        %v1480 = vpack.c.bf16 %v1479, %v1479
        %v1482 = vlaneseq
        %v1483 = vshrl.u32 %v1482, 7
        %v1484 = vsub.s32 0, %v1483
        %v1485 = vrot.slane %v735, %v1484
        %v1503 = vunpack.c.l.b16 %v719
        %v1504 = vunpack.c.l.b16 %v720
        %v1505 = vunpack.c.l.b16 %v721
        %v1506 = vunpack.c.l.b16 %v722
        %v1507 = vunpack.c.l.b16 %v723
        %v1508 = vunpack.c.l.b16 %v724
        %v1509 = vunpack.c.l.b16 %v725
        %v1510 = vunpack.c.l.b16 %v726
        %v1511 = vunpack.c.l.b16 %v727
        %v1512 = vunpack.c.l.b16 %v728
        %v1513 = vunpack.c.l.b16 %v729
        %v1514 = vunpack.c.l.b16 %v730
        %v1515 = vunpack.c.l.b16 %v731
        %v1516 = vunpack.c.l.b16 %v732
        %v1517 = vunpack.c.l.b16 %v733
        %v1518 = vunpack.c.l.b16 %v734
        %v1519 = vpack.c.b16 %v1504, %v1503
        %v1520 = vpack.c.b16 %v1506, %v1505
        %v1521 = vpack.c.b16 %v1508, %v1507
        %v1522 = vpack.c.b16 %v1510, %v1509
        %v1523 = vpack.c.b16 %v1512, %v1511
        %v1524 = vpack.c.b16 %v1514, %v1513
        %v1525 = vpack.c.b16 %v1516, %v1515
        %v1526 = vpack.c.b16 %v1518, %v1517
        %1535 = vmatprep.subr.bf16.mxu0 0
        %1536 = vmatpush1.bf16.msra.mxu0 %v1526
        %1537 = vmatprep.subr.bf16.mxu0 0
        %1538 = vmatpush1.bf16.msra.mxu0 %v1525
        %1539 = vmatprep.subr.bf16.mxu0 0
        %1540 = vmatpush1.bf16.msra.mxu0 %v1524
        %1541 = vmatprep.subr.bf16.mxu0 0
        %1542 = vmatpush1.bf16.msra.mxu0 %v1523
        %1543 = vmatprep.subr.bf16.mxu0 0
        %1544 = vmatpush1.bf16.msra.mxu0 %v1522
        %1545 = vmatprep.subr.bf16.mxu0 0
        %1546 = vmatpush1.bf16.msra.mxu0 %v1521
        %1547 = vmatprep.subr.bf16.mxu0 0
        %1548 = vmatpush1.bf16.msra.mxu0 %v1520
        %1549 = vmatprep.subr.bf16.mxu0 0
        %1550 = vmatpush1.bf16.msra.mxu0 %v1519
        %1551 = vmatprep.subr.bf16.mxu0 0
        %1552 = vmatpush2.bf16.msra.mxu0 0
        %1553 = vmatprep.subr.bf16.mxu0 0
        %1554 = vmatpush2.bf16.msra.mxu0 0
        %1555 = vmatprep.subr.bf16.mxu0 0
        %1556 = vmatpush2.bf16.msra.mxu0 0
        %1557 = vmatprep.subr.bf16.mxu0 0
        %1558 = vmatpush2.bf16.msra.mxu0 0
        %1559 = vmatprep.subr.bf16.mxu0 0
        %1560 = vmatpush2.bf16.msra.mxu0 0
        %1561 = vmatprep.subr.bf16.mxu0 0
        %1562 = vmatpush2.bf16.msra.mxu0 0
        %1563 = vmatprep.subr.bf16.mxu0 0
        %1564 = vmatpush2.bf16.msra.mxu0 0
        %1565 = vmatprep.subr.bf16.mxu0 0
        %1566 = vmatpush2.bf16.msra.mxu0 0
        %1567 = vmatprep.mubr.bf16.mxu0 0
        %1568 = vmatmul.mubr.bf16.gmra.mxu0 %v1480
        %v1569 = vpop.f32.mrf.mxu0
        %v1570 = vadd.f32 %v1485, %v1569
        %v1571 = vpop.f32.mrf.mxu0
        %v1572 = vpop.f32.mrf.mxu0
        %v1573 = vpop.f32.mrf.mxu0
        %1574 = vdwg.mxu0
        %v1575 = vpack.c.bf16 %v1570, %v1570
        %1576 = vmatprep.subr.bf16.mxu0 0
        %1577 = vmatpush1.bf16.msra.mxu0 %v783
        %1578 = vmatprep.subr.bf16.mxu0 0
        %1579 = vmatpush1.bf16.msra.mxu0 %v782
        %1580 = vmatprep.subr.bf16.mxu0 0
        %1581 = vmatpush1.bf16.msra.mxu0 %v781
        %1582 = vmatprep.subr.bf16.mxu0 0
        %1583 = vmatpush1.bf16.msra.mxu0 %v780
        %1584 = vmatprep.subr.bf16.mxu0 0
        %1585 = vmatpush1.bf16.msra.mxu0 %v779
        %1586 = vmatprep.subr.bf16.mxu0 0
        %1587 = vmatpush1.bf16.msra.mxu0 %v778
        %1588 = vmatprep.subr.bf16.mxu0 0
        %1589 = vmatpush1.bf16.msra.mxu0 %v777
        %1590 = vmatprep.subr.bf16.mxu0 0
        %1591 = vmatpush1.bf16.msra.mxu0 %v776
        %1592 = vmatprep.subr.bf16.mxu0 0
        %1593 = vmatpush2.bf16.msra.mxu0 0
        %1594 = vmatprep.subr.bf16.mxu0 0
        %1595 = vmatpush2.bf16.msra.mxu0 0
        %1596 = vmatprep.subr.bf16.mxu0 0
        %1597 = vmatpush2.bf16.msra.mxu0 0
        %1598 = vmatprep.subr.bf16.mxu0 0
        %1599 = vmatpush2.bf16.msra.mxu0 0
        %1600 = vmatprep.subr.bf16.mxu0 0
        %1601 = vmatpush2.bf16.msra.mxu0 0
        %1602 = vmatprep.subr.bf16.mxu0 0
        %1603 = vmatpush2.bf16.msra.mxu0 0
        %1604 = vmatprep.subr.bf16.mxu0 0
        %1605 = vmatpush2.bf16.msra.mxu0 0
        %1606 = vmatprep.subr.bf16.mxu0 0
        %1607 = vmatpush2.bf16.msra.mxu0 0
        %1608 = vmatprep.mubr.bf16.mxu0 0
        %1609 = vmatmul.mubr.bf16.gmra.mxu0 %v1575
        %v1610 = vpop.f32.mrf.mxu0
        %v1611 = vadd.f32 %v742, %v1610
        %v1612 = vpop.f32.mrf.mxu0
        %v1613 = vpop.f32.mrf.mxu0
        %v1614 = vpop.f32.mrf.mxu0
        %1615 = vdwg.mxu0
        %v1616 = vpack.c.bf16 %v1611, %v1611
        %v1619 = vunpack.c.l.b16 %v666
        %v1620 = vunpack.c.l.b16 %v667
        %v1621 = vpack.c.b16 %v1620, %v1619
        %1623 = vmatprep.subr.bf16.mxu0 0
        %1624 = vmatpush1.bf16.msra.mxu0 %v878
        %1625 = vmatprep.subr.bf16.mxu0 0
        %1626 = vmatpush1.bf16.msra.mxu0 %v877
        %1627 = vmatprep.subr.bf16.mxu0 0
        %1628 = vmatpush1.bf16.msra.mxu0 %v876
        %1629 = vmatprep.subr.bf16.mxu0 0
        %1630 = vmatpush1.bf16.msra.mxu0 %v875
        %1631 = vmatprep.subr.bf16.mxu0 0
        %1632 = vmatpush1.bf16.msra.mxu0 %v874
        %1633 = vmatprep.subr.bf16.mxu0 0
        %1634 = vmatpush1.bf16.msra.mxu0 %v873
        %1635 = vmatprep.subr.bf16.mxu0 0
        %1636 = vmatpush1.bf16.msra.mxu0 %v872
        %1637 = vmatprep.subr.bf16.mxu0 0
        %1638 = vmatpush1.bf16.msra.mxu0 %v871
        %1639 = vmatprep.subr.bf16.mxu0 0
        %1640 = vmatpush2.bf16.msra.mxu0 0
        %1641 = vmatprep.subr.bf16.mxu0 0
        %1642 = vmatpush2.bf16.msra.mxu0 0
        %1643 = vmatprep.subr.bf16.mxu0 0
        %1644 = vmatpush2.bf16.msra.mxu0 0
        %1645 = vmatprep.subr.bf16.mxu0 0
        %1646 = vmatpush2.bf16.msra.mxu0 0
        %1647 = vmatprep.subr.bf16.mxu0 0
        %1648 = vmatpush2.bf16.msra.mxu0 0
        %1649 = vmatprep.subr.bf16.mxu0 0
        %1650 = vmatpush2.bf16.msra.mxu0 0
        %1651 = vmatprep.subr.bf16.mxu0 0
        %1652 = vmatpush2.bf16.msra.mxu0 0
        %1653 = vmatprep.subr.bf16.mxu0 0
        %1654 = vmatpush2.bf16.msra.mxu0 0
        %1655 = vmatprep.mubr.bf16.mxu0 0
        %1656 = vmatmul.mubr.bf16.gmra.mxu0 %v1621
        %v1657 = vpop.f32.mrf.mxu0
        %v1658 = vadd.f32 %v837, %v1657
        %v1659 = vpop.f32.mrf.mxu0
        %v1660 = vpop.f32.mrf.mxu0
        %v1661 = vadd.f32 %v837, %v1660
        %v1662 = vpop.f32.mrf.mxu0
        %1663 = vdwg.mxu0
        %v1664 = vpack.c.bf16 %v1661, %v1658
        %1665 = vmatprep.subr.bf16.mxu0 0
        %1666 = vmatpush1.bf16.msra.mxu0 %v973
        %1667 = vmatprep.subr.bf16.mxu0 0
        %1668 = vmatpush1.bf16.msra.mxu0 %v972
        %1669 = vmatprep.subr.bf16.mxu0 0
        %1670 = vmatpush1.bf16.msra.mxu0 %v971
        %1671 = vmatprep.subr.bf16.mxu0 0
        %1672 = vmatpush1.bf16.msra.mxu0 %v970
        %1673 = vmatprep.subr.bf16.mxu0 0
        %1674 = vmatpush1.bf16.msra.mxu0 %v969
        %1675 = vmatprep.subr.bf16.mxu0 0
        %1676 = vmatpush1.bf16.msra.mxu0 %v968
        %1677 = vmatprep.subr.bf16.mxu0 0
        %1678 = vmatpush1.bf16.msra.mxu0 %v967
        %1679 = vmatprep.subr.bf16.mxu0 0
        %1680 = vmatpush1.bf16.msra.mxu0 %v966
        %1681 = vmatprep.subr.bf16.mxu0 0
        %1682 = vmatpush2.bf16.msra.mxu0 0
        %1683 = vmatprep.subr.bf16.mxu0 0
        %1684 = vmatpush2.bf16.msra.mxu0 0
        %1685 = vmatprep.subr.bf16.mxu0 0
        %1686 = vmatpush2.bf16.msra.mxu0 0
        %1687 = vmatprep.subr.bf16.mxu0 0
        %1688 = vmatpush2.bf16.msra.mxu0 0
        %1689 = vmatprep.subr.bf16.mxu0 0
        %1690 = vmatpush2.bf16.msra.mxu0 0
        %1691 = vmatprep.subr.bf16.mxu0 0
        %1692 = vmatpush2.bf16.msra.mxu0 0
        %1693 = vmatprep.subr.bf16.mxu0 0
        %1694 = vmatpush2.bf16.msra.mxu0 0
        %1695 = vmatprep.subr.bf16.mxu0 0
        %1696 = vmatpush2.bf16.msra.mxu0 0
        %1697 = vmatprep.mubr.bf16.mxu0 0
        %1698 = vmatmul.mubr.bf16.gmra.mxu0 %v1621
        %v1699 = vpop.f32.mrf.mxu0
        %v1700 = vadd.f32 %v932, %v1699
        %v1701 = vpop.f32.mrf.mxu0
        %v1702 = vpop.f32.mrf.mxu0
        %v1703 = vadd.f32 %v932, %v1702
        %v1704 = vpop.f32.mrf.mxu0
        %1705 = vdwg.mxu0
        %v1706 = vpack.c.bf16 %v1703, %v1700
        %v1708 = vsel %vm1023, %v1616, 0
        %v1711 = vsel %vm1023, %v1664, 0
        %1713 = vmatprep.subr.bf16.mxu0 0
        %1714 = vmatpush1.bf16.xpose.msra.mxu0 0
        %1715 = vmatprep.subr.bf16.mxu0 0
        %1716 = vmatpush1.bf16.xpose.msra.mxu0 0
        %1717 = vmatprep.subr.bf16.mxu0 0
        %1718 = vmatpush1.bf16.xpose.msra.mxu0 0
        %1719 = vmatprep.subr.bf16.mxu0 0
        %1720 = vmatpush1.bf16.xpose.msra.mxu0 0
        %1721 = vmatprep.subr.bf16.mxu0 0
        %1722 = vmatpush1.bf16.xpose.msra.mxu0 0
        %1723 = vmatprep.subr.bf16.mxu0 0
        %1724 = vmatpush1.bf16.xpose.msra.mxu0 0
        %1725 = vmatprep.subr.bf16.mxu0 0
        %1726 = vmatpush1.bf16.xpose.msra.mxu0 0
        %1727 = vmatprep.subr.bf16.mxu0 0
        %1728 = vmatpush1.bf16.xpose.msra.mxu0 %v1711
        %1729 = vmatprep.subr.bf16.mxu0 0
        %1730 = vmatpush2.bf16.xpose.msra.mxu0 0
        %1731 = vmatprep.subr.bf16.mxu0 0
        %1732 = vmatpush2.bf16.xpose.msra.mxu0 0
        %1733 = vmatprep.subr.bf16.mxu0 0
        %1734 = vmatpush2.bf16.xpose.msra.mxu0 0
        %1735 = vmatprep.subr.bf16.mxu0 0
        %1736 = vmatpush2.bf16.xpose.msra.mxu0 0
        %1737 = vmatprep.subr.bf16.mxu0 0
        %1738 = vmatpush2.bf16.xpose.msra.mxu0 0
        %1739 = vmatprep.subr.bf16.mxu0 0
        %1740 = vmatpush2.bf16.xpose.msra.mxu0 0
        %1741 = vmatprep.subr.bf16.mxu0 0
        %1742 = vmatpush2.bf16.xpose.msra.mxu0 0
        %1743 = vmatprep.subr.bf16.mxu0 0
        %1744 = vmatpush2.bf16.xpose.msra.mxu0 0
        %1745 = vmatprep.mubr.bf16.mxu0 0
        %1746 = vmatmul.mubr.bf16.gmra.mxu0 %v1708
        %v1747 = vpop.f32.mrf.mxu0
        %v1748 = vadd.f32 0.0, %v1747
        %v1749 = vpop.f32.mrf.mxu0
        %v1750 = vpop.f32.mrf.mxu0
        %v1751 = vpop.f32.mrf.mxu0
        %1752 = vdwg.mxu0
        %vm1753 = vcmask 130048
        %v1754 = vsel %vm1753, %v1748, -inf
        %1755 = vmax.xlane.f32.xlu0 %v1754
        %v1756 = vpop.xlane.xlu0 %1755
        %v1757 = vsub.f32 %v1748, %v1756
        %v1758 = vmul.f32 %v1757, 1.442695
        %v1759 = vpow.pop %v1758
        %v1760 = vsel %vm1753, %v1759, 0.0
        %1761 = vadd.xlane.f32.xlu0 %v1760
        %v1762 = vpop.xlane.xlu0 %1761
        %v1763 = vrcp.pop %v1762
        %v1764 = vmul.f32 %v1759, %v1763
        %v1765 = vpack.c.bf16 %v1764, %v1764
        %v1767 = vsel %vm1753, %v1765, 0
        %1769 = vmatprep.subr.bf16.mxu0 0
        %1770 = vmatpush1.bf16.msra.mxu0 0
        %1771 = vmatprep.subr.bf16.mxu0 0
        %1772 = vmatpush1.bf16.msra.mxu0 0
        %1773 = vmatprep.subr.bf16.mxu0 0
        %1774 = vmatpush1.bf16.msra.mxu0 0
        %1775 = vmatprep.subr.bf16.mxu0 0
        %1776 = vmatpush1.bf16.msra.mxu0 0
        %1777 = vmatprep.subr.bf16.mxu0 0
        %1778 = vmatpush1.bf16.msra.mxu0 0
        %1779 = vmatprep.subr.bf16.mxu0 0
        %1780 = vmatpush1.bf16.msra.mxu0 0
        %1781 = vmatprep.subr.bf16.mxu0 0
        %1782 = vmatpush1.bf16.msra.mxu0 0
        %1783 = vmatprep.subr.bf16.mxu0 0
        %1784 = vmatpush1.bf16.msra.mxu0 %v1706
        %1785 = vmatprep.subr.bf16.mxu0 0
        %1786 = vmatpush2.bf16.msra.mxu0 0
        %1787 = vmatprep.subr.bf16.mxu0 0
        %1788 = vmatpush2.bf16.msra.mxu0 0
        %1789 = vmatprep.subr.bf16.mxu0 0
        %1790 = vmatpush2.bf16.msra.mxu0 0
        %1791 = vmatprep.subr.bf16.mxu0 0
        %1792 = vmatpush2.bf16.msra.mxu0 0
        %1793 = vmatprep.subr.bf16.mxu0 0
        %1794 = vmatpush2.bf16.msra.mxu0 0
        %1795 = vmatprep.subr.bf16.mxu0 0
        %1796 = vmatpush2.bf16.msra.mxu0 0
        %1797 = vmatprep.subr.bf16.mxu0 0
        %1798 = vmatpush2.bf16.msra.mxu0 0
        %1799 = vmatprep.subr.bf16.mxu0 0
        %1800 = vmatpush2.bf16.msra.mxu0 0
        %1801 = vmatprep.mubr.bf16.mxu0 0
        %1802 = vmatmul.mubr.bf16.gmra.mxu0 %v1767
        %v1803 = vpop.f32.mrf.mxu0
        %v1804 = vadd.f32 0.0, %v1803
        %v1805 = vpop.f32.mrf.mxu0
        %v1806 = vpop.f32.mrf.mxu0
        %v1807 = vpop.f32.mrf.mxu0
        %1808 = vdwg.mxu0
        %1810 = vrot.lane.b32.xlu0 %v1616, 96
        %v1811 = vpop.permute.xlu0 %1810
        %1813 = vrot.lane.b32.xlu0 %v1664, 96
        %v1814 = vpop.permute.xlu0 %1813
        %v1816 = vsel %vm1023, %v1811, 0
        %v1819 = vsel %vm1023, %v1814, 0
        %1821 = vmatprep.subr.bf16.mxu0 0
        %1822 = vmatpush1.bf16.xpose.msra.mxu0 0
        %1823 = vmatprep.subr.bf16.mxu0 0
        %1824 = vmatpush1.bf16.xpose.msra.mxu0 0
        %1825 = vmatprep.subr.bf16.mxu0 0
        %1826 = vmatpush1.bf16.xpose.msra.mxu0 0
        %1827 = vmatprep.subr.bf16.mxu0 0
        %1828 = vmatpush1.bf16.xpose.msra.mxu0 0
        %1829 = vmatprep.subr.bf16.mxu0 0
        %1830 = vmatpush1.bf16.xpose.msra.mxu0 0
        %1831 = vmatprep.subr.bf16.mxu0 0
        %1832 = vmatpush1.bf16.xpose.msra.mxu0 0
        %1833 = vmatprep.subr.bf16.mxu0 0
        %1834 = vmatpush1.bf16.xpose.msra.mxu0 0
        %1835 = vmatprep.subr.bf16.mxu0 0
        %1836 = vmatpush1.bf16.xpose.msra.mxu0 %v1819
        %1837 = vmatprep.subr.bf16.mxu0 0
        %1838 = vmatpush2.bf16.xpose.msra.mxu0 0
        %1839 = vmatprep.subr.bf16.mxu0 0
        %1840 = vmatpush2.bf16.xpose.msra.mxu0 0
        %1841 = vmatprep.subr.bf16.mxu0 0
        %1842 = vmatpush2.bf16.xpose.msra.mxu0 0
        %1843 = vmatprep.subr.bf16.mxu0 0
        %1844 = vmatpush2.bf16.xpose.msra.mxu0 0
        %1845 = vmatprep.subr.bf16.mxu0 0
        %1846 = vmatpush2.bf16.xpose.msra.mxu0 0
        %1847 = vmatprep.subr.bf16.mxu0 0
        %1848 = vmatpush2.bf16.xpose.msra.mxu0 0
        %1849 = vmatprep.subr.bf16.mxu0 0
        %1850 = vmatpush2.bf16.xpose.msra.mxu0 0
        %1851 = vmatprep.subr.bf16.mxu0 0
        %1852 = vmatpush2.bf16.xpose.msra.mxu0 0
        %1853 = vmatprep.mubr.bf16.mxu0 0
        %1854 = vmatmul.mubr.bf16.gmra.mxu0 %v1816
        %v1855 = vpop.f32.mrf.mxu0
        %v1856 = vadd.f32 0.0, %v1855
        %v1857 = vpop.f32.mrf.mxu0
        %v1858 = vpop.f32.mrf.mxu0
        %v1859 = vpop.f32.mrf.mxu0
        %1860 = vdwg.mxu0
        %v1861 = vsel %vm1753, %v1856, -inf
        %1862 = vmax.xlane.f32.xlu0 %v1861
        %v1863 = vpop.xlane.xlu0 %1862
        %v1864 = vsub.f32 %v1856, %v1863
        %v1865 = vmul.f32 %v1864, 1.442695
        %v1866 = vpow.pop %v1865
        %v1867 = vsel %vm1753, %v1866, 0.0
        %1868 = vadd.xlane.f32.xlu0 %v1867
        %v1869 = vpop.xlane.xlu0 %1868
        %v1870 = vrcp.pop %v1869
        %v1871 = vmul.f32 %v1866, %v1870
        %v1872 = vpack.c.bf16 %v1871, %v1871
        %1874 = vrot.lane.b32.xlu0 %v1706, 96
        %v1875 = vpop.permute.xlu0 %1874
        %v1878 = vsel %vm1753, %v1872, 0
        %1880 = vmatprep.subr.bf16.mxu0 0
        %1881 = vmatpush1.bf16.msra.mxu0 0
        %1882 = vmatprep.subr.bf16.mxu0 0
        %1883 = vmatpush1.bf16.msra.mxu0 0
        %1884 = vmatprep.subr.bf16.mxu0 0
        %1885 = vmatpush1.bf16.msra.mxu0 0
        %1886 = vmatprep.subr.bf16.mxu0 0
        %1887 = vmatpush1.bf16.msra.mxu0 0
        %1888 = vmatprep.subr.bf16.mxu0 0
        %1889 = vmatpush1.bf16.msra.mxu0 0
        %1890 = vmatprep.subr.bf16.mxu0 0
        %1891 = vmatpush1.bf16.msra.mxu0 0
        %1892 = vmatprep.subr.bf16.mxu0 0
        %1893 = vmatpush1.bf16.msra.mxu0 0
        %1894 = vmatprep.subr.bf16.mxu0 0
        %1895 = vmatpush1.bf16.msra.mxu0 %v1875
        %1896 = vmatprep.subr.bf16.mxu0 0
        %1897 = vmatpush2.bf16.msra.mxu0 0
        %1898 = vmatprep.subr.bf16.mxu0 0
        %1899 = vmatpush2.bf16.msra.mxu0 0
        %1900 = vmatprep.subr.bf16.mxu0 0
        %1901 = vmatpush2.bf16.msra.mxu0 0
        %1902 = vmatprep.subr.bf16.mxu0 0
        %1903 = vmatpush2.bf16.msra.mxu0 0
        %1904 = vmatprep.subr.bf16.mxu0 0
        %1905 = vmatpush2.bf16.msra.mxu0 0
        %1906 = vmatprep.subr.bf16.mxu0 0
        %1907 = vmatpush2.bf16.msra.mxu0 0
        %1908 = vmatprep.subr.bf16.mxu0 0
        %1909 = vmatpush2.bf16.msra.mxu0 0
        %1910 = vmatprep.subr.bf16.mxu0 0
        %1911 = vmatpush2.bf16.msra.mxu0 0
        %1912 = vmatprep.mubr.bf16.mxu0 0
        %1913 = vmatmul.mubr.bf16.gmra.mxu0 %v1878
        %v1914 = vpop.f32.mrf.mxu0
        %v1915 = vadd.f32 0.0, %v1914
        %v1916 = vpop.f32.mrf.mxu0
        %v1917 = vpop.f32.mrf.mxu0
        %v1918 = vpop.f32.mrf.mxu0
        %1919 = vdwg.mxu0
        %1920 = vrot.lane.b32.xlu0 %v1616, 64
        %v1921 = vpop.permute.xlu0 %1920
        %1922 = vrot.lane.b32.xlu0 %v1664, 64
        %v1923 = vpop.permute.xlu0 %1922
        %v1925 = vsel %vm1023, %v1921, 0
        %v1928 = vsel %vm1023, %v1923, 0
        %1930 = vmatprep.subr.bf16.mxu0 0
        %1931 = vmatpush1.bf16.xpose.msra.mxu0 0
        %1932 = vmatprep.subr.bf16.mxu0 0
        %1933 = vmatpush1.bf16.xpose.msra.mxu0 0
        %1934 = vmatprep.subr.bf16.mxu0 0
        %1935 = vmatpush1.bf16.xpose.msra.mxu0 0
        %1936 = vmatprep.subr.bf16.mxu0 0
        %1937 = vmatpush1.bf16.xpose.msra.mxu0 0
        %1938 = vmatprep.subr.bf16.mxu0 0
        %1939 = vmatpush1.bf16.xpose.msra.mxu0 0
        %1940 = vmatprep.subr.bf16.mxu0 0
        %1941 = vmatpush1.bf16.xpose.msra.mxu0 0
        %1942 = vmatprep.subr.bf16.mxu0 0
        %1943 = vmatpush1.bf16.xpose.msra.mxu0 0
        %1944 = vmatprep.subr.bf16.mxu0 0
        %1945 = vmatpush1.bf16.xpose.msra.mxu0 %v1928
        %1946 = vmatprep.subr.bf16.mxu0 0
        %1947 = vmatpush2.bf16.xpose.msra.mxu0 0
        %1948 = vmatprep.subr.bf16.mxu0 0
        %1949 = vmatpush2.bf16.xpose.msra.mxu0 0
        %1950 = vmatprep.subr.bf16.mxu0 0
        %1951 = vmatpush2.bf16.xpose.msra.mxu0 0
        %1952 = vmatprep.subr.bf16.mxu0 0
        %1953 = vmatpush2.bf16.xpose.msra.mxu0 0
        %1954 = vmatprep.subr.bf16.mxu0 0
        %1955 = vmatpush2.bf16.xpose.msra.mxu0 0
        %1956 = vmatprep.subr.bf16.mxu0 0
        %1957 = vmatpush2.bf16.xpose.msra.mxu0 0
        %1958 = vmatprep.subr.bf16.mxu0 0
        %1959 = vmatpush2.bf16.xpose.msra.mxu0 0
        %1960 = vmatprep.subr.bf16.mxu0 0
        %1961 = vmatpush2.bf16.xpose.msra.mxu0 0
        %1962 = vmatprep.mubr.bf16.mxu0 0
        %1963 = vmatmul.mubr.bf16.gmra.mxu0 %v1925
        %v1964 = vpop.f32.mrf.mxu0
        %v1965 = vadd.f32 0.0, %v1964
        %v1966 = vpop.f32.mrf.mxu0
        %v1967 = vpop.f32.mrf.mxu0
        %v1968 = vpop.f32.mrf.mxu0
        %1969 = vdwg.mxu0
        %v1970 = vsel %vm1753, %v1965, -inf
        %1971 = vmax.xlane.f32.xlu0 %v1970
        %v1972 = vpop.xlane.xlu0 %1971
        %v1973 = vsub.f32 %v1965, %v1972
        %v1974 = vmul.f32 %v1973, 1.442695
        %v1975 = vpow.pop %v1974
        %v1976 = vsel %vm1753, %v1975, 0.0
        %1977 = vadd.xlane.f32.xlu0 %v1976
        %v1978 = vpop.xlane.xlu0 %1977
        %v1979 = vrcp.pop %v1978
        %v1980 = vmul.f32 %v1975, %v1979
        %v1981 = vpack.c.bf16 %v1980, %v1980
        %1982 = vrot.lane.b32.xlu0 %v1706, 64
        %v1983 = vpop.permute.xlu0 %1982
        %v1986 = vsel %vm1753, %v1981, 0
        %1988 = vmatprep.subr.bf16.mxu0 0
        %1989 = vmatpush1.bf16.msra.mxu0 0
        %1990 = vmatprep.subr.bf16.mxu0 0
        %1991 = vmatpush1.bf16.msra.mxu0 0
        %1992 = vmatprep.subr.bf16.mxu0 0
        %1993 = vmatpush1.bf16.msra.mxu0 0
        %1994 = vmatprep.subr.bf16.mxu0 0
        %1995 = vmatpush1.bf16.msra.mxu0 0
        %1996 = vmatprep.subr.bf16.mxu0 0
        %1997 = vmatpush1.bf16.msra.mxu0 0
        %1998 = vmatprep.subr.bf16.mxu0 0
        %1999 = vmatpush1.bf16.msra.mxu0 0
        %2000 = vmatprep.subr.bf16.mxu0 0
        %2001 = vmatpush1.bf16.msra.mxu0 0
        %2002 = vmatprep.subr.bf16.mxu0 0
        %2003 = vmatpush1.bf16.msra.mxu0 %v1983
        %2004 = vmatprep.subr.bf16.mxu0 0
        %2005 = vmatpush2.bf16.msra.mxu0 0
        %2006 = vmatprep.subr.bf16.mxu0 0
        %2007 = vmatpush2.bf16.msra.mxu0 0
        %2008 = vmatprep.subr.bf16.mxu0 0
        %2009 = vmatpush2.bf16.msra.mxu0 0
        %2010 = vmatprep.subr.bf16.mxu0 0
        %2011 = vmatpush2.bf16.msra.mxu0 0
        %2012 = vmatprep.subr.bf16.mxu0 0
        %2013 = vmatpush2.bf16.msra.mxu0 0
        %2014 = vmatprep.subr.bf16.mxu0 0
        %2015 = vmatpush2.bf16.msra.mxu0 0
        %2016 = vmatprep.subr.bf16.mxu0 0
        %2017 = vmatpush2.bf16.msra.mxu0 0
        %2018 = vmatprep.subr.bf16.mxu0 0
        %2019 = vmatpush2.bf16.msra.mxu0 0
        %2020 = vmatprep.mubr.bf16.mxu0 0
        %2021 = vmatmul.mubr.bf16.gmra.mxu0 %v1986
        %v2022 = vpop.f32.mrf.mxu0
        %v2023 = vadd.f32 0.0, %v2022
        %v2024 = vpop.f32.mrf.mxu0
        %v2025 = vpop.f32.mrf.mxu0
        %v2026 = vpop.f32.mrf.mxu0
        %2027 = vdwg.mxu0
        %2028 = vrot.lane.b32.xlu0 %v1616, 32
        %v2029 = vpop.permute.xlu0 %2028
        %2030 = vrot.lane.b32.xlu0 %v1664, 32
        %v2031 = vpop.permute.xlu0 %2030
        %v2033 = vsel %vm1023, %v2029, 0
        %v2036 = vsel %vm1023, %v2031, 0
        %2038 = vmatprep.subr.bf16.mxu0 0
        %2039 = vmatpush1.bf16.xpose.msra.mxu0 0
        %2040 = vmatprep.subr.bf16.mxu0 0
        %2041 = vmatpush1.bf16.xpose.msra.mxu0 0
        %2042 = vmatprep.subr.bf16.mxu0 0
        %2043 = vmatpush1.bf16.xpose.msra.mxu0 0
        %2044 = vmatprep.subr.bf16.mxu0 0
        %2045 = vmatpush1.bf16.xpose.msra.mxu0 0
        %2046 = vmatprep.subr.bf16.mxu0 0
        %2047 = vmatpush1.bf16.xpose.msra.mxu0 0
        %2048 = vmatprep.subr.bf16.mxu0 0
        %2049 = vmatpush1.bf16.xpose.msra.mxu0 0
        %2050 = vmatprep.subr.bf16.mxu0 0
        %2051 = vmatpush1.bf16.xpose.msra.mxu0 0
        %2052 = vmatprep.subr.bf16.mxu0 0
        %2053 = vmatpush1.bf16.xpose.msra.mxu0 %v2036
        %2054 = vmatprep.subr.bf16.mxu0 0
        %2055 = vmatpush2.bf16.xpose.msra.mxu0 0
        %2056 = vmatprep.subr.bf16.mxu0 0
        %2057 = vmatpush2.bf16.xpose.msra.mxu0 0
        %2058 = vmatprep.subr.bf16.mxu0 0
        %2059 = vmatpush2.bf16.xpose.msra.mxu0 0
        %2060 = vmatprep.subr.bf16.mxu0 0
        %2061 = vmatpush2.bf16.xpose.msra.mxu0 0
        %2062 = vmatprep.subr.bf16.mxu0 0
        %2063 = vmatpush2.bf16.xpose.msra.mxu0 0
        %2064 = vmatprep.subr.bf16.mxu0 0
        %2065 = vmatpush2.bf16.xpose.msra.mxu0 0
        %2066 = vmatprep.subr.bf16.mxu0 0
        %2067 = vmatpush2.bf16.xpose.msra.mxu0 0
        %2068 = vmatprep.subr.bf16.mxu0 0
        %2069 = vmatpush2.bf16.xpose.msra.mxu0 0
        %2070 = vmatprep.mubr.bf16.mxu0 0
        %2071 = vmatmul.mubr.bf16.gmra.mxu0 %v2033
        %v2072 = vpop.f32.mrf.mxu0
        %v2073 = vadd.f32 0.0, %v2072
        %v2074 = vpop.f32.mrf.mxu0
        %v2075 = vpop.f32.mrf.mxu0
        %v2076 = vpop.f32.mrf.mxu0
        %2077 = vdwg.mxu0
        %v2078 = vsel %vm1753, %v2073, -inf
        %2079 = vmax.xlane.f32.xlu0 %v2078
        %v2080 = vpop.xlane.xlu0 %2079
        %v2081 = vsub.f32 %v2073, %v2080
        %v2082 = vmul.f32 %v2081, 1.442695
        %v2083 = vpow.pop %v2082
        %v2084 = vsel %vm1753, %v2083, 0.0
        %2085 = vadd.xlane.f32.xlu0 %v2084
        %v2086 = vpop.xlane.xlu0 %2085
        %v2087 = vrcp.pop %v2086
        %v2088 = vmul.f32 %v2083, %v2087
        %v2089 = vpack.c.bf16 %v2088, %v2088
        %2090 = vrot.lane.b32.xlu0 %v1706, 32
        %v2091 = vpop.permute.xlu0 %2090
        %v2094 = vsel %vm1753, %v2089, 0
        %2096 = vmatprep.subr.bf16.mxu0 0
        %2097 = vmatpush1.bf16.msra.mxu0 0
        %2098 = vmatprep.subr.bf16.mxu0 0
        %2099 = vmatpush1.bf16.msra.mxu0 0
        %2100 = vmatprep.subr.bf16.mxu0 0
        %2101 = vmatpush1.bf16.msra.mxu0 0
        %2102 = vmatprep.subr.bf16.mxu0 0
        %2103 = vmatpush1.bf16.msra.mxu0 0
        %2104 = vmatprep.subr.bf16.mxu0 0
        %2105 = vmatpush1.bf16.msra.mxu0 0
        %2106 = vmatprep.subr.bf16.mxu0 0
        %2107 = vmatpush1.bf16.msra.mxu0 0
        %2108 = vmatprep.subr.bf16.mxu0 0
        %2109 = vmatpush1.bf16.msra.mxu0 0
        %2110 = vmatprep.subr.bf16.mxu0 0
        %2111 = vmatpush1.bf16.msra.mxu0 %v2091
        %2112 = vmatprep.subr.bf16.mxu0 0
        %2113 = vmatpush2.bf16.msra.mxu0 0
        %2114 = vmatprep.subr.bf16.mxu0 0
        %2115 = vmatpush2.bf16.msra.mxu0 0
        %2116 = vmatprep.subr.bf16.mxu0 0
        %2117 = vmatpush2.bf16.msra.mxu0 0
        %2118 = vmatprep.subr.bf16.mxu0 0
        %2119 = vmatpush2.bf16.msra.mxu0 0
        %2120 = vmatprep.subr.bf16.mxu0 0
        %2121 = vmatpush2.bf16.msra.mxu0 0
        %2122 = vmatprep.subr.bf16.mxu0 0
        %2123 = vmatpush2.bf16.msra.mxu0 0
        %2124 = vmatprep.subr.bf16.mxu0 0
        %2125 = vmatpush2.bf16.msra.mxu0 0
        %2126 = vmatprep.subr.bf16.mxu0 0
        %2127 = vmatpush2.bf16.msra.mxu0 0
        %2128 = vmatprep.mubr.bf16.mxu0 0
        %2129 = vmatmul.mubr.bf16.gmra.mxu0 %v2094
        %v2130 = vpop.f32.mrf.mxu0
        %v2131 = vadd.f32 0.0, %v2130
        %v2132 = vpop.f32.mrf.mxu0
        %v2133 = vpop.f32.mrf.mxu0
        %v2134 = vpop.f32.mrf.mxu0
        %2135 = vdwg.mxu0
        %2137 = vrot.lane.b32.xlu0 %v1915, 32
        %v2138 = vpop.permute.xlu0 %2137
        %2141 = vrot.lane.b32.xlu0 %v2023, 64
        %v2142 = vpop.permute.xlu0 %2141
        %2145 = vrot.lane.b32.xlu0 %v2131, 96
        %v2146 = vpop.permute.xlu0 %2145
        %v2148 = vsel %vm1023, %v1804, %v2138
        %v2149 = vsel %vm1476, %v2148, %v2142
        %v2150 = vsel %vm1478, %v2149, %v2146
        %v2151 = vpack.c.bf16 %v2150, %v2150
        %2152 = vmatprep.subr.bf16.mxu0 0
        %2153 = vmatpush1.bf16.msra.mxu0 %v1526
        %2154 = vmatprep.subr.bf16.mxu0 0
        %2155 = vmatpush1.bf16.msra.mxu0 %v1525
        %2156 = vmatprep.subr.bf16.mxu0 0
        %2157 = vmatpush1.bf16.msra.mxu0 %v1524
        %2158 = vmatprep.subr.bf16.mxu0 0
        %2159 = vmatpush1.bf16.msra.mxu0 %v1523
        %2160 = vmatprep.subr.bf16.mxu0 0
        %2161 = vmatpush1.bf16.msra.mxu0 %v1522
        %2162 = vmatprep.subr.bf16.mxu0 0
        %2163 = vmatpush1.bf16.msra.mxu0 %v1521
        %2164 = vmatprep.subr.bf16.mxu0 0
        %2165 = vmatpush1.bf16.msra.mxu0 %v1520
        %2166 = vmatprep.subr.bf16.mxu0 0
        %2167 = vmatpush1.bf16.msra.mxu0 %v1519
        %2168 = vmatprep.subr.bf16.mxu0 0
        %2169 = vmatpush2.bf16.msra.mxu0 0
        %2170 = vmatprep.subr.bf16.mxu0 0
        %2171 = vmatpush2.bf16.msra.mxu0 0
        %2172 = vmatprep.subr.bf16.mxu0 0
        %2173 = vmatpush2.bf16.msra.mxu0 0
        %2174 = vmatprep.subr.bf16.mxu0 0
        %2175 = vmatpush2.bf16.msra.mxu0 0
        %2176 = vmatprep.subr.bf16.mxu0 0
        %2177 = vmatpush2.bf16.msra.mxu0 0
        %2178 = vmatprep.subr.bf16.mxu0 0
        %2179 = vmatpush2.bf16.msra.mxu0 0
        %2180 = vmatprep.subr.bf16.mxu0 0
        %2181 = vmatpush2.bf16.msra.mxu0 0
        %2182 = vmatprep.subr.bf16.mxu0 0
        %2183 = vmatpush2.bf16.msra.mxu0 0
        %2184 = vmatprep.mubr.bf16.mxu0 0
        %2185 = vmatmul.mubr.bf16.gmra.mxu0 %v2151
        %v2186 = vpop.f32.mrf.mxu0
        %v2187 = vadd.f32 %v1485, %v2186
        %v2188 = vpop.f32.mrf.mxu0
        %v2189 = vpop.f32.mrf.mxu0
        %v2190 = vpop.f32.mrf.mxu0
        %2191 = vdwg.mxu0
        %2192 = vadd.xlane.f32.xlu0 %v2187
        %v2193 = vpop.xlane.xlu0 %2192
        %v2194 = vrcp.pop 128.0
        %v2195 = vmul.f32 %v2193, %v2194
        %v2196 = vsub.f32 %v2187, %v2195
        %v2197 = vmul.f32 %v2196, %v2196
        %2198 = vadd.xlane.f32.xlu0 %v2197
        %v2199 = vpop.xlane.xlu0 %2198
        %v2200 = vmul.f32 %v2199, %v2194
        %v2201 = vadd.f32 %v2200, 1e-06
        %v2202 = vrsqrt.pop %v2201
        %v2203 = vmul.f32 %v2196, %v2202
        %v2205 = vlaneseq
        %v2206 = vshrl.u32 %v2205, 7
        %v2207 = vsub.s32 0, %v2206
        %v2208 = vrot.slane %v736, %v2207
        %v2210 = vmul.f32 %v2203, %v2208
        %v2212 = vlaneseq
        %v2213 = vshrl.u32 %v2212, 7
        %v2214 = vsub.s32 0, %v2213
        %v2215 = vrot.slane %v737, %v2214
        %v2217 = vadd.f32 %v2210, %v2215
        %v2218 = vpack.c.bf16 %v2217, %v2217
        %v2219 = vld [vmem:[#allocation13] sm:$0xff]
        %v2220 = vld [vmem:[#allocation13 + $0x8] sm:$0xff]
        %v2221 = vld [vmem:[#allocation13 + $0x10] sm:$0xff]
        %v2222 = vld [vmem:[#allocation13 + $0x18] sm:$0xff]
        %v2223 = vld [vmem:[#allocation13 + $0x20] sm:$0xff]
        %v2224 = vld [vmem:[#allocation13 + $0x28] sm:$0xff]
        %v2225 = vld [vmem:[#allocation13 + $0x30] sm:$0xff]
        %v2226 = vld [vmem:[#allocation13 + $0x38] sm:$0xff]
        %v2227 = vld [vmem:[#allocation13 + $0x40] sm:$0xff]
        %v2228 = vld [vmem:[#allocation13 + $0x48] sm:$0xff]
        %v2229 = vld [vmem:[#allocation13 + $0x50] sm:$0xff]
        %v2230 = vld [vmem:[#allocation13 + $0x58] sm:$0xff]
        %v2231 = vld [vmem:[#allocation13 + $0x60] sm:$0xff]
        %v2232 = vld [vmem:[#allocation13 + $0x68] sm:$0xff]
        %v2233 = vld [vmem:[#allocation13 + $0x70] sm:$0xff]
        %v2234 = vld [vmem:[#allocation13 + $0x78] sm:$0xff]
        %v2235 = vld [vmem:[%s13] sm:$0x3]
        %v2237 = vlaneseq
        %v2238 = vshrl.u32 %v2237, 7
        %v2239 = vsub.s32 0, %v2238
        %v2240 = vrot.slane %v2235, %v2239
        %v2241 = vlaneseq
        %v2242 = vshrl.u32 %v2241, 7
        %v2243 = vsub.s32 1, %v2242
        %v2244 = vrot.slane %v2235, %v2243
        %v2263 = vunpack.c.l.b16 %v2219
        %v2264 = vunpack.c.h.b16 %v2219
        %v2265 = vunpack.c.l.b16 %v2220
        %v2266 = vunpack.c.h.b16 %v2220
        %v2267 = vunpack.c.l.b16 %v2221
        %v2268 = vunpack.c.h.b16 %v2221
        %v2269 = vunpack.c.l.b16 %v2222
        %v2270 = vunpack.c.h.b16 %v2222
        %v2271 = vunpack.c.l.b16 %v2223
        %v2272 = vunpack.c.h.b16 %v2223
        %v2273 = vunpack.c.l.b16 %v2224
        %v2274 = vunpack.c.h.b16 %v2224
        %v2275 = vunpack.c.l.b16 %v2225
        %v2276 = vunpack.c.h.b16 %v2225
        %v2277 = vunpack.c.l.b16 %v2226
        %v2278 = vunpack.c.h.b16 %v2226
        %v2279 = vunpack.c.l.b16 %v2227
        %v2280 = vunpack.c.h.b16 %v2227
        %v2281 = vunpack.c.l.b16 %v2228
        %v2282 = vunpack.c.h.b16 %v2228
        %v2283 = vunpack.c.l.b16 %v2229
        %v2284 = vunpack.c.h.b16 %v2229
        %v2285 = vunpack.c.l.b16 %v2230
        %v2286 = vunpack.c.h.b16 %v2230
        %v2287 = vunpack.c.l.b16 %v2231
        %v2288 = vunpack.c.h.b16 %v2231
        %v2289 = vunpack.c.l.b16 %v2232
        %v2290 = vunpack.c.h.b16 %v2232
        %v2291 = vunpack.c.l.b16 %v2233
        %v2292 = vunpack.c.h.b16 %v2233
        %v2293 = vunpack.c.l.b16 %v2234
        %v2294 = vunpack.c.h.b16 %v2234
        %v2295 = vpack.c.b16 %v2265, %v2263
        %v2296 = vpack.c.b16 %v2266, %v2264
        %v2297 = vpack.c.b16 %v2269, %v2267
        %v2298 = vpack.c.b16 %v2270, %v2268
        %v2299 = vpack.c.b16 %v2273, %v2271
        %v2300 = vpack.c.b16 %v2274, %v2272
        %v2301 = vpack.c.b16 %v2277, %v2275
        %v2302 = vpack.c.b16 %v2278, %v2276
        %v2303 = vpack.c.b16 %v2281, %v2279
        %v2304 = vpack.c.b16 %v2282, %v2280
        %v2305 = vpack.c.b16 %v2285, %v2283
        %v2306 = vpack.c.b16 %v2286, %v2284
        %v2307 = vpack.c.b16 %v2289, %v2287
        %v2308 = vpack.c.b16 %v2290, %v2288
        %v2309 = vpack.c.b16 %v2293, %v2291
        %v2310 = vpack.c.b16 %v2294, %v2292
        %2327 = vmatprep.subr.bf16.mxu0 %v2310
        %2328 = vmatpush1.bf16.msra.mxu0 %v2309
        %2329 = vmatprep.subr.bf16.mxu0 %v2308
        %2330 = vmatpush1.bf16.msra.mxu0 %v2307
        %2331 = vmatprep.subr.bf16.mxu0 %v2306
        %2332 = vmatpush1.bf16.msra.mxu0 %v2305
        %2333 = vmatprep.subr.bf16.mxu0 %v2304
        %2334 = vmatpush1.bf16.msra.mxu0 %v2303
        %2335 = vmatprep.subr.bf16.mxu0 %v2302
        %2336 = vmatpush1.bf16.msra.mxu0 %v2301
        %2337 = vmatprep.subr.bf16.mxu0 %v2300
        %2338 = vmatpush1.bf16.msra.mxu0 %v2299
        %2339 = vmatprep.subr.bf16.mxu0 %v2298
        %2340 = vmatpush1.bf16.msra.mxu0 %v2297
        %2341 = vmatprep.subr.bf16.mxu0 %v2296
        %2342 = vmatpush1.bf16.msra.mxu0 %v2295
        %2343 = vmatprep.subr.bf16.mxu0 0
        %2344 = vmatpush2.bf16.msra.mxu0 0
        %2345 = vmatprep.subr.bf16.mxu0 0
        %2346 = vmatpush2.bf16.msra.mxu0 0
        %2347 = vmatprep.subr.bf16.mxu0 0
        %2348 = vmatpush2.bf16.msra.mxu0 0
        %2349 = vmatprep.subr.bf16.mxu0 0
        %2350 = vmatpush2.bf16.msra.mxu0 0
        %2351 = vmatprep.subr.bf16.mxu0 0
        %2352 = vmatpush2.bf16.msra.mxu0 0
        %2353 = vmatprep.subr.bf16.mxu0 0
        %2354 = vmatpush2.bf16.msra.mxu0 0
        %2355 = vmatprep.subr.bf16.mxu0 0
        %2356 = vmatpush2.bf16.msra.mxu0 0
        %2357 = vmatprep.subr.bf16.mxu0 0
        %2358 = vmatpush2.bf16.msra.mxu0 0
        %2359 = vmatprep.mubr.bf16.mxu0 0
        %2360 = vmatmul.mubr.bf16.gmra.mxu0 %v2218
        %v2361 = vpop.f32.mrf.mxu0
        %v2362 = vadd.f32 %v2240, %v2361
        %v2363 = vpop.f32.mrf.mxu0
        %v2364 = vadd.f32 %v2244, %v2363
        %v2365 = vpop.f32.mrf.mxu0
        %v2366 = vpop.f32.mrf.mxu0
        %2367 = vdwg.mxu0
        %v2368 = vmul.f32 %v2362, 0.5
        %v2369 = vmul.f32 %v2364, 0.5
        %v2370 = vmul.f32 %v2362, 0.044715
        %v2371 = vmul.f32 %v2364, 0.044715
        %v2372 = vmul.f32 %v2370, %v2362
        %v2373 = vmul.f32 %v2371, %v2364
        %v2374 = vmul.f32 %v2372, %v2362
        %v2375 = vmul.f32 %v2373, %v2364
        %v2376 = vadd.f32 %v2362, %v2374
        %v2377 = vadd.f32 %v2364, %v2375
        %v2378 = vmul.f32 %v2376, 0.7978846
        %v2379 = vmul.f32 %v2377, 0.7978846
        %v2380 = vtanh.pop %v2378
        %v2381 = vtanh.pop %v2379
        %v2382 = vadd.f32 %v2380, 1.0
        %v2383 = vadd.f32 %v2381, 1.0
        %v2384 = vmul.f32 %v2368, %v2382
        %v2385 = vmul.f32 %v2369, %v2383
        %v2386 = vpack.c.bf16 %v2384, %v2384
        %v2387 = vpack.c.bf16 %v2385, %v2385
        %v2388 = vld [vmem:[#allocation14] sm:$0xf]
        %v2389 = vld [vmem:[#allocation14 + $0x4] sm:$0xf]
        %v2390 = vld [vmem:[#allocation14 + $0x8] sm:$0xf]
        %v2391 = vld [vmem:[#allocation14 + $0xc] sm:$0xf]
        %v2392 = vld [vmem:[#allocation14 + $0x10] sm:$0xf]
        %v2393 = vld [vmem:[#allocation14 + $0x14] sm:$0xf]
        %v2394 = vld [vmem:[#allocation14 + $0x18] sm:$0xf]
        %v2395 = vld [vmem:[#allocation14 + $0x1c] sm:$0xf]
        %v2396 = vld [vmem:[#allocation14 + $0x20] sm:$0xf]
        %v2397 = vld [vmem:[#allocation14 + $0x24] sm:$0xf]
        %v2398 = vld [vmem:[#allocation14 + $0x28] sm:$0xf]
        %v2399 = vld [vmem:[#allocation14 + $0x2c] sm:$0xf]
        %v2400 = vld [vmem:[#allocation14 + $0x30] sm:$0xf]
        %v2401 = vld [vmem:[#allocation14 + $0x34] sm:$0xf]
        %v2402 = vld [vmem:[#allocation14 + $0x38] sm:$0xf]
        %v2403 = vld [vmem:[#allocation14 + $0x3c] sm:$0xf]
        %v2404 = vld [vmem:[#allocation14 + $0x40] sm:$0xf]
        %v2405 = vld [vmem:[#allocation14 + $0x44] sm:$0xf]
        %v2406 = vld [vmem:[#allocation14 + $0x48] sm:$0xf]
        %v2407 = vld [vmem:[#allocation14 + $0x4c] sm:$0xf]
        %v2408 = vld [vmem:[#allocation14 + $0x50] sm:$0xf]
        %v2409 = vld [vmem:[#allocation14 + $0x54] sm:$0xf]
        %v2410 = vld [vmem:[#allocation14 + $0x58] sm:$0xf]
        %v2411 = vld [vmem:[#allocation14 + $0x5c] sm:$0xf]
        %v2412 = vld [vmem:[#allocation14 + $0x60] sm:$0xf]
        %v2413 = vld [vmem:[#allocation14 + $0x64] sm:$0xf]
        %v2414 = vld [vmem:[#allocation14 + $0x68] sm:$0xf]
        %v2415 = vld [vmem:[#allocation14 + $0x6c] sm:$0xf]
        %v2416 = vld [vmem:[#allocation14 + $0x70] sm:$0xf]
        %v2417 = vld [vmem:[#allocation14 + $0x74] sm:$0xf]
        %v2418 = vld [vmem:[#allocation14 + $0x78] sm:$0xf]
        %v2419 = vld [vmem:[#allocation14 + $0x7c] sm:$0xf]
        %v2420 = vld [vmem:[%s15] sm:$0x1]
        %v2422 = vlaneseq
        %v2423 = vshrl.u32 %v2422, 7
        %v2424 = vsub.s32 0, %v2423
        %v2425 = vrot.slane %v2420, %v2424
        %v2459 = vunpack.c.l.b16 %v2388
        %v2460 = vunpack.c.l.b16 %v2389
        %v2461 = vunpack.c.l.b16 %v2390
        %v2462 = vunpack.c.l.b16 %v2391
        %v2463 = vunpack.c.l.b16 %v2392
        %v2464 = vunpack.c.l.b16 %v2393
        %v2465 = vunpack.c.l.b16 %v2394
        %v2466 = vunpack.c.l.b16 %v2395
        %v2467 = vunpack.c.l.b16 %v2396
        %v2468 = vunpack.c.l.b16 %v2397
        %v2469 = vunpack.c.l.b16 %v2398
        %v2470 = vunpack.c.l.b16 %v2399
        %v2471 = vunpack.c.l.b16 %v2400
        %v2472 = vunpack.c.l.b16 %v2401
        %v2473 = vunpack.c.l.b16 %v2402
        %v2474 = vunpack.c.l.b16 %v2403
        %v2475 = vunpack.c.l.b16 %v2404
        %v2476 = vunpack.c.l.b16 %v2405
        %v2477 = vunpack.c.l.b16 %v2406
        %v2478 = vunpack.c.l.b16 %v2407
        %v2479 = vunpack.c.l.b16 %v2408
        %v2480 = vunpack.c.l.b16 %v2409
        %v2481 = vunpack.c.l.b16 %v2410
        %v2482 = vunpack.c.l.b16 %v2411
        %v2483 = vunpack.c.l.b16 %v2412
        %v2484 = vunpack.c.l.b16 %v2413
        %v2485 = vunpack.c.l.b16 %v2414
        %v2486 = vunpack.c.l.b16 %v2415
        %v2487 = vunpack.c.l.b16 %v2416
        %v2488 = vunpack.c.l.b16 %v2417
        %v2489 = vunpack.c.l.b16 %v2418
        %v2490 = vunpack.c.l.b16 %v2419
        %v2491 = vpack.c.b16 %v2460, %v2459
        %v2492 = vpack.c.b16 %v2462, %v2461
        %v2493 = vpack.c.b16 %v2464, %v2463
        %v2494 = vpack.c.b16 %v2466, %v2465
        %v2495 = vpack.c.b16 %v2468, %v2467
        %v2496 = vpack.c.b16 %v2470, %v2469
        %v2497 = vpack.c.b16 %v2472, %v2471
        %v2498 = vpack.c.b16 %v2474, %v2473
        %v2499 = vpack.c.b16 %v2476, %v2475
        %v2500 = vpack.c.b16 %v2478, %v2477
        %v2501 = vpack.c.b16 %v2480, %v2479
        %v2502 = vpack.c.b16 %v2482, %v2481
        %v2503 = vpack.c.b16 %v2484, %v2483
        %v2504 = vpack.c.b16 %v2486, %v2485
        %v2505 = vpack.c.b16 %v2488, %v2487
        %v2506 = vpack.c.b16 %v2490, %v2489
        %2523 = vmatprep.subr.bf16.mxu0 0
        %2524 = vmatpush1.bf16.msra.mxu0 %v2498
        %2525 = vmatprep.subr.bf16.mxu0 0
        %2526 = vmatpush1.bf16.msra.mxu0 %v2497
        %2527 = vmatprep.subr.bf16.mxu0 0
        %2528 = vmatpush1.bf16.msra.mxu0 %v2496
        %2529 = vmatprep.subr.bf16.mxu0 0
        %2530 = vmatpush1.bf16.msra.mxu0 %v2495
        %2531 = vmatprep.subr.bf16.mxu0 0
        %2532 = vmatpush1.bf16.msra.mxu0 %v2494
        %2533 = vmatprep.subr.bf16.mxu0 0
        %2534 = vmatpush1.bf16.msra.mxu0 %v2493
        %2535 = vmatprep.subr.bf16.mxu0 0
        %2536 = vmatpush1.bf16.msra.mxu0 %v2492
        %2537 = vmatprep.subr.bf16.mxu0 0
        %2538 = vmatpush1.bf16.msra.mxu0 %v2491
        %2539 = vmatprep.subr.bf16.mxu0 0
        %2540 = vmatpush2.bf16.msra.mxu0 %v2506
        %2541 = vmatprep.subr.bf16.mxu0 0
        %2542 = vmatpush2.bf16.msra.mxu0 %v2505
        %2543 = vmatprep.subr.bf16.mxu0 0
        %2544 = vmatpush2.bf16.msra.mxu0 %v2504
        %2545 = vmatprep.subr.bf16.mxu0 0
        %2546 = vmatpush2.bf16.msra.mxu0 %v2503
        %2547 = vmatprep.subr.bf16.mxu0 0
        %2548 = vmatpush2.bf16.msra.mxu0 %v2502
        %2549 = vmatprep.subr.bf16.mxu0 0
        %2550 = vmatpush2.bf16.msra.mxu0 %v2501
        %2551 = vmatprep.subr.bf16.mxu0 0
        %2552 = vmatpush2.bf16.msra.mxu0 %v2500
        %2553 = vmatprep.subr.bf16.mxu0 0
        %2554 = vmatpush2.bf16.msra.mxu0 %v2499
        %2555 = vmatprep.mubr.bf16.mxu0 %v2387
        %2556 = vmatmul.mubr.bf16.gmra.mxu0 %v2386
        %v2557 = vpop.f32.mrf.mxu0
        %v2558 = vadd.f32 %v2425, %v2557
        %v2559 = vpop.f32.mrf.mxu0
        %v2560 = vpop.f32.mrf.mxu0
        %v2561 = vpop.f32.mrf.mxu0
        %2562 = vdwg.mxu0
        %v2563 = vadd.f32 %v2558, %v2187
        %v2564 = vpack.c.bf16 %v2563, %v2563
        %2565 = vst [vmem:[%s663] sm:$0xf] %v2564
        %s2566 = sand.u32 %s393, 1
        %s2567 = scalar_lea.sflag [#allocation4], %s2566
        %s2568 = sand.u32 %s393, 1
        %s2569 = smul.addr %s2568, 4
        %s2570 = scalar_lea.vmem [#allocation16], %s2569
        // Predicated region
        $region117: #{tpu_custom_call.1} parent=83 // pred_check
          %p2571 = pneg %p403
        $region118: #{tpu_custom_call.1} parent=83 // pred_check_branch
          %2573 = sbr.rel (%p2571) target = $region120
        $region119: #{tpu_custom_call.1} parent=83 // pred_region
          %s2575 = ssub.s32 64, 64
          %2576 = vsyncadd %s2567, %s2575
          %s2577 = smul.addr %s39, 64
          %s2578 = scalar_lea.hbm %s16, %s2577
          %s2580 = sshll.u32 %s2570, 4
          %s2581 = int_to_ptr.vmem [resolvable:$true] %s2580
          %2583 = dma.vmem_to_hbm [thread:$0]  %s2581, 64, %s2578, %s2567
        $region120: #{tpu_custom_call.1} parent=83 // pred_fallthru
          _
      $region84: #{tpu_custom_call.1} parent=5 // pred_fallthru
        _
      %p2584 = scmp.le.s32.totalorder 2, %s34
      // Predicated region
      $region121: #{tpu_custom_call.1} parent=5 // pred_check
        %p2585 = pneg %p2584
      $region122: #{tpu_custom_call.1} parent=5 // pred_check_branch
        %2587 = sbr.rel (%p2585) target = $region124
      $region123: #{tpu_custom_call.1} parent=5 // pred_region
        %s2588 = ssub.s32 %s34, 2
        // Predicated region
        $region125: #{tpu_custom_call.1} parent=123 // pred_check
          %p2589 = pneg %p409
        $region126: #{tpu_custom_call.1} parent=123 // pred_check_branch
          %2591 = sbr.rel (%p2589) target = $region128
        $region127: #{tpu_custom_call.1} parent=123 // pred_region
          %s2592 = sand.u32 %s394, 1
          %s2593 = scalar_lea.sflag [#allocation4], %s2592
          %s2594 = sand.u32 %s394, 1
          %s2595 = smul.addr %s2594, 4
          %s2596 = scalar_lea.vmem [#allocation16], %s2595
          %2597 = dma.done %s2593, 64
        $region128: #{tpu_custom_call.1} parent=123 // pred_fallthru
          _
      $region124: #{tpu_custom_call.1} parent=5 // pred_fallthru
        _
    $region6: #{tpu_custom_call.1} parent=1 // loop_footer
      %s38 = sadd.s32 1, %s34
    $region7: #{tpu_custom_call.1} parent=1 // loop_footer_branch
      %33 = sbr.rel target = $region3
    $region8: #{tpu_custom_call.1} parent=1 // loop_exit
      _
    %2598 = vsyncpa [#allocation3], 1
    %s2599 = scalar_lea.sflag [#allocation3], 1
    %2600 = vsyncpa %s2599, 1
    %2601 = vsyncpa [#allocation6], 1
    %s2602 = scalar_lea.sflag [#allocation6], 1
    %2603 = vsyncpa %s2602, 1
    %2604 = vsyncpa [#allocation9], 1
    %2605 = vsyncpa [#allocation12], 1
    %2606 = vsyncpa [#allocation15], 1
    %2607 = vsyncpa [#allocation4], 1
    %s2608 = scalar_lea.sflag [#allocation4], 1
    %2609 = vsyncpa %s2608, 1

// kernel: tpu_custom_call.1
$region0: #{tpu_custom_call.1}
  #allocation0 [shape = 'u32[]', space=smem, size = 0x4, offset = 0x4, fixed_abs, tag = 'smem constant byte address 0x4 - core index']
  #allocation1 [shape = 'u32[144,128]{1,0:T(1,128)}', space=vmem, size = 0x12000, scoped, tag = 'internal scratch']
  %s0 = inlined_call_operand.hbm [shape: bf16[2,8,128], index: 0, kind: input, shape index: {}]
  %s1 = inlined_call_operand.hbm [shape: bf16[2,16,128], index: 1, kind: input, shape index: {}]
  %s2 = inlined_call_operand.hbm [shape: bf16[128,128], index: 2, kind: input, shape index: {}]
  %s3 = inlined_call_operand.hbm [shape: bf16[128,128], index: 3, kind: input, shape index: {}]
  %s4 = inlined_call_operand.hbm [shape: bf16[128,128], index: 4, kind: input, shape index: {}]
  %s5 = inlined_call_operand.vmem [shape: f32[1,128], index: 5, kind: input, shape index: {}]
  %s6 = inlined_call_operand.vmem [shape: f32[1,128], index: 6, kind: input, shape index: {}]
  %s7 = inlined_call_operand.vmem [shape: f32[1,128], index: 7, kind: input, shape index: {}]
  %s8 = inlined_call_operand.hbm [shape: bf16[128,128], index: 8, kind: input, shape index: {}]
  %s9 = inlined_call_operand.vmem [shape: f32[1,128], index: 9, kind: input, shape index: {}]
  %s10 = inlined_call_operand.vmem [shape: f32[1,128], index: 10, kind: input, shape index: {}]
  %s11 = inlined_call_operand.vmem [shape: f32[1,128], index: 11, kind: input, shape index: {}]
  %s12 = inlined_call_operand.hbm [shape: bf16[128,256], index: 12, kind: input, shape index: {}]
  %s13 = inlined_call_operand.vmem [shape: f32[1,256], index: 13, kind: input, shape index: {}]
  %s14 = inlined_call_operand.hbm [shape: bf16[256,128], index: 14, kind: input, shape index: {}]
  %s15 = inlined_call_operand.vmem [shape: f32[1,128], index: 15, kind: input, shape index: {}]
  %s16 = inlined_call_operand.hbm [shape: bf16[2,8,128], index: 16, kind: output, shape index: {}]
  %s17 = sld [smem:[#allocation0]]
  $region129: #{tpu_custom_call.1} parent=0
    _
  %s19 = ssub.s32 1, %s17
  %s20 = scalar_select 0, %s19, %s17
  $region1: #{tpu_custom_call.1} parent=0
    #allocation2 [shape = 'u8[4096]{0}', space=vmem, size = 0x1000, scoped, tag = 'input window, operand 0']
    #allocation3 [shape = 's32[2]{0}', space=sflag, size = 0x8, scoped, tag = 'scoped memory for tpu_custom_call.1']
    #allocation4 [shape = 's32[2]{0}', space=sflag, size = 0x8, scoped, tag = 'scoped memory for tpu_custom_call.1']
    #allocation5 [shape = 'u8[8192]{0}', space=vmem, size = 0x2000, scoped, tag = 'input window, operand 1']
    #allocation6 [shape = 's32[2]{0}', space=sflag, size = 0x8, scoped, tag = 'scoped memory for tpu_custom_call.1']
    #allocation7 [shape = 'u8[32768]{0}', space=vmem, size = 0x8000, scoped, tag = 'input window, operand 2, single buffered']
    #allocation8 [shape = 'u8[32768]{0}', space=vmem, size = 0x8000, scoped, tag = 'input window, operand 3, single buffered']
    #allocation9 [shape = 's32[1]{0}', space=sflag, size = 0x4, scoped, tag = 'scoped memory for tpu_custom_call.1']
    #allocation10 [shape = 'u8[32768]{0}', space=vmem, size = 0x8000, scoped, tag = 'input window, operand 4, single buffered']
    #allocation11 [shape = 'u8[32768]{0}', space=vmem, size = 0x8000, scoped, tag = 'input window, operand 8, single buffered']
    #allocation12 [shape = 's32[1]{0}', space=sflag, size = 0x4, scoped, tag = 'scoped memory for tpu_custom_call.1']
    #allocation13 [shape = 'u8[65536]{0}', space=vmem, size = 0x10000, scoped, tag = 'input window, operand 12, single buffered']
    #allocation14 [shape = 'u8[65536]{0}', space=vmem, size = 0x10000, scoped, tag = 'input window, operand 14, single buffered']
    #allocation15 [shape = 's32[1]{0}', space=sflag, size = 0x4, scoped, tag = 'scoped memory for tpu_custom_call.1']
    #allocation16 [shape = 'u8[4096]{0}', space=vmem, size = 0x1000, scoped, tag = 'output window, operand 0']
    %21 = vsyncpa [#allocation3], 0
    %s22 = scalar_lea.sflag [#allocation3], 1
    %23 = vsyncpa %s22, 0
    %24 = vsyncpa [#allocation6], 0
    %s25 = scalar_lea.sflag [#allocation6], 1
    %26 = vsyncpa %s25, 0
    %27 = vsyncpa [#allocation9], 0
    %28 = vsyncpa [#allocation12], 0
    %29 = vsyncpa [#allocation15], 0
    %30 = vsyncpa [#allocation4], 0
    %s31 = scalar_lea.sflag [#allocation4], 1
    %32 = vsyncpa %s31, 0
    loop: start=0, step=1, limit=4
    $region2: #{tpu_custom_call.1} parent=1 // loop_pre_header
      _
    $region3: #{tpu_custom_call.1} parent=1 // loop_header
      %s34 = sphi 0, %s38
      %p35 = scmp.ge.s32.totalorder %s34, 4
      %s44 = sphi 0, %s46
      %s47 = sphi 0, %s44
      %s48 = sphi 0, %s47
      %s64 = sphi 0, %s48
      %s70 = sphi 0, %s72
      %s73 = sphi 0, %s70
      %s74 = sphi 0, %s73
      %s90 = sphi 0, %s74
      %s94 = sphi 0, %s94
      %s96 = sphi 0, %s94
      %s97 = sphi 0, %s96
      %s111 = sphi 0, %s97
      %s115 = sphi 0, %s115
      %s117 = sphi 0, %s115
      %s118 = sphi 0, %s117
      %s132 = sphi 0, %s118
      %s136 = sphi 0, %s136
      %s138 = sphi 0, %s136
      %s139 = sphi 0, %s138
      %s153 = sphi 0, %s139
      %s157 = sphi 0, %s157
      %s159 = sphi 0, %s157
      %s160 = sphi 0, %s159
      %s174 = sphi 0, %s160
      %s178 = sphi 0, %s178
      %s180 = sphi 0, %s178
      %s181 = sphi 0, %s180
      %s195 = sphi 0, %s181
      %s199 = sphi 0, %s199
      %s201 = sphi 0, %s199
      %s202 = sphi 0, %s201
      %s216 = sphi 0, %s202
      %s220 = sphi 0, %s220
      %s222 = sphi 0, %s220
      %s223 = sphi 0, %s222
      %s237 = sphi 0, %s223
      %s241 = sphi 0, %s241
      %s243 = sphi 0, %s241
      %s244 = sphi 0, %s243
      %s258 = sphi 0, %s244
      %s262 = sphi 0, %s262
      %s264 = sphi 0, %s262
      %s265 = sphi 0, %s264
      %s279 = sphi 0, %s265
      %s283 = sphi 0, %s283
      %s285 = sphi 0, %s283
      %s286 = sphi 0, %s285
      %s300 = sphi 0, %s286
      %s304 = sphi 0, %s304
      %s306 = sphi 0, %s304
      %s307 = sphi 0, %s306
      %s321 = sphi 0, %s307
      %s325 = sphi 0, %s325
      %s327 = sphi 0, %s325
      %s328 = sphi 0, %s327
      %s342 = sphi 0, %s328
      %s346 = sphi 0, %s346
      %s348 = sphi 0, %s346
      %s349 = sphi 0, %s348
      %s363 = sphi 0, %s349
      %s367 = sphi 0, %s367
      %s369 = sphi 0, %s367
      %s370 = sphi 0, %s369
      %s384 = sphi 0, %s370
      %s390 = sphi 0, %s392
      %s393 = sphi 0, %s390
      %s394 = sphi 0, %s393
      %s410 = sphi 0, %s394
    $region4: #{tpu_custom_call.1} parent=1 // loop_header_branch
      %37 = sbr.rel (%p35) target = $region8
    $region5: #{tpu_custom_call.1} parent=1 // loop_body
      %s39 = ssub.s32 %s34, 1
      %s40 = ssub.s32 %s34, 2
      %s41 = sadd.s32 %s34, 1
      %s42 = ssub.s32 %s34, %s41
      %p43 = scmp.eq.s32.totalorder %s42, 0
      %s45 = sadd.s32 %s44, 1
      %s46 = scalar_select %p43, %s44, %s45
      %p49 = pneg %p43
      %p50 = scmp.eq.s32.totalorder %s34, 1
      %p51 = por %p49, %p50
      %p52 = scmp.ne.s32.totalorder %s44, %s47
      %p53 = scmp.eq.s32.totalorder %s34, 0
      %p54 = por %p52, %p53
      %p55 = scmp.ne.s32.totalorder %s44, %s47
      %p56 = scmp.eq.s32.totalorder %s39, 1
      %p57 = por %p55, %p56
      %p58 = scmp.ne.s32.totalorder %s47, %s48
      %p59 = scmp.eq.s32.totalorder %s39, 0
      %p60 = por %p58, %p59
      %p61 = scmp.ne.s32.totalorder %s47, %s48
      %p62 = scmp.eq.s32.totalorder %s40, 1
      %p63 = por %p61, %p62
      %p65 = scmp.ne.s32.totalorder %s48, %s64
      %p66 = scmp.eq.s32.totalorder %s40, 0
      %p67 = por %p65, %p66
      %s68 = ssub.s32 %s34, %s41
      %p69 = scmp.eq.s32.totalorder %s68, 0
      %s71 = sadd.s32 %s70, 1
      %s72 = scalar_select %p69, %s70, %s71
      %p75 = pneg %p69
      %p76 = scmp.eq.s32.totalorder %s34, 1
      %p77 = por %p75, %p76
      %p78 = scmp.ne.s32.totalorder %s70, %s73
      %p79 = scmp.eq.s32.totalorder %s34, 0
      %p80 = por %p78, %p79
      %p81 = scmp.ne.s32.totalorder %s70, %s73
      %p82 = scmp.eq.s32.totalorder %s39, 1
      %p83 = por %p81, %p82
      %p84 = scmp.ne.s32.totalorder %s73, %s74
      %p85 = scmp.eq.s32.totalorder %s39, 0
      %p86 = por %p84, %p85
      %p87 = scmp.ne.s32.totalorder %s73, %s74
      %p88 = scmp.eq.s32.totalorder %s40, 1
      %p89 = por %p87, %p88
      %p91 = scmp.ne.s32.totalorder %s74, %s90
      %p92 = scmp.eq.s32.totalorder %s40, 0
      %p93 = por %p91, %p92
      %s95 = sadd.s32 %s94, 1
      %p98 = scmp.eq.s32.totalorder %s34, 1
      %p99 = scmp.ne.s32.totalorder %s94, %s96
      %p100 = scmp.eq.s32.totalorder %s34, 0
      %p101 = por %p99, %p100
      %p102 = scmp.ne.s32.totalorder %s94, %s96
      %p103 = scmp.eq.s32.totalorder %s39, 1
      %p104 = por %p102, %p103
      %p105 = scmp.ne.s32.totalorder %s96, %s97
      %p106 = scmp.eq.s32.totalorder %s39, 0
      %p107 = por %p105, %p106
      %p108 = scmp.ne.s32.totalorder %s96, %s97
      %p109 = scmp.eq.s32.totalorder %s40, 1
      %p110 = por %p108, %p109
      %p112 = scmp.ne.s32.totalorder %s97, %s111
      %p113 = scmp.eq.s32.totalorder %s40, 0
      %p114 = por %p112, %p113
      %s116 = sadd.s32 %s115, 1
      %p119 = scmp.eq.s32.totalorder %s34, 1
      %p120 = scmp.ne.s32.totalorder %s115, %s117
      %p121 = scmp.eq.s32.totalorder %s34, 0
      %p122 = por %p120, %p121
      %p123 = scmp.ne.s32.totalorder %s115, %s117
      %p124 = scmp.eq.s32.totalorder %s39, 1
      %p125 = por %p123, %p124
      %p126 = scmp.ne.s32.totalorder %s117, %s118
      %p127 = scmp.eq.s32.totalorder %s39, 0
      %p128 = por %p126, %p127
      %p129 = scmp.ne.s32.totalorder %s117, %s118
      %p130 = scmp.eq.s32.totalorder %s40, 1
      %p131 = por %p129, %p130
      %p133 = scmp.ne.s32.totalorder %s118, %s132
      %p134 = scmp.eq.s32.totalorder %s40, 0
      %p135 = por %p133, %p134
      %s137 = sadd.s32 %s136, 1
      %p140 = scmp.eq.s32.totalorder %s34, 1
      %p141 = scmp.ne.s32.totalorder %s136, %s138
      %p142 = scmp.eq.s32.totalorder %s34, 0
      %p143 = por %p141, %p142
      %p144 = scmp.ne.s32.totalorder %s136, %s138
      %p145 = scmp.eq.s32.totalorder %s39, 1
      %p146 = por %p144, %p145
      %p147 = scmp.ne.s32.totalorder %s138, %s139
      %p148 = scmp.eq.s32.totalorder %s39, 0
      %p149 = por %p147, %p148
      %p150 = scmp.ne.s32.totalorder %s138, %s139
      %p151 = scmp.eq.s32.totalorder %s40, 1
      %p152 = por %p150, %p151
      %p154 = scmp.ne.s32.totalorder %s139, %s153
      %p155 = scmp.eq.s32.totalorder %s40, 0
      %p156 = por %p154, %p155
      %s158 = sadd.s32 %s157, 1
      %p161 = scmp.eq.s32.totalorder %s34, 1
      %p162 = scmp.ne.s32.totalorder %s157, %s159
      %p163 = scmp.eq.s32.totalorder %s34, 0
      %p164 = por %p162, %p163
      %p165 = scmp.ne.s32.totalorder %s157, %s159
      %p166 = scmp.eq.s32.totalorder %s39, 1
      %p167 = por %p165, %p166
      %p168 = scmp.ne.s32.totalorder %s159, %s160
      %p169 = scmp.eq.s32.totalorder %s39, 0
      %p170 = por %p168, %p169
      %p171 = scmp.ne.s32.totalorder %s159, %s160
      %p172 = scmp.eq.s32.totalorder %s40, 1
      %p173 = por %p171, %p172
      %p175 = scmp.ne.s32.totalorder %s160, %s174
      %p176 = scmp.eq.s32.totalorder %s40, 0
      %p177 = por %p175, %p176
      %s179 = sadd.s32 %s178, 1
      %p182 = scmp.eq.s32.totalorder %s34, 1
      %p183 = scmp.ne.s32.totalorder %s178, %s180
      %p184 = scmp.eq.s32.totalorder %s34, 0
      %p185 = por %p183, %p184
      %p186 = scmp.ne.s32.totalorder %s178, %s180
      %p187 = scmp.eq.s32.totalorder %s39, 1
      %p188 = por %p186, %p187
      %p189 = scmp.ne.s32.totalorder %s180, %s181
      %p190 = scmp.eq.s32.totalorder %s39, 0
      %p191 = por %p189, %p190
      %p192 = scmp.ne.s32.totalorder %s180, %s181
      %p193 = scmp.eq.s32.totalorder %s40, 1
      %p194 = por %p192, %p193
      %p196 = scmp.ne.s32.totalorder %s181, %s195
      %p197 = scmp.eq.s32.totalorder %s40, 0
      %p198 = por %p196, %p197
      %s200 = sadd.s32 %s199, 1
      %p203 = scmp.eq.s32.totalorder %s34, 1
      %p204 = scmp.ne.s32.totalorder %s199, %s201
      %p205 = scmp.eq.s32.totalorder %s34, 0
      %p206 = por %p204, %p205
      %p207 = scmp.ne.s32.totalorder %s199, %s201
      %p208 = scmp.eq.s32.totalorder %s39, 1
      %p209 = por %p207, %p208
      %p210 = scmp.ne.s32.totalorder %s201, %s202
      %p211 = scmp.eq.s32.totalorder %s39, 0
      %p212 = por %p210, %p211
      %p213 = scmp.ne.s32.totalorder %s201, %s202
      %p214 = scmp.eq.s32.totalorder %s40, 1
      %p215 = por %p213, %p214
      %p217 = scmp.ne.s32.totalorder %s202, %s216
      %p218 = scmp.eq.s32.totalorder %s40, 0
      %p219 = por %p217, %p218
      %s221 = sadd.s32 %s220, 1
      %p224 = scmp.eq.s32.totalorder %s34, 1
      %p225 = scmp.ne.s32.totalorder %s220, %s222
      %p226 = scmp.eq.s32.totalorder %s34, 0
      %p227 = por %p225, %p226
      %p228 = scmp.ne.s32.totalorder %s220, %s222
      %p229 = scmp.eq.s32.totalorder %s39, 1
      %p230 = por %p228, %p229
      %p231 = scmp.ne.s32.totalorder %s222, %s223
      %p232 = scmp.eq.s32.totalorder %s39, 0
      %p233 = por %p231, %p232
      %p234 = scmp.ne.s32.totalorder %s222, %s223
      %p235 = scmp.eq.s32.totalorder %s40, 1
      %p236 = por %p234, %p235
      %p238 = scmp.ne.s32.totalorder %s223, %s237
      %p239 = scmp.eq.s32.totalorder %s40, 0
      %p240 = por %p238, %p239
      %s242 = sadd.s32 %s241, 1
      %p245 = scmp.eq.s32.totalorder %s34, 1
      %p246 = scmp.ne.s32.totalorder %s241, %s243
      %p247 = scmp.eq.s32.totalorder %s34, 0
      %p248 = por %p246, %p247
      %p249 = scmp.ne.s32.totalorder %s241, %s243
      %p250 = scmp.eq.s32.totalorder %s39, 1
      %p251 = por %p249, %p250
      %p252 = scmp.ne.s32.totalorder %s243, %s244
      %p253 = scmp.eq.s32.totalorder %s39, 0
      %p254 = por %p252, %p253
      %p255 = scmp.ne.s32.totalorder %s243, %s244
      %p256 = scmp.eq.s32.totalorder %s40, 1
      %p257 = por %p255, %p256
      %p259 = scmp.ne.s32.totalorder %s244, %s258
      %p260 = scmp.eq.s32.totalorder %s40, 0
      %p261 = por %p259, %p260
      %s263 = sadd.s32 %s262, 1
      %p266 = scmp.eq.s32.totalorder %s34, 1
      %p267 = scmp.ne.s32.totalorder %s262, %s264
      %p268 = scmp.eq.s32.totalorder %s34, 0
      %p269 = por %p267, %p268
      %p270 = scmp.ne.s32.totalorder %s262, %s264
      %p271 = scmp.eq.s32.totalorder %s39, 1
      %p272 = por %p270, %p271
      %p273 = scmp.ne.s32.totalorder %s264, %s265
      %p274 = scmp.eq.s32.totalorder %s39, 0
      %p275 = por %p273, %p274
      %p276 = scmp.ne.s32.totalorder %s264, %s265
      %p277 = scmp.eq.s32.totalorder %s40, 1
      %p278 = por %p276, %p277
      %p280 = scmp.ne.s32.totalorder %s265, %s279
      %p281 = scmp.eq.s32.totalorder %s40, 0
      %p282 = por %p280, %p281
      %s284 = sadd.s32 %s283, 1
      %p287 = scmp.eq.s32.totalorder %s34, 1
      %p288 = scmp.ne.s32.totalorder %s283, %s285
      %p289 = scmp.eq.s32.totalorder %s34, 0
      %p290 = por %p288, %p289
      %p291 = scmp.ne.s32.totalorder %s283, %s285
      %p292 = scmp.eq.s32.totalorder %s39, 1
      %p293 = por %p291, %p292
      %p294 = scmp.ne.s32.totalorder %s285, %s286
      %p295 = scmp.eq.s32.totalorder %s39, 0
      %p296 = por %p294, %p295
      %p297 = scmp.ne.s32.totalorder %s285, %s286
      %p298 = scmp.eq.s32.totalorder %s40, 1
      %p299 = por %p297, %p298
      %p301 = scmp.ne.s32.totalorder %s286, %s300
      %p302 = scmp.eq.s32.totalorder %s40, 0
      %p303 = por %p301, %p302
      %s305 = sadd.s32 %s304, 1
      %p308 = scmp.eq.s32.totalorder %s34, 1
      %p309 = scmp.ne.s32.totalorder %s304, %s306
      %p310 = scmp.eq.s32.totalorder %s34, 0
      %p311 = por %p309, %p310
      %p312 = scmp.ne.s32.totalorder %s304, %s306
      %p313 = scmp.eq.s32.totalorder %s39, 1
      %p314 = por %p312, %p313
      %p315 = scmp.ne.s32.totalorder %s306, %s307
      %p316 = scmp.eq.s32.totalorder %s39, 0
      %p317 = por %p315, %p316
      %p318 = scmp.ne.s32.totalorder %s306, %s307
      %p319 = scmp.eq.s32.totalorder %s40, 1
      %p320 = por %p318, %p319
      %p322 = scmp.ne.s32.totalorder %s307, %s321
      %p323 = scmp.eq.s32.totalorder %s40, 0
      %p324 = por %p322, %p323
      %s326 = sadd.s32 %s325, 1
      %p329 = scmp.eq.s32.totalorder %s34, 1
      %p330 = scmp.ne.s32.totalorder %s325, %s327
      %p331 = scmp.eq.s32.totalorder %s34, 0
      %p332 = por %p330, %p331
      %p333 = scmp.ne.s32.totalorder %s325, %s327
      %p334 = scmp.eq.s32.totalorder %s39, 1
      %p335 = por %p333, %p334
      %p336 = scmp.ne.s32.totalorder %s327, %s328
      %p337 = scmp.eq.s32.totalorder %s39, 0
      %p338 = por %p336, %p337
      %p339 = scmp.ne.s32.totalorder %s327, %s328
      %p340 = scmp.eq.s32.totalorder %s40, 1
      %p341 = por %p339, %p340
      %p343 = scmp.ne.s32.totalorder %s328, %s342
      %p344 = scmp.eq.s32.totalorder %s40, 0
      %p345 = por %p343, %p344
      %s347 = sadd.s32 %s346, 1
      %p350 = scmp.eq.s32.totalorder %s34, 1
      %p351 = scmp.ne.s32.totalorder %s346, %s348
      %p352 = scmp.eq.s32.totalorder %s34, 0
      %p353 = por %p351, %p352
      %p354 = scmp.ne.s32.totalorder %s346, %s348
      %p355 = scmp.eq.s32.totalorder %s39, 1
      %p356 = por %p354, %p355
      %p357 = scmp.ne.s32.totalorder %s348, %s349
      %p358 = scmp.eq.s32.totalorder %s39, 0
      %p359 = por %p357, %p358
      %p360 = scmp.ne.s32.totalorder %s348, %s349
      %p361 = scmp.eq.s32.totalorder %s40, 1
      %p362 = por %p360, %p361
      %p364 = scmp.ne.s32.totalorder %s349, %s363
      %p365 = scmp.eq.s32.totalorder %s40, 0
      %p366 = por %p364, %p365
      %s368 = sadd.s32 %s367, 1
      %p371 = scmp.eq.s32.totalorder %s34, 1
      %p372 = scmp.ne.s32.totalorder %s367, %s369
      %p373 = scmp.eq.s32.totalorder %s34, 0
      %p374 = por %p372, %p373
      %p375 = scmp.ne.s32.totalorder %s367, %s369
      %p376 = scmp.eq.s32.totalorder %s39, 1
      %p377 = por %p375, %p376
      %p378 = scmp.ne.s32.totalorder %s369, %s370
      %p379 = scmp.eq.s32.totalorder %s39, 0
      %p380 = por %p378, %p379
      %p381 = scmp.ne.s32.totalorder %s369, %s370
      %p382 = scmp.eq.s32.totalorder %s40, 1
      %p383 = por %p381, %p382
      %p385 = scmp.ne.s32.totalorder %s370, %s384
      %p386 = scmp.eq.s32.totalorder %s40, 0
      %p387 = por %p385, %p386
      %s388 = ssub.s32 %s34, %s41
      %p389 = scmp.eq.s32.totalorder %s388, 0
      %s391 = sadd.s32 %s390, 1
      %s392 = scalar_select %p389, %s390, %s391
      %p395 = pneg %p389
      %p396 = scmp.eq.s32.totalorder %s34, 1
      %p397 = por %p395, %p396
      %p398 = scmp.ne.s32.totalorder %s390, %s393
      %p399 = scmp.eq.s32.totalorder %s34, 0
      %p400 = por %p398, %p399
      %p401 = scmp.ne.s32.totalorder %s390, %s393
      %p402 = scmp.eq.s32.totalorder %s39, 1
      %p403 = por %p401, %p402
      %p404 = scmp.ne.s32.totalorder %s393, %s394
      %p405 = scmp.eq.s32.totalorder %s39, 0
      %p406 = por %p404, %p405
      %p407 = scmp.ne.s32.totalorder %s393, %s394
      %p408 = scmp.eq.s32.totalorder %s40, 1
      %p409 = por %p407, %p408
      %p411 = scmp.ne.s32.totalorder %s394, %s410
      %p412 = scmp.eq.s32.totalorder %s40, 0
      %p413 = por %p411, %p412
      %p414 = scmp.le.s32.totalorder 1, %s34
      %p415 = scmp.lt.s32.totalorder %s34, 3
      %p416 = pnand %p414, %p415
      %p417 = pneg %p416
      // Predicated region
      $region9: #{tpu_custom_call.1} parent=5 // pred_check
        _
      $region10: #{tpu_custom_call.1} parent=5 // pred_check_branch
        %419 = sbr.rel (%p416) target = $region12
      $region11: #{tpu_custom_call.1} parent=5 // pred_region
        %s420 = ssub.s32 %s34, 1
        // Predicated region
        $region13: #{tpu_custom_call.1} parent=11 // pred_check
          %p421 = pneg %p107
        $region14: #{tpu_custom_call.1} parent=11 // pred_check_branch
          %423 = sbr.rel (%p421) target = $region16
        $region15: #{tpu_custom_call.1} parent=11 // pred_region
          %s425 = ssub.s32 1024, 1024
          %426 = vsyncadd [#allocation6], %s425
          %s427 = sshll.u32 [#allocation7], 4
          %s428 = int_to_ptr.vmem [resolvable:$true] %s427
          %433 = dma.hbm_to_vmem [thread:$0]  %s2, 1024, %s428, [#allocation6], 64, 64, 4
        $region16: #{tpu_custom_call.1} parent=11 // pred_fallthru
          _
        // Predicated region
        $region17: #{tpu_custom_call.1} parent=11 // pred_check
          %p434 = pneg %p128
        $region18: #{tpu_custom_call.1} parent=11 // pred_check_branch
          %436 = sbr.rel (%p434) target = $region20
        $region19: #{tpu_custom_call.1} parent=11 // pred_region
          %s438 = ssub.s32 1024, 1024
          %439 = vsyncadd [#allocation9], %s438
          %s440 = sshll.u32 [#allocation8], 4
          %s441 = int_to_ptr.vmem [resolvable:$true] %s440
          %446 = dma.hbm_to_vmem [thread:$0]  %s3, 1024, %s441, [#allocation9], 64, 64, 4
        $region20: #{tpu_custom_call.1} parent=11 // pred_fallthru
          _
        // Predicated region
        $region21: #{tpu_custom_call.1} parent=11 // pred_check
          %p447 = pneg %p149
        $region22: #{tpu_custom_call.1} parent=11 // pred_check_branch
          %449 = sbr.rel (%p447) target = $region24
        $region23: #{tpu_custom_call.1} parent=11 // pred_region
          %s451 = ssub.s32 1024, 1024
          %452 = vsyncadd [#allocation9], %s451
          %s453 = sshll.u32 [#allocation10], 4
          %s454 = int_to_ptr.vmem [resolvable:$true] %s453
          %459 = dma.hbm_to_vmem [thread:$0]  %s4, 1024, %s454, [#allocation9], 64, 64, 4
        $region24: #{tpu_custom_call.1} parent=11 // pred_fallthru
          _
        // Predicated region
        $region25: #{tpu_custom_call.1} parent=11 // pred_check
          %p460 = pneg %p170
        $region26: #{tpu_custom_call.1} parent=11 // pred_check_branch
          %462 = sbr.rel (%p460) target = $region28
        $region27: #{tpu_custom_call.1} parent=11 // pred_region
          _
        $region28: #{tpu_custom_call.1} parent=11 // pred_fallthru
          _
        // Predicated region
        $region29: #{tpu_custom_call.1} parent=11 // pred_check
          %p463 = pneg %p191
        $region30: #{tpu_custom_call.1} parent=11 // pred_check_branch
          %465 = sbr.rel (%p463) target = $region32
        $region31: #{tpu_custom_call.1} parent=11 // pred_region
          _
        $region32: #{tpu_custom_call.1} parent=11 // pred_fallthru
          _
        // Predicated region
        $region33: #{tpu_custom_call.1} parent=11 // pred_check
          %p466 = pneg %p212
        $region34: #{tpu_custom_call.1} parent=11 // pred_check_branch
          %468 = sbr.rel (%p466) target = $region36
        $region35: #{tpu_custom_call.1} parent=11 // pred_region
          _
        $region36: #{tpu_custom_call.1} parent=11 // pred_fallthru
          _
        // Predicated region
        $region37: #{tpu_custom_call.1} parent=11 // pred_check
          %p469 = pneg %p233
        $region38: #{tpu_custom_call.1} parent=11 // pred_check_branch
          %471 = sbr.rel (%p469) target = $region40
        $region39: #{tpu_custom_call.1} parent=11 // pred_region
          %s473 = ssub.s32 1024, 1024
          %474 = vsyncadd [#allocation12], %s473
          %s475 = sshll.u32 [#allocation11], 4
          %s476 = int_to_ptr.vmem [resolvable:$true] %s475
          %481 = dma.hbm_to_vmem [thread:$0]  %s8, 1024, %s476, [#allocation12], 64, 64, 4
        $region40: #{tpu_custom_call.1} parent=11 // pred_fallthru
          _
        // Predicated region
        $region41: #{tpu_custom_call.1} parent=11 // pred_check
          %p482 = pneg %p254
        $region42: #{tpu_custom_call.1} parent=11 // pred_check_branch
          %484 = sbr.rel (%p482) target = $region44
        $region43: #{tpu_custom_call.1} parent=11 // pred_region
          _
        $region44: #{tpu_custom_call.1} parent=11 // pred_fallthru
          _
        // Predicated region
        $region45: #{tpu_custom_call.1} parent=11 // pred_check
          %p485 = pneg %p275
        $region46: #{tpu_custom_call.1} parent=11 // pred_check_branch
          %487 = sbr.rel (%p485) target = $region48
        $region47: #{tpu_custom_call.1} parent=11 // pred_region
          _
        $region48: #{tpu_custom_call.1} parent=11 // pred_fallthru
          _
        // Predicated region
        $region49: #{tpu_custom_call.1} parent=11 // pred_check
          %p488 = pneg %p296
        $region50: #{tpu_custom_call.1} parent=11 // pred_check_branch
          %490 = sbr.rel (%p488) target = $region52
        $region51: #{tpu_custom_call.1} parent=11 // pred_region
          _
        $region52: #{tpu_custom_call.1} parent=11 // pred_fallthru
          _
        // Predicated region
        $region53: #{tpu_custom_call.1} parent=11 // pred_check
          %p491 = pneg %p317
        $region54: #{tpu_custom_call.1} parent=11 // pred_check_branch
          %493 = sbr.rel (%p491) target = $region56
        $region55: #{tpu_custom_call.1} parent=11 // pred_region
          %s495 = ssub.s32 2048, 2048
          %496 = vsyncadd [#allocation12], %s495
          %s497 = sshll.u32 [#allocation13], 4
          %s498 = int_to_ptr.vmem [resolvable:$true] %s497
          %503 = dma.hbm_to_vmem [thread:$0]  %s12, 2048, %s498, [#allocation12], 128, 128, 8
        $region56: #{tpu_custom_call.1} parent=11 // pred_fallthru
          _
        // Predicated region
        $region57: #{tpu_custom_call.1} parent=11 // pred_check
          %p504 = pneg %p338
        $region58: #{tpu_custom_call.1} parent=11 // pred_check_branch
          %506 = sbr.rel (%p504) target = $region60
        $region59: #{tpu_custom_call.1} parent=11 // pred_region
          _
        $region60: #{tpu_custom_call.1} parent=11 // pred_fallthru
          _
        // Predicated region
        $region61: #{tpu_custom_call.1} parent=11 // pred_check
          %p507 = pneg %p359
        $region62: #{tpu_custom_call.1} parent=11 // pred_check_branch
          %509 = sbr.rel (%p507) target = $region64
        $region63: #{tpu_custom_call.1} parent=11 // pred_region
          %s511 = ssub.s32 2048, 2048
          %512 = vsyncadd [#allocation15], %s511
          %s513 = sshll.u32 [#allocation14], 4
          %s514 = int_to_ptr.vmem [resolvable:$true] %s513
          %519 = dma.hbm_to_vmem [thread:$0]  %s14, 2048, %s514, [#allocation15], 64, 64, 4
        $region64: #{tpu_custom_call.1} parent=11 // pred_fallthru
          _
        // Predicated region
        $region65: #{tpu_custom_call.1} parent=11 // pred_check
          %p520 = pneg %p380
        $region66: #{tpu_custom_call.1} parent=11 // pred_check_branch
          %522 = sbr.rel (%p520) target = $region68
        $region67: #{tpu_custom_call.1} parent=11 // pred_region
          _
        $region68: #{tpu_custom_call.1} parent=11 // pred_fallthru
          _
      $region12: #{tpu_custom_call.1} parent=5 // pred_fallthru
        _
      %p523 = scmp.lt.s32.totalorder %s34, 2
      // Predicated region
      $region69: #{tpu_custom_call.1} parent=5 // pred_check
        %p524 = pneg %p523
      $region70: #{tpu_custom_call.1} parent=5 // pred_check_branch
        %526 = sbr.rel (%p524) target = $region72
      $region71: #{tpu_custom_call.1} parent=5 // pred_region
        // Predicated region
        $region73: #{tpu_custom_call.1} parent=71 // pred_check
          %p527 = pneg %p54
        $region74: #{tpu_custom_call.1} parent=71 // pred_check_branch
          %529 = sbr.rel (%p527) target = $region76
        $region75: #{tpu_custom_call.1} parent=71 // pred_region
          %s530 = sand.u32 %s44, 1
          %s531 = scalar_lea.sflag [#allocation3], %s530
          %s532 = sand.u32 %s44, 1
          %s533 = smul.addr %s532, 4
          %s534 = scalar_lea.vmem [#allocation2], %s533
          %s536 = ssub.s32 64, 64
          %537 = vsyncadd %s531, %s536
          %s538 = smul.addr %s34, 64
          %s539 = scalar_lea.hbm %s0, %s538
          %s541 = sshll.u32 %s534, 4
          %s542 = int_to_ptr.vmem [resolvable:$true] %s541
          %544 = dma.hbm_to_vmem [thread:$0]  %s539, 64, %s542, %s531
        $region76: #{tpu_custom_call.1} parent=71 // pred_fallthru
          _
        // Predicated region
        $region77: #{tpu_custom_call.1} parent=71 // pred_check
          %p545 = pneg %p80
        $region78: #{tpu_custom_call.1} parent=71 // pred_check_branch
          %547 = sbr.rel (%p545) target = $region80
        $region79: #{tpu_custom_call.1} parent=71 // pred_region
          %s548 = sand.u32 %s34, 1
          %s549 = scalar_lea.sflag [#allocation6], %s548
          %s550 = sand.u32 %s70, 1
          %s551 = smul.addr %s550, 8
          %s552 = scalar_lea.vmem [#allocation5], %s551
          %s554 = ssub.s32 128, 128
          %555 = vsyncadd %s549, %s554
          %s556 = smul.addr %s34, 2
          %s557 = smul.addr %s556, 64
          %s558 = scalar_lea.hbm %s1, %s557
          %s559 = sshll.u32 %s552, 4
          %s560 = int_to_ptr.vmem [resolvable:$true] %s559
          %565 = dma.hbm_to_vmem [thread:$0]  %s558, 128, %s560, %s549, 64, 64, 4
        $region80: #{tpu_custom_call.1} parent=71 // pred_fallthru
          _
      $region72: #{tpu_custom_call.1} parent=5 // pred_fallthru
        _
      %p566 = scmp.le.s32.totalorder 1, %s34
      %p567 = scmp.lt.s32.totalorder %s34, 3
      %p568 = pnand %p566, %p567
      %p569 = pneg %p568
      // Predicated region
      $region81: #{tpu_custom_call.1} parent=5 // pred_check
        _
      $region82: #{tpu_custom_call.1} parent=5 // pred_check_branch
        %571 = sbr.rel (%p568) target = $region84
      $region83: #{tpu_custom_call.1} parent=5 // pred_region
        %s572 = ssub.s32 %s34, 1
        %s573 = sand.u32 %s47, 1
        %s574 = scalar_lea.sflag [#allocation3], %s573
        %s575 = sand.u32 %s47, 1
        %s576 = smul.addr %s575, 4
        %s577 = scalar_lea.vmem [#allocation2], %s576
        // Predicated region
        $region85: #{tpu_custom_call.1} parent=83 // pred_check
          %p578 = pneg %p60
        $region86: #{tpu_custom_call.1} parent=83 // pred_check_branch
          %580 = sbr.rel (%p578) target = $region88
        $region87: #{tpu_custom_call.1} parent=83 // pred_region
          %581 = dma.done %s574, 64
        $region88: #{tpu_custom_call.1} parent=83 // pred_fallthru
          _
        %s582 = sand.u32 %s39, 1
        %s583 = scalar_lea.sflag [#allocation6], %s582
        %s584 = sand.u32 %s73, 1
        %s585 = smul.addr %s584, 8
        %s586 = scalar_lea.vmem [#allocation5], %s585
        // Predicated region
        $region89: #{tpu_custom_call.1} parent=83 // pred_check
          %p587 = pneg %p86
        $region90: #{tpu_custom_call.1} parent=83 // pred_check_branch
          %589 = sbr.rel (%p587) target = $region92
        $region91: #{tpu_custom_call.1} parent=83 // pred_region
          %590 = dma.done %s583, 128
        $region92: #{tpu_custom_call.1} parent=83 // pred_fallthru
          _
        // Predicated region
        $region93: #{tpu_custom_call.1} parent=83 // pred_check
          %p591 = pneg %p107
        $region94: #{tpu_custom_call.1} parent=83 // pred_check_branch
          %593 = sbr.rel (%p591) target = $region96
        $region95: #{tpu_custom_call.1} parent=83 // pred_region
          %594 = dma.done [#allocation6], 1024
        $region96: #{tpu_custom_call.1} parent=83 // pred_fallthru
          _
        // Predicated region
        $region97: #{tpu_custom_call.1} parent=83 // pred_check
          %p595 = pneg %p128
        $region98: #{tpu_custom_call.1} parent=83 // pred_check_branch
          %597 = sbr.rel (%p595) target = $region100
        $region99: #{tpu_custom_call.1} parent=83 // pred_region
          %598 = dma.done [#allocation9], 1024
        $region100: #{tpu_custom_call.1} parent=83 // pred_fallthru
          _
        // Predicated region
        $region101: #{tpu_custom_call.1} parent=83 // pred_check
          %p599 = pneg %p149
        $region102: #{tpu_custom_call.1} parent=83 // pred_check_branch
          %601 = sbr.rel (%p599) target = $region104
        $region103: #{tpu_custom_call.1} parent=83 // pred_region
          %602 = dma.done [#allocation9], 1024
        $region104: #{tpu_custom_call.1} parent=83 // pred_fallthru
          _
        // Predicated region
        $region105: #{tpu_custom_call.1} parent=83 // pred_check
          %p603 = pneg %p233
        $region106: #{tpu_custom_call.1} parent=83 // pred_check_branch
          %605 = sbr.rel (%p603) target = $region108
        $region107: #{tpu_custom_call.1} parent=83 // pred_region
          %606 = dma.done [#allocation12], 1024
        $region108: #{tpu_custom_call.1} parent=83 // pred_fallthru
          _
        // Predicated region
        $region109: #{tpu_custom_call.1} parent=83 // pred_check
          %p607 = pneg %p317
        $region110: #{tpu_custom_call.1} parent=83 // pred_check_branch
          %609 = sbr.rel (%p607) target = $region112
        $region111: #{tpu_custom_call.1} parent=83 // pred_region
          %610 = dma.done [#allocation12], 2048
        $region112: #{tpu_custom_call.1} parent=83 // pred_fallthru
          _
        // Predicated region
        $region113: #{tpu_custom_call.1} parent=83 // pred_check
          %p611 = pneg %p359
        $region114: #{tpu_custom_call.1} parent=83 // pred_check_branch
          %613 = sbr.rel (%p611) target = $region116
        $region115: #{tpu_custom_call.1} parent=83 // pred_region
          %614 = dma.done [#allocation15], 2048
        $region116: #{tpu_custom_call.1} parent=83 // pred_fallthru
          _
        %s615 = sand.u32 %s47, 1
        %s616 = scalar_lea.sflag [#allocation3], %s615
        %s617 = sand.u32 %s47, 1
        %s618 = smul.addr %s617, 4
        %s619 = scalar_lea.vmem [#allocation2], %s618
        %p620 = pneg %p60
        %p621 = pneg %p57
        %s622 = sand.u32 %s39, 1
        %s623 = scalar_lea.sflag [#allocation6], %s622
        %s624 = sand.u32 %s73, 1
        %s625 = smul.addr %s624, 8
        %s626 = scalar_lea.vmem [#allocation5], %s625
        %p627 = pneg %p86
        %p628 = pneg %p83
        %p629 = pneg %p107
        %p630 = pneg %p104
        %p631 = pneg %p128
        %p632 = pneg %p125
        %p633 = pneg %p149
        %p634 = pneg %p146
        %p635 = pneg %p170
        %p636 = pneg %p167
        %p637 = pneg %p191
        %p638 = pneg %p188
        %p639 = pneg %p212
        %p640 = pneg %p209
        %p641 = pneg %p233
        %p642 = pneg %p230
        %p643 = pneg %p254
        %p644 = pneg %p251
        %p645 = pneg %p275
        %p646 = pneg %p272
        %p647 = pneg %p296
        %p648 = pneg %p293
        %p649 = pneg %p317
        %p650 = pneg %p314
        %p651 = pneg %p338
        %p652 = pneg %p335
        %p653 = pneg %p359
        %p654 = pneg %p356
        %p655 = pneg %p380
        %p656 = pneg %p377
        %p657 = pneg %p406
        %p658 = pneg %p403
        %s659 = sand.u32 %s393, 1
        %s660 = scalar_lea.sflag [#allocation4], %s659
        %s661 = sand.u32 %s393, 1
        %s662 = smul.addr %s661, 4
        %s663 = scalar_lea.vmem [#allocation16], %s662
        %v665 = vld [vmem:[%s577] sm:$0xf]
        %v666 = vld [vmem:[%s586] sm:$0xf]
        %v667 = vld [vmem:[%s586 + $0x4] sm:$0xf]
        %v668 = vld [vmem:[#allocation7] sm:$0xf]
        %v669 = vld [vmem:[#allocation7 + $0x4] sm:$0xf]
        %v670 = vld [vmem:[#allocation7 + $0x8] sm:$0xf]
        %v671 = vld [vmem:[#allocation7 + $0xc] sm:$0xf]
        %v672 = vld [vmem:[#allocation7 + $0x10] sm:$0xf]
        %v673 = vld [vmem:[#allocation7 + $0x14] sm:$0xf]
        %v674 = vld [vmem:[#allocation7 + $0x18] sm:$0xf]
        %v675 = vld [vmem:[#allocation7 + $0x1c] sm:$0xf]
        %v676 = vld [vmem:[#allocation7 + $0x20] sm:$0xf]
        %v677 = vld [vmem:[#allocation7 + $0x24] sm:$0xf]
        %v678 = vld [vmem:[#allocation7 + $0x28] sm:$0xf]
        %v679 = vld [vmem:[#allocation7 + $0x2c] sm:$0xf]
        %v680 = vld [vmem:[#allocation7 + $0x30] sm:$0xf]
        %v681 = vld [vmem:[#allocation7 + $0x34] sm:$0xf]
        %v682 = vld [vmem:[#allocation7 + $0x38] sm:$0xf]
        %v683 = vld [vmem:[#allocation7 + $0x3c] sm:$0xf]
        %v684 = vld [vmem:[#allocation8] sm:$0xf]
        %v685 = vld [vmem:[#allocation8 + $0x4] sm:$0xf]
        %v686 = vld [vmem:[#allocation8 + $0x8] sm:$0xf]
        %v687 = vld [vmem:[#allocation8 + $0xc] sm:$0xf]
        %v688 = vld [vmem:[#allocation8 + $0x10] sm:$0xf]
        %v689 = vld [vmem:[#allocation8 + $0x14] sm:$0xf]
        %v690 = vld [vmem:[#allocation8 + $0x18] sm:$0xf]
        %v691 = vld [vmem:[#allocation8 + $0x1c] sm:$0xf]
        %v692 = vld [vmem:[#allocation8 + $0x20] sm:$0xf]
        %v693 = vld [vmem:[#allocation8 + $0x24] sm:$0xf]
        %v694 = vld [vmem:[#allocation8 + $0x28] sm:$0xf]
        %v695 = vld [vmem:[#allocation8 + $0x2c] sm:$0xf]
        %v696 = vld [vmem:[#allocation8 + $0x30] sm:$0xf]
        %v697 = vld [vmem:[#allocation8 + $0x34] sm:$0xf]
        %v698 = vld [vmem:[#allocation8 + $0x38] sm:$0xf]
        %v699 = vld [vmem:[#allocation8 + $0x3c] sm:$0xf]
        %v700 = vld [vmem:[#allocation10] sm:$0xf]
        %v701 = vld [vmem:[#allocation10 + $0x4] sm:$0xf]
        %v702 = vld [vmem:[#allocation10 + $0x8] sm:$0xf]
        %v703 = vld [vmem:[#allocation10 + $0xc] sm:$0xf]
        %v704 = vld [vmem:[#allocation10 + $0x10] sm:$0xf]
        %v705 = vld [vmem:[#allocation10 + $0x14] sm:$0xf]
        %v706 = vld [vmem:[#allocation10 + $0x18] sm:$0xf]
        %v707 = vld [vmem:[#allocation10 + $0x1c] sm:$0xf]
        %v708 = vld [vmem:[#allocation10 + $0x20] sm:$0xf]
        %v709 = vld [vmem:[#allocation10 + $0x24] sm:$0xf]
        %v710 = vld [vmem:[#allocation10 + $0x28] sm:$0xf]
        %v711 = vld [vmem:[#allocation10 + $0x2c] sm:$0xf]
        %v712 = vld [vmem:[#allocation10 + $0x30] sm:$0xf]
        %v713 = vld [vmem:[#allocation10 + $0x34] sm:$0xf]
        %v714 = vld [vmem:[#allocation10 + $0x38] sm:$0xf]
        %v715 = vld [vmem:[#allocation10 + $0x3c] sm:$0xf]
        %v716 = vld [vmem:[%s5] sm:$0x1]
        %v717 = vld [vmem:[%s6] sm:$0x1]
        %v718 = vld [vmem:[%s7] sm:$0x1]
        %v719 = vld [vmem:[#allocation11] sm:$0xf]
        %v720 = vld [vmem:[#allocation11 + $0x4] sm:$0xf]
        %v721 = vld [vmem:[#allocation11 + $0x8] sm:$0xf]
        %v722 = vld [vmem:[#allocation11 + $0xc] sm:$0xf]
        %v723 = vld [vmem:[#allocation11 + $0x10] sm:$0xf]
        %v724 = vld [vmem:[#allocation11 + $0x14] sm:$0xf]
        %v725 = vld [vmem:[#allocation11 + $0x18] sm:$0xf]
        %v726 = vld [vmem:[#allocation11 + $0x1c] sm:$0xf]
        %v727 = vld [vmem:[#allocation11 + $0x20] sm:$0xf]
        %v728 = vld [vmem:[#allocation11 + $0x24] sm:$0xf]
        %v729 = vld [vmem:[#allocation11 + $0x28] sm:$0xf]
        %v730 = vld [vmem:[#allocation11 + $0x2c] sm:$0xf]
        %v731 = vld [vmem:[#allocation11 + $0x30] sm:$0xf]
        %v732 = vld [vmem:[#allocation11 + $0x34] sm:$0xf]
        %v733 = vld [vmem:[#allocation11 + $0x38] sm:$0xf]
        %v734 = vld [vmem:[#allocation11 + $0x3c] sm:$0xf]
        %v735 = vld [vmem:[%s9] sm:$0x1]
        %v736 = vld [vmem:[%s10] sm:$0x1]
        %v737 = vld [vmem:[%s11] sm:$0x1]
        %v739 = vlaneseq
        %v740 = vshrl.u32 %v739, 7
        %v741 = vsub.s32 0, %v740
        %v742 = vrot.slane %v716, %v741
        %v760 = vunpack.c.l.b16 %v668
        %v761 = vunpack.c.l.b16 %v669
        %v762 = vunpack.c.l.b16 %v670
        %v763 = vunpack.c.l.b16 %v671
        %v764 = vunpack.c.l.b16 %v672
        %v765 = vunpack.c.l.b16 %v673
        %v766 = vunpack.c.l.b16 %v674
        %v767 = vunpack.c.l.b16 %v675
        %v768 = vunpack.c.l.b16 %v676
        %v769 = vunpack.c.l.b16 %v677
        %v770 = vunpack.c.l.b16 %v678
        %v771 = vunpack.c.l.b16 %v679
        %v772 = vunpack.c.l.b16 %v680
        %v773 = vunpack.c.l.b16 %v681
        %v774 = vunpack.c.l.b16 %v682
        %v775 = vunpack.c.l.b16 %v683
        %v776 = vpack.c.b16 %v761, %v760
        %v777 = vpack.c.b16 %v763, %v762
        %v778 = vpack.c.b16 %v765, %v764
        %v779 = vpack.c.b16 %v767, %v766
        %v780 = vpack.c.b16 %v769, %v768
        %v781 = vpack.c.b16 %v771, %v770
        %v782 = vpack.c.b16 %v773, %v772
        %v783 = vpack.c.b16 %v775, %v774
        %792 = vmatprep.subr.bf16.mxu0 0
        %793 = vmatpush1.bf16.msra.mxu0 %v783
        %794 = vmatprep.subr.bf16.mxu0 0
        %795 = vmatpush1.bf16.msra.mxu0 %v782
        %796 = vmatprep.subr.bf16.mxu0 0
        %797 = vmatpush1.bf16.msra.mxu0 %v781
        %798 = vmatprep.subr.bf16.mxu0 0
        %799 = vmatpush1.bf16.msra.mxu0 %v780
        %800 = vmatprep.subr.bf16.mxu0 0
        %801 = vmatpush1.bf16.msra.mxu0 %v779
        %802 = vmatprep.subr.bf16.mxu0 0
        %803 = vmatpush1.bf16.msra.mxu0 %v778
        %804 = vmatprep.subr.bf16.mxu0 0
        %805 = vmatpush1.bf16.msra.mxu0 %v777
        %806 = vmatprep.subr.bf16.mxu0 0
        %807 = vmatpush1.bf16.msra.mxu0 %v776
        %808 = vmatprep.subr.bf16.mxu0 0
        %809 = vmatpush2.bf16.msra.mxu0 0
        %810 = vmatprep.subr.bf16.mxu0 0
        %811 = vmatpush2.bf16.msra.mxu0 0
        %812 = vmatprep.subr.bf16.mxu0 0
        %813 = vmatpush2.bf16.msra.mxu0 0
        %814 = vmatprep.subr.bf16.mxu0 0
        %815 = vmatpush2.bf16.msra.mxu0 0
        %816 = vmatprep.subr.bf16.mxu0 0
        %817 = vmatpush2.bf16.msra.mxu0 0
        %818 = vmatprep.subr.bf16.mxu0 0
        %819 = vmatpush2.bf16.msra.mxu0 0
        %820 = vmatprep.subr.bf16.mxu0 0
        %821 = vmatpush2.bf16.msra.mxu0 0
        %822 = vmatprep.subr.bf16.mxu0 0
        %823 = vmatpush2.bf16.msra.mxu0 0
        %824 = vmatprep.mubr.bf16.mxu0 0
        %825 = vmatmul.mubr.bf16.gmra.mxu0 %v665
        %v826 = vpop.f32.mrf.mxu0
        %v827 = vadd.f32 %v742, %v826
        %v828 = vpop.f32.mrf.mxu0
        %v829 = vpop.f32.mrf.mxu0
        %v830 = vpop.f32.mrf.mxu0
        %831 = vdwg.mxu0
        %v832 = vpack.c.bf16 %v827, %v827
        %v834 = vlaneseq
        %v835 = vshrl.u32 %v834, 7
        %v836 = vsub.s32 0, %v835
        %v837 = vrot.slane %v717, %v836
        %v855 = vunpack.c.l.b16 %v684
        %v856 = vunpack.c.l.b16 %v685
        %v857 = vunpack.c.l.b16 %v686
        %v858 = vunpack.c.l.b16 %v687
        %v859 = vunpack.c.l.b16 %v688
        %v860 = vunpack.c.l.b16 %v689
        %v861 = vunpack.c.l.b16 %v690
        %v862 = vunpack.c.l.b16 %v691
        %v863 = vunpack.c.l.b16 %v692
        %v864 = vunpack.c.l.b16 %v693
        %v865 = vunpack.c.l.b16 %v694
        %v866 = vunpack.c.l.b16 %v695
        %v867 = vunpack.c.l.b16 %v696
        %v868 = vunpack.c.l.b16 %v697
        %v869 = vunpack.c.l.b16 %v698
        %v870 = vunpack.c.l.b16 %v699
        %v871 = vpack.c.b16 %v856, %v855
        %v872 = vpack.c.b16 %v858, %v857
        %v873 = vpack.c.b16 %v860, %v859
        %v874 = vpack.c.b16 %v862, %v861
        %v875 = vpack.c.b16 %v864, %v863
        %v876 = vpack.c.b16 %v866, %v865
        %v877 = vpack.c.b16 %v868, %v867
        %v878 = vpack.c.b16 %v870, %v869
        %887 = vmatprep.subr.bf16.mxu0 0
        %888 = vmatpush1.bf16.msra.mxu0 %v878
        %889 = vmatprep.subr.bf16.mxu0 0
        %890 = vmatpush1.bf16.msra.mxu0 %v877
        %891 = vmatprep.subr.bf16.mxu0 0
        %892 = vmatpush1.bf16.msra.mxu0 %v876
        %893 = vmatprep.subr.bf16.mxu0 0
        %894 = vmatpush1.bf16.msra.mxu0 %v875
        %895 = vmatprep.subr.bf16.mxu0 0
        %896 = vmatpush1.bf16.msra.mxu0 %v874
        %897 = vmatprep.subr.bf16.mxu0 0
        %898 = vmatpush1.bf16.msra.mxu0 %v873
        %899 = vmatprep.subr.bf16.mxu0 0
        %900 = vmatpush1.bf16.msra.mxu0 %v872
        %901 = vmatprep.subr.bf16.mxu0 0
        %902 = vmatpush1.bf16.msra.mxu0 %v871
        %903 = vmatprep.subr.bf16.mxu0 0
        %904 = vmatpush2.bf16.msra.mxu0 0
        %905 = vmatprep.subr.bf16.mxu0 0
        %906 = vmatpush2.bf16.msra.mxu0 0
        %907 = vmatprep.subr.bf16.mxu0 0
        %908 = vmatpush2.bf16.msra.mxu0 0
        %909 = vmatprep.subr.bf16.mxu0 0
        %910 = vmatpush2.bf16.msra.mxu0 0
        %911 = vmatprep.subr.bf16.mxu0 0
        %912 = vmatpush2.bf16.msra.mxu0 0
        %913 = vmatprep.subr.bf16.mxu0 0
        %914 = vmatpush2.bf16.msra.mxu0 0
        %915 = vmatprep.subr.bf16.mxu0 0
        %916 = vmatpush2.bf16.msra.mxu0 0
        %917 = vmatprep.subr.bf16.mxu0 0
        %918 = vmatpush2.bf16.msra.mxu0 0
        %919 = vmatprep.mubr.bf16.mxu0 0
        %920 = vmatmul.mubr.bf16.gmra.mxu0 %v665
        %v921 = vpop.f32.mrf.mxu0
        %v922 = vadd.f32 %v837, %v921
        %v923 = vpop.f32.mrf.mxu0
        %v924 = vpop.f32.mrf.mxu0
        %v925 = vpop.f32.mrf.mxu0
        %926 = vdwg.mxu0
        %v927 = vpack.c.bf16 %v922, %v922
        %v929 = vlaneseq
        %v930 = vshrl.u32 %v929, 7
        %v931 = vsub.s32 0, %v930
        %v932 = vrot.slane %v718, %v931
        %v950 = vunpack.c.l.b16 %v700
        %v951 = vunpack.c.l.b16 %v701
        %v952 = vunpack.c.l.b16 %v702
        %v953 = vunpack.c.l.b16 %v703
        %v954 = vunpack.c.l.b16 %v704
        %v955 = vunpack.c.l.b16 %v705
        %v956 = vunpack.c.l.b16 %v706
        %v957 = vunpack.c.l.b16 %v707
        %v958 = vunpack.c.l.b16 %v708
        %v959 = vunpack.c.l.b16 %v709
        %v960 = vunpack.c.l.b16 %v710
        %v961 = vunpack.c.l.b16 %v711
        %v962 = vunpack.c.l.b16 %v712
        %v963 = vunpack.c.l.b16 %v713
        %v964 = vunpack.c.l.b16 %v714
        %v965 = vunpack.c.l.b16 %v715
        %v966 = vpack.c.b16 %v951, %v950
        %v967 = vpack.c.b16 %v953, %v952
        %v968 = vpack.c.b16 %v955, %v954
        %v969 = vpack.c.b16 %v957, %v956
        %v970 = vpack.c.b16 %v959, %v958
        %v971 = vpack.c.b16 %v961, %v960
        %v972 = vpack.c.b16 %v963, %v962
        %v973 = vpack.c.b16 %v965, %v964
        %982 = vmatprep.subr.bf16.mxu0 0
        %983 = vmatpush1.bf16.msra.mxu0 %v973
        %984 = vmatprep.subr.bf16.mxu0 0
        %985 = vmatpush1.bf16.msra.mxu0 %v972
        %986 = vmatprep.subr.bf16.mxu0 0
        %987 = vmatpush1.bf16.msra.mxu0 %v971
        %988 = vmatprep.subr.bf16.mxu0 0
        %989 = vmatpush1.bf16.msra.mxu0 %v970
        %990 = vmatprep.subr.bf16.mxu0 0
        %991 = vmatpush1.bf16.msra.mxu0 %v969
        %992 = vmatprep.subr.bf16.mxu0 0
        %993 = vmatpush1.bf16.msra.mxu0 %v968
        %994 = vmatprep.subr.bf16.mxu0 0
        %995 = vmatpush1.bf16.msra.mxu0 %v967
        %996 = vmatprep.subr.bf16.mxu0 0
        %997 = vmatpush1.bf16.msra.mxu0 %v966
        %998 = vmatprep.subr.bf16.mxu0 0
        %999 = vmatpush2.bf16.msra.mxu0 0
        %1000 = vmatprep.subr.bf16.mxu0 0
        %1001 = vmatpush2.bf16.msra.mxu0 0
        %1002 = vmatprep.subr.bf16.mxu0 0
        %1003 = vmatpush2.bf16.msra.mxu0 0
        %1004 = vmatprep.subr.bf16.mxu0 0
        %1005 = vmatpush2.bf16.msra.mxu0 0
        %1006 = vmatprep.subr.bf16.mxu0 0
        %1007 = vmatpush2.bf16.msra.mxu0 0
        %1008 = vmatprep.subr.bf16.mxu0 0
        %1009 = vmatpush2.bf16.msra.mxu0 0
        %1010 = vmatprep.subr.bf16.mxu0 0
        %1011 = vmatpush2.bf16.msra.mxu0 0
        %1012 = vmatprep.subr.bf16.mxu0 0
        %1013 = vmatpush2.bf16.msra.mxu0 0
        %1014 = vmatprep.mubr.bf16.mxu0 0
        %1015 = vmatmul.mubr.bf16.gmra.mxu0 %v665
        %v1016 = vpop.f32.mrf.mxu0
        %v1017 = vadd.f32 %v932, %v1016
        %v1018 = vpop.f32.mrf.mxu0
        %v1019 = vpop.f32.mrf.mxu0
        %v1020 = vpop.f32.mrf.mxu0
        %1021 = vdwg.mxu0
        %v1022 = vpack.c.bf16 %v1017, %v1017
        %vm1023 = vcmask 261120
        %v1025 = vsel %vm1023, %v832, 0
        %v1028 = vsel %vm1023, %v927, 0
        %1030 = vmatprep.subr.bf16.mxu0 0
        %1031 = vmatpush1.bf16.xpose.msra.mxu0 0
        %1032 = vmatprep.subr.bf16.mxu0 0
        %1033 = vmatpush1.bf16.xpose.msra.mxu0 0
        %1034 = vmatprep.subr.bf16.mxu0 0
        %1035 = vmatpush1.bf16.xpose.msra.mxu0 0
        %1036 = vmatprep.subr.bf16.mxu0 0
        %1037 = vmatpush1.bf16.xpose.msra.mxu0 0
        %1038 = vmatprep.subr.bf16.mxu0 0
        %1039 = vmatpush1.bf16.xpose.msra.mxu0 0
        %1040 = vmatprep.subr.bf16.mxu0 0
        %1041 = vmatpush1.bf16.xpose.msra.mxu0 0
        %1042 = vmatprep.subr.bf16.mxu0 0
        %1043 = vmatpush1.bf16.xpose.msra.mxu0 0
        %1044 = vmatprep.subr.bf16.mxu0 0
        %1045 = vmatpush1.bf16.xpose.msra.mxu0 %v1028
        %1046 = vmatprep.subr.bf16.mxu0 0
        %1047 = vmatpush2.bf16.xpose.msra.mxu0 0
        %1048 = vmatprep.subr.bf16.mxu0 0
        %1049 = vmatpush2.bf16.xpose.msra.mxu0 0
        %1050 = vmatprep.subr.bf16.mxu0 0
        %1051 = vmatpush2.bf16.xpose.msra.mxu0 0
        %1052 = vmatprep.subr.bf16.mxu0 0
        %1053 = vmatpush2.bf16.xpose.msra.mxu0 0
        %1054 = vmatprep.subr.bf16.mxu0 0
        %1055 = vmatpush2.bf16.xpose.msra.mxu0 0
        %1056 = vmatprep.subr.bf16.mxu0 0
        %1057 = vmatpush2.bf16.xpose.msra.mxu0 0
        %1058 = vmatprep.subr.bf16.mxu0 0
        %1059 = vmatpush2.bf16.xpose.msra.mxu0 0
        %1060 = vmatprep.subr.bf16.mxu0 0
        %1061 = vmatpush2.bf16.xpose.msra.mxu0 0
        %1062 = vmatprep.mubr.bf16.mxu0 0
        %1063 = vmatmul.mubr.bf16.gmra.mxu0 %v1025
        %v1064 = vpop.f32.mrf.mxu0
        %v1065 = vadd.f32 0.0, %v1064
        %v1066 = vpop.f32.mrf.mxu0
        %v1067 = vpop.f32.mrf.mxu0
        %v1068 = vpop.f32.mrf.mxu0
        %1069 = vdwg.mxu0
        %vm1070 = vcmask 64512
        %v1071 = vsel %vm1070, %v1065, -inf
        %1072 = vmax.xlane.f32.xlu0 %v1071
        %v1073 = vpop.xlane.xlu0 %1072
        %v1074 = vsub.f32 %v1065, %v1073
        %v1075 = vmul.f32 %v1074, 1.442695
        %v1076 = vpow.pop %v1075
        %v1077 = vsel %vm1070, %v1076, 0.0
        %1078 = vadd.xlane.f32.xlu0 %v1077
        %v1079 = vpop.xlane.xlu0 %1078
        %v1080 = vrcp.pop %v1079
        %v1081 = vmul.f32 %v1076, %v1080
        %v1082 = vpack.c.bf16 %v1081, %v1081
        %v1084 = vsel %vm1070, %v1082, 0
        %vm1086 = vcmask 1043456
        %v1088 = vsel %vm1086, %v1022, 0
        %1090 = vmatprep.subr.bf16.mxu0 0
        %1091 = vmatpush1.bf16.msra.mxu0 0
        %1092 = vmatprep.subr.bf16.mxu0 0
        %1093 = vmatpush1.bf16.msra.mxu0 0
        %1094 = vmatprep.subr.bf16.mxu0 0
        %1095 = vmatpush1.bf16.msra.mxu0 0
        %1096 = vmatprep.subr.bf16.mxu0 0
        %1097 = vmatpush1.bf16.msra.mxu0 0
        %1098 = vmatprep.subr.bf16.mxu0 0
        %1099 = vmatpush1.bf16.msra.mxu0 0
        %1100 = vmatprep.subr.bf16.mxu0 0
        %1101 = vmatpush1.bf16.msra.mxu0 0
        %1102 = vmatprep.subr.bf16.mxu0 0
        %1103 = vmatpush1.bf16.msra.mxu0 0
        %1104 = vmatprep.subr.bf16.mxu0 0
        %1105 = vmatpush1.bf16.msra.mxu0 %v1088
        %1106 = vmatprep.subr.bf16.mxu0 0
        %1107 = vmatpush2.bf16.msra.mxu0 0
        %1108 = vmatprep.subr.bf16.mxu0 0
        %1109 = vmatpush2.bf16.msra.mxu0 0
        %1110 = vmatprep.subr.bf16.mxu0 0
        %1111 = vmatpush2.bf16.msra.mxu0 0
        %1112 = vmatprep.subr.bf16.mxu0 0
        %1113 = vmatpush2.bf16.msra.mxu0 0
        %1114 = vmatprep.subr.bf16.mxu0 0
        %1115 = vmatpush2.bf16.msra.mxu0 0
        %1116 = vmatprep.subr.bf16.mxu0 0
        %1117 = vmatpush2.bf16.msra.mxu0 0
        %1118 = vmatprep.subr.bf16.mxu0 0
        %1119 = vmatpush2.bf16.msra.mxu0 0
        %1120 = vmatprep.subr.bf16.mxu0 0
        %1121 = vmatpush2.bf16.msra.mxu0 0
        %1122 = vmatprep.mubr.bf16.mxu0 0
        %1123 = vmatmul.mubr.bf16.gmra.mxu0 %v1084
        %v1124 = vpop.f32.mrf.mxu0
        %v1125 = vadd.f32 0.0, %v1124
        %v1126 = vpop.f32.mrf.mxu0
        %v1127 = vpop.f32.mrf.mxu0
        %v1128 = vpop.f32.mrf.mxu0
        %1129 = vdwg.mxu0
        %1131 = vrot.lane.b32.xlu0 %v832, 96
        %v1132 = vpop.permute.xlu0 %1131
        %1134 = vrot.lane.b32.xlu0 %v927, 96
        %v1135 = vpop.permute.xlu0 %1134
        %v1137 = vsel %vm1023, %v1132, 0
        %v1140 = vsel %vm1023, %v1135, 0
        %1142 = vmatprep.subr.bf16.mxu0 0
        %1143 = vmatpush1.bf16.xpose.msra.mxu0 0
        %1144 = vmatprep.subr.bf16.mxu0 0
        %1145 = vmatpush1.bf16.xpose.msra.mxu0 0
        %1146 = vmatprep.subr.bf16.mxu0 0
        %1147 = vmatpush1.bf16.xpose.msra.mxu0 0
        %1148 = vmatprep.subr.bf16.mxu0 0
        %1149 = vmatpush1.bf16.xpose.msra.mxu0 0
        %1150 = vmatprep.subr.bf16.mxu0 0
        %1151 = vmatpush1.bf16.xpose.msra.mxu0 0
        %1152 = vmatprep.subr.bf16.mxu0 0
        %1153 = vmatpush1.bf16.xpose.msra.mxu0 0
        %1154 = vmatprep.subr.bf16.mxu0 0
        %1155 = vmatpush1.bf16.xpose.msra.mxu0 0
        %1156 = vmatprep.subr.bf16.mxu0 0
        %1157 = vmatpush1.bf16.xpose.msra.mxu0 %v1140
        %1158 = vmatprep.subr.bf16.mxu0 0
        %1159 = vmatpush2.bf16.xpose.msra.mxu0 0
        %1160 = vmatprep.subr.bf16.mxu0 0
        %1161 = vmatpush2.bf16.xpose.msra.mxu0 0
        %1162 = vmatprep.subr.bf16.mxu0 0
        %1163 = vmatpush2.bf16.xpose.msra.mxu0 0
        %1164 = vmatprep.subr.bf16.mxu0 0
        %1165 = vmatpush2.bf16.xpose.msra.mxu0 0
        %1166 = vmatprep.subr.bf16.mxu0 0
        %1167 = vmatpush2.bf16.xpose.msra.mxu0 0
        %1168 = vmatprep.subr.bf16.mxu0 0
        %1169 = vmatpush2.bf16.xpose.msra.mxu0 0
        %1170 = vmatprep.subr.bf16.mxu0 0
        %1171 = vmatpush2.bf16.xpose.msra.mxu0 0
        %1172 = vmatprep.subr.bf16.mxu0 0
        %1173 = vmatpush2.bf16.xpose.msra.mxu0 0
        %1174 = vmatprep.mubr.bf16.mxu0 0
        %1175 = vmatmul.mubr.bf16.gmra.mxu0 %v1137
        %v1176 = vpop.f32.mrf.mxu0
        %v1177 = vadd.f32 0.0, %v1176
        %v1178 = vpop.f32.mrf.mxu0
        %v1179 = vpop.f32.mrf.mxu0
        %v1180 = vpop.f32.mrf.mxu0
        %1181 = vdwg.mxu0
        %v1182 = vsel %vm1070, %v1177, -inf
        %1183 = vmax.xlane.f32.xlu0 %v1182
        %v1184 = vpop.xlane.xlu0 %1183
        %v1185 = vsub.f32 %v1177, %v1184
        %v1186 = vmul.f32 %v1185, 1.442695
        %v1187 = vpow.pop %v1186
        %v1188 = vsel %vm1070, %v1187, 0.0
        %1189 = vadd.xlane.f32.xlu0 %v1188
        %v1190 = vpop.xlane.xlu0 %1189
        %v1191 = vrcp.pop %v1190
        %v1192 = vmul.f32 %v1187, %v1191
        %v1193 = vpack.c.bf16 %v1192, %v1192
        %1195 = vrot.lane.b32.xlu0 %v1022, 96
        %v1196 = vpop.permute.xlu0 %1195
        %v1198 = vsel %vm1070, %v1193, 0
        %v1201 = vsel %vm1086, %v1196, 0
        %1203 = vmatprep.subr.bf16.mxu0 0
        %1204 = vmatpush1.bf16.msra.mxu0 0
        %1205 = vmatprep.subr.bf16.mxu0 0
        %1206 = vmatpush1.bf16.msra.mxu0 0
        %1207 = vmatprep.subr.bf16.mxu0 0
        %1208 = vmatpush1.bf16.msra.mxu0 0
        %1209 = vmatprep.subr.bf16.mxu0 0
        %1210 = vmatpush1.bf16.msra.mxu0 0
        %1211 = vmatprep.subr.bf16.mxu0 0
        %1212 = vmatpush1.bf16.msra.mxu0 0
        %1213 = vmatprep.subr.bf16.mxu0 0
        %1214 = vmatpush1.bf16.msra.mxu0 0
        %1215 = vmatprep.subr.bf16.mxu0 0
        %1216 = vmatpush1.bf16.msra.mxu0 0
        %1217 = vmatprep.subr.bf16.mxu0 0
        %1218 = vmatpush1.bf16.msra.mxu0 %v1201
        %1219 = vmatprep.subr.bf16.mxu0 0
        %1220 = vmatpush2.bf16.msra.mxu0 0
        %1221 = vmatprep.subr.bf16.mxu0 0
        %1222 = vmatpush2.bf16.msra.mxu0 0
        %1223 = vmatprep.subr.bf16.mxu0 0
        %1224 = vmatpush2.bf16.msra.mxu0 0
        %1225 = vmatprep.subr.bf16.mxu0 0
        %1226 = vmatpush2.bf16.msra.mxu0 0
        %1227 = vmatprep.subr.bf16.mxu0 0
        %1228 = vmatpush2.bf16.msra.mxu0 0
        %1229 = vmatprep.subr.bf16.mxu0 0
        %1230 = vmatpush2.bf16.msra.mxu0 0
        %1231 = vmatprep.subr.bf16.mxu0 0
        %1232 = vmatpush2.bf16.msra.mxu0 0
        %1233 = vmatprep.subr.bf16.mxu0 0
        %1234 = vmatpush2.bf16.msra.mxu0 0
        %1235 = vmatprep.mubr.bf16.mxu0 0
        %1236 = vmatmul.mubr.bf16.gmra.mxu0 %v1198
        %v1237 = vpop.f32.mrf.mxu0
        %v1238 = vadd.f32 0.0, %v1237
        %v1239 = vpop.f32.mrf.mxu0
        %v1240 = vpop.f32.mrf.mxu0
        %v1241 = vpop.f32.mrf.mxu0
        %1242 = vdwg.mxu0
        %1243 = vrot.lane.b32.xlu0 %v832, 64
        %v1244 = vpop.permute.xlu0 %1243
        %1245 = vrot.lane.b32.xlu0 %v927, 64
        %v1246 = vpop.permute.xlu0 %1245
        %v1248 = vsel %vm1023, %v1244, 0
        %v1251 = vsel %vm1023, %v1246, 0
        %1253 = vmatprep.subr.bf16.mxu0 0
        %1254 = vmatpush1.bf16.xpose.msra.mxu0 0
        %1255 = vmatprep.subr.bf16.mxu0 0
        %1256 = vmatpush1.bf16.xpose.msra.mxu0 0
        %1257 = vmatprep.subr.bf16.mxu0 0
        %1258 = vmatpush1.bf16.xpose.msra.mxu0 0
        %1259 = vmatprep.subr.bf16.mxu0 0
        %1260 = vmatpush1.bf16.xpose.msra.mxu0 0
        %1261 = vmatprep.subr.bf16.mxu0 0
        %1262 = vmatpush1.bf16.xpose.msra.mxu0 0
        %1263 = vmatprep.subr.bf16.mxu0 0
        %1264 = vmatpush1.bf16.xpose.msra.mxu0 0
        %1265 = vmatprep.subr.bf16.mxu0 0
        %1266 = vmatpush1.bf16.xpose.msra.mxu0 0
        %1267 = vmatprep.subr.bf16.mxu0 0
        %1268 = vmatpush1.bf16.xpose.msra.mxu0 %v1251
        %1269 = vmatprep.subr.bf16.mxu0 0
        %1270 = vmatpush2.bf16.xpose.msra.mxu0 0
        %1271 = vmatprep.subr.bf16.mxu0 0
        %1272 = vmatpush2.bf16.xpose.msra.mxu0 0
        %1273 = vmatprep.subr.bf16.mxu0 0
        %1274 = vmatpush2.bf16.xpose.msra.mxu0 0
        %1275 = vmatprep.subr.bf16.mxu0 0
        %1276 = vmatpush2.bf16.xpose.msra.mxu0 0
        %1277 = vmatprep.subr.bf16.mxu0 0
        %1278 = vmatpush2.bf16.xpose.msra.mxu0 0
        %1279 = vmatprep.subr.bf16.mxu0 0
        %1280 = vmatpush2.bf16.xpose.msra.mxu0 0
        %1281 = vmatprep.subr.bf16.mxu0 0
        %1282 = vmatpush2.bf16.xpose.msra.mxu0 0
        %1283 = vmatprep.subr.bf16.mxu0 0
        %1284 = vmatpush2.bf16.xpose.msra.mxu0 0
        %1285 = vmatprep.mubr.bf16.mxu0 0
        %1286 = vmatmul.mubr.bf16.gmra.mxu0 %v1248
        %v1287 = vpop.f32.mrf.mxu0
        %v1288 = vadd.f32 0.0, %v1287
        %v1289 = vpop.f32.mrf.mxu0
        %v1290 = vpop.f32.mrf.mxu0
        %v1291 = vpop.f32.mrf.mxu0
        %1292 = vdwg.mxu0
        %v1293 = vsel %vm1070, %v1288, -inf
        %1294 = vmax.xlane.f32.xlu0 %v1293
        %v1295 = vpop.xlane.xlu0 %1294
        %v1296 = vsub.f32 %v1288, %v1295
        %v1297 = vmul.f32 %v1296, 1.442695
        %v1298 = vpow.pop %v1297
        %v1299 = vsel %vm1070, %v1298, 0.0
        %1300 = vadd.xlane.f32.xlu0 %v1299
        %v1301 = vpop.xlane.xlu0 %1300
        %v1302 = vrcp.pop %v1301
        %v1303 = vmul.f32 %v1298, %v1302
        %v1304 = vpack.c.bf16 %v1303, %v1303
        %1305 = vrot.lane.b32.xlu0 %v1022, 64
        %v1306 = vpop.permute.xlu0 %1305
        %v1308 = vsel %vm1070, %v1304, 0
        %v1311 = vsel %vm1086, %v1306, 0
        %1313 = vmatprep.subr.bf16.mxu0 0
        %1314 = vmatpush1.bf16.msra.mxu0 0
        %1315 = vmatprep.subr.bf16.mxu0 0
        %1316 = vmatpush1.bf16.msra.mxu0 0
        %1317 = vmatprep.subr.bf16.mxu0 0
        %1318 = vmatpush1.bf16.msra.mxu0 0
        %1319 = vmatprep.subr.bf16.mxu0 0
        %1320 = vmatpush1.bf16.msra.mxu0 0
        %1321 = vmatprep.subr.bf16.mxu0 0
        %1322 = vmatpush1.bf16.msra.mxu0 0
        %1323 = vmatprep.subr.bf16.mxu0 0
        %1324 = vmatpush1.bf16.msra.mxu0 0
        %1325 = vmatprep.subr.bf16.mxu0 0
        %1326 = vmatpush1.bf16.msra.mxu0 0
        %1327 = vmatprep.subr.bf16.mxu0 0
        %1328 = vmatpush1.bf16.msra.mxu0 %v1311
        %1329 = vmatprep.subr.bf16.mxu0 0
        %1330 = vmatpush2.bf16.msra.mxu0 0
        %1331 = vmatprep.subr.bf16.mxu0 0
        %1332 = vmatpush2.bf16.msra.mxu0 0
        %1333 = vmatprep.subr.bf16.mxu0 0
        %1334 = vmatpush2.bf16.msra.mxu0 0
        %1335 = vmatprep.subr.bf16.mxu0 0
        %1336 = vmatpush2.bf16.msra.mxu0 0
        %1337 = vmatprep.subr.bf16.mxu0 0
        %1338 = vmatpush2.bf16.msra.mxu0 0
        %1339 = vmatprep.subr.bf16.mxu0 0
        %1340 = vmatpush2.bf16.msra.mxu0 0
        %1341 = vmatprep.subr.bf16.mxu0 0
        %1342 = vmatpush2.bf16.msra.mxu0 0
        %1343 = vmatprep.subr.bf16.mxu0 0
        %1344 = vmatpush2.bf16.msra.mxu0 0
        %1345 = vmatprep.mubr.bf16.mxu0 0
        %1346 = vmatmul.mubr.bf16.gmra.mxu0 %v1308
        %v1347 = vpop.f32.mrf.mxu0
        %v1348 = vadd.f32 0.0, %v1347
        %v1349 = vpop.f32.mrf.mxu0
        %v1350 = vpop.f32.mrf.mxu0
        %v1351 = vpop.f32.mrf.mxu0
        %1352 = vdwg.mxu0
        %1353 = vrot.lane.b32.xlu0 %v832, 32
        %v1354 = vpop.permute.xlu0 %1353
        %1355 = vrot.lane.b32.xlu0 %v927, 32
        %v1356 = vpop.permute.xlu0 %1355
        %v1358 = vsel %vm1023, %v1354, 0
        %v1361 = vsel %vm1023, %v1356, 0
        %1363 = vmatprep.subr.bf16.mxu0 0
        %1364 = vmatpush1.bf16.xpose.msra.mxu0 0
        %1365 = vmatprep.subr.bf16.mxu0 0
        %1366 = vmatpush1.bf16.xpose.msra.mxu0 0
        %1367 = vmatprep.subr.bf16.mxu0 0
        %1368 = vmatpush1.bf16.xpose.msra.mxu0 0
        %1369 = vmatprep.subr.bf16.mxu0 0
        %1370 = vmatpush1.bf16.xpose.msra.mxu0 0
        %1371 = vmatprep.subr.bf16.mxu0 0
        %1372 = vmatpush1.bf16.xpose.msra.mxu0 0
        %1373 = vmatprep.subr.bf16.mxu0 0
        %1374 = vmatpush1.bf16.xpose.msra.mxu0 0
        %1375 = vmatprep.subr.bf16.mxu0 0
        %1376 = vmatpush1.bf16.xpose.msra.mxu0 0
        %1377 = vmatprep.subr.bf16.mxu0 0
        %1378 = vmatpush1.bf16.xpose.msra.mxu0 %v1361
        %1379 = vmatprep.subr.bf16.mxu0 0
        %1380 = vmatpush2.bf16.xpose.msra.mxu0 0
        %1381 = vmatprep.subr.bf16.mxu0 0
        %1382 = vmatpush2.bf16.xpose.msra.mxu0 0
        %1383 = vmatprep.subr.bf16.mxu0 0
        %1384 = vmatpush2.bf16.xpose.msra.mxu0 0
        %1385 = vmatprep.subr.bf16.mxu0 0
        %1386 = vmatpush2.bf16.xpose.msra.mxu0 0
        %1387 = vmatprep.subr.bf16.mxu0 0
        %1388 = vmatpush2.bf16.xpose.msra.mxu0 0
        %1389 = vmatprep.subr.bf16.mxu0 0
        %1390 = vmatpush2.bf16.xpose.msra.mxu0 0
        %1391 = vmatprep.subr.bf16.mxu0 0
        %1392 = vmatpush2.bf16.xpose.msra.mxu0 0
        %1393 = vmatprep.subr.bf16.mxu0 0
        %1394 = vmatpush2.bf16.xpose.msra.mxu0 0
        %1395 = vmatprep.mubr.bf16.mxu0 0
        %1396 = vmatmul.mubr.bf16.gmra.mxu0 %v1358
        %v1397 = vpop.f32.mrf.mxu0
        %v1398 = vadd.f32 0.0, %v1397
        %v1399 = vpop.f32.mrf.mxu0
        %v1400 = vpop.f32.mrf.mxu0
        %v1401 = vpop.f32.mrf.mxu0
        %1402 = vdwg.mxu0
        %v1403 = vsel %vm1070, %v1398, -inf
        %1404 = vmax.xlane.f32.xlu0 %v1403
        %v1405 = vpop.xlane.xlu0 %1404
        %v1406 = vsub.f32 %v1398, %v1405
        %v1407 = vmul.f32 %v1406, 1.442695
        %v1408 = vpow.pop %v1407
        %v1409 = vsel %vm1070, %v1408, 0.0
        %1410 = vadd.xlane.f32.xlu0 %v1409
        %v1411 = vpop.xlane.xlu0 %1410
        %v1412 = vrcp.pop %v1411
        %v1413 = vmul.f32 %v1408, %v1412
        %v1414 = vpack.c.bf16 %v1413, %v1413
        %1415 = vrot.lane.b32.xlu0 %v1022, 32
        %v1416 = vpop.permute.xlu0 %1415
        %v1418 = vsel %vm1070, %v1414, 0
        %v1421 = vsel %vm1086, %v1416, 0
        %1423 = vmatprep.subr.bf16.mxu0 0
        %1424 = vmatpush1.bf16.msra.mxu0 0
        %1425 = vmatprep.subr.bf16.mxu0 0
        %1426 = vmatpush1.bf16.msra.mxu0 0
        %1427 = vmatprep.subr.bf16.mxu0 0
        %1428 = vmatpush1.bf16.msra.mxu0 0
        %1429 = vmatprep.subr.bf16.mxu0 0
        %1430 = vmatpush1.bf16.msra.mxu0 0
        %1431 = vmatprep.subr.bf16.mxu0 0
        %1432 = vmatpush1.bf16.msra.mxu0 0
        %1433 = vmatprep.subr.bf16.mxu0 0
        %1434 = vmatpush1.bf16.msra.mxu0 0
        %1435 = vmatprep.subr.bf16.mxu0 0
        %1436 = vmatpush1.bf16.msra.mxu0 0
        %1437 = vmatprep.subr.bf16.mxu0 0
        %1438 = vmatpush1.bf16.msra.mxu0 %v1421
        %1439 = vmatprep.subr.bf16.mxu0 0
        %1440 = vmatpush2.bf16.msra.mxu0 0
        %1441 = vmatprep.subr.bf16.mxu0 0
        %1442 = vmatpush2.bf16.msra.mxu0 0
        %1443 = vmatprep.subr.bf16.mxu0 0
        %1444 = vmatpush2.bf16.msra.mxu0 0
        %1445 = vmatprep.subr.bf16.mxu0 0
        %1446 = vmatpush2.bf16.msra.mxu0 0
        %1447 = vmatprep.subr.bf16.mxu0 0
        %1448 = vmatpush2.bf16.msra.mxu0 0
        %1449 = vmatprep.subr.bf16.mxu0 0
        %1450 = vmatpush2.bf16.msra.mxu0 0
        %1451 = vmatprep.subr.bf16.mxu0 0
        %1452 = vmatpush2.bf16.msra.mxu0 0
        %1453 = vmatprep.subr.bf16.mxu0 0
        %1454 = vmatpush2.bf16.msra.mxu0 0
        %1455 = vmatprep.mubr.bf16.mxu0 0
        %1456 = vmatmul.mubr.bf16.gmra.mxu0 %v1418
        %v1457 = vpop.f32.mrf.mxu0
        %v1458 = vadd.f32 0.0, %v1457
        %v1459 = vpop.f32.mrf.mxu0
        %v1460 = vpop.f32.mrf.mxu0
        %v1461 = vpop.f32.mrf.mxu0
        %1462 = vdwg.mxu0
        %1464 = vrot.lane.b32.xlu0 %v1238, 32
        %v1465 = vpop.permute.xlu0 %1464
        %1468 = vrot.lane.b32.xlu0 %v1348, 64
        %v1469 = vpop.permute.xlu0 %1468
        %1472 = vrot.lane.b32.xlu0 %v1458, 96
        %v1473 = vpop.permute.xlu0 %1472
        %v1475 = vsel %vm1023, %v1125, %v1465
        %vm1476 = vcmask 523264
        %v1477 = vsel %vm1476, %v1475, %v1469
        %vm1478 = vcmask 785408
        %v1479 = vsel %vm1478, %v1477, %v1473
        %v1480 = vpack.c.bf16 %v1479, %v1479
        %v1482 = vlaneseq
        %v1483 = vshrl.u32 %v1482, 7
        %v1484 = vsub.s32 0, %v1483
        %v1485 = vrot.slane %v735, %v1484
        %v1503 = vunpack.c.l.b16 %v719
        %v1504 = vunpack.c.l.b16 %v720
        %v1505 = vunpack.c.l.b16 %v721
        %v1506 = vunpack.c.l.b16 %v722
        %v1507 = vunpack.c.l.b16 %v723
        %v1508 = vunpack.c.l.b16 %v724
        %v1509 = vunpack.c.l.b16 %v725
        %v1510 = vunpack.c.l.b16 %v726
        %v1511 = vunpack.c.l.b16 %v727
        %v1512 = vunpack.c.l.b16 %v728
        %v1513 = vunpack.c.l.b16 %v729
        %v1514 = vunpack.c.l.b16 %v730
        %v1515 = vunpack.c.l.b16 %v731
        %v1516 = vunpack.c.l.b16 %v732
        %v1517 = vunpack.c.l.b16 %v733
        %v1518 = vunpack.c.l.b16 %v734
        %v1519 = vpack.c.b16 %v1504, %v1503
        %v1520 = vpack.c.b16 %v1506, %v1505
        %v1521 = vpack.c.b16 %v1508, %v1507
        %v1522 = vpack.c.b16 %v1510, %v1509
        %v1523 = vpack.c.b16 %v1512, %v1511
        %v1524 = vpack.c.b16 %v1514, %v1513
        %v1525 = vpack.c.b16 %v1516, %v1515
        %v1526 = vpack.c.b16 %v1518, %v1517
        %1535 = vmatprep.subr.bf16.mxu0 0
        %1536 = vmatpush1.bf16.msra.mxu0 %v1526
        %1537 = vmatprep.subr.bf16.mxu0 0
        %1538 = vmatpush1.bf16.msra.mxu0 %v1525
        %1539 = vmatprep.subr.bf16.mxu0 0
        %1540 = vmatpush1.bf16.msra.mxu0 %v1524
        %1541 = vmatprep.subr.bf16.mxu0 0
        %1542 = vmatpush1.bf16.msra.mxu0 %v1523
        %1543 = vmatprep.subr.bf16.mxu0 0
        %1544 = vmatpush1.bf16.msra.mxu0 %v1522
        %1545 = vmatprep.subr.bf16.mxu0 0
        %1546 = vmatpush1.bf16.msra.mxu0 %v1521
        %1547 = vmatprep.subr.bf16.mxu0 0
        %1548 = vmatpush1.bf16.msra.mxu0 %v1520
        %1549 = vmatprep.subr.bf16.mxu0 0
        %1550 = vmatpush1.bf16.msra.mxu0 %v1519
        %1551 = vmatprep.subr.bf16.mxu0 0
        %1552 = vmatpush2.bf16.msra.mxu0 0
        %1553 = vmatprep.subr.bf16.mxu0 0
        %1554 = vmatpush2.bf16.msra.mxu0 0
        %1555 = vmatprep.subr.bf16.mxu0 0
        %1556 = vmatpush2.bf16.msra.mxu0 0
        %1557 = vmatprep.subr.bf16.mxu0 0
        %1558 = vmatpush2.bf16.msra.mxu0 0
        %1559 = vmatprep.subr.bf16.mxu0 0
        %1560 = vmatpush2.bf16.msra.mxu0 0
        %1561 = vmatprep.subr.bf16.mxu0 0
        %1562 = vmatpush2.bf16.msra.mxu0 0
        %1563 = vmatprep.subr.bf16.mxu0 0
        %1564 = vmatpush2.bf16.msra.mxu0 0
        %1565 = vmatprep.subr.bf16.mxu0 0
        %1566 = vmatpush2.bf16.msra.mxu0 0
        %1567 = vmatprep.mubr.bf16.mxu0 0
        %1568 = vmatmul.mubr.bf16.gmra.mxu0 %v1480
        %v1569 = vpop.f32.mrf.mxu0
        %v1570 = vadd.f32 %v1485, %v1569
        %v1571 = vpop.f32.mrf.mxu0
        %v1572 = vpop.f32.mrf.mxu0
        %v1573 = vpop.f32.mrf.mxu0
        %1574 = vdwg.mxu0
        %v1575 = vpack.c.bf16 %v1570, %v1570
        %1576 = vmatprep.subr.bf16.mxu0 0
        %1577 = vmatpush1.bf16.msra.mxu0 %v783
        %1578 = vmatprep.subr.bf16.mxu0 0
        %1579 = vmatpush1.bf16.msra.mxu0 %v782
        %1580 = vmatprep.subr.bf16.mxu0 0
        %1581 = vmatpush1.bf16.msra.mxu0 %v781
        %1582 = vmatprep.subr.bf16.mxu0 0
        %1583 = vmatpush1.bf16.msra.mxu0 %v780
        %1584 = vmatprep.subr.bf16.mxu0 0
        %1585 = vmatpush1.bf16.msra.mxu0 %v779
        %1586 = vmatprep.subr.bf16.mxu0 0
        %1587 = vmatpush1.bf16.msra.mxu0 %v778
        %1588 = vmatprep.subr.bf16.mxu0 0
        %1589 = vmatpush1.bf16.msra.mxu0 %v777
        %1590 = vmatprep.subr.bf16.mxu0 0
        %1591 = vmatpush1.bf16.msra.mxu0 %v776
        %1592 = vmatprep.subr.bf16.mxu0 0
        %1593 = vmatpush2.bf16.msra.mxu0 0
        %1594 = vmatprep.subr.bf16.mxu0 0
        %1595 = vmatpush2.bf16.msra.mxu0 0
        %1596 = vmatprep.subr.bf16.mxu0 0
        %1597 = vmatpush2.bf16.msra.mxu0 0
        %1598 = vmatprep.subr.bf16.mxu0 0
        %1599 = vmatpush2.bf16.msra.mxu0 0
        %1600 = vmatprep.subr.bf16.mxu0 0
        %1601 = vmatpush2.bf16.msra.mxu0 0
        %1602 = vmatprep.subr.bf16.mxu0 0
        %1603 = vmatpush2.bf16.msra.mxu0 0
        %1604 = vmatprep.subr.bf16.mxu0 0
        %1605 = vmatpush2.bf16.msra.mxu0 0
        %1606 = vmatprep.subr.bf16.mxu0 0
        %1607 = vmatpush2.bf16.msra.mxu0 0
        %1608 = vmatprep.mubr.bf16.mxu0 0
        %1609 = vmatmul.mubr.bf16.gmra.mxu0 %v1575
        %v1610 = vpop.f32.mrf.mxu0
        %v1611 = vadd.f32 %v742, %v1610
        %v1612 = vpop.f32.mrf.mxu0
        %v1613 = vpop.f32.mrf.mxu0
        %v1614 = vpop.f32.mrf.mxu0
        %1615 = vdwg.mxu0
        %v1616 = vpack.c.bf16 %v1611, %v1611
        %v1619 = vunpack.c.l.b16 %v666
        %v1620 = vunpack.c.l.b16 %v667
        %v1621 = vpack.c.b16 %v1620, %v1619
        %1623 = vmatprep.subr.bf16.mxu0 0
        %1624 = vmatpush1.bf16.msra.mxu0 %v878
        %1625 = vmatprep.subr.bf16.mxu0 0
        %1626 = vmatpush1.bf16.msra.mxu0 %v877
        %1627 = vmatprep.subr.bf16.mxu0 0
        %1628 = vmatpush1.bf16.msra.mxu0 %v876
        %1629 = vmatprep.subr.bf16.mxu0 0
        %1630 = vmatpush1.bf16.msra.mxu0 %v875
        %1631 = vmatprep.subr.bf16.mxu0 0
        %1632 = vmatpush1.bf16.msra.mxu0 %v874
        %1633 = vmatprep.subr.bf16.mxu0 0
        %1634 = vmatpush1.bf16.msra.mxu0 %v873
        %1635 = vmatprep.subr.bf16.mxu0 0
        %1636 = vmatpush1.bf16.msra.mxu0 %v872
        %1637 = vmatprep.subr.bf16.mxu0 0
        %1638 = vmatpush1.bf16.msra.mxu0 %v871
        %1639 = vmatprep.subr.bf16.mxu0 0
        %1640 = vmatpush2.bf16.msra.mxu0 0
        %1641 = vmatprep.subr.bf16.mxu0 0
        %1642 = vmatpush2.bf16.msra.mxu0 0
        %1643 = vmatprep.subr.bf16.mxu0 0
        %1644 = vmatpush2.bf16.msra.mxu0 0
        %1645 = vmatprep.subr.bf16.mxu0 0
        %1646 = vmatpush2.bf16.msra.mxu0 0
        %1647 = vmatprep.subr.bf16.mxu0 0
        %1648 = vmatpush2.bf16.msra.mxu0 0
        %1649 = vmatprep.subr.bf16.mxu0 0
        %1650 = vmatpush2.bf16.msra.mxu0 0
        %1651 = vmatprep.subr.bf16.mxu0 0
        %1652 = vmatpush2.bf16.msra.mxu0 0
        %1653 = vmatprep.subr.bf16.mxu0 0
        %1654 = vmatpush2.bf16.msra.mxu0 0
        %1655 = vmatprep.mubr.bf16.mxu0 0
        %1656 = vmatmul.mubr.bf16.gmra.mxu0 %v1621
        %v1657 = vpop.f32.mrf.mxu0
        %v1658 = vadd.f32 %v837, %v1657
        %v1659 = vpop.f32.mrf.mxu0
        %v1660 = vpop.f32.mrf.mxu0
        %v1661 = vadd.f32 %v837, %v1660
        %v1662 = vpop.f32.mrf.mxu0
        %1663 = vdwg.mxu0
        %v1664 = vpack.c.bf16 %v1661, %v1658
        %1665 = vmatprep.subr.bf16.mxu0 0
        %1666 = vmatpush1.bf16.msra.mxu0 %v973
        %1667 = vmatprep.subr.bf16.mxu0 0
        %1668 = vmatpush1.bf16.msra.mxu0 %v972
        %1669 = vmatprep.subr.bf16.mxu0 0
        %1670 = vmatpush1.bf16.msra.mxu0 %v971
        %1671 = vmatprep.subr.bf16.mxu0 0
        %1672 = vmatpush1.bf16.msra.mxu0 %v970
        %1673 = vmatprep.subr.bf16.mxu0 0
        %1674 = vmatpush1.bf16.msra.mxu0 %v969
        %1675 = vmatprep.subr.bf16.mxu0 0
        %1676 = vmatpush1.bf16.msra.mxu0 %v968
        %1677 = vmatprep.subr.bf16.mxu0 0
        %1678 = vmatpush1.bf16.msra.mxu0 %v967
        %1679 = vmatprep.subr.bf16.mxu0 0
        %1680 = vmatpush1.bf16.msra.mxu0 %v966
        %1681 = vmatprep.subr.bf16.mxu0 0
        %1682 = vmatpush2.bf16.msra.mxu0 0
        %1683 = vmatprep.subr.bf16.mxu0 0
        %1684 = vmatpush2.bf16.msra.mxu0 0
        %1685 = vmatprep.subr.bf16.mxu0 0
        %1686 = vmatpush2.bf16.msra.mxu0 0
        %1687 = vmatprep.subr.bf16.mxu0 0
        %1688 = vmatpush2.bf16.msra.mxu0 0
        %1689 = vmatprep.subr.bf16.mxu0 0
        %1690 = vmatpush2.bf16.msra.mxu0 0
        %1691 = vmatprep.subr.bf16.mxu0 0
        %1692 = vmatpush2.bf16.msra.mxu0 0
        %1693 = vmatprep.subr.bf16.mxu0 0
        %1694 = vmatpush2.bf16.msra.mxu0 0
        %1695 = vmatprep.subr.bf16.mxu0 0
        %1696 = vmatpush2.bf16.msra.mxu0 0
        %1697 = vmatprep.mubr.bf16.mxu0 0
        %1698 = vmatmul.mubr.bf16.gmra.mxu0 %v1621
        %v1699 = vpop.f32.mrf.mxu0
        %v1700 = vadd.f32 %v932, %v1699
        %v1701 = vpop.f32.mrf.mxu0
        %v1702 = vpop.f32.mrf.mxu0
        %v1703 = vadd.f32 %v932, %v1702
        %v1704 = vpop.f32.mrf.mxu0
        %1705 = vdwg.mxu0
        %v1706 = vpack.c.bf16 %v1703, %v1700
        %v1708 = vsel %vm1023, %v1616, 0
        %v1711 = vsel %vm1023, %v1664, 0
        %1713 = vmatprep.subr.bf16.mxu0 0
        %1714 = vmatpush1.bf16.xpose.msra.mxu0 0
        %1715 = vmatprep.subr.bf16.mxu0 0
        %1716 = vmatpush1.bf16.xpose.msra.mxu0 0
        %1717 = vmatprep.subr.bf16.mxu0 0
        %1718 = vmatpush1.bf16.xpose.msra.mxu0 0
        %1719 = vmatprep.subr.bf16.mxu0 0
        %1720 = vmatpush1.bf16.xpose.msra.mxu0 0
        %1721 = vmatprep.subr.bf16.mxu0 0
        %1722 = vmatpush1.bf16.xpose.msra.mxu0 0
        %1723 = vmatprep.subr.bf16.mxu0 0
        %1724 = vmatpush1.bf16.xpose.msra.mxu0 0
        %1725 = vmatprep.subr.bf16.mxu0 0
        %1726 = vmatpush1.bf16.xpose.msra.mxu0 0
        %1727 = vmatprep.subr.bf16.mxu0 0
        %1728 = vmatpush1.bf16.xpose.msra.mxu0 %v1711
        %1729 = vmatprep.subr.bf16.mxu0 0
        %1730 = vmatpush2.bf16.xpose.msra.mxu0 0
        %1731 = vmatprep.subr.bf16.mxu0 0
        %1732 = vmatpush2.bf16.xpose.msra.mxu0 0
        %1733 = vmatprep.subr.bf16.mxu0 0
        %1734 = vmatpush2.bf16.xpose.msra.mxu0 0
        %1735 = vmatprep.subr.bf16.mxu0 0
        %1736 = vmatpush2.bf16.xpose.msra.mxu0 0
        %1737 = vmatprep.subr.bf16.mxu0 0
        %1738 = vmatpush2.bf16.xpose.msra.mxu0 0
        %1739 = vmatprep.subr.bf16.mxu0 0
        %1740 = vmatpush2.bf16.xpose.msra.mxu0 0
        %1741 = vmatprep.subr.bf16.mxu0 0
        %1742 = vmatpush2.bf16.xpose.msra.mxu0 0
        %1743 = vmatprep.subr.bf16.mxu0 0
        %1744 = vmatpush2.bf16.xpose.msra.mxu0 0
        %1745 = vmatprep.mubr.bf16.mxu0 0
        %1746 = vmatmul.mubr.bf16.gmra.mxu0 %v1708
        %v1747 = vpop.f32.mrf.mxu0
        %v1748 = vadd.f32 0.0, %v1747
        %v1749 = vpop.f32.mrf.mxu0
        %v1750 = vpop.f32.mrf.mxu0
        %v1751 = vpop.f32.mrf.mxu0
        %1752 = vdwg.mxu0
        %vm1753 = vcmask 130048
        %v1754 = vsel %vm1753, %v1748, -inf
        %1755 = vmax.xlane.f32.xlu0 %v1754
        %v1756 = vpop.xlane.xlu0 %1755
        %v1757 = vsub.f32 %v1748, %v1756
        %v1758 = vmul.f32 %v1757, 1.442695
        %v1759 = vpow.pop %v1758
        %v1760 = vsel %vm1753, %v1759, 0.0
        %1761 = vadd.xlane.f32.xlu0 %v1760
        %v1762 = vpop.xlane.xlu0 %1761
        %v1763 = vrcp.pop %v1762
        %v1764 = vmul.f32 %v1759, %v1763
        %v1765 = vpack.c.bf16 %v1764, %v1764
        %v1767 = vsel %vm1753, %v1765, 0
        %1769 = vmatprep.subr.bf16.mxu0 0
        %1770 = vmatpush1.bf16.msra.mxu0 0
        %1771 = vmatprep.subr.bf16.mxu0 0
        %1772 = vmatpush1.bf16.msra.mxu0 0
        %1773 = vmatprep.subr.bf16.mxu0 0
        %1774 = vmatpush1.bf16.msra.mxu0 0
        %1775 = vmatprep.subr.bf16.mxu0 0
        %1776 = vmatpush1.bf16.msra.mxu0 0
        %1777 = vmatprep.subr.bf16.mxu0 0
        %1778 = vmatpush1.bf16.msra.mxu0 0
        %1779 = vmatprep.subr.bf16.mxu0 0
        %1780 = vmatpush1.bf16.msra.mxu0 0
        %1781 = vmatprep.subr.bf16.mxu0 0
        %1782 = vmatpush1.bf16.msra.mxu0 0
        %1783 = vmatprep.subr.bf16.mxu0 0
        %1784 = vmatpush1.bf16.msra.mxu0 %v1706
        %1785 = vmatprep.subr.bf16.mxu0 0
        %1786 = vmatpush2.bf16.msra.mxu0 0
        %1787 = vmatprep.subr.bf16.mxu0 0
        %1788 = vmatpush2.bf16.msra.mxu0 0
        %1789 = vmatprep.subr.bf16.mxu0 0
        %1790 = vmatpush2.bf16.msra.mxu0 0
        %1791 = vmatprep.subr.bf16.mxu0 0
        %1792 = vmatpush2.bf16.msra.mxu0 0
        %1793 = vmatprep.subr.bf16.mxu0 0
        %1794 = vmatpush2.bf16.msra.mxu0 0
        %1795 = vmatprep.subr.bf16.mxu0 0
        %1796 = vmatpush2.bf16.msra.mxu0 0
        %1797 = vmatprep.subr.bf16.mxu0 0
        %1798 = vmatpush2.bf16.msra.mxu0 0
        %1799 = vmatprep.subr.bf16.mxu0 0
        %1800 = vmatpush2.bf16.msra.mxu0 0
        %1801 = vmatprep.mubr.bf16.mxu0 0
        %1802 = vmatmul.mubr.bf16.gmra.mxu0 %v1767
        %v1803 = vpop.f32.mrf.mxu0
        %v1804 = vadd.f32 0.0, %v1803
        %v1805 = vpop.f32.mrf.mxu0
        %v1806 = vpop.f32.mrf.mxu0
        %v1807 = vpop.f32.mrf.mxu0
        %1808 = vdwg.mxu0
        %1810 = vrot.lane.b32.xlu0 %v1616, 96
        %v1811 = vpop.permute.xlu0 %1810
        %1813 = vrot.lane.b32.xlu0 %v1664, 96
        %v1814 = vpop.permute.xlu0 %1813
        %v1816 = vsel %vm1023, %v1811, 0
        %v1819 = vsel %vm1023, %v1814, 0
        %1821 = vmatprep.subr.bf16.mxu0 0
        %1822 = vmatpush1.bf16.xpose.msra.mxu0 0
        %1823 = vmatprep.subr.bf16.mxu0 0
        %1824 = vmatpush1.bf16.xpose.msra.mxu0 0
        %1825 = vmatprep.subr.bf16.mxu0 0
        %1826 = vmatpush1.bf16.xpose.msra.mxu0 0
        %1827 = vmatprep.subr.bf16.mxu0 0
        %1828 = vmatpush1.bf16.xpose.msra.mxu0 0
        %1829 = vmatprep.subr.bf16.mxu0 0
        %1830 = vmatpush1.bf16.xpose.msra.mxu0 0
        %1831 = vmatprep.subr.bf16.mxu0 0
        %1832 = vmatpush1.bf16.xpose.msra.mxu0 0
        %1833 = vmatprep.subr.bf16.mxu0 0
        %1834 = vmatpush1.bf16.xpose.msra.mxu0 0
        %1835 = vmatprep.subr.bf16.mxu0 0
        %1836 = vmatpush1.bf16.xpose.msra.mxu0 %v1819
        %1837 = vmatprep.subr.bf16.mxu0 0
        %1838 = vmatpush2.bf16.xpose.msra.mxu0 0
        %1839 = vmatprep.subr.bf16.mxu0 0
        %1840 = vmatpush2.bf16.xpose.msra.mxu0 0
        %1841 = vmatprep.subr.bf16.mxu0 0
        %1842 = vmatpush2.bf16.xpose.msra.mxu0 0
        %1843 = vmatprep.subr.bf16.mxu0 0
        %1844 = vmatpush2.bf16.xpose.msra.mxu0 0
        %1845 = vmatprep.subr.bf16.mxu0 0
        %1846 = vmatpush2.bf16.xpose.msra.mxu0 0
        %1847 = vmatprep.subr.bf16.mxu0 0
        %1848 = vmatpush2.bf16.xpose.msra.mxu0 0
        %1849 = vmatprep.subr.bf16.mxu0 0
        %1850 = vmatpush2.bf16.xpose.msra.mxu0 0
        %1851 = vmatprep.subr.bf16.mxu0 0
        %1852 = vmatpush2.bf16.xpose.msra.mxu0 0
        %1853 = vmatprep.mubr.bf16.mxu0 0
        %1854 = vmatmul.mubr.bf16.gmra.mxu0 %v1816
        %v1855 = vpop.f32.mrf.mxu0
        %v1856 = vadd.f32 0.0, %v1855
        %v1857 = vpop.f32.mrf.mxu0
        %v1858 = vpop.f32.mrf.mxu0
        %v1859 = vpop.f32.mrf.mxu0
        %1860 = vdwg.mxu0
        %v1861 = vsel %vm1753, %v1856, -inf
        %1862 = vmax.xlane.f32.xlu0 %v1861
        %v1863 = vpop.xlane.xlu0 %1862
        %v1864 = vsub.f32 %v1856, %v1863
        %v1865 = vmul.f32 %v1864, 1.442695
        %v1866 = vpow.pop %v1865
        %v1867 = vsel %vm1753, %v1866, 0.0
        %1868 = vadd.xlane.f32.xlu0 %v1867
        %v1869 = vpop.xlane.xlu0 %1868
        %v1870 = vrcp.pop %v1869
        %v1871 = vmul.f32 %v1866, %v1870
        %v1872 = vpack.c.bf16 %v1871, %v1871
        %1874 = vrot.lane.b32.xlu0 %v1706, 96
        %v1875 = vpop.permute.xlu0 %1874
        %v1878 = vsel %vm1753, %v1872, 0
        %1880 = vmatprep.subr.bf16.mxu0 0
        %1881 = vmatpush1.bf16.msra.mxu0 0
        %1882 = vmatprep.subr.bf16.mxu0 0
        %1883 = vmatpush1.bf16.msra.mxu0 0
        %1884 = vmatprep.subr.bf16.mxu0 0
        %1885 = vmatpush1.bf16.msra.mxu0 0
        %1886 = vmatprep.subr.bf16.mxu0 0
        %1887 = vmatpush1.bf16.msra.mxu0 0
        %1888 = vmatprep.subr.bf16.mxu0 0
        %1889 = vmatpush1.bf16.msra.mxu0 0
        %1890 = vmatprep.subr.bf16.mxu0 0
        %1891 = vmatpush1.bf16.msra.mxu0 0
        %1892 = vmatprep.subr.bf16.mxu0 0
        %1893 = vmatpush1.bf16.msra.mxu0 0
        %1894 = vmatprep.subr.bf16.mxu0 0
        %1895 = vmatpush1.bf16.msra.mxu0 %v1875
        %1896 = vmatprep.subr.bf16.mxu0 0
        %1897 = vmatpush2.bf16.msra.mxu0 0
        %1898 = vmatprep.subr.bf16.mxu0 0
        %1899 = vmatpush2.bf16.msra.mxu0 0
        %1900 = vmatprep.subr.bf16.mxu0 0
        %1901 = vmatpush2.bf16.msra.mxu0 0
        %1902 = vmatprep.subr.bf16.mxu0 0
        %1903 = vmatpush2.bf16.msra.mxu0 0
        %1904 = vmatprep.subr.bf16.mxu0 0
        %1905 = vmatpush2.bf16.msra.mxu0 0
        %1906 = vmatprep.subr.bf16.mxu0 0
        %1907 = vmatpush2.bf16.msra.mxu0 0
        %1908 = vmatprep.subr.bf16.mxu0 0
        %1909 = vmatpush2.bf16.msra.mxu0 0
        %1910 = vmatprep.subr.bf16.mxu0 0
        %1911 = vmatpush2.bf16.msra.mxu0 0
        %1912 = vmatprep.mubr.bf16.mxu0 0
        %1913 = vmatmul.mubr.bf16.gmra.mxu0 %v1878
        %v1914 = vpop.f32.mrf.mxu0
        %v1915 = vadd.f32 0.0, %v1914
        %v1916 = vpop.f32.mrf.mxu0
        %v1917 = vpop.f32.mrf.mxu0
        %v1918 = vpop.f32.mrf.mxu0
        %1919 = vdwg.mxu0
        %1920 = vrot.lane.b32.xlu0 %v1616, 64
        %v1921 = vpop.permute.xlu0 %1920
        %1922 = vrot.lane.b32.xlu0 %v1664, 64
        %v1923 = vpop.permute.xlu0 %1922
        %v1925 = vsel %vm1023, %v1921, 0
        %v1928 = vsel %vm1023, %v1923, 0
        %1930 = vmatprep.subr.bf16.mxu0 0
        %1931 = vmatpush1.bf16.xpose.msra.mxu0 0
        %1932 = vmatprep.subr.bf16.mxu0 0
        %1933 = vmatpush1.bf16.xpose.msra.mxu0 0
        %1934 = vmatprep.subr.bf16.mxu0 0
        %1935 = vmatpush1.bf16.xpose.msra.mxu0 0
        %1936 = vmatprep.subr.bf16.mxu0 0
        %1937 = vmatpush1.bf16.xpose.msra.mxu0 0
        %1938 = vmatprep.subr.bf16.mxu0 0
        %1939 = vmatpush1.bf16.xpose.msra.mxu0 0
        %1940 = vmatprep.subr.bf16.mxu0 0
        %1941 = vmatpush1.bf16.xpose.msra.mxu0 0
        %1942 = vmatprep.subr.bf16.mxu0 0
        %1943 = vmatpush1.bf16.xpose.msra.mxu0 0
        %1944 = vmatprep.subr.bf16.mxu0 0
        %1945 = vmatpush1.bf16.xpose.msra.mxu0 %v1928
        %1946 = vmatprep.subr.bf16.mxu0 0
        %1947 = vmatpush2.bf16.xpose.msra.mxu0 0
        %1948 = vmatprep.subr.bf16.mxu0 0
        %1949 = vmatpush2.bf16.xpose.msra.mxu0 0
        %1950 = vmatprep.subr.bf16.mxu0 0
        %1951 = vmatpush2.bf16.xpose.msra.mxu0 0
        %1952 = vmatprep.subr.bf16.mxu0 0
        %1953 = vmatpush2.bf16.xpose.msra.mxu0 0
        %1954 = vmatprep.subr.bf16.mxu0 0
        %1955 = vmatpush2.bf16.xpose.msra.mxu0 0
        %1956 = vmatprep.subr.bf16.mxu0 0
        %1957 = vmatpush2.bf16.xpose.msra.mxu0 0
        %1958 = vmatprep.subr.bf16.mxu0 0
        %1959 = vmatpush2.bf16.xpose.msra.mxu0 0
        %1960 = vmatprep.subr.bf16.mxu0 0
        %1961 = vmatpush2.bf16.xpose.msra.mxu0 0
        %1962 = vmatprep.mubr.bf16.mxu0 0
        %1963 = vmatmul.mubr.bf16.gmra.mxu0 %v1925
        %v1964 = vpop.f32.mrf.mxu0
        %v1965 = vadd.f32 0.0, %v1964
        %v1966 = vpop.f32.mrf.mxu0
        %v1967 = vpop.f32.mrf.mxu0
        %v1968 = vpop.f32.mrf.mxu0
        %1969 = vdwg.mxu0
        %v1970 = vsel %vm1753, %v1965, -inf
        %1971 = vmax.xlane.f32.xlu0 %v1970
        %v1972 = vpop.xlane.xlu0 %1971
        %v1973 = vsub.f32 %v1965, %v1972
        %v1974 = vmul.f32 %v1973, 1.442695
        %v1975 = vpow.pop %v1974
        %v1976 = vsel %vm1753, %v1975, 0.0
        %1977 = vadd.xlane.f32.xlu0 %v1976
        %v1978 = vpop.xlane.xlu0 %1977
        %v1979 = vrcp.pop %v1978
        %v1980 = vmul.f32 %v1975, %v1979
        %v1981 = vpack.c.bf16 %v1980, %v1980
        %1982 = vrot.lane.b32.xlu0 %v1706, 64
        %v1983 = vpop.permute.xlu0 %1982
        %v1986 = vsel %vm1753, %v1981, 0
        %1988 = vmatprep.subr.bf16.mxu0 0
        %1989 = vmatpush1.bf16.msra.mxu0 0
        %1990 = vmatprep.subr.bf16.mxu0 0
        %1991 = vmatpush1.bf16.msra.mxu0 0
        %1992 = vmatprep.subr.bf16.mxu0 0
        %1993 = vmatpush1.bf16.msra.mxu0 0
        %1994 = vmatprep.subr.bf16.mxu0 0
        %1995 = vmatpush1.bf16.msra.mxu0 0
        %1996 = vmatprep.subr.bf16.mxu0 0
        %1997 = vmatpush1.bf16.msra.mxu0 0
        %1998 = vmatprep.subr.bf16.mxu0 0
        %1999 = vmatpush1.bf16.msra.mxu0 0
        %2000 = vmatprep.subr.bf16.mxu0 0
        %2001 = vmatpush1.bf16.msra.mxu0 0
        %2002 = vmatprep.subr.bf16.mxu0 0
        %2003 = vmatpush1.bf16.msra.mxu0 %v1983
        %2004 = vmatprep.subr.bf16.mxu0 0
        %2005 = vmatpush2.bf16.msra.mxu0 0
        %2006 = vmatprep.subr.bf16.mxu0 0
        %2007 = vmatpush2.bf16.msra.mxu0 0
        %2008 = vmatprep.subr.bf16.mxu0 0
        %2009 = vmatpush2.bf16.msra.mxu0 0
        %2010 = vmatprep.subr.bf16.mxu0 0
        %2011 = vmatpush2.bf16.msra.mxu0 0
        %2012 = vmatprep.subr.bf16.mxu0 0
        %2013 = vmatpush2.bf16.msra.mxu0 0
        %2014 = vmatprep.subr.bf16.mxu0 0
        %2015 = vmatpush2.bf16.msra.mxu0 0
        %2016 = vmatprep.subr.bf16.mxu0 0
        %2017 = vmatpush2.bf16.msra.mxu0 0
        %2018 = vmatprep.subr.bf16.mxu0 0
        %2019 = vmatpush2.bf16.msra.mxu0 0
        %2020 = vmatprep.mubr.bf16.mxu0 0
        %2021 = vmatmul.mubr.bf16.gmra.mxu0 %v1986
        %v2022 = vpop.f32.mrf.mxu0
        %v2023 = vadd.f32 0.0, %v2022
        %v2024 = vpop.f32.mrf.mxu0
        %v2025 = vpop.f32.mrf.mxu0
        %v2026 = vpop.f32.mrf.mxu0
        %2027 = vdwg.mxu0
        %2028 = vrot.lane.b32.xlu0 %v1616, 32
        %v2029 = vpop.permute.xlu0 %2028
        %2030 = vrot.lane.b32.xlu0 %v1664, 32
        %v2031 = vpop.permute.xlu0 %2030
        %v2033 = vsel %vm1023, %v2029, 0
        %v2036 = vsel %vm1023, %v2031, 0
        %2038 = vmatprep.subr.bf16.mxu0 0
        %2039 = vmatpush1.bf16.xpose.msra.mxu0 0
        %2040 = vmatprep.subr.bf16.mxu0 0
        %2041 = vmatpush1.bf16.xpose.msra.mxu0 0
        %2042 = vmatprep.subr.bf16.mxu0 0
        %2043 = vmatpush1.bf16.xpose.msra.mxu0 0
        %2044 = vmatprep.subr.bf16.mxu0 0
        %2045 = vmatpush1.bf16.xpose.msra.mxu0 0
        %2046 = vmatprep.subr.bf16.mxu0 0
        %2047 = vmatpush1.bf16.xpose.msra.mxu0 0
        %2048 = vmatprep.subr.bf16.mxu0 0
        %2049 = vmatpush1.bf16.xpose.msra.mxu0 0
        %2050 = vmatprep.subr.bf16.mxu0 0
        %2051 = vmatpush1.bf16.xpose.msra.mxu0 0
        %2052 = vmatprep.subr.bf16.mxu0 0
        %2053 = vmatpush1.bf16.xpose.msra.mxu0 %v2036
        %2054 = vmatprep.subr.bf16.mxu0 0
        %2055 = vmatpush2.bf16.xpose.msra.mxu0 0
        %2056 = vmatprep.subr.bf16.mxu0 0
        %2057 = vmatpush2.bf16.xpose.msra.mxu0 0
        %2058 = vmatprep.subr.bf16.mxu0 0
        %2059 = vmatpush2.bf16.xpose.msra.mxu0 0
        %2060 = vmatprep.subr.bf16.mxu0 0
        %2061 = vmatpush2.bf16.xpose.msra.mxu0 0
        %2062 = vmatprep.subr.bf16.mxu0 0
        %2063 = vmatpush2.bf16.xpose.msra.mxu0 0
        %2064 = vmatprep.subr.bf16.mxu0 0
        %2065 = vmatpush2.bf16.xpose.msra.mxu0 0
        %2066 = vmatprep.subr.bf16.mxu0 0
        %2067 = vmatpush2.bf16.xpose.msra.mxu0 0
        %2068 = vmatprep.subr.bf16.mxu0 0
        %2069 = vmatpush2.bf16.xpose.msra.mxu0 0
        %2070 = vmatprep.mubr.bf16.mxu0 0
        %2071 = vmatmul.mubr.bf16.gmra.mxu0 %v2033
        %v2072 = vpop.f32.mrf.mxu0
        %v2073 = vadd.f32 0.0, %v2072
        %v2074 = vpop.f32.mrf.mxu0
        %v2075 = vpop.f32.mrf.mxu0
        %v2076 = vpop.f32.mrf.mxu0
        %2077 = vdwg.mxu0
        %v2078 = vsel %vm1753, %v2073, -inf
        %2079 = vmax.xlane.f32.xlu0 %v2078
        %v2080 = vpop.xlane.xlu0 %2079
        %v2081 = vsub.f32 %v2073, %v2080
        %v2082 = vmul.f32 %v2081, 1.442695
        %v2083 = vpow.pop %v2082
        %v2084 = vsel %vm1753, %v2083, 0.0
        %2085 = vadd.xlane.f32.xlu0 %v2084
        %v2086 = vpop.xlane.xlu0 %2085
        %v2087 = vrcp.pop %v2086
        %v2088 = vmul.f32 %v2083, %v2087
        %v2089 = vpack.c.bf16 %v2088, %v2088
        %2090 = vrot.lane.b32.xlu0 %v1706, 32
        %v2091 = vpop.permute.xlu0 %2090
        %v2094 = vsel %vm1753, %v2089, 0
        %2096 = vmatprep.subr.bf16.mxu0 0
        %2097 = vmatpush1.bf16.msra.mxu0 0
        %2098 = vmatprep.subr.bf16.mxu0 0
        %2099 = vmatpush1.bf16.msra.mxu0 0
        %2100 = vmatprep.subr.bf16.mxu0 0
        %2101 = vmatpush1.bf16.msra.mxu0 0
        %2102 = vmatprep.subr.bf16.mxu0 0
        %2103 = vmatpush1.bf16.msra.mxu0 0
        %2104 = vmatprep.subr.bf16.mxu0 0
        %2105 = vmatpush1.bf16.msra.mxu0 0
        %2106 = vmatprep.subr.bf16.mxu0 0
        %2107 = vmatpush1.bf16.msra.mxu0 0
        %2108 = vmatprep.subr.bf16.mxu0 0
        %2109 = vmatpush1.bf16.msra.mxu0 0
        %2110 = vmatprep.subr.bf16.mxu0 0
        %2111 = vmatpush1.bf16.msra.mxu0 %v2091
        %2112 = vmatprep.subr.bf16.mxu0 0
        %2113 = vmatpush2.bf16.msra.mxu0 0
        %2114 = vmatprep.subr.bf16.mxu0 0
        %2115 = vmatpush2.bf16.msra.mxu0 0
        %2116 = vmatprep.subr.bf16.mxu0 0
        %2117 = vmatpush2.bf16.msra.mxu0 0
        %2118 = vmatprep.subr.bf16.mxu0 0
        %2119 = vmatpush2.bf16.msra.mxu0 0
        %2120 = vmatprep.subr.bf16.mxu0 0
        %2121 = vmatpush2.bf16.msra.mxu0 0
        %2122 = vmatprep.subr.bf16.mxu0 0
        %2123 = vmatpush2.bf16.msra.mxu0 0
        %2124 = vmatprep.subr.bf16.mxu0 0
        %2125 = vmatpush2.bf16.msra.mxu0 0
        %2126 = vmatprep.subr.bf16.mxu0 0
        %2127 = vmatpush2.bf16.msra.mxu0 0
        %2128 = vmatprep.mubr.bf16.mxu0 0
        %2129 = vmatmul.mubr.bf16.gmra.mxu0 %v2094
        %v2130 = vpop.f32.mrf.mxu0
        %v2131 = vadd.f32 0.0, %v2130
        %v2132 = vpop.f32.mrf.mxu0
        %v2133 = vpop.f32.mrf.mxu0
        %v2134 = vpop.f32.mrf.mxu0
        %2135 = vdwg.mxu0
        %2137 = vrot.lane.b32.xlu0 %v1915, 32
        %v2138 = vpop.permute.xlu0 %2137
        %2141 = vrot.lane.b32.xlu0 %v2023, 64
        %v2142 = vpop.permute.xlu0 %2141
        %2145 = vrot.lane.b32.xlu0 %v2131, 96
        %v2146 = vpop.permute.xlu0 %2145
        %v2148 = vsel %vm1023, %v1804, %v2138
        %v2149 = vsel %vm1476, %v2148, %v2142
        %v2150 = vsel %vm1478, %v2149, %v2146
        %v2151 = vpack.c.bf16 %v2150, %v2150
        %2152 = vmatprep.subr.bf16.mxu0 0
        %2153 = vmatpush1.bf16.msra.mxu0 %v1526
        %2154 = vmatprep.subr.bf16.mxu0 0
        %2155 = vmatpush1.bf16.msra.mxu0 %v1525
        %2156 = vmatprep.subr.bf16.mxu0 0
        %2157 = vmatpush1.bf16.msra.mxu0 %v1524
        %2158 = vmatprep.subr.bf16.mxu0 0
        %2159 = vmatpush1.bf16.msra.mxu0 %v1523
        %2160 = vmatprep.subr.bf16.mxu0 0
        %2161 = vmatpush1.bf16.msra.mxu0 %v1522
        %2162 = vmatprep.subr.bf16.mxu0 0
        %2163 = vmatpush1.bf16.msra.mxu0 %v1521
        %2164 = vmatprep.subr.bf16.mxu0 0
        %2165 = vmatpush1.bf16.msra.mxu0 %v1520
        %2166 = vmatprep.subr.bf16.mxu0 0
        %2167 = vmatpush1.bf16.msra.mxu0 %v1519
        %2168 = vmatprep.subr.bf16.mxu0 0
        %2169 = vmatpush2.bf16.msra.mxu0 0
        %2170 = vmatprep.subr.bf16.mxu0 0
        %2171 = vmatpush2.bf16.msra.mxu0 0
        %2172 = vmatprep.subr.bf16.mxu0 0
        %2173 = vmatpush2.bf16.msra.mxu0 0
        %2174 = vmatprep.subr.bf16.mxu0 0
        %2175 = vmatpush2.bf16.msra.mxu0 0
        %2176 = vmatprep.subr.bf16.mxu0 0
        %2177 = vmatpush2.bf16.msra.mxu0 0
        %2178 = vmatprep.subr.bf16.mxu0 0
        %2179 = vmatpush2.bf16.msra.mxu0 0
        %2180 = vmatprep.subr.bf16.mxu0 0
        %2181 = vmatpush2.bf16.msra.mxu0 0
        %2182 = vmatprep.subr.bf16.mxu0 0
        %2183 = vmatpush2.bf16.msra.mxu0 0
        %2184 = vmatprep.mubr.bf16.mxu0 0
        %2185 = vmatmul.mubr.bf16.gmra.mxu0 %v2151
        %v2186 = vpop.f32.mrf.mxu0
        %v2187 = vadd.f32 %v1485, %v2186
        %v2188 = vpop.f32.mrf.mxu0
        %v2189 = vpop.f32.mrf.mxu0
        %v2190 = vpop.f32.mrf.mxu0
        %2191 = vdwg.mxu0
        %2192 = vadd.xlane.f32.xlu0 %v2187
        %v2193 = vpop.xlane.xlu0 %2192
        %v2194 = vrcp.pop 128.0
        %v2195 = vmul.f32 %v2193, %v2194
        %v2196 = vsub.f32 %v2187, %v2195
        %v2197 = vmul.f32 %v2196, %v2196
        %2198 = vadd.xlane.f32.xlu0 %v2197
        %v2199 = vpop.xlane.xlu0 %2198
        %v2200 = vmul.f32 %v2199, %v2194
        %v2201 = vadd.f32 %v2200, 1e-06
        %v2202 = vrsqrt.pop %v2201
        %v2203 = vmul.f32 %v2196, %v2202
        %v2205 = vlaneseq
        %v2206 = vshrl.u32 %v2205, 7
        %v2207 = vsub.s32 0, %v2206
        %v2208 = vrot.slane %v736, %v2207
        %v2210 = vmul.f32 %v2203, %v2208
        %v2212 = vlaneseq
        %v2213 = vshrl.u32 %v2212, 7
        %v2214 = vsub.s32 0, %v2213
        %v2215 = vrot.slane %v737, %v2214
        %v2217 = vadd.f32 %v2210, %v2215
        %v2218 = vpack.c.bf16 %v2217, %v2217
        %v2219 = vld [vmem:[#allocation13] sm:$0xff]
        %v2220 = vld [vmem:[#allocation13 + $0x8] sm:$0xff]
        %v2221 = vld [vmem:[#allocation13 + $0x10] sm:$0xff]
        %v2222 = vld [vmem:[#allocation13 + $0x18] sm:$0xff]
        %v2223 = vld [vmem:[#allocation13 + $0x20] sm:$0xff]
        %v2224 = vld [vmem:[#allocation13 + $0x28] sm:$0xff]
        %v2225 = vld [vmem:[#allocation13 + $0x30] sm:$0xff]
        %v2226 = vld [vmem:[#allocation13 + $0x38] sm:$0xff]
        %v2227 = vld [vmem:[#allocation13 + $0x40] sm:$0xff]
        %v2228 = vld [vmem:[#allocation13 + $0x48] sm:$0xff]
        %v2229 = vld [vmem:[#allocation13 + $0x50] sm:$0xff]
        %v2230 = vld [vmem:[#allocation13 + $0x58] sm:$0xff]
        %v2231 = vld [vmem:[#allocation13 + $0x60] sm:$0xff]
        %v2232 = vld [vmem:[#allocation13 + $0x68] sm:$0xff]
        %v2233 = vld [vmem:[#allocation13 + $0x70] sm:$0xff]
        %v2234 = vld [vmem:[#allocation13 + $0x78] sm:$0xff]
        %v2235 = vld [vmem:[%s13] sm:$0x3]
        %v2237 = vlaneseq
        %v2238 = vshrl.u32 %v2237, 7
        %v2239 = vsub.s32 0, %v2238
        %v2240 = vrot.slane %v2235, %v2239
        %v2241 = vlaneseq
        %v2242 = vshrl.u32 %v2241, 7
        %v2243 = vsub.s32 1, %v2242
        %v2244 = vrot.slane %v2235, %v2243
        %v2263 = vunpack.c.l.b16 %v2219
        %v2264 = vunpack.c.h.b16 %v2219
        %v2265 = vunpack.c.l.b16 %v2220
        %v2266 = vunpack.c.h.b16 %v2220
        %v2267 = vunpack.c.l.b16 %v2221
        %v2268 = vunpack.c.h.b16 %v2221
        %v2269 = vunpack.c.l.b16 %v2222
        %v2270 = vunpack.c.h.b16 %v2222
        %v2271 = vunpack.c.l.b16 %v2223
        %v2272 = vunpack.c.h.b16 %v2223
        %v2273 = vunpack.c.l.b16 %v2224
        %v2274 = vunpack.c.h.b16 %v2224
        %v2275 = vunpack.c.l.b16 %v2225
        %v2276 = vunpack.c.h.b16 %v2225
        %v2277 = vunpack.c.l.b16 %v2226
        %v2278 = vunpack.c.h.b16 %v2226
        %v2279 = vunpack.c.l.b16 %v2227
        %v2280 = vunpack.c.h.b16 %v2227
        %v2281 = vunpack.c.l.b16 %v2228
        %v2282 = vunpack.c.h.b16 %v2228
        %v2283 = vunpack.c.l.b16 %v2229
        %v2284 = vunpack.c.h.b16 %v2229
        %v2285 = vunpack.c.l.b16 %v2230
        %v2286 = vunpack.c.h.b16 %v2230
        %v2287 = vunpack.c.l.b16 %v2231
        %v2288 = vunpack.c.h.b16 %v2231
        %v2289 = vunpack.c.l.b16 %v2232
        %v2290 = vunpack.c.h.b16 %v2232
        %v2291 = vunpack.c.l.b16 %v2233
        %v2292 = vunpack.c.h.b16 %v2233
        %v2293 = vunpack.c.l.b16 %v2234
        %v2294 = vunpack.c.h.b16 %v2234
        %v2295 = vpack.c.b16 %v2265, %v2263
        %v2296 = vpack.c.b16 %v2266, %v2264
        %v2297 = vpack.c.b16 %v2269, %v2267
        %v2298 = vpack.c.b16 %v2270, %v2268
        %v2299 = vpack.c.b16 %v2273, %v2271
        %v2300 = vpack.c.b16 %v2274, %v2272
        %v2301 = vpack.c.b16 %v2277, %v2275
        %v2302 = vpack.c.b16 %v2278, %v2276
        %v2303 = vpack.c.b16 %v2281, %v2279
        %v2304 = vpack.c.b16 %v2282, %v2280
        %v2305 = vpack.c.b16 %v2285, %v2283
        %v2306 = vpack.c.b16 %v2286, %v2284
        %v2307 = vpack.c.b16 %v2289, %v2287
        %v2308 = vpack.c.b16 %v2290, %v2288
        %v2309 = vpack.c.b16 %v2293, %v2291
        %v2310 = vpack.c.b16 %v2294, %v2292
        %2327 = vmatprep.subr.bf16.mxu0 %v2310
        %2328 = vmatpush1.bf16.msra.mxu0 %v2309
        %2329 = vmatprep.subr.bf16.mxu0 %v2308
        %2330 = vmatpush1.bf16.msra.mxu0 %v2307
        %2331 = vmatprep.subr.bf16.mxu0 %v2306
        %2332 = vmatpush1.bf16.msra.mxu0 %v2305
        %2333 = vmatprep.subr.bf16.mxu0 %v2304
        %2334 = vmatpush1.bf16.msra.mxu0 %v2303
        %2335 = vmatprep.subr.bf16.mxu0 %v2302
        %2336 = vmatpush1.bf16.msra.mxu0 %v2301
        %2337 = vmatprep.subr.bf16.mxu0 %v2300
        %2338 = vmatpush1.bf16.msra.mxu0 %v2299
        %2339 = vmatprep.subr.bf16.mxu0 %v2298
        %2340 = vmatpush1.bf16.msra.mxu0 %v2297
        %2341 = vmatprep.subr.bf16.mxu0 %v2296
        %2342 = vmatpush1.bf16.msra.mxu0 %v2295
        %2343 = vmatprep.subr.bf16.mxu0 0
        %2344 = vmatpush2.bf16.msra.mxu0 0
        %2345 = vmatprep.subr.bf16.mxu0 0
        %2346 = vmatpush2.bf16.msra.mxu0 0
        %2347 = vmatprep.subr.bf16.mxu0 0
        %2348 = vmatpush2.bf16.msra.mxu0 0
        %2349 = vmatprep.subr.bf16.mxu0 0
        %2350 = vmatpush2.bf16.msra.mxu0 0
        %2351 = vmatprep.subr.bf16.mxu0 0
        %2352 = vmatpush2.bf16.msra.mxu0 0
        %2353 = vmatprep.subr.bf16.mxu0 0
        %2354 = vmatpush2.bf16.msra.mxu0 0
        %2355 = vmatprep.subr.bf16.mxu0 0
        %2356 = vmatpush2.bf16.msra.mxu0 0
        %2357 = vmatprep.subr.bf16.mxu0 0
        %2358 = vmatpush2.bf16.msra.mxu0 0
        %2359 = vmatprep.mubr.bf16.mxu0 0
        %2360 = vmatmul.mubr.bf16.gmra.mxu0 %v2218
        %v2361 = vpop.f32.mrf.mxu0
        %v2362 = vadd.f32 %v2240, %v2361
        %v2363 = vpop.f32.mrf.mxu0
        %v2364 = vadd.f32 %v2244, %v2363
        %v2365 = vpop.f32.mrf.mxu0
        %v2366 = vpop.f32.mrf.mxu0
        %2367 = vdwg.mxu0
        %v2368 = vmul.f32 %v2362, 0.5
        %v2369 = vmul.f32 %v2364, 0.5
        %v2370 = vmul.f32 %v2362, 0.044715
        %v2371 = vmul.f32 %v2364, 0.044715
        %v2372 = vmul.f32 %v2370, %v2362
        %v2373 = vmul.f32 %v2371, %v2364
        %v2374 = vmul.f32 %v2372, %v2362
        %v2375 = vmul.f32 %v2373, %v2364
        %v2376 = vadd.f32 %v2362, %v2374
        %v2377 = vadd.f32 %v2364, %v2375
        %v2378 = vmul.f32 %v2376, 0.7978846
        %v2379 = vmul.f32 %v2377, 0.7978846
        %v2380 = vtanh.pop %v2378
        %v2381 = vtanh.pop %v2379
        %v2382 = vadd.f32 %v2380, 1.0
        %v2383 = vadd.f32 %v2381, 1.0
        %v2384 = vmul.f32 %v2368, %v2382
        %v2385 = vmul.f32 %v2369, %v2383
        %v2386 = vpack.c.bf16 %v2384, %v2384
        %v2387 = vpack.c.bf16 %v2385, %v2385
        %v2388 = vld [vmem:[#allocation14] sm:$0xf]
        %v2389 = vld [vmem:[#allocation14 + $0x4] sm:$0xf]
        %v2390 = vld [vmem:[#allocation14 + $0x8] sm:$0xf]
        %v2391 = vld [vmem:[#allocation14 + $0xc] sm:$0xf]
        %v2392 = vld [vmem:[#allocation14 + $0x10] sm:$0xf]
        %v2393 = vld [vmem:[#allocation14 + $0x14] sm:$0xf]
        %v2394 = vld [vmem:[#allocation14 + $0x18] sm:$0xf]
        %v2395 = vld [vmem:[#allocation14 + $0x1c] sm:$0xf]
        %v2396 = vld [vmem:[#allocation14 + $0x20] sm:$0xf]
        %v2397 = vld [vmem:[#allocation14 + $0x24] sm:$0xf]
        %v2398 = vld [vmem:[#allocation14 + $0x28] sm:$0xf]
        %v2399 = vld [vmem:[#allocation14 + $0x2c] sm:$0xf]
        %v2400 = vld [vmem:[#allocation14 + $0x30] sm:$0xf]
        %v2401 = vld [vmem:[#allocation14 + $0x34] sm:$0xf]
        %v2402 = vld [vmem:[#allocation14 + $0x38] sm:$0xf]
        %v2403 = vld [vmem:[#allocation14 + $0x3c] sm:$0xf]
        %v2404 = vld [vmem:[#allocation14 + $0x40] sm:$0xf]
        %v2405 = vld [vmem:[#allocation14 + $0x44] sm:$0xf]
        %v2406 = vld [vmem:[#allocation14 + $0x48] sm:$0xf]
        %v2407 = vld [vmem:[#allocation14 + $0x4c] sm:$0xf]
        %v2408 = vld [vmem:[#allocation14 + $0x50] sm:$0xf]
        %v2409 = vld [vmem:[#allocation14 + $0x54] sm:$0xf]
        %v2410 = vld [vmem:[#allocation14 + $0x58] sm:$0xf]
        %v2411 = vld [vmem:[#allocation14 + $0x5c] sm:$0xf]
        %v2412 = vld [vmem:[#allocation14 + $0x60] sm:$0xf]
        %v2413 = vld [vmem:[#allocation14 + $0x64] sm:$0xf]
        %v2414 = vld [vmem:[#allocation14 + $0x68] sm:$0xf]
        %v2415 = vld [vmem:[#allocation14 + $0x6c] sm:$0xf]
        %v2416 = vld [vmem:[#allocation14 + $0x70] sm:$0xf]
        %v2417 = vld [vmem:[#allocation14 + $0x74] sm:$0xf]
        %v2418 = vld [vmem:[#allocation14 + $0x78] sm:$0xf]
        %v2419 = vld [vmem:[#allocation14 + $0x7c] sm:$0xf]
        %v2420 = vld [vmem:[%s15] sm:$0x1]
        %v2422 = vlaneseq
        %v2423 = vshrl.u32 %v2422, 7
        %v2424 = vsub.s32 0, %v2423
        %v2425 = vrot.slane %v2420, %v2424
        %v2459 = vunpack.c.l.b16 %v2388
        %v2460 = vunpack.c.l.b16 %v2389
        %v2461 = vunpack.c.l.b16 %v2390
        %v2462 = vunpack.c.l.b16 %v2391
        %v2463 = vunpack.c.l.b16 %v2392
        %v2464 = vunpack.c.l.b16 %v2393
        %v2465 = vunpack.c.l.b16 %v2394
        %v2466 = vunpack.c.l.b16 %v2395
        %v2467 = vunpack.c.l.b16 %v2396
        %v2468 = vunpack.c.l.b16 %v2397
        %v2469 = vunpack.c.l.b16 %v2398
        %v2470 = vunpack.c.l.b16 %v2399
        %v2471 = vunpack.c.l.b16 %v2400
        %v2472 = vunpack.c.l.b16 %v2401
        %v2473 = vunpack.c.l.b16 %v2402
        %v2474 = vunpack.c.l.b16 %v2403
        %v2475 = vunpack.c.l.b16 %v2404
        %v2476 = vunpack.c.l.b16 %v2405
        %v2477 = vunpack.c.l.b16 %v2406
        %v2478 = vunpack.c.l.b16 %v2407
        %v2479 = vunpack.c.l.b16 %v2408
        %v2480 = vunpack.c.l.b16 %v2409
        %v2481 = vunpack.c.l.b16 %v2410
        %v2482 = vunpack.c.l.b16 %v2411
        %v2483 = vunpack.c.l.b16 %v2412
        %v2484 = vunpack.c.l.b16 %v2413
        %v2485 = vunpack.c.l.b16 %v2414
        %v2486 = vunpack.c.l.b16 %v2415
        %v2487 = vunpack.c.l.b16 %v2416
        %v2488 = vunpack.c.l.b16 %v2417
        %v2489 = vunpack.c.l.b16 %v2418
        %v2490 = vunpack.c.l.b16 %v2419
        %v2491 = vpack.c.b16 %v2460, %v2459
        %v2492 = vpack.c.b16 %v2462, %v2461
        %v2493 = vpack.c.b16 %v2464, %v2463
        %v2494 = vpack.c.b16 %v2466, %v2465
        %v2495 = vpack.c.b16 %v2468, %v2467
        %v2496 = vpack.c.b16 %v2470, %v2469
        %v2497 = vpack.c.b16 %v2472, %v2471
        %v2498 = vpack.c.b16 %v2474, %v2473
        %v2499 = vpack.c.b16 %v2476, %v2475
        %v2500 = vpack.c.b16 %v2478, %v2477
        %v2501 = vpack.c.b16 %v2480, %v2479
        %v2502 = vpack.c.b16 %v2482, %v2481
        %v2503 = vpack.c.b16 %v2484, %v2483
        %v2504 = vpack.c.b16 %v2486, %v2485
        %v2505 = vpack.c.b16 %v2488, %v2487
        %v2506 = vpack.c.b16 %v2490, %v2489
        %2523 = vmatprep.subr.bf16.mxu0 0
        %2524 = vmatpush1.bf16.msra.mxu0 %v2498
        %2525 = vmatprep.subr.bf16.mxu0 0
        %2526 = vmatpush1.bf16.msra.mxu0 %v2497
        %2527 = vmatprep.subr.bf16.mxu0 0
        %2528 = vmatpush1.bf16.msra.mxu0 %v2496
        %2529 = vmatprep.subr.bf16.mxu0 0
        %2530 = vmatpush1.bf16.msra.mxu0 %v2495
        %2531 = vmatprep.subr.bf16.mxu0 0
        %2532 = vmatpush1.bf16.msra.mxu0 %v2494
        %2533 = vmatprep.subr.bf16.mxu0 0
        %2534 = vmatpush1.bf16.msra.mxu0 %v2493
        %2535 = vmatprep.subr.bf16.mxu0 0
        %2536 = vmatpush1.bf16.msra.mxu0 %v2492
        %2537 = vmatprep.subr.bf16.mxu0 0
        %2538 = vmatpush1.bf16.msra.mxu0 %v2491
        %2539 = vmatprep.subr.bf16.mxu0 0
        %2540 = vmatpush2.bf16.msra.mxu0 %v2506
        %2541 = vmatprep.subr.bf16.mxu0 0
        %2542 = vmatpush2.bf16.msra.mxu0 %v2505
        %2543 = vmatprep.subr.bf16.mxu0 0
        %2544 = vmatpush2.bf16.msra.mxu0 %v2504
        %2545 = vmatprep.subr.bf16.mxu0 0
        %2546 = vmatpush2.bf16.msra.mxu0 %v2503
        %2547 = vmatprep.subr.bf16.mxu0 0
        %2548 = vmatpush2.bf16.msra.mxu0 %v2502
        %2549 = vmatprep.subr.bf16.mxu0 0
        %2550 = vmatpush2.bf16.msra.mxu0 %v2501
        %2551 = vmatprep.subr.bf16.mxu0 0
        %2552 = vmatpush2.bf16.msra.mxu0 %v2500
        %2553 = vmatprep.subr.bf16.mxu0 0
        %2554 = vmatpush2.bf16.msra.mxu0 %v2499
        %2555 = vmatprep.mubr.bf16.mxu0 %v2387
        %2556 = vmatmul.mubr.bf16.gmra.mxu0 %v2386
        %v2557 = vpop.f32.mrf.mxu0
        %v2558 = vadd.f32 %v2425, %v2557
        %v2559 = vpop.f32.mrf.mxu0
        %v2560 = vpop.f32.mrf.mxu0
        %v2561 = vpop.f32.mrf.mxu0
        %2562 = vdwg.mxu0
        %v2563 = vadd.f32 %v2558, %v2187
        %v2564 = vpack.c.bf16 %v2563, %v2563
        %2565 = vst [vmem:[%s663] sm:$0xf] %v2564
        %s2566 = sand.u32 %s393, 1
        %s2567 = scalar_lea.sflag [#allocation4], %s2566
        %s2568 = sand.u32 %s393, 1
        %s2569 = smul.addr %s2568, 4
        %s2570 = scalar_lea.vmem [#allocation16], %s2569
        // Predicated region
        $region117: #{tpu_custom_call.1} parent=83 // pred_check
          %p2571 = pneg %p403
        $region118: #{tpu_custom_call.1} parent=83 // pred_check_branch
          %2573 = sbr.rel (%p2571) target = $region120
        $region119: #{tpu_custom_call.1} parent=83 // pred_region
          %s2575 = ssub.s32 64, 64
          %2576 = vsyncadd %s2567, %s2575
          %s2577 = smul.addr %s39, 64
          %s2578 = scalar_lea.hbm %s16, %s2577
          %s2580 = sshll.u32 %s2570, 4
          %s2581 = int_to_ptr.vmem [resolvable:$true] %s2580
          %2583 = dma.vmem_to_hbm [thread:$0]  %s2581, 64, %s2578, %s2567
        $region120: #{tpu_custom_call.1} parent=83 // pred_fallthru
          _
      $region84: #{tpu_custom_call.1} parent=5 // pred_fallthru
        _
      %p2584 = scmp.le.s32.totalorder 2, %s34
      // Predicated region
      $region121: #{tpu_custom_call.1} parent=5 // pred_check
        %p2585 = pneg %p2584
      $region122: #{tpu_custom_call.1} parent=5 // pred_check_branch
        %2587 = sbr.rel (%p2585) target = $region124
      $region123: #{tpu_custom_call.1} parent=5 // pred_region
        %s2588 = ssub.s32 %s34, 2
        // Predicated region
        $region125: #{tpu_custom_call.1} parent=123 // pred_check
          %p2589 = pneg %p409
        $region126: #{tpu_custom_call.1} parent=123 // pred_check_branch
          %2591 = sbr.rel (%p2589) target = $region128
        $region127: #{tpu_custom_call.1} parent=123 // pred_region
          %s2592 = sand.u32 %s394, 1
          %s2593 = scalar_lea.sflag [#allocation4], %s2592
          %s2594 = sand.u32 %s394, 1
          %s2595 = smul.addr %s2594, 4
          %s2596 = scalar_lea.vmem [#allocation16], %s2595
          %2597 = dma.done %s2593, 64
        $region128: #{tpu_custom_call.1} parent=123 // pred_fallthru
          _
      $region124: #{tpu_custom_call.1} parent=5 // pred_fallthru
        _
    $region6: #{tpu_custom_call.1} parent=1 // loop_footer
      %s38 = sadd.s32 1, %s34
    $region7: #{tpu_custom_call.1} parent=1 // loop_footer_branch
      %33 = sbr.rel target = $region3
    $region8: #{tpu_custom_call.1} parent=1 // loop_exit
      _
    %2598 = vsyncpa [#allocation3], 1
    %s2599 = scalar_lea.sflag [#allocation3], 1
    %2600 = vsyncpa %s2599, 1
    %2601 = vsyncpa [#allocation6], 1
    %s2602 = scalar_lea.sflag [#allocation6], 1
    %2603 = vsyncpa %s2602, 1
    %2604 = vsyncpa [#allocation9], 1
    %2605 = vsyncpa [#allocation12], 1
    %2606 = vsyncpa [#allocation15], 1
    %2607 = vsyncpa [#allocation4], 1
    %s2608 = scalar_lea.sflag [#allocation4], 1
    %2609 = vsyncpa %s2608, 1

</llo_original>
